<compile_context>
chip_gen: v7x
topology: tpu7x:2x2x1
jax: 0.10.0
libtpu: 0.0.40
codegen_flags: <defaults>
</compile_context>

<pallas_src>
import functools

import jax
import jax.numpy as jnp
import numpy as np
from jax.experimental import pallas as pl
from jax.experimental.pallas import tpu as pltpu

H1 = 256                 # FaceRecon trunk width (layer 1)
H2 = 256                 # FaceRecon trunk width (layer 2)
N_FACE_DELTA = 18        # 6 faces x 3 shift components
N_LOG_VAR = 6
N_MASK = 6
FACE_OUT = N_FACE_DELTA + N_LOG_VAR + N_MASK          # 30 (original face head width)

# fused output slab layout: [face_shift(18) | delta(18) | log_var(6) | recon(3)]
OUT_W = N_FACE_DELTA + N_FACE_DELTA + N_LOG_VAR + 3   # 45
_SHIFT_LO, _SHIFT_HI = 0, 18
_DELTA_LO, _DELTA_HI = 18, 36
_LVAR_LO, _LVAR_HI = 36, 42
_RECON_LO, _RECON_HI = 42, 45


# ----------------------------------------------------------------------------- kernel
def _resnormal_kernel(pts_ref, nocs_ref, m_ref, c_ref,
                      w1p_ref, w1n_ref, b1_ref,
                      w2_ref, b2_ref, wh_ref, bh_ref, out_ref):
    pts = pts_ref[...]                               # (TN, 3) f32, un-centered points
    nocs = nocs_ref[...]                             # (TN, 3) f32

    # face_shift_prior in f32 on the VPU (no extra f32 MXU pass):
    #   fsp = nocs @ M + C, expanded as three rank-1 broadcast-multiplies.
    m = m_ref[...]                                   # (3, 18) f32, per batch
    fsp = (nocs[:, 0:1] * m[0:1, :]
           + nocs[:, 1:2] * m[1:2, :]
           + nocs[:, 2:3] * m[2:3, :]
           + c_ref[...])                             # (TN, 18) f32

    # layer 1 (folded): relu(pts_c @ W1p + fsp @ W1f + gg @ W1g + b1)
    #   == relu(points @ W1p + nocs @ W1n + b_eff)
    # with centering, prior constants and global features folded into the
    # per-batch W1n / b_eff computed once in the wrapper.
    h = (jnp.dot(pts.astype(jnp.bfloat16), w1p_ref[...],
                 preferred_element_type=jnp.float32)
         + jnp.dot(nocs.astype(jnp.bfloat16), w1n_ref[...],
                   preferred_element_type=jnp.float32)
         + b1_ref[...])
    h = jnp.maximum(h, 0.0).astype(jnp.bfloat16)

    # layer 2 (256x256 bf16 — ideal MXU slab, left untouched)
    h = jnp.dot(h, w2_ref[...], preferred_element_type=jnp.float32) + b2_ref[...]
    h = jnp.maximum(h, 0.0).astype(jnp.bfloat16)

    # widened fused head: [delta | delta | log_var | recon]; the recon bias columns
    # already carry +pts_mean (per batch).
    head = jnp.dot(h, wh_ref[...], preferred_element_type=jnp.float32) + bh_ref[...]

    # single lane-packed output slab; then fix up the first 18 columns to delta + fsp.
    out_ref[...] = head.astype(out_ref.dtype)
    out_ref[:, :N_FACE_DELTA] = (head[:, :N_FACE_DELTA] + fsp).astype(out_ref.dtype)


# ----------------------------------------------------------------------------- wrapper
def res_normal_net_forward(params, nocs_pred, p_green_R, p_red_R, f_green_R, f_red_R,
                           viewGlobalFeats, points, mean_shape, *, tile_n=2048):
    del f_green_R, f_red_R   # only used when use_rectify_normal != 0 (here it is 0)
    B, N, _ = points.shape

    # ---- per-batch constants for the face-shift prior:  fsp = nocs @ M + C ---------
    diag = jnp.linalg.norm(mean_shape, axis=-1)                                   # (B,)
    green = p_green_R / jnp.linalg.norm(p_green_R, axis=-1, keepdims=True)        # +y axis
    red = p_red_R / jnp.linalg.norm(p_red_R, axis=-1, keepdims=True)              # +x axis
    yellow = jnp.cross(red, green)                                                # +z axis

    ax = jnp.array([0, 0, 0, 1, 1, 1, 2, 2, 2, 0, 0, 0, 1, 1, 1, 2, 2, 2], jnp.int32)
    sgn = jnp.array([-1.0] * 9 + [1.0] * 9, jnp.float32)
    nrm = jnp.concatenate([red, green, yellow, -red, -green, -yellow], axis=-1)   # (B,18)
    half = mean_shape[:, ax] / 2.0                                                # (B,18)
    Cvec = half * nrm                                                             # (B,18)
    Cmat = Cvec[:, None, :]                                                       # (B,1,18)
    gsel = jnp.eye(3, dtype=jnp.float32)[:, ax]                                   # (3,18)
    Mmat = diag[:, None, None] * sgn[None, None, :] * nrm[:, None, :] * gsel[None]  # (B,3,18)

    # ---- fold centering / prior / global feats / bias of layer 1 into per-batch ----
    pm = points.mean(axis=1)                                                      # (B,3)
    gg = jnp.concatenate([viewGlobalFeats, viewGlobalFeats], axis=-1)             # (B,2Cg)
    W1n = jnp.einsum('bik,kh->bih', Mmat, params["w1f"])                          # (B,3,H1)
    b1_eff = (Cvec @ params["w1f"] + gg @ params["w1g"] + params["b1"]
              - pm @ params["w1p"])[:, None, :]                                   # (B,1,H1)

    # ---- widened fused head [delta | delta | log_var | recon]; fold pts_mean -------
    wf_d = params["wf"][:, :N_FACE_DELTA]
    wf_lv = params["wf"][:, N_FACE_DELTA:N_FACE_DELTA + N_LOG_VAR]
    wh = jnp.concatenate([wf_d, wf_d, wf_lv, params["wr"]], axis=1)               # (H2,45)
    bf_d = params["bf"][:, :N_FACE_DELTA]
    bf_lv = params["bf"][:, N_FACE_DELTA:N_FACE_DELTA + N_LOG_VAR]
    bh_base = jnp.concatenate([bf_d, bf_d, bf_lv, params["br"]], axis=1)          # (1,45)
    bh_eff = (bh_base + jnp.pad(pm, ((0, 0), (OUT_W - 3, 0))))[:, None, :]        # (B,1,45)

    w1p = params["w1p"].astype(jnp.bfloat16)
    W1n = W1n.astype(jnp.bfloat16)
    w2 = params["w2"].astype(jnp.bfloat16)
    wh = wh.astype(jnp.bfloat16)

    # ---- point-axis tiling: big tiles (grid-step overhead dominates here) ----------
    # Ragged last tile (N % tn != 0) is handled by Pallas partial-block masking.
    tn = N if N <= tile_n else (tile_n // 8) * 8
    grid = (B, pl.cdiv(N, tn))

    in_specs = [
        pl.BlockSpec((None, tn, 3), lambda b, t: (b, t, 0)),            # points
        pl.BlockSpec((None, tn, 3), lambda b, t: (b, t, 0)),            # nocs_pred
        pl.BlockSpec((None, 3, N_FACE_DELTA), lambda b, t: (b, 0, 0)),  # Mmat (per batch)
        pl.BlockSpec((None, 1, N_FACE_DELTA), lambda b, t: (b, 0, 0)),  # Cvec (per batch)
        pl.BlockSpec((3, H1), lambda b, t: (0, 0)),                     # w1p (shared)
        pl.BlockSpec((None, 3, H1), lambda b, t: (b, 0, 0)),            # W1n (per batch)
        pl.BlockSpec((None, 1, H1), lambda b, t: (b, 0, 0)),            # b1_eff (per batch)
        pl.BlockSpec((H1, H2), lambda b, t: (0, 0)),                    # w2
        pl.BlockSpec((1, H2), lambda b, t: (0, 0)),                     # b2
        pl.BlockSpec((H2, OUT_W), lambda b, t: (0, 0)),                 # wh (fused head)
        pl.BlockSpec((None, 1, OUT_W), lambda b, t: (b, 0, 0)),         # bh_eff (per batch)
    ]
    out_spec = pl.BlockSpec((None, tn, OUT_W), lambda b, t: (b, t, 0))

    out = pl.pallas_call(
        _resnormal_kernel,
        grid=grid,
        in_specs=in_specs,
        out_specs=out_spec,
        out_shape=jax.ShapeDtypeStruct((B, N, OUT_W), jnp.float32),
        compiler_params=pltpu.CompilerParams(
            dimension_semantics=("parallel", "parallel")),
    )(points, nocs_pred, Mmat, Cmat, w1p, W1n, b1_eff, w2, params["b2"], wh, bh_eff)

    face_shift = out[..., _SHIFT_LO:_SHIFT_HI]
    face_shift_delta = out[..., _DELTA_LO:_DELTA_HI]
    face_log_var = out[..., _LVAR_LO:_LVAR_HI]
    recon = out[..., _RECON_LO:_RECON_HI]
    return face_shift, recon, face_shift_delta, face_log_var


# ----------------------------------------------------------------------------- params
def init_params(key, cg):
    din = 3 + 18 + 2 * cg
    ks = jax.random.split(key, 4)
    w1 = jax.random.normal(ks[0], (din, H1), jnp.float32) * (1.0 / np.sqrt(din))
    return dict(
        w1p=w1[:3], w1f=w1[3:21], w1g=w1[21:],
        b1=jnp.zeros((1, H1), jnp.float32),
        w2=jax.random.normal(ks[1], (H1, H2), jnp.float32) * (1.0 / np.sqrt(H1)),
        b2=jnp.zeros((1, H2), jnp.float32),
        wr=jax.random.normal(ks[2], (H2, 3), jnp.float32) * (1.0 / np.sqrt(H2)),
        br=jnp.zeros((1, 3), jnp.float32),
        wf=jax.random.normal(ks[3], (H2, FACE_OUT), jnp.float32) * (1.0 / np.sqrt(H2)),
        bf=jnp.zeros((1, FACE_OUT), jnp.float32),
    )


# ----------------------------------------------------------------------------- reference
def reference_forward(params, nocs_pred, p_green_R, p_red_R, f_green_R, f_red_R,
                      viewGlobalFeats, points, mean_shape):
    B, N, _ = points.shape
    diag = jnp.linalg.norm(mean_shape, axis=-1)[:, None, None]
    green = p_green_R / jnp.linalg.norm(p_green_R, axis=-1, keepdims=True)
    red = p_red_R / jnp.linalg.norm(p_red_R, axis=-1, keepdims=True)
    yellow = jnp.cross(red, green)
    nocs_abs = nocs_pred * diag
    half = (mean_shape / 2.0)[:, None, :]
    d_xp = half[..., 0:1] - nocs_abs[..., 0:1]
    d_yp = half[..., 1:2] - nocs_abs[..., 1:2]
    d_zp = half[..., 2:3] - nocs_abs[..., 2:3]
    d_xn = half[..., 0:1] + nocs_abs[..., 0:1]
    d_yn = half[..., 1:2] + nocs_abs[..., 1:2]
    d_zn = half[..., 2:3] + nocs_abs[..., 2:3]
    r, g_, y = red[:, None, :], green[:, None, :], yellow[:, None, :]
    fsp = jnp.concatenate(
        [d_xp * r, d_yp * g_, d_zp * y, -d_xn * r, -d_yn * g_, -d_zn * y], axis=-1)
    pts_mean = points.mean(axis=1, keepdims=True)
    pts_c = points - pts_mean
    gg = jnp.broadcast_to(
        jnp.concatenate([viewGlobalFeats, viewGlobalFeats], -1)[:, None, :],
        (B, N, 2 * viewGlobalFeats.shape[-1]))
    x = jnp.concatenate([pts_c, fsp, gg], axis=-1)
    w1 = jnp.concatenate([params["w1p"], params["w1f"], params["w1g"]], axis=0)
    h = jax.nn.relu(x @ w1 + params["b1"])
    h = jax.nn.relu(h @ params["w2"] + params["b2"])
    recon = h @ params["wr"] + params["br"] + pts_mean
    face = h @ params["wf"] + params["bf"]
    delta = face[..., :N_FACE_DELTA]
    log_var = face[..., N_FACE_DELTA:N_FACE_DELTA + N_LOG_VAR]
    return delta + fsp, recon, delta, log_var


# ----------------------------------------------------------------------------- main
if __name__ == "__main__":
    key = jax.random.PRNGKey(0)
    B, N, Cg = 2, 1024, 32
    ks = jax.random.split(key, 9)

    nocs_pred = jax.random.uniform(ks[0], (B, N, 3), jnp.float32, -0.5, 0.5)
    p_green_R = jax.random.normal(ks[1], (B, 3), jnp.float32)
    p_red_R = jax.random.normal(ks[2], (B, 3), jnp.float32)
    f_green_R = jax.nn.sigmoid(jax.random.normal(ks[3], (B, 1), jnp.float32))
    f_red_R = jax.nn.sigmoid(jax.random.normal(ks[4], (B, 1), jnp.float32))
    viewGlobalFeats = jax.random.normal(ks[5], (B, Cg), jnp.float32)
    points = jax.random.normal(ks[6], (B, N, 3), jnp.float32)
    mean_shape = jax.random.uniform(ks[7], (B, 3), jnp.float32, 0.1, 0.5)

    params = init_params(ks[8], Cg)

    fwd = functools.partial(res_normal_net_forward, params, tile_n=2048)
    outs = fwd(nocs_pred, p_green_R, p_red_R, f_green_R, f_red_R,
               viewGlobalFeats, points, mean_shape)
    outs = jax.block_until_ready(outs)

    refs = reference_forward(params, nocs_pred, p_green_R, p_red_R, f_green_R, f_red_R,
                             viewGlobalFeats, points, mean_shape)
    names = ("face_shift", "recon", "face_shift_delta", "face_log_var")
    for nm, o, r in zip(names, outs, refs):
        o_np, r_np = np.asarray(o), np.asarray(r)
        assert o_np.shape == r_np.shape, (nm, o_np.shape, r_np.shape)
        assert np.all(np.isfinite(o_np)), nm
        # NOTE: trunk runs in bf16 (f32 accumulation) -> ~0.5% relative error vs f32 ref.
        np.testing.assert_allclose(o_np, r_np, rtol=5e-2, atol=5e-2, err_msg=nm)

    print("KERNEL_OK")
</pallas_src>

<mosaic_0001>
module attributes {stable_mosaic.version = 11 : i64} {
  func.func @_resnormal_kernel(%arg0: i32, %arg1: i32, %arg2: memref<1x1024x3xf32, #tpu.memory_space<vmem>>, %arg3: memref<1x1024x3xf32, #tpu.memory_space<vmem>>, %arg4: memref<1x3x18xf32, #tpu.memory_space<vmem>>, %arg5: memref<1x1x18xf32, #tpu.memory_space<vmem>>, %arg6: memref<3x256xbf16, #tpu.memory_space<vmem>>, %arg7: memref<1x3x256xbf16, #tpu.memory_space<vmem>>, %arg8: memref<1x1x256xf32, #tpu.memory_space<vmem>>, %arg9: memref<256x256xbf16, #tpu.memory_space<vmem>>, %arg10: memref<1x256xf32, #tpu.memory_space<vmem>>, %arg11: memref<256x45xbf16, #tpu.memory_space<vmem>>, %arg12: memref<1x1x45xf32, #tpu.memory_space<vmem>>, %arg13: memref<1x1024x45xf32, #tpu.memory_space<vmem>>) attributes {dimension_semantics = [#tpu.dimension_semantics<parallel>, #tpu.dimension_semantics<parallel>], iteration_bounds = array<i64: 2, 1>, scalar_prefetch = 0 : i64, scratch_operands = 0 : i64, tpu.core_type = #tpu.core_type<tc>, window_params = [{transform_indices = @transform_0, window_bounds = array<i64: 1, 1024, 3>}, {transform_indices = @transform_1, window_bounds = array<i64: 1, 1024, 3>}, {transform_indices = @transform_2, window_bounds = array<i64: 1, 3, 18>}, {transform_indices = @transform_3, window_bounds = array<i64: 1, 1, 18>}, {pipeline_mode = #tpu.pipeline_mode<synchronous>, transform_indices = @transform_4, window_bounds = array<i64: 3, 256>}, {transform_indices = @transform_5, window_bounds = array<i64: 1, 3, 256>}, {transform_indices = @transform_6, window_bounds = array<i64: 1, 1, 256>}, {pipeline_mode = #tpu.pipeline_mode<synchronous>, transform_indices = @transform_7, window_bounds = array<i64: 256, 256>}, {pipeline_mode = #tpu.pipeline_mode<synchronous>, transform_indices = @transform_8, window_bounds = array<i64: 1, 256>}, {pipeline_mode = #tpu.pipeline_mode<synchronous>, transform_indices = @transform_9, window_bounds = array<i64: 256, 45>}, {transform_indices = @transform_10, window_bounds = array<i64: 1, 1, 45>}, {transform_indices = @transform_11, window_bounds = array<i64: 1, 1024, 45>}]} {
    %c0 = arith.constant 0 : index
    %c0_0 = arith.constant 0 : index
    %c0_1 = arith.constant 0 : index
    %0 = vector.load %arg2[%c0, %c0_0, %c0_1] : memref<1x1024x3xf32, #tpu.memory_space<vmem>>, vector<1x1024x3xf32>
    %1 = vector.shape_cast %0 : vector<1x1024x3xf32> to vector<1024x3xf32>
    %c0_2 = arith.constant 0 : index
    %c0_3 = arith.constant 0 : index
    %c0_4 = arith.constant 0 : index
    %2 = vector.load %arg3[%c0_2, %c0_3, %c0_4] : memref<1x1024x3xf32, #tpu.memory_space<vmem>>, vector<1x1024x3xf32>
    %3 = vector.shape_cast %2 : vector<1x1024x3xf32> to vector<1024x3xf32>
    %c0_5 = arith.constant 0 : index
    %c0_6 = arith.constant 0 : index
    %c0_7 = arith.constant 0 : index
    %4 = vector.load %arg4[%c0_5, %c0_6, %c0_7] : memref<1x3x18xf32, #tpu.memory_space<vmem>>, vector<1x3x18xf32>
    %5 = vector.shape_cast %4 : vector<1x3x18xf32> to vector<3x18xf32>
    %6 = vector.extract_strided_slice %3 {offsets = [0, 0], sizes = [1024, 1], strides = [1, 1]} : vector<1024x3xf32> to vector<1024x1xf32>
    %7 = vector.extract_strided_slice %5 {offsets = [0, 0], sizes = [1, 18], strides = [1, 1]} : vector<3x18xf32> to vector<1x18xf32>
    %8 = vector.broadcast %6 : vector<1024x1xf32> to vector<1024x18xf32>
    %9 = vector.broadcast %7 : vector<1x18xf32> to vector<1024x18xf32>
    %10 = arith.mulf %8, %9 : vector<1024x18xf32>
    %11 = vector.extract_strided_slice %3 {offsets = [0, 1], sizes = [1024, 1], strides = [1, 1]} : vector<1024x3xf32> to vector<1024x1xf32>
    %12 = vector.extract_strided_slice %5 {offsets = [1, 0], sizes = [1, 18], strides = [1, 1]} : vector<3x18xf32> to vector<1x18xf32>
    %13 = vector.broadcast %11 : vector<1024x1xf32> to vector<1024x18xf32>
    %14 = vector.broadcast %12 : vector<1x18xf32> to vector<1024x18xf32>
    %15 = arith.mulf %13, %14 : vector<1024x18xf32>
    %16 = arith.addf %10, %15 : vector<1024x18xf32>
    %17 = vector.extract_strided_slice %3 {offsets = [0, 2], sizes = [1024, 1], strides = [1, 1]} : vector<1024x3xf32> to vector<1024x1xf32>
    %18 = vector.extract_strided_slice %5 {offsets = [2, 0], sizes = [1, 18], strides = [1, 1]} : vector<3x18xf32> to vector<1x18xf32>
    %19 = vector.broadcast %17 : vector<1024x1xf32> to vector<1024x18xf32>
    %20 = vector.broadcast %18 : vector<1x18xf32> to vector<1024x18xf32>
    %21 = arith.mulf %19, %20 : vector<1024x18xf32>
    %22 = arith.addf %16, %21 : vector<1024x18xf32>
    %c0_8 = arith.constant 0 : index
    %c0_9 = arith.constant 0 : index
    %c0_10 = arith.constant 0 : index
    %23 = vector.load %arg5[%c0_8, %c0_9, %c0_10] : memref<1x1x18xf32, #tpu.memory_space<vmem>>, vector<1x1x18xf32>
    %24 = vector.shape_cast %23 : vector<1x1x18xf32> to vector<1x18xf32>
    %25 = vector.broadcast %24 : vector<1x18xf32> to vector<1024x18xf32>
    %26 = arith.addf %22, %25 : vector<1024x18xf32>
    %27 = arith.truncf %1 : vector<1024x3xf32> to vector<1024x3xbf16>
    %c0_11 = arith.constant 0 : index
    %c0_12 = arith.constant 0 : index
    %28 = vector.load %arg6[%c0_11, %c0_12] : memref<3x256xbf16, #tpu.memory_space<vmem>>, vector<3x256xbf16>
    %cst = arith.constant dense<0.000000e+00> : vector<1024x256xf32>
    %29 = tpu.matmul %27, %28, %cst {dimension_numbers = #tpu.dot_dimension_numbers<[1], [0], [0], [1], [0, 0, 1, 1], [], []>} : vector<1024x3xbf16>, vector<3x256xbf16>, vector<1024x256xf32> -> vector<1024x256xf32>
    %30 = arith.truncf %3 : vector<1024x3xf32> to vector<1024x3xbf16>
    %c0_13 = arith.constant 0 : index
    %c0_14 = arith.constant 0 : index
    %c0_15 = arith.constant 0 : index
    %31 = vector.load %arg7[%c0_13, %c0_14, %c0_15] : memref<1x3x256xbf16, #tpu.memory_space<vmem>>, vector<1x3x256xbf16>
    %32 = vector.shape_cast %31 : vector<1x3x256xbf16> to vector<3x256xbf16>
    %cst_16 = arith.constant dense<0.000000e+00> : vector<1024x256xf32>
    %33 = tpu.matmul %30, %32, %cst_16 {dimension_numbers = #tpu.dot_dimension_numbers<[1], [0], [0], [1], [0, 0, 1, 1], [], []>} : vector<1024x3xbf16>, vector<3x256xbf16>, vector<1024x256xf32> -> vector<1024x256xf32>
    %34 = arith.addf %29, %33 : vector<1024x256xf32>
    %c0_17 = arith.constant 0 : index
    %c0_18 = arith.constant 0 : index
    %c0_19 = arith.constant 0 : index
    %35 = vector.load %arg8[%c0_17, %c0_18, %c0_19] : memref<1x1x256xf32, #tpu.memory_space<vmem>>, vector<1x1x256xf32>
    %36 = vector.shape_cast %35 : vector<1x1x256xf32> to vector<1x256xf32>
    %37 = vector.broadcast %36 : vector<1x256xf32> to vector<1024x256xf32>
    %38 = arith.addf %34, %37 : vector<1024x256xf32>
    %cst_20 = arith.constant 0.000000e+00 : f32
    %39 = vector.broadcast %cst_20 : f32 to vector<1024x256xf32>
    %40 = arith.maximumf %38, %39 : vector<1024x256xf32>
    %41 = arith.truncf %40 : vector<1024x256xf32> to vector<1024x256xbf16>
    %c0_21 = arith.constant 0 : index
    %c0_22 = arith.constant 0 : index
    %42 = vector.load %arg9[%c0_21, %c0_22] : memref<256x256xbf16, #tpu.memory_space<vmem>>, vector<256x256xbf16>
    %cst_23 = arith.constant dense<0.000000e+00> : vector<1024x256xf32>
    %43 = tpu.matmul %41, %42, %cst_23 {dimension_numbers = #tpu.dot_dimension_numbers<[1], [0], [0], [1], [0, 0, 1, 1], [], []>} : vector<1024x256xbf16>, vector<256x256xbf16>, vector<1024x256xf32> -> vector<1024x256xf32>
    %c0_24 = arith.constant 0 : index
    %c0_25 = arith.constant 0 : index
    %44 = vector.load %arg10[%c0_24, %c0_25] : memref<1x256xf32, #tpu.memory_space<vmem>>, vector<1x256xf32>
    %45 = vector.broadcast %44 : vector<1x256xf32> to vector<1024x256xf32>
    %46 = arith.addf %43, %45 : vector<1024x256xf32>
    %cst_26 = arith.constant 0.000000e+00 : f32
    %47 = vector.broadcast %cst_26 : f32 to vector<1024x256xf32>
    %48 = arith.maximumf %46, %47 : vector<1024x256xf32>
    %49 = arith.truncf %48 : vector<1024x256xf32> to vector<1024x256xbf16>
    %c0_27 = arith.constant 0 : index
    %c0_28 = arith.constant 0 : index
    %50 = vector.load %arg11[%c0_27, %c0_28] : memref<256x45xbf16, #tpu.memory_space<vmem>>, vector<256x45xbf16>
    %cst_29 = arith.constant dense<0.000000e+00> : vector<1024x45xf32>
    %51 = tpu.matmul %49, %50, %cst_29 {dimension_numbers = #tpu.dot_dimension_numbers<[1], [0], [0], [1], [0, 0, 1, 1], [], []>} : vector<1024x256xbf16>, vector<256x45xbf16>, vector<1024x45xf32> -> vector<1024x45xf32>
    %c0_30 = arith.constant 0 : index
    %c0_31 = arith.constant 0 : index
    %c0_32 = arith.constant 0 : index
    %52 = vector.load %arg12[%c0_30, %c0_31, %c0_32] : memref<1x1x45xf32, #tpu.memory_space<vmem>>, vector<1x1x45xf32>
    %53 = vector.shape_cast %52 : vector<1x1x45xf32> to vector<1x45xf32>
    %54 = vector.broadcast %53 : vector<1x45xf32> to vector<1024x45xf32>
    %55 = arith.addf %51, %54 : vector<1024x45xf32>
    %c0_33 = arith.constant 0 : index
    %c0_34 = arith.constant 0 : index
    %c0_35 = arith.constant 0 : index
    %56 = vector.load %arg13[%c0_33, %c0_34, %c0_35] : memref<1x1024x45xf32, #tpu.memory_space<vmem>>, vector<1x1024x45xf32>
    %57 = vector.shape_cast %56 : vector<1x1024x45xf32> to vector<1024x45xf32>
    %58 = vector.shape_cast %55 : vector<1024x45xf32> to vector<1x1024x45xf32>
    tpu.vector_store %arg13[%c0_33, %c0_34, %c0_35], %58 {strides = array<i32>} : memref<1x1024x45xf32, #tpu.memory_space<vmem>>, vector<1x1024x45xf32>,
    %59 = vector.extract_strided_slice %55 {offsets = [0, 0], sizes = [1024, 18], strides = [1, 1]} : vector<1024x45xf32> to vector<1024x18xf32>
    %60 = arith.addf %59, %26 : vector<1024x18xf32>
    %c0_36 = arith.constant 0 : index
    %c0_37 = arith.constant 0 : index
    %c0_38 = arith.constant 0 : index
    %61 = vector.load %arg13[%c0_36, %c0_37, %c0_38] : memref<1x1024x45xf32, #tpu.memory_space<vmem>>, vector<1x1024x18xf32>
    %62 = vector.shape_cast %61 : vector<1x1024x18xf32> to vector<1024x18xf32>
    %63 = vector.shape_cast %60 : vector<1024x18xf32> to vector<1x1024x18xf32>
    tpu.vector_store %arg13[%c0_36, %c0_37, %c0_38], %63 {strides = array<i32>} : memref<1x1024x45xf32, #tpu.memory_space<vmem>>, vector<1x1024x18xf32>,
    return
  }
  func.func @transform_0(%arg0: i32, %arg1: i32) -> (i32, i32, i32) {
    %c0_i32 = arith.constant 0 : i32
    %c0_i32_0 = arith.constant 0 : i32
    return %arg0, %arg1, %c0_i32 : i32, i32, i32
  }
  func.func @transform_1(%arg0: i32, %arg1: i32) -> (i32, i32, i32) {
    %c0_i32 = arith.constant 0 : i32
    %c0_i32_0 = arith.constant 0 : i32
    return %arg0, %arg1, %c0_i32 : i32, i32, i32
  }
  func.func @transform_2(%arg0: i32, %arg1: i32) -> (i32, i32, i32) {
    %c0_i32 = arith.constant 0 : i32
    %c0_i32_0 = arith.constant 0 : i32
    %c0_i32_1 = arith.constant 0 : i32
    return %arg0, %c0_i32, %c0_i32_0 : i32, i32, i32
  }
  func.func @transform_3(%arg0: i32, %arg1: i32) -> (i32, i32, i32) {
    %c0_i32 = arith.constant 0 : i32
    %c0_i32_0 = arith.constant 0 : i32
    %c0_i32_1 = arith.constant 0 : i32
    return %arg0, %c0_i32, %c0_i32_0 : i32, i32, i32
  }
  func.func @transform_4(%arg0: i32, %arg1: i32) -> (i32, i32) {
    %c0_i32 = arith.constant 0 : i32
    %c0_i32_0 = arith.constant 0 : i32
    %c0_i32_1 = arith.constant 0 : i32
    return %c0_i32, %c0_i32_0 : i32, i32
  }
  func.func @transform_5(%arg0: i32, %arg1: i32) -> (i32, i32, i32) {
    %c0_i32 = arith.constant 0 : i32
    %c0_i32_0 = arith.constant 0 : i32
    %c0_i32_1 = arith.constant 0 : i32
    return %arg0, %c0_i32, %c0_i32_0 : i32, i32, i32
  }
  func.func @transform_6(%arg0: i32, %arg1: i32) -> (i32, i32, i32) {
    %c0_i32 = arith.constant 0 : i32
    %c0_i32_0 = arith.constant 0 : i32
    %c0_i32_1 = arith.constant 0 : i32
    return %arg0, %c0_i32, %c0_i32_0 : i32, i32, i32
  }
  func.func @transform_7(%arg0: i32, %arg1: i32) -> (i32, i32) {
    %c0_i32 = arith.constant 0 : i32
    %c0_i32_0 = arith.constant 0 : i32
    %c0_i32_1 = arith.constant 0 : i32
    return %c0_i32, %c0_i32_0 : i32, i32
  }
  func.func @transform_8(%arg0: i32, %arg1: i32) -> (i32, i32) {
    %c0_i32 = arith.constant 0 : i32
    %c0_i32_0 = arith.constant 0 : i32
    %c0_i32_1 = arith.constant 0 : i32
    return %c0_i32, %c0_i32_0 : i32, i32
  }
  func.func @transform_9(%arg0: i32, %arg1: i32) -> (i32, i32) {
    %c0_i32 = arith.constant 0 : i32
    %c0_i32_0 = arith.constant 0 : i32
    %c0_i32_1 = arith.constant 0 : i32
    return %c0_i32, %c0_i32_0 : i32, i32
  }
  func.func @transform_10(%arg0: i32, %arg1: i32) -> (i32, i32, i32) {
    %c0_i32 = arith.constant 0 : i32
    %c0_i32_0 = arith.constant 0 : i32
    %c0_i32_1 = arith.constant 0 : i32
    return %arg0, %c0_i32, %c0_i32_0 : i32, i32, i32
  }
  func.func @transform_11(%arg0: i32, %arg1: i32) -> (i32, i32, i32) {
    %c0_i32 = arith.constant 0 : i32
    %c0_i32_0 = arith.constant 0 : i32
    return %arg0, %arg1, %c0_i32 : i32, i32, i32
  }
}

</mosaic_0001>

<llo_original>
// kernel: tpu_custom_call.1
$region0: #{tpu_custom_call.1}
  #allocation0 [shape = 'u32[]', space=smem, size = 0x4, offset = 0x4, fixed_abs, tag = 'smem constant byte address 0x4 - core index']
  #allocation1 [shape = 'u32[144,128]{1,0:T(1,128)}', space=vmem, size = 0x12000, scoped, tag = 'internal scratch']
  %s0 = inlined_call_operand.vmem [shape: f32[2,1024,3], index: 0, kind: input, shape index: {}]
  %s1 = inlined_call_operand.vmem [shape: f32[2,1024,3], index: 1, kind: input, shape index: {}]
  %s2 = inlined_call_operand.vmem [shape: f32[2,3,18], index: 2, kind: input, shape index: {}]
  %s3 = inlined_call_operand.vmem [shape: f32[2,1,18], index: 3, kind: input, shape index: {}]
  %s4 = inlined_call_operand.vmem [shape: bf16[3,256], index: 4, kind: input, shape index: {}]
  %s5 = inlined_call_operand.vmem [shape: bf16[2,3,256], index: 5, kind: input, shape index: {}]
  %s6 = inlined_call_operand.vmem [shape: f32[2,1,256], index: 6, kind: input, shape index: {}]
  %s7 = inlined_call_operand.vmem [shape: bf16[256,256], index: 7, kind: input, shape index: {}]
  %s8 = inlined_call_operand.vmem [shape: f32[1,256], index: 8, kind: input, shape index: {}]
  %s9 = inlined_call_operand.vmem [shape: bf16[256,45], index: 9, kind: input, shape index: {}]
  %s10 = inlined_call_operand.vmem [shape: f32[2,1,45], index: 10, kind: input, shape index: {}]
  %s11 = inlined_call_operand.vmem [shape: f32[2,1024,45], index: 11, kind: output, shape index: {}]
  %s12 = sld [smem:[#allocation0]]
  $region77: #{tpu_custom_call.1} parent=0
    _
  %s14 = ssub.s32 1, %s12
  %s15 = scalar_select 0, %s14, %s12
  loop: start=0, step=1, limit=4
  $region2: #{tpu_custom_call.1} parent=0 // loop_pre_header
    _
  $region3: #{tpu_custom_call.1} parent=0 // loop_header
    %s17 = sphi 0, %s21
    %p18 = scmp.ge.s32.totalorder %s17, 4
    %s24 = sphi 0, %s36
    %s25 = sphi 0, %s32
    %s26 = sphi 0, %s24
    %s27 = sphi 0, %s25
    %s28 = sphi 0, %s26
    %s29 = sphi 0, %s27
    %s41 = sphi 0, %s43
    %s44 = sphi 0, %s41
    %s45 = sphi 0, %s44
    %s61 = sphi 0, %s45
    %s69 = sphi 0, %s71
    %s72 = sphi 0, %s69
    %s73 = sphi 0, %s72
    %s89 = sphi 0, %s73
    %s95 = sphi 0, %s97
    %s98 = sphi 0, %s95
    %s99 = sphi 0, %s98
    %s115 = sphi 0, %s99
    %s121 = sphi 0, %s123
    %s124 = sphi 0, %s121
    %s125 = sphi 0, %s124
    %s141 = sphi 0, %s125
    %s145 = sphi 0, %s145
    %s147 = sphi 0, %s145
    %s148 = sphi 0, %s147
    %s162 = sphi 0, %s148
    %s168 = sphi 0, %s170
    %s171 = sphi 0, %s168
    %s172 = sphi 0, %s171
    %s188 = sphi 0, %s172
    %s194 = sphi 0, %s196
    %s197 = sphi 0, %s194
    %s198 = sphi 0, %s197
    %s214 = sphi 0, %s198
    %s218 = sphi 0, %s218
    %s220 = sphi 0, %s218
    %s221 = sphi 0, %s220
    %s235 = sphi 0, %s221
    %s239 = sphi 0, %s239
    %s241 = sphi 0, %s239
    %s242 = sphi 0, %s241
    %s256 = sphi 0, %s242
    %s260 = sphi 0, %s260
    %s262 = sphi 0, %s260
    %s263 = sphi 0, %s262
    %s277 = sphi 0, %s263
    %s283 = sphi 0, %s285
    %s286 = sphi 0, %s283
    %s287 = sphi 0, %s286
    %s303 = sphi 0, %s287
    %s311 = sphi 0, %s313
    %s314 = sphi 0, %s311
    %s315 = sphi 0, %s314
    %s331 = sphi 0, %s315
  $region4: #{tpu_custom_call.1} parent=0 // loop_header_branch
    %20 = sbr.rel (%p18) target = $region8
  $region5: #{tpu_custom_call.1} parent=0 // loop_body
    %s22 = ssub.s32 %s17, 1
    %s23 = ssub.s32 %s17, 2
    %s30 = sadd.s32 1, %s25
    %p31 = scmp.ge.s32.totalorder %s30, 1
    %s32 = scalar_select %p31, 0, %s30
    %s33 = sadd.s32 1, %s24
    %s34 = scalar_select %p31, %s33, %s24
    %p35 = scmp.ge.s32.totalorder %s34, 2
    %s36 = scalar_select %p35, 0, %s34
    %s37 = ssub.s32 %s24, %s36
    %s38 = ssub.s32 %s25, %s32
    %s39 = sor.u32 %s37, %s38
    %p40 = scmp.eq.s32.totalorder %s39, 0
    %s42 = sadd.s32 %s41, 1
    %s43 = scalar_select %p40, %s41, %s42
    %p46 = pneg %p40
    %p47 = scmp.eq.s32.totalorder %s17, 1
    %p48 = por %p46, %p47
    %p49 = scmp.ne.s32.totalorder %s41, %s44
    %p50 = scmp.eq.s32.totalorder %s17, 0
    %p51 = por %p49, %p50
    %p52 = scmp.ne.s32.totalorder %s41, %s44
    %p53 = scmp.eq.s32.totalorder %s22, 1
    %p54 = por %p52, %p53
    %p55 = scmp.ne.s32.totalorder %s44, %s45
    %p56 = scmp.eq.s32.totalorder %s22, 0
    %p57 = por %p55, %p56
    %p58 = scmp.ne.s32.totalorder %s44, %s45
    %p59 = scmp.eq.s32.totalorder %s23, 1
    %p60 = por %p58, %p59
    %p62 = scmp.ne.s32.totalorder %s45, %s61
    %p63 = scmp.eq.s32.totalorder %s23, 0
    %p64 = por %p62, %p63
    %s65 = ssub.s32 %s24, %s36
    %s66 = ssub.s32 %s25, %s32
    %s67 = sor.u32 %s65, %s66
    %p68 = scmp.eq.s32.totalorder %s67, 0
    %s70 = sadd.s32 %s69, 1
    %s71 = scalar_select %p68, %s69, %s70
    %p74 = pneg %p68
    %p75 = scmp.eq.s32.totalorder %s17, 1
    %p76 = por %p74, %p75
    %p77 = scmp.ne.s32.totalorder %s69, %s72
    %p78 = scmp.eq.s32.totalorder %s17, 0
    %p79 = por %p77, %p78
    %p80 = scmp.ne.s32.totalorder %s69, %s72
    %p81 = scmp.eq.s32.totalorder %s22, 1
    %p82 = por %p80, %p81
    %p83 = scmp.ne.s32.totalorder %s72, %s73
    %p84 = scmp.eq.s32.totalorder %s22, 0
    %p85 = por %p83, %p84
    %p86 = scmp.ne.s32.totalorder %s72, %s73
    %p87 = scmp.eq.s32.totalorder %s23, 1
    %p88 = por %p86, %p87
    %p90 = scmp.ne.s32.totalorder %s73, %s89
    %p91 = scmp.eq.s32.totalorder %s23, 0
    %p92 = por %p90, %p91
    %s93 = ssub.s32 %s24, %s36
    %p94 = scmp.eq.s32.totalorder %s93, 0
    %s96 = sadd.s32 %s95, 1
    %s97 = scalar_select %p94, %s95, %s96
    %p100 = pneg %p94
    %p101 = scmp.eq.s32.totalorder %s17, 1
    %p102 = por %p100, %p101
    %p103 = scmp.ne.s32.totalorder %s95, %s98
    %p104 = scmp.eq.s32.totalorder %s17, 0
    %p105 = por %p103, %p104
    %p106 = scmp.ne.s32.totalorder %s95, %s98
    %p107 = scmp.eq.s32.totalorder %s22, 1
    %p108 = por %p106, %p107
    %p109 = scmp.ne.s32.totalorder %s98, %s99
    %p110 = scmp.eq.s32.totalorder %s22, 0
    %p111 = por %p109, %p110
    %p112 = scmp.ne.s32.totalorder %s98, %s99
    %p113 = scmp.eq.s32.totalorder %s23, 1
    %p114 = por %p112, %p113
    %p116 = scmp.ne.s32.totalorder %s99, %s115
    %p117 = scmp.eq.s32.totalorder %s23, 0
    %p118 = por %p116, %p117
    %s119 = ssub.s32 %s24, %s36
    %p120 = scmp.eq.s32.totalorder %s119, 0
    %s122 = sadd.s32 %s121, 1
    %s123 = scalar_select %p120, %s121, %s122
    %p126 = pneg %p120
    %p127 = scmp.eq.s32.totalorder %s17, 1
    %p128 = por %p126, %p127
    %p129 = scmp.ne.s32.totalorder %s121, %s124
    %p130 = scmp.eq.s32.totalorder %s17, 0
    %p131 = por %p129, %p130
    %p132 = scmp.ne.s32.totalorder %s121, %s124
    %p133 = scmp.eq.s32.totalorder %s22, 1
    %p134 = por %p132, %p133
    %p135 = scmp.ne.s32.totalorder %s124, %s125
    %p136 = scmp.eq.s32.totalorder %s22, 0
    %p137 = por %p135, %p136
    %p138 = scmp.ne.s32.totalorder %s124, %s125
    %p139 = scmp.eq.s32.totalorder %s23, 1
    %p140 = por %p138, %p139
    %p142 = scmp.ne.s32.totalorder %s125, %s141
    %p143 = scmp.eq.s32.totalorder %s23, 0
    %p144 = por %p142, %p143
    %s146 = sadd.s32 %s145, 1
    %p149 = scmp.eq.s32.totalorder %s17, 1
    %p150 = scmp.ne.s32.totalorder %s145, %s147
    %p151 = scmp.eq.s32.totalorder %s17, 0
    %p152 = por %p150, %p151
    %p153 = scmp.ne.s32.totalorder %s145, %s147
    %p154 = scmp.eq.s32.totalorder %s22, 1
    %p155 = por %p153, %p154
    %p156 = scmp.ne.s32.totalorder %s147, %s148
    %p157 = scmp.eq.s32.totalorder %s22, 0
    %p158 = por %p156, %p157
    %p159 = scmp.ne.s32.totalorder %s147, %s148
    %p160 = scmp.eq.s32.totalorder %s23, 1
    %p161 = por %p159, %p160
    %p163 = scmp.ne.s32.totalorder %s148, %s162
    %p164 = scmp.eq.s32.totalorder %s23, 0
    %p165 = por %p163, %p164
    %s166 = ssub.s32 %s24, %s36
    %p167 = scmp.eq.s32.totalorder %s166, 0
    %s169 = sadd.s32 %s168, 1
    %s170 = scalar_select %p167, %s168, %s169
    %p173 = pneg %p167
    %p174 = scmp.eq.s32.totalorder %s17, 1
    %p175 = por %p173, %p174
    %p176 = scmp.ne.s32.totalorder %s168, %s171
    %p177 = scmp.eq.s32.totalorder %s17, 0
    %p178 = por %p176, %p177
    %p179 = scmp.ne.s32.totalorder %s168, %s171
    %p180 = scmp.eq.s32.totalorder %s22, 1
    %p181 = por %p179, %p180
    %p182 = scmp.ne.s32.totalorder %s171, %s172
    %p183 = scmp.eq.s32.totalorder %s22, 0
    %p184 = por %p182, %p183
    %p185 = scmp.ne.s32.totalorder %s171, %s172
    %p186 = scmp.eq.s32.totalorder %s23, 1
    %p187 = por %p185, %p186
    %p189 = scmp.ne.s32.totalorder %s172, %s188
    %p190 = scmp.eq.s32.totalorder %s23, 0
    %p191 = por %p189, %p190
    %s192 = ssub.s32 %s24, %s36
    %p193 = scmp.eq.s32.totalorder %s192, 0
    %s195 = sadd.s32 %s194, 1
    %s196 = scalar_select %p193, %s194, %s195
    %p199 = pneg %p193
    %p200 = scmp.eq.s32.totalorder %s17, 1
    %p201 = por %p199, %p200
    %p202 = scmp.ne.s32.totalorder %s194, %s197
    %p203 = scmp.eq.s32.totalorder %s17, 0
    %p204 = por %p202, %p203
    %p205 = scmp.ne.s32.totalorder %s194, %s197
    %p206 = scmp.eq.s32.totalorder %s22, 1
    %p207 = por %p205, %p206
    %p208 = scmp.ne.s32.totalorder %s197, %s198
    %p209 = scmp.eq.s32.totalorder %s22, 0
    %p210 = por %p208, %p209
    %p211 = scmp.ne.s32.totalorder %s197, %s198
    %p212 = scmp.eq.s32.totalorder %s23, 1
    %p213 = por %p211, %p212
    %p215 = scmp.ne.s32.totalorder %s198, %s214
    %p216 = scmp.eq.s32.totalorder %s23, 0
    %p217 = por %p215, %p216
    %s219 = sadd.s32 %s218, 1
    %p222 = scmp.eq.s32.totalorder %s17, 1
    %p223 = scmp.ne.s32.totalorder %s218, %s220
    %p224 = scmp.eq.s32.totalorder %s17, 0
    %p225 = por %p223, %p224
    %p226 = scmp.ne.s32.totalorder %s218, %s220
    %p227 = scmp.eq.s32.totalorder %s22, 1
    %p228 = por %p226, %p227
    %p229 = scmp.ne.s32.totalorder %s220, %s221
    %p230 = scmp.eq.s32.totalorder %s22, 0
    %p231 = por %p229, %p230
    %p232 = scmp.ne.s32.totalorder %s220, %s221
    %p233 = scmp.eq.s32.totalorder %s23, 1
    %p234 = por %p232, %p233
    %p236 = scmp.ne.s32.totalorder %s221, %s235
    %p237 = scmp.eq.s32.totalorder %s23, 0
    %p238 = por %p236, %p237
    %s240 = sadd.s32 %s239, 1
    %p243 = scmp.eq.s32.totalorder %s17, 1
    %p244 = scmp.ne.s32.totalorder %s239, %s241
    %p245 = scmp.eq.s32.totalorder %s17, 0
    %p246 = por %p244, %p245
    %p247 = scmp.ne.s32.totalorder %s239, %s241
    %p248 = scmp.eq.s32.totalorder %s22, 1
    %p249 = por %p247, %p248
    %p250 = scmp.ne.s32.totalorder %s241, %s242
    %p251 = scmp.eq.s32.totalorder %s22, 0
    %p252 = por %p250, %p251
    %p253 = scmp.ne.s32.totalorder %s241, %s242
    %p254 = scmp.eq.s32.totalorder %s23, 1
    %p255 = por %p253, %p254
    %p257 = scmp.ne.s32.totalorder %s242, %s256
    %p258 = scmp.eq.s32.totalorder %s23, 0
    %p259 = por %p257, %p258
    %s261 = sadd.s32 %s260, 1
    %p264 = scmp.eq.s32.totalorder %s17, 1
    %p265 = scmp.ne.s32.totalorder %s260, %s262
    %p266 = scmp.eq.s32.totalorder %s17, 0
    %p267 = por %p265, %p266
    %p268 = scmp.ne.s32.totalorder %s260, %s262
    %p269 = scmp.eq.s32.totalorder %s22, 1
    %p270 = por %p268, %p269
    %p271 = scmp.ne.s32.totalorder %s262, %s263
    %p272 = scmp.eq.s32.totalorder %s22, 0
    %p273 = por %p271, %p272
    %p274 = scmp.ne.s32.totalorder %s262, %s263
    %p275 = scmp.eq.s32.totalorder %s23, 1
    %p276 = por %p274, %p275
    %p278 = scmp.ne.s32.totalorder %s263, %s277
    %p279 = scmp.eq.s32.totalorder %s23, 0
    %p280 = por %p278, %p279
    %s281 = ssub.s32 %s24, %s36
    %p282 = scmp.eq.s32.totalorder %s281, 0
    %s284 = sadd.s32 %s283, 1
    %s285 = scalar_select %p282, %s283, %s284
    %p288 = pneg %p282
    %p289 = scmp.eq.s32.totalorder %s17, 1
    %p290 = por %p288, %p289
    %p291 = scmp.ne.s32.totalorder %s283, %s286
    %p292 = scmp.eq.s32.totalorder %s17, 0
    %p293 = por %p291, %p292
    %p294 = scmp.ne.s32.totalorder %s283, %s286
    %p295 = scmp.eq.s32.totalorder %s22, 1
    %p296 = por %p294, %p295
    %p297 = scmp.ne.s32.totalorder %s286, %s287
    %p298 = scmp.eq.s32.totalorder %s22, 0
    %p299 = por %p297, %p298
    %p300 = scmp.ne.s32.totalorder %s286, %s287
    %p301 = scmp.eq.s32.totalorder %s23, 1
    %p302 = por %p300, %p301
    %p304 = scmp.ne.s32.totalorder %s287, %s303
    %p305 = scmp.eq.s32.totalorder %s23, 0
    %p306 = por %p304, %p305
    %s307 = ssub.s32 %s24, %s36
    %s308 = ssub.s32 %s25, %s32
    %s309 = sor.u32 %s307, %s308
    %p310 = scmp.eq.s32.totalorder %s309, 0
    %s312 = sadd.s32 %s311, 1
    %s313 = scalar_select %p310, %s311, %s312
    %p316 = pneg %p310
    %p317 = scmp.eq.s32.totalorder %s17, 1
    %p318 = por %p316, %p317
    %p319 = scmp.ne.s32.totalorder %s311, %s314
    %p320 = scmp.eq.s32.totalorder %s17, 0
    %p321 = por %p319, %p320
    %p322 = scmp.ne.s32.totalorder %s311, %s314
    %p323 = scmp.eq.s32.totalorder %s22, 1
    %p324 = por %p322, %p323
    %p325 = scmp.ne.s32.totalorder %s314, %s315
    %p326 = scmp.eq.s32.totalorder %s22, 0
    %p327 = por %p325, %p326
    %p328 = scmp.ne.s32.totalorder %s314, %s315
    %p329 = scmp.eq.s32.totalorder %s23, 1
    %p330 = por %p328, %p329
    %p332 = scmp.ne.s32.totalorder %s315, %s331
    %p333 = scmp.eq.s32.totalorder %s23, 0
    %p334 = por %p332, %p333
    %p335 = scmp.le.s32.totalorder 1, %s17
    %p336 = scmp.lt.s32.totalorder %s17, 3
    %p337 = pnand %p335, %p336
    %p338 = pneg %p337
    // Predicated region
    $region9: #{tpu_custom_call.1} parent=5 // pred_check
      _
    $region10: #{tpu_custom_call.1} parent=5 // pred_check_branch
      %340 = sbr.rel (%p337) target = $region12
    $region11: #{tpu_custom_call.1} parent=5 // pred_region
      %s341 = ssub.s32 %s17, 1
      // Predicated region
      $region13: #{tpu_custom_call.1} parent=11 // pred_check
        %p342 = pneg %p158
      $region14: #{tpu_custom_call.1} parent=11 // pred_check_branch
        %344 = sbr.rel (%p342) target = $region16
      $region15: #{tpu_custom_call.1} parent=11 // pred_region
        _
      $region16: #{tpu_custom_call.1} parent=11 // pred_fallthru
        _
      // Predicated region
      $region17: #{tpu_custom_call.1} parent=11 // pred_check
        %p345 = pneg %p231
      $region18: #{tpu_custom_call.1} parent=11 // pred_check_branch
        %347 = sbr.rel (%p345) target = $region20
      $region19: #{tpu_custom_call.1} parent=11 // pred_region
        _
      $region20: #{tpu_custom_call.1} parent=11 // pred_fallthru
        _
      // Predicated region
      $region21: #{tpu_custom_call.1} parent=11 // pred_check
        %p348 = pneg %p252
      $region22: #{tpu_custom_call.1} parent=11 // pred_check_branch
        %350 = sbr.rel (%p348) target = $region24
      $region23: #{tpu_custom_call.1} parent=11 // pred_region
        _
      $region24: #{tpu_custom_call.1} parent=11 // pred_fallthru
        _
      // Predicated region
      $region25: #{tpu_custom_call.1} parent=11 // pred_check
        %p351 = pneg %p273
      $region26: #{tpu_custom_call.1} parent=11 // pred_check_branch
        %353 = sbr.rel (%p351) target = $region28
      $region27: #{tpu_custom_call.1} parent=11 // pred_region
        _
      $region28: #{tpu_custom_call.1} parent=11 // pred_fallthru
        _
    $region12: #{tpu_custom_call.1} parent=5 // pred_fallthru
      _
    %p354 = scmp.lt.s32.totalorder %s17, 2
    // Predicated region
    $region29: #{tpu_custom_call.1} parent=5 // pred_check
      %p355 = pneg %p354
    $region30: #{tpu_custom_call.1} parent=5 // pred_check_branch
      %357 = sbr.rel (%p355) target = $region32
    $region31: #{tpu_custom_call.1} parent=5 // pred_region
      // Predicated region
      $region33: #{tpu_custom_call.1} parent=31 // pred_check
        %p358 = pneg %p51
      $region34: #{tpu_custom_call.1} parent=31 // pred_check_branch
        %360 = sbr.rel (%p358) target = $region36
      $region35: #{tpu_custom_call.1} parent=31 // pred_region
        %s361 = smul.u32 128, %s25
        %p362 = scmp.lt.s32.totalorder %s24, 1
        %s363 = scalar_select %p362, %s24, 1
        %p364 = scmp.lt.s32.totalorder %s361, 127
        %s365 = scalar_select %p364, %s361, 127
        %s366 = smul.addr %s363, 128
        %s367 = sadd.s32 %s365, %s366
        %s368 = smul.addr %s367, 8
        %s369 = scalar_lea.vmem %s0, %s368
        %s370 = smul.u32 128, %s25
      $region36: #{tpu_custom_call.1} parent=31 // pred_fallthru
        _
      // Predicated region
      $region37: #{tpu_custom_call.1} parent=31 // pred_check
        %p371 = pneg %p79
      $region38: #{tpu_custom_call.1} parent=31 // pred_check_branch
        %373 = sbr.rel (%p371) target = $region40
      $region39: #{tpu_custom_call.1} parent=31 // pred_region
        %s374 = smul.u32 128, %s25
        %p375 = scmp.lt.s32.totalorder %s24, 1
        %s376 = scalar_select %p375, %s24, 1
        %p377 = scmp.lt.s32.totalorder %s374, 127
        %s378 = scalar_select %p377, %s374, 127
        %s379 = smul.addr %s376, 128
        %s380 = sadd.s32 %s378, %s379
        %s381 = smul.addr %s380, 8
        %s382 = scalar_lea.vmem %s1, %s381
        %s383 = smul.u32 128, %s25
      $region40: #{tpu_custom_call.1} parent=31 // pred_fallthru
        _
      // Predicated region
      $region41: #{tpu_custom_call.1} parent=31 // pred_check
        %p384 = pneg %p105
      $region42: #{tpu_custom_call.1} parent=31 // pred_check_branch
        %386 = sbr.rel (%p384) target = $region44
      $region43: #{tpu_custom_call.1} parent=31 // pred_region
        %p387 = scmp.lt.s32.totalorder %s24, 1
        %s388 = scalar_select %p387, %s24, 1
        %s389 = smul.addr %s388, 4
        %s390 = scalar_lea.vmem %s2, %s389
      $region44: #{tpu_custom_call.1} parent=31 // pred_fallthru
        _
      // Predicated region
      $region45: #{tpu_custom_call.1} parent=31 // pred_check
        %p391 = pneg %p131
      $region46: #{tpu_custom_call.1} parent=31 // pred_check_branch
        %393 = sbr.rel (%p391) target = $region48
      $region47: #{tpu_custom_call.1} parent=31 // pred_region
        %p394 = scmp.lt.s32.totalorder %s24, 1
        %s395 = scalar_select %p394, %s24, 1
        %s396 = scalar_lea.vmem %s3, %s395
      $region48: #{tpu_custom_call.1} parent=31 // pred_fallthru
        _
      // Predicated region
      $region49: #{tpu_custom_call.1} parent=31 // pred_check
        %p397 = pneg %p178
      $region50: #{tpu_custom_call.1} parent=31 // pred_check_branch
        %399 = sbr.rel (%p397) target = $region52
      $region51: #{tpu_custom_call.1} parent=31 // pred_region
        %p400 = scmp.lt.s32.totalorder %s24, 1
        %s401 = scalar_select %p400, %s24, 1
        %s402 = smul.addr %s401, 2
        %s403 = smul.addr %s402, 2
        %s404 = scalar_lea.vmem %s5, %s403
      $region52: #{tpu_custom_call.1} parent=31 // pred_fallthru
        _
      // Predicated region
      $region53: #{tpu_custom_call.1} parent=31 // pred_check
        %p405 = pneg %p204
      $region54: #{tpu_custom_call.1} parent=31 // pred_check_branch
        %407 = sbr.rel (%p405) target = $region56
      $region55: #{tpu_custom_call.1} parent=31 // pred_region
        %p408 = scmp.lt.s32.totalorder %s24, 1
        %s409 = scalar_select %p408, %s24, 1
        %s410 = smul.addr %s409, 2
        %s411 = scalar_lea.vmem %s6, %s410
      $region56: #{tpu_custom_call.1} parent=31 // pred_fallthru
        _
      // Predicated region
      $region57: #{tpu_custom_call.1} parent=31 // pred_check
        %p412 = pneg %p293
      $region58: #{tpu_custom_call.1} parent=31 // pred_check_branch
        %414 = sbr.rel (%p412) target = $region60
      $region59: #{tpu_custom_call.1} parent=31 // pred_region
        %p415 = scmp.lt.s32.totalorder %s24, 1
        %s416 = scalar_select %p415, %s24, 1
        %s417 = scalar_lea.vmem %s10, %s416
      $region60: #{tpu_custom_call.1} parent=31 // pred_fallthru
        _
    $region32: #{tpu_custom_call.1} parent=5 // pred_fallthru
      _
    %p418 = scmp.le.s32.totalorder 1, %s17
    %p419 = scmp.lt.s32.totalorder %s17, 3
    %p420 = pnand %p418, %p419
    %p421 = pneg %p420
    // Predicated region
    $region61: #{tpu_custom_call.1} parent=5 // pred_check
      _
    $region62: #{tpu_custom_call.1} parent=5 // pred_check_branch
      %423 = sbr.rel (%p420) target = $region64
    $region63: #{tpu_custom_call.1} parent=5 // pred_region
      %s424 = ssub.s32 %s17, 1
      %s425 = smul.u32 128, %s27
      %p426 = scmp.lt.s32.totalorder %s26, 1
      %s427 = scalar_select %p426, %s26, 1
      %p428 = scmp.lt.s32.totalorder %s425, 127
      %s429 = scalar_select %p428, %s425, 127
      %s430 = smul.addr %s427, 128
      %s431 = sadd.s32 %s429, %s430
      %s432 = smul.addr %s431, 8
      %s433 = scalar_lea.vmem %s0, %s432
      %p434 = pneg %p57
      %p435 = pneg %p54
      %s436 = smul.u32 128, %s27
      %p437 = scmp.lt.s32.totalorder %s26, 1
      %s438 = scalar_select %p437, %s26, 1
      %p439 = scmp.lt.s32.totalorder %s436, 127
      %s440 = scalar_select %p439, %s436, 127
      %s441 = smul.addr %s438, 128
      %s442 = sadd.s32 %s440, %s441
      %s443 = smul.addr %s442, 8
      %s444 = scalar_lea.vmem %s1, %s443
      %p445 = pneg %p85
      %p446 = pneg %p82
      %p447 = scmp.lt.s32.totalorder %s26, 1
      %s448 = scalar_select %p447, %s26, 1
      %s449 = smul.addr %s448, 4
      %s450 = scalar_lea.vmem %s2, %s449
      %p451 = pneg %p111
      %p452 = pneg %p108
      %p453 = scmp.lt.s32.totalorder %s26, 1
      %s454 = scalar_select %p453, %s26, 1
      %s455 = scalar_lea.vmem %s3, %s454
      %p456 = pneg %p137
      %p457 = pneg %p134
      %p458 = pneg %p158
      %p459 = pneg %p155
      %p460 = scmp.lt.s32.totalorder %s26, 1
      %s461 = scalar_select %p460, %s26, 1
      %s462 = smul.addr %s461, 2
      %s463 = smul.addr %s462, 2
      %s464 = scalar_lea.vmem %s5, %s463
      %p465 = pneg %p184
      %p466 = pneg %p181
      %p467 = scmp.lt.s32.totalorder %s26, 1
      %s468 = scalar_select %p467, %s26, 1
      %s469 = smul.addr %s468, 2
      %s470 = scalar_lea.vmem %s6, %s469
      %p471 = pneg %p210
      %p472 = pneg %p207
      %p473 = pneg %p231
      %p474 = pneg %p228
      %p475 = pneg %p252
      %p476 = pneg %p249
      %p477 = pneg %p273
      %p478 = pneg %p270
      %p479 = scmp.lt.s32.totalorder %s26, 1
      %s480 = scalar_select %p479, %s26, 1
      %s481 = scalar_lea.vmem %s10, %s480
      %p482 = pneg %p299
      %p483 = pneg %p296
      %p484 = pneg %p327
      %p485 = pneg %p324
      %s486 = smul.u32 128, %s27
      %p487 = scmp.lt.s32.totalorder %s26, 1
      %s488 = scalar_select %p487, %s26, 1
      %p489 = scmp.lt.s32.totalorder %s486, 127
      %s490 = scalar_select %p489, %s486, 127
      %s491 = smul.addr %s488, 128
      %s492 = sadd.s32 %s490, %s491
      %s493 = smul.addr %s492, 8
      %s494 = scalar_lea.vmem %s11, %s493
      %s495 = smul.u32 128, %s27
      %p496 = scmp.lt.s32.totalorder %s26, 1
      %s497 = scalar_select %p496, %s26, 1
      %p498 = scmp.lt.s32.totalorder %s495, 127
      %s499 = scalar_select %p498, %s495, 127
      %s500 = smul.addr %s497, 128
      %s501 = sadd.s32 %s499, %s500
      %s502 = smul.addr %s501, 8
      %s503 = scalar_lea.vmem %s0, %s502
      %s504 = smul.u32 128, %s27
      %s505 = smul.u32 128, %s27
      %p506 = scmp.lt.s32.totalorder %s26, 1
      %s507 = scalar_select %p506, %s26, 1
      %p508 = scmp.lt.s32.totalorder %s505, 127
      %s509 = scalar_select %p508, %s505, 127
      %s510 = smul.addr %s507, 128
      %s511 = sadd.s32 %s509, %s510
      %s512 = smul.addr %s511, 8
      %s513 = scalar_lea.vmem %s1, %s512
      %s514 = smul.u32 128, %s27
      %p515 = scmp.lt.s32.totalorder %s26, 1
      %s516 = scalar_select %p515, %s26, 1
      %s517 = smul.addr %s516, 4
      %s518 = scalar_lea.vmem %s2, %s517
      %p519 = scmp.lt.s32.totalorder %s26, 1
      %s520 = scalar_select %p519, %s26, 1
      %s521 = scalar_lea.vmem %s3, %s520
      %p522 = scmp.lt.s32.totalorder %s26, 1
      %s523 = scalar_select %p522, %s26, 1
      %s524 = smul.addr %s523, 2
      %s525 = smul.addr %s524, 2
      %s526 = scalar_lea.vmem %s5, %s525
      %p527 = scmp.lt.s32.totalorder %s26, 1
      %s528 = scalar_select %p527, %s26, 1
      %s529 = smul.addr %s528, 2
      %s530 = scalar_lea.vmem %s6, %s529
      %p531 = scmp.lt.s32.totalorder %s26, 1
      %s532 = scalar_select %p531, %s26, 1
      %s533 = scalar_lea.vmem %s10, %s532
      %s534 = smul.u32 128, %s27
      %p535 = scmp.lt.s32.totalorder %s26, 1
      %s536 = scalar_select %p535, %s26, 1
      %p537 = scmp.lt.s32.totalorder %s534, 127
      %s538 = scalar_select %p537, %s534, 127
      %s539 = smul.addr %s536, 128
      %s540 = sadd.s32 %s538, %s539
      %s541 = smul.addr %s540, 8
      %s542 = scalar_lea.vmem %s11, %s541
      %s543 = smul.u32 128, %s27
      %v545 = vld [vmem:[%s503] sm:$0xff]
      %v546 = vld [vmem:[%s503 + $0x8] sm:$0xff]
      %v547 = vld [vmem:[%s503 + $0x10] sm:$0xff]
      %v548 = vld [vmem:[%s503 + $0x18] sm:$0xff]
      %v549 = vld [vmem:[%s503 + $0x20] sm:$0xff]
      %v550 = vld [vmem:[%s503 + $0x28] sm:$0xff]
      %v551 = vld [vmem:[%s503 + $0x30] sm:$0xff]
      %v552 = vld [vmem:[%s503 + $0x38] sm:$0xff]
      %v553 = vld [vmem:[%s503 + $0x40] sm:$0xff]
      %v554 = vld [vmem:[%s503 + $0x48] sm:$0xff]
      %v555 = vld [vmem:[%s503 + $0x50] sm:$0xff]
      %v556 = vld [vmem:[%s503 + $0x58] sm:$0xff]
      %v557 = vld [vmem:[%s503 + $0x60] sm:$0xff]
      %v558 = vld [vmem:[%s503 + $0x68] sm:$0xff]
      %v559 = vld [vmem:[%s503 + $0x70] sm:$0xff]
      %v560 = vld [vmem:[%s503 + $0x78] sm:$0xff]
      %v561 = vld [vmem:[%s503 + $0x80] sm:$0xff]
      %v562 = vld [vmem:[%s503 + $0x88] sm:$0xff]
      %v563 = vld [vmem:[%s503 + $0x90] sm:$0xff]
      %v564 = vld [vmem:[%s503 + $0x98] sm:$0xff]
      %v565 = vld [vmem:[%s503 + $0xa0] sm:$0xff]
      %v566 = vld [vmem:[%s503 + $0xa8] sm:$0xff]
      %v567 = vld [vmem:[%s503 + $0xb0] sm:$0xff]
      %v568 = vld [vmem:[%s503 + $0xb8] sm:$0xff]
      %v569 = vld [vmem:[%s503 + $0xc0] sm:$0xff]
      %v570 = vld [vmem:[%s503 + $0xc8] sm:$0xff]
      %v571 = vld [vmem:[%s503 + $0xd0] sm:$0xff]
      %v572 = vld [vmem:[%s503 + $0xd8] sm:$0xff]
      %v573 = vld [vmem:[%s503 + $0xe0] sm:$0xff]
      %v574 = vld [vmem:[%s503 + $0xe8] sm:$0xff]
      %v575 = vld [vmem:[%s503 + $0xf0] sm:$0xff]
      %v576 = vld [vmem:[%s503 + $0xf8] sm:$0xff]
      %v577 = vld [vmem:[%s503 + $0x100] sm:$0xff]
      %v578 = vld [vmem:[%s503 + $0x108] sm:$0xff]
      %v579 = vld [vmem:[%s503 + $0x110] sm:$0xff]
      %v580 = vld [vmem:[%s503 + $0x118] sm:$0xff]
      %v581 = vld [vmem:[%s503 + $0x120] sm:$0xff]
      %v582 = vld [vmem:[%s503 + $0x128] sm:$0xff]
      %v583 = vld [vmem:[%s503 + $0x130] sm:$0xff]
      %v584 = vld [vmem:[%s503 + $0x138] sm:$0xff]
      %v585 = vld [vmem:[%s503 + $0x140] sm:$0xff]
      %v586 = vld [vmem:[%s503 + $0x148] sm:$0xff]
      %v587 = vld [vmem:[%s503 + $0x150] sm:$0xff]
      %v588 = vld [vmem:[%s503 + $0x158] sm:$0xff]
      %v589 = vld [vmem:[%s503 + $0x160] sm:$0xff]
      %v590 = vld [vmem:[%s503 + $0x168] sm:$0xff]
      %v591 = vld [vmem:[%s503 + $0x170] sm:$0xff]
      %v592 = vld [vmem:[%s503 + $0x178] sm:$0xff]
      %v593 = vld [vmem:[%s503 + $0x180] sm:$0xff]
      %v594 = vld [vmem:[%s503 + $0x188] sm:$0xff]
      %v595 = vld [vmem:[%s503 + $0x190] sm:$0xff]
      %v596 = vld [vmem:[%s503 + $0x198] sm:$0xff]
      %v597 = vld [vmem:[%s503 + $0x1a0] sm:$0xff]
      %v598 = vld [vmem:[%s503 + $0x1a8] sm:$0xff]
      %v599 = vld [vmem:[%s503 + $0x1b0] sm:$0xff]
      %v600 = vld [vmem:[%s503 + $0x1b8] sm:$0xff]
      %v601 = vld [vmem:[%s503 + $0x1c0] sm:$0xff]
      %v602 = vld [vmem:[%s503 + $0x1c8] sm:$0xff]
      %v603 = vld [vmem:[%s503 + $0x1d0] sm:$0xff]
      %v604 = vld [vmem:[%s503 + $0x1d8] sm:$0xff]
      %v605 = vld [vmem:[%s503 + $0x1e0] sm:$0xff]
      %v606 = vld [vmem:[%s503 + $0x1e8] sm:$0xff]
      %v607 = vld [vmem:[%s503 + $0x1f0] sm:$0xff]
      %v608 = vld [vmem:[%s503 + $0x1f8] sm:$0xff]
      %v609 = vld [vmem:[%s503 + $0x200] sm:$0xff]
      %v610 = vld [vmem:[%s503 + $0x208] sm:$0xff]
      %v611 = vld [vmem:[%s503 + $0x210] sm:$0xff]
      %v612 = vld [vmem:[%s503 + $0x218] sm:$0xff]
      %v613 = vld [vmem:[%s503 + $0x220] sm:$0xff]
      %v614 = vld [vmem:[%s503 + $0x228] sm:$0xff]
      %v615 = vld [vmem:[%s503 + $0x230] sm:$0xff]
      %v616 = vld [vmem:[%s503 + $0x238] sm:$0xff]
      %v617 = vld [vmem:[%s503 + $0x240] sm:$0xff]
      %v618 = vld [vmem:[%s503 + $0x248] sm:$0xff]
      %v619 = vld [vmem:[%s503 + $0x250] sm:$0xff]
      %v620 = vld [vmem:[%s503 + $0x258] sm:$0xff]
      %v621 = vld [vmem:[%s503 + $0x260] sm:$0xff]
      %v622 = vld [vmem:[%s503 + $0x268] sm:$0xff]
      %v623 = vld [vmem:[%s503 + $0x270] sm:$0xff]
      %v624 = vld [vmem:[%s503 + $0x278] sm:$0xff]
      %v625 = vld [vmem:[%s503 + $0x280] sm:$0xff]
      %v626 = vld [vmem:[%s503 + $0x288] sm:$0xff]
      %v627 = vld [vmem:[%s503 + $0x290] sm:$0xff]
      %v628 = vld [vmem:[%s503 + $0x298] sm:$0xff]
      %v629 = vld [vmem:[%s503 + $0x2a0] sm:$0xff]
      %v630 = vld [vmem:[%s503 + $0x2a8] sm:$0xff]
      %v631 = vld [vmem:[%s503 + $0x2b0] sm:$0xff]
      %v632 = vld [vmem:[%s503 + $0x2b8] sm:$0xff]
      %v633 = vld [vmem:[%s503 + $0x2c0] sm:$0xff]
      %v634 = vld [vmem:[%s503 + $0x2c8] sm:$0xff]
      %v635 = vld [vmem:[%s503 + $0x2d0] sm:$0xff]
      %v636 = vld [vmem:[%s503 + $0x2d8] sm:$0xff]
      %v637 = vld [vmem:[%s503 + $0x2e0] sm:$0xff]
      %v638 = vld [vmem:[%s503 + $0x2e8] sm:$0xff]
      %v639 = vld [vmem:[%s503 + $0x2f0] sm:$0xff]
      %v640 = vld [vmem:[%s503 + $0x2f8] sm:$0xff]
      %v641 = vld [vmem:[%s503 + $0x300] sm:$0xff]
      %v642 = vld [vmem:[%s503 + $0x308] sm:$0xff]
      %v643 = vld [vmem:[%s503 + $0x310] sm:$0xff]
      %v644 = vld [vmem:[%s503 + $0x318] sm:$0xff]
      %v645 = vld [vmem:[%s503 + $0x320] sm:$0xff]
      %v646 = vld [vmem:[%s503 + $0x328] sm:$0xff]
      %v647 = vld [vmem:[%s503 + $0x330] sm:$0xff]
      %v648 = vld [vmem:[%s503 + $0x338] sm:$0xff]
      %v649 = vld [vmem:[%s503 + $0x340] sm:$0xff]
      %v650 = vld [vmem:[%s503 + $0x348] sm:$0xff]
      %v651 = vld [vmem:[%s503 + $0x350] sm:$0xff]
      %v652 = vld [vmem:[%s503 + $0x358] sm:$0xff]
      %v653 = vld [vmem:[%s503 + $0x360] sm:$0xff]
      %v654 = vld [vmem:[%s503 + $0x368] sm:$0xff]
      %v655 = vld [vmem:[%s503 + $0x370] sm:$0xff]
      %v656 = vld [vmem:[%s503 + $0x378] sm:$0xff]
      %v657 = vld [vmem:[%s503 + $0x380] sm:$0xff]
      %v658 = vld [vmem:[%s503 + $0x388] sm:$0xff]
      %v659 = vld [vmem:[%s503 + $0x390] sm:$0xff]
      %v660 = vld [vmem:[%s503 + $0x398] sm:$0xff]
      %v661 = vld [vmem:[%s503 + $0x3a0] sm:$0xff]
      %v662 = vld [vmem:[%s503 + $0x3a8] sm:$0xff]
      %v663 = vld [vmem:[%s503 + $0x3b0] sm:$0xff]
      %v664 = vld [vmem:[%s503 + $0x3b8] sm:$0xff]
      %v665 = vld [vmem:[%s503 + $0x3c0] sm:$0xff]
      %v666 = vld [vmem:[%s503 + $0x3c8] sm:$0xff]
      %v667 = vld [vmem:[%s503 + $0x3d0] sm:$0xff]
      %v668 = vld [vmem:[%s503 + $0x3d8] sm:$0xff]
      %v669 = vld [vmem:[%s503 + $0x3e0] sm:$0xff]
      %v670 = vld [vmem:[%s503 + $0x3e8] sm:$0xff]
      %v671 = vld [vmem:[%s503 + $0x3f0] sm:$0xff]
      %v672 = vld [vmem:[%s503 + $0x3f8] sm:$0xff]
      %v673 = vld [vmem:[%s513] sm:$0xff]
      %v674 = vld [vmem:[%s513 + $0x8] sm:$0xff]
      %v675 = vld [vmem:[%s513 + $0x10] sm:$0xff]
      %v676 = vld [vmem:[%s513 + $0x18] sm:$0xff]
      %v677 = vld [vmem:[%s513 + $0x20] sm:$0xff]
      %v678 = vld [vmem:[%s513 + $0x28] sm:$0xff]
      %v679 = vld [vmem:[%s513 + $0x30] sm:$0xff]
      %v680 = vld [vmem:[%s513 + $0x38] sm:$0xff]
      %v681 = vld [vmem:[%s513 + $0x40] sm:$0xff]
      %v682 = vld [vmem:[%s513 + $0x48] sm:$0xff]
      %v683 = vld [vmem:[%s513 + $0x50] sm:$0xff]
      %v684 = vld [vmem:[%s513 + $0x58] sm:$0xff]
      %v685 = vld [vmem:[%s513 + $0x60] sm:$0xff]
      %v686 = vld [vmem:[%s513 + $0x68] sm:$0xff]
      %v687 = vld [vmem:[%s513 + $0x70] sm:$0xff]
      %v688 = vld [vmem:[%s513 + $0x78] sm:$0xff]
      %v689 = vld [vmem:[%s513 + $0x80] sm:$0xff]
      %v690 = vld [vmem:[%s513 + $0x88] sm:$0xff]
      %v691 = vld [vmem:[%s513 + $0x90] sm:$0xff]
      %v692 = vld [vmem:[%s513 + $0x98] sm:$0xff]
      %v693 = vld [vmem:[%s513 + $0xa0] sm:$0xff]
      %v694 = vld [vmem:[%s513 + $0xa8] sm:$0xff]
      %v695 = vld [vmem:[%s513 + $0xb0] sm:$0xff]
      %v696 = vld [vmem:[%s513 + $0xb8] sm:$0xff]
      %v697 = vld [vmem:[%s513 + $0xc0] sm:$0xff]
      %v698 = vld [vmem:[%s513 + $0xc8] sm:$0xff]
      %v699 = vld [vmem:[%s513 + $0xd0] sm:$0xff]
      %v700 = vld [vmem:[%s513 + $0xd8] sm:$0xff]
      %v701 = vld [vmem:[%s513 + $0xe0] sm:$0xff]
      %v702 = vld [vmem:[%s513 + $0xe8] sm:$0xff]
      %v703 = vld [vmem:[%s513 + $0xf0] sm:$0xff]
      %v704 = vld [vmem:[%s513 + $0xf8] sm:$0xff]
      %v705 = vld [vmem:[%s513 + $0x100] sm:$0xff]
      %v706 = vld [vmem:[%s513 + $0x108] sm:$0xff]
      %v707 = vld [vmem:[%s513 + $0x110] sm:$0xff]
      %v708 = vld [vmem:[%s513 + $0x118] sm:$0xff]
      %v709 = vld [vmem:[%s513 + $0x120] sm:$0xff]
      %v710 = vld [vmem:[%s513 + $0x128] sm:$0xff]
      %v711 = vld [vmem:[%s513 + $0x130] sm:$0xff]
      %v712 = vld [vmem:[%s513 + $0x138] sm:$0xff]
      %v713 = vld [vmem:[%s513 + $0x140] sm:$0xff]
      %v714 = vld [vmem:[%s513 + $0x148] sm:$0xff]
      %v715 = vld [vmem:[%s513 + $0x150] sm:$0xff]
      %v716 = vld [vmem:[%s513 + $0x158] sm:$0xff]
      %v717 = vld [vmem:[%s513 + $0x160] sm:$0xff]
      %v718 = vld [vmem:[%s513 + $0x168] sm:$0xff]
      %v719 = vld [vmem:[%s513 + $0x170] sm:$0xff]
      %v720 = vld [vmem:[%s513 + $0x178] sm:$0xff]
      %v721 = vld [vmem:[%s513 + $0x180] sm:$0xff]
      %v722 = vld [vmem:[%s513 + $0x188] sm:$0xff]
      %v723 = vld [vmem:[%s513 + $0x190] sm:$0xff]
      %v724 = vld [vmem:[%s513 + $0x198] sm:$0xff]
      %v725 = vld [vmem:[%s513 + $0x1a0] sm:$0xff]
      %v726 = vld [vmem:[%s513 + $0x1a8] sm:$0xff]
      %v727 = vld [vmem:[%s513 + $0x1b0] sm:$0xff]
      %v728 = vld [vmem:[%s513 + $0x1b8] sm:$0xff]
      %v729 = vld [vmem:[%s513 + $0x1c0] sm:$0xff]
      %v730 = vld [vmem:[%s513 + $0x1c8] sm:$0xff]
      %v731 = vld [vmem:[%s513 + $0x1d0] sm:$0xff]
      %v732 = vld [vmem:[%s513 + $0x1d8] sm:$0xff]
      %v733 = vld [vmem:[%s513 + $0x1e0] sm:$0xff]
      %v734 = vld [vmem:[%s513 + $0x1e8] sm:$0xff]
      %v735 = vld [vmem:[%s513 + $0x1f0] sm:$0xff]
      %v736 = vld [vmem:[%s513 + $0x1f8] sm:$0xff]
      %v737 = vld [vmem:[%s513 + $0x200] sm:$0xff]
      %v738 = vld [vmem:[%s513 + $0x208] sm:$0xff]
      %v739 = vld [vmem:[%s513 + $0x210] sm:$0xff]
      %v740 = vld [vmem:[%s513 + $0x218] sm:$0xff]
      %v741 = vld [vmem:[%s513 + $0x220] sm:$0xff]
      %v742 = vld [vmem:[%s513 + $0x228] sm:$0xff]
      %v743 = vld [vmem:[%s513 + $0x230] sm:$0xff]
      %v744 = vld [vmem:[%s513 + $0x238] sm:$0xff]
      %v745 = vld [vmem:[%s513 + $0x240] sm:$0xff]
      %v746 = vld [vmem:[%s513 + $0x248] sm:$0xff]
      %v747 = vld [vmem:[%s513 + $0x250] sm:$0xff]
      %v748 = vld [vmem:[%s513 + $0x258] sm:$0xff]
      %v749 = vld [vmem:[%s513 + $0x260] sm:$0xff]
      %v750 = vld [vmem:[%s513 + $0x268] sm:$0xff]
      %v751 = vld [vmem:[%s513 + $0x270] sm:$0xff]
      %v752 = vld [vmem:[%s513 + $0x278] sm:$0xff]
      %v753 = vld [vmem:[%s513 + $0x280] sm:$0xff]
      %v754 = vld [vmem:[%s513 + $0x288] sm:$0xff]
      %v755 = vld [vmem:[%s513 + $0x290] sm:$0xff]
      %v756 = vld [vmem:[%s513 + $0x298] sm:$0xff]
      %v757 = vld [vmem:[%s513 + $0x2a0] sm:$0xff]
      %v758 = vld [vmem:[%s513 + $0x2a8] sm:$0xff]
      %v759 = vld [vmem:[%s513 + $0x2b0] sm:$0xff]
      %v760 = vld [vmem:[%s513 + $0x2b8] sm:$0xff]
      %v761 = vld [vmem:[%s513 + $0x2c0] sm:$0xff]
      %v762 = vld [vmem:[%s513 + $0x2c8] sm:$0xff]
      %v763 = vld [vmem:[%s513 + $0x2d0] sm:$0xff]
      %v764 = vld [vmem:[%s513 + $0x2d8] sm:$0xff]
      %v765 = vld [vmem:[%s513 + $0x2e0] sm:$0xff]
      %v766 = vld [vmem:[%s513 + $0x2e8] sm:$0xff]
      %v767 = vld [vmem:[%s513 + $0x2f0] sm:$0xff]
      %v768 = vld [vmem:[%s513 + $0x2f8] sm:$0xff]
      %v769 = vld [vmem:[%s513 + $0x300] sm:$0xff]
      %v770 = vld [vmem:[%s513 + $0x308] sm:$0xff]
      %v771 = vld [vmem:[%s513 + $0x310] sm:$0xff]
      %v772 = vld [vmem:[%s513 + $0x318] sm:$0xff]
      %v773 = vld [vmem:[%s513 + $0x320] sm:$0xff]
      %v774 = vld [vmem:[%s513 + $0x328] sm:$0xff]
      %v775 = vld [vmem:[%s513 + $0x330] sm:$0xff]
      %v776 = vld [vmem:[%s513 + $0x338] sm:$0xff]
      %v777 = vld [vmem:[%s513 + $0x340] sm:$0xff]
      %v778 = vld [vmem:[%s513 + $0x348] sm:$0xff]
      %v779 = vld [vmem:[%s513 + $0x350] sm:$0xff]
      %v780 = vld [vmem:[%s513 + $0x358] sm:$0xff]
      %v781 = vld [vmem:[%s513 + $0x360] sm:$0xff]
      %v782 = vld [vmem:[%s513 + $0x368] sm:$0xff]
      %v783 = vld [vmem:[%s513 + $0x370] sm:$0xff]
      %v784 = vld [vmem:[%s513 + $0x378] sm:$0xff]
      %v785 = vld [vmem:[%s513 + $0x380] sm:$0xff]
      %v786 = vld [vmem:[%s513 + $0x388] sm:$0xff]
      %v787 = vld [vmem:[%s513 + $0x390] sm:$0xff]
      %v788 = vld [vmem:[%s513 + $0x398] sm:$0xff]
      %v789 = vld [vmem:[%s513 + $0x3a0] sm:$0xff]
      %v790 = vld [vmem:[%s513 + $0x3a8] sm:$0xff]
      %v791 = vld [vmem:[%s513 + $0x3b0] sm:$0xff]
      %v792 = vld [vmem:[%s513 + $0x3b8] sm:$0xff]
      %v793 = vld [vmem:[%s513 + $0x3c0] sm:$0xff]
      %v794 = vld [vmem:[%s513 + $0x3c8] sm:$0xff]
      %v795 = vld [vmem:[%s513 + $0x3d0] sm:$0xff]
      %v796 = vld [vmem:[%s513 + $0x3d8] sm:$0xff]
      %v797 = vld [vmem:[%s513 + $0x3e0] sm:$0xff]
      %v798 = vld [vmem:[%s513 + $0x3e8] sm:$0xff]
      %v799 = vld [vmem:[%s513 + $0x3f0] sm:$0xff]
      %v800 = vld [vmem:[%s513 + $0x3f8] sm:$0xff]
      %v801 = vld [vmem:[%s518] sm:$0x7]
      %803 = vset.pattern.permute.xlu0 0
      %804 = vperm.xlu0 %803, %v673
      %v805 = vpop.permute.xlu0 %804
      %808 = vset.pattern.permute.xlu0 0
      %809 = vperm.xlu0 %808, %v674
      %v810 = vpop.permute.xlu0 %809
      %813 = vset.pattern.permute.xlu0 0
      %814 = vperm.xlu0 %813, %v675
      %v815 = vpop.permute.xlu0 %814
      %818 = vset.pattern.permute.xlu0 0
      %819 = vperm.xlu0 %818, %v676
      %v820 = vpop.permute.xlu0 %819
      %823 = vset.pattern.permute.xlu0 0
      %824 = vperm.xlu0 %823, %v677
      %v825 = vpop.permute.xlu0 %824
      %828 = vset.pattern.permute.xlu0 0
      %829 = vperm.xlu0 %828, %v678
      %v830 = vpop.permute.xlu0 %829
      %833 = vset.pattern.permute.xlu0 0
      %834 = vperm.xlu0 %833, %v679
      %v835 = vpop.permute.xlu0 %834
      %838 = vset.pattern.permute.xlu0 0
      %839 = vperm.xlu0 %838, %v680
      %v840 = vpop.permute.xlu0 %839
      %843 = vset.pattern.permute.xlu0 0
      %844 = vperm.xlu0 %843, %v681
      %v845 = vpop.permute.xlu0 %844
      %848 = vset.pattern.permute.xlu0 0
      %849 = vperm.xlu0 %848, %v682
      %v850 = vpop.permute.xlu0 %849
      %853 = vset.pattern.permute.xlu0 0
      %854 = vperm.xlu0 %853, %v683
      %v855 = vpop.permute.xlu0 %854
      %858 = vset.pattern.permute.xlu0 0
      %859 = vperm.xlu0 %858, %v684
      %v860 = vpop.permute.xlu0 %859
      %863 = vset.pattern.permute.xlu0 0
      %864 = vperm.xlu0 %863, %v685
      %v865 = vpop.permute.xlu0 %864
      %868 = vset.pattern.permute.xlu0 0
      %869 = vperm.xlu0 %868, %v686
      %v870 = vpop.permute.xlu0 %869
      %873 = vset.pattern.permute.xlu0 0
      %874 = vperm.xlu0 %873, %v687
      %v875 = vpop.permute.xlu0 %874
      %878 = vset.pattern.permute.xlu0 0
      %879 = vperm.xlu0 %878, %v688
      %v880 = vpop.permute.xlu0 %879
      %883 = vset.pattern.permute.xlu0 0
      %884 = vperm.xlu0 %883, %v689
      %v885 = vpop.permute.xlu0 %884
      %888 = vset.pattern.permute.xlu0 0
      %889 = vperm.xlu0 %888, %v690
      %v890 = vpop.permute.xlu0 %889
      %893 = vset.pattern.permute.xlu0 0
      %894 = vperm.xlu0 %893, %v691
      %v895 = vpop.permute.xlu0 %894
      %898 = vset.pattern.permute.xlu0 0
      %899 = vperm.xlu0 %898, %v692
      %v900 = vpop.permute.xlu0 %899
      %903 = vset.pattern.permute.xlu0 0
      %904 = vperm.xlu0 %903, %v693
      %v905 = vpop.permute.xlu0 %904
      %908 = vset.pattern.permute.xlu0 0
      %909 = vperm.xlu0 %908, %v694
      %v910 = vpop.permute.xlu0 %909
      %913 = vset.pattern.permute.xlu0 0
      %914 = vperm.xlu0 %913, %v695
      %v915 = vpop.permute.xlu0 %914
      %918 = vset.pattern.permute.xlu0 0
      %919 = vperm.xlu0 %918, %v696
      %v920 = vpop.permute.xlu0 %919
      %923 = vset.pattern.permute.xlu0 0
      %924 = vperm.xlu0 %923, %v697
      %v925 = vpop.permute.xlu0 %924
      %928 = vset.pattern.permute.xlu0 0
      %929 = vperm.xlu0 %928, %v698
      %v930 = vpop.permute.xlu0 %929
      %933 = vset.pattern.permute.xlu0 0
      %934 = vperm.xlu0 %933, %v699
      %v935 = vpop.permute.xlu0 %934
      %938 = vset.pattern.permute.xlu0 0
      %939 = vperm.xlu0 %938, %v700
      %v940 = vpop.permute.xlu0 %939
      %943 = vset.pattern.permute.xlu0 0
      %944 = vperm.xlu0 %943, %v701
      %v945 = vpop.permute.xlu0 %944
      %948 = vset.pattern.permute.xlu0 0
      %949 = vperm.xlu0 %948, %v702
      %v950 = vpop.permute.xlu0 %949
      %953 = vset.pattern.permute.xlu0 0
      %954 = vperm.xlu0 %953, %v703
      %v955 = vpop.permute.xlu0 %954
      %958 = vset.pattern.permute.xlu0 0
      %959 = vperm.xlu0 %958, %v704
      %v960 = vpop.permute.xlu0 %959
      %963 = vset.pattern.permute.xlu0 0
      %964 = vperm.xlu0 %963, %v705
      %v965 = vpop.permute.xlu0 %964
      %968 = vset.pattern.permute.xlu0 0
      %969 = vperm.xlu0 %968, %v706
      %v970 = vpop.permute.xlu0 %969
      %973 = vset.pattern.permute.xlu0 0
      %974 = vperm.xlu0 %973, %v707
      %v975 = vpop.permute.xlu0 %974
      %978 = vset.pattern.permute.xlu0 0
      %979 = vperm.xlu0 %978, %v708
      %v980 = vpop.permute.xlu0 %979
      %983 = vset.pattern.permute.xlu0 0
      %984 = vperm.xlu0 %983, %v709
      %v985 = vpop.permute.xlu0 %984
      %988 = vset.pattern.permute.xlu0 0
      %989 = vperm.xlu0 %988, %v710
      %v990 = vpop.permute.xlu0 %989
      %993 = vset.pattern.permute.xlu0 0
      %994 = vperm.xlu0 %993, %v711
      %v995 = vpop.permute.xlu0 %994
      %998 = vset.pattern.permute.xlu0 0
      %999 = vperm.xlu0 %998, %v712
      %v1000 = vpop.permute.xlu0 %999
      %1003 = vset.pattern.permute.xlu0 0
      %1004 = vperm.xlu0 %1003, %v713
      %v1005 = vpop.permute.xlu0 %1004
      %1008 = vset.pattern.permute.xlu0 0
      %1009 = vperm.xlu0 %1008, %v714
      %v1010 = vpop.permute.xlu0 %1009
      %1013 = vset.pattern.permute.xlu0 0
      %1014 = vperm.xlu0 %1013, %v715
      %v1015 = vpop.permute.xlu0 %1014
      %1018 = vset.pattern.permute.xlu0 0
      %1019 = vperm.xlu0 %1018, %v716
      %v1020 = vpop.permute.xlu0 %1019
      %1023 = vset.pattern.permute.xlu0 0
      %1024 = vperm.xlu0 %1023, %v717
      %v1025 = vpop.permute.xlu0 %1024
      %1028 = vset.pattern.permute.xlu0 0
      %1029 = vperm.xlu0 %1028, %v718
      %v1030 = vpop.permute.xlu0 %1029
      %1033 = vset.pattern.permute.xlu0 0
      %1034 = vperm.xlu0 %1033, %v719
      %v1035 = vpop.permute.xlu0 %1034
      %1038 = vset.pattern.permute.xlu0 0
      %1039 = vperm.xlu0 %1038, %v720
      %v1040 = vpop.permute.xlu0 %1039
      %1043 = vset.pattern.permute.xlu0 0
      %1044 = vperm.xlu0 %1043, %v721
      %v1045 = vpop.permute.xlu0 %1044
      %1048 = vset.pattern.permute.xlu0 0
      %1049 = vperm.xlu0 %1048, %v722
      %v1050 = vpop.permute.xlu0 %1049
      %1053 = vset.pattern.permute.xlu0 0
      %1054 = vperm.xlu0 %1053, %v723
      %v1055 = vpop.permute.xlu0 %1054
      %1058 = vset.pattern.permute.xlu0 0
      %1059 = vperm.xlu0 %1058, %v724
      %v1060 = vpop.permute.xlu0 %1059
      %1063 = vset.pattern.permute.xlu0 0
      %1064 = vperm.xlu0 %1063, %v725
      %v1065 = vpop.permute.xlu0 %1064
      %1068 = vset.pattern.permute.xlu0 0
      %1069 = vperm.xlu0 %1068, %v726
      %v1070 = vpop.permute.xlu0 %1069
      %1073 = vset.pattern.permute.xlu0 0
      %1074 = vperm.xlu0 %1073, %v727
      %v1075 = vpop.permute.xlu0 %1074
      %1078 = vset.pattern.permute.xlu0 0
      %1079 = vperm.xlu0 %1078, %v728
      %v1080 = vpop.permute.xlu0 %1079
      %1083 = vset.pattern.permute.xlu0 0
      %1084 = vperm.xlu0 %1083, %v729
      %v1085 = vpop.permute.xlu0 %1084
      %1088 = vset.pattern.permute.xlu0 0
      %1089 = vperm.xlu0 %1088, %v730
      %v1090 = vpop.permute.xlu0 %1089
      %1093 = vset.pattern.permute.xlu0 0
      %1094 = vperm.xlu0 %1093, %v731
      %v1095 = vpop.permute.xlu0 %1094
      %1098 = vset.pattern.permute.xlu0 0
      %1099 = vperm.xlu0 %1098, %v732
      %v1100 = vpop.permute.xlu0 %1099
      %1103 = vset.pattern.permute.xlu0 0
      %1104 = vperm.xlu0 %1103, %v733
      %v1105 = vpop.permute.xlu0 %1104
      %1108 = vset.pattern.permute.xlu0 0
      %1109 = vperm.xlu0 %1108, %v734
      %v1110 = vpop.permute.xlu0 %1109
      %1113 = vset.pattern.permute.xlu0 0
      %1114 = vperm.xlu0 %1113, %v735
      %v1115 = vpop.permute.xlu0 %1114
      %1118 = vset.pattern.permute.xlu0 0
      %1119 = vperm.xlu0 %1118, %v736
      %v1120 = vpop.permute.xlu0 %1119
      %1123 = vset.pattern.permute.xlu0 0
      %1124 = vperm.xlu0 %1123, %v737
      %v1125 = vpop.permute.xlu0 %1124
      %1128 = vset.pattern.permute.xlu0 0
      %1129 = vperm.xlu0 %1128, %v738
      %v1130 = vpop.permute.xlu0 %1129
      %1133 = vset.pattern.permute.xlu0 0
      %1134 = vperm.xlu0 %1133, %v739
      %v1135 = vpop.permute.xlu0 %1134
      %1138 = vset.pattern.permute.xlu0 0
      %1139 = vperm.xlu0 %1138, %v740
      %v1140 = vpop.permute.xlu0 %1139
      %1143 = vset.pattern.permute.xlu0 0
      %1144 = vperm.xlu0 %1143, %v741
      %v1145 = vpop.permute.xlu0 %1144
      %1148 = vset.pattern.permute.xlu0 0
      %1149 = vperm.xlu0 %1148, %v742
      %v1150 = vpop.permute.xlu0 %1149
      %1153 = vset.pattern.permute.xlu0 0
      %1154 = vperm.xlu0 %1153, %v743
      %v1155 = vpop.permute.xlu0 %1154
      %1158 = vset.pattern.permute.xlu0 0
      %1159 = vperm.xlu0 %1158, %v744
      %v1160 = vpop.permute.xlu0 %1159
      %1163 = vset.pattern.permute.xlu0 0
      %1164 = vperm.xlu0 %1163, %v745
      %v1165 = vpop.permute.xlu0 %1164
      %1168 = vset.pattern.permute.xlu0 0
      %1169 = vperm.xlu0 %1168, %v746
      %v1170 = vpop.permute.xlu0 %1169
      %1173 = vset.pattern.permute.xlu0 0
      %1174 = vperm.xlu0 %1173, %v747
      %v1175 = vpop.permute.xlu0 %1174
      %1178 = vset.pattern.permute.xlu0 0
      %1179 = vperm.xlu0 %1178, %v748
      %v1180 = vpop.permute.xlu0 %1179
      %1183 = vset.pattern.permute.xlu0 0
      %1184 = vperm.xlu0 %1183, %v749
      %v1185 = vpop.permute.xlu0 %1184
      %1188 = vset.pattern.permute.xlu0 0
      %1189 = vperm.xlu0 %1188, %v750
      %v1190 = vpop.permute.xlu0 %1189
      %1193 = vset.pattern.permute.xlu0 0
      %1194 = vperm.xlu0 %1193, %v751
      %v1195 = vpop.permute.xlu0 %1194
      %1198 = vset.pattern.permute.xlu0 0
      %1199 = vperm.xlu0 %1198, %v752
      %v1200 = vpop.permute.xlu0 %1199
      %1203 = vset.pattern.permute.xlu0 0
      %1204 = vperm.xlu0 %1203, %v753
      %v1205 = vpop.permute.xlu0 %1204
      %1208 = vset.pattern.permute.xlu0 0
      %1209 = vperm.xlu0 %1208, %v754
      %v1210 = vpop.permute.xlu0 %1209
      %1213 = vset.pattern.permute.xlu0 0
      %1214 = vperm.xlu0 %1213, %v755
      %v1215 = vpop.permute.xlu0 %1214
      %1218 = vset.pattern.permute.xlu0 0
      %1219 = vperm.xlu0 %1218, %v756
      %v1220 = vpop.permute.xlu0 %1219
      %1223 = vset.pattern.permute.xlu0 0
      %1224 = vperm.xlu0 %1223, %v757
      %v1225 = vpop.permute.xlu0 %1224
      %1228 = vset.pattern.permute.xlu0 0
      %1229 = vperm.xlu0 %1228, %v758
      %v1230 = vpop.permute.xlu0 %1229
      %1233 = vset.pattern.permute.xlu0 0
      %1234 = vperm.xlu0 %1233, %v759
      %v1235 = vpop.permute.xlu0 %1234
      %1238 = vset.pattern.permute.xlu0 0
      %1239 = vperm.xlu0 %1238, %v760
      %v1240 = vpop.permute.xlu0 %1239
      %1243 = vset.pattern.permute.xlu0 0
      %1244 = vperm.xlu0 %1243, %v761
      %v1245 = vpop.permute.xlu0 %1244
      %1248 = vset.pattern.permute.xlu0 0
      %1249 = vperm.xlu0 %1248, %v762
      %v1250 = vpop.permute.xlu0 %1249
      %1253 = vset.pattern.permute.xlu0 0
      %1254 = vperm.xlu0 %1253, %v763
      %v1255 = vpop.permute.xlu0 %1254
      %1258 = vset.pattern.permute.xlu0 0
      %1259 = vperm.xlu0 %1258, %v764
      %v1260 = vpop.permute.xlu0 %1259
      %1263 = vset.pattern.permute.xlu0 0
      %1264 = vperm.xlu0 %1263, %v765
      %v1265 = vpop.permute.xlu0 %1264
      %1268 = vset.pattern.permute.xlu0 0
      %1269 = vperm.xlu0 %1268, %v766
      %v1270 = vpop.permute.xlu0 %1269
      %1273 = vset.pattern.permute.xlu0 0
      %1274 = vperm.xlu0 %1273, %v767
      %v1275 = vpop.permute.xlu0 %1274
      %1278 = vset.pattern.permute.xlu0 0
      %1279 = vperm.xlu0 %1278, %v768
      %v1280 = vpop.permute.xlu0 %1279
      %1283 = vset.pattern.permute.xlu0 0
      %1284 = vperm.xlu0 %1283, %v769
      %v1285 = vpop.permute.xlu0 %1284
      %1288 = vset.pattern.permute.xlu0 0
      %1289 = vperm.xlu0 %1288, %v770
      %v1290 = vpop.permute.xlu0 %1289
      %1293 = vset.pattern.permute.xlu0 0
      %1294 = vperm.xlu0 %1293, %v771
      %v1295 = vpop.permute.xlu0 %1294
      %1298 = vset.pattern.permute.xlu0 0
      %1299 = vperm.xlu0 %1298, %v772
      %v1300 = vpop.permute.xlu0 %1299
      %1303 = vset.pattern.permute.xlu0 0
      %1304 = vperm.xlu0 %1303, %v773
      %v1305 = vpop.permute.xlu0 %1304
      %1308 = vset.pattern.permute.xlu0 0
      %1309 = vperm.xlu0 %1308, %v774
      %v1310 = vpop.permute.xlu0 %1309
      %1313 = vset.pattern.permute.xlu0 0
      %1314 = vperm.xlu0 %1313, %v775
      %v1315 = vpop.permute.xlu0 %1314
      %1318 = vset.pattern.permute.xlu0 0
      %1319 = vperm.xlu0 %1318, %v776
      %v1320 = vpop.permute.xlu0 %1319
      %1323 = vset.pattern.permute.xlu0 0
      %1324 = vperm.xlu0 %1323, %v777
      %v1325 = vpop.permute.xlu0 %1324
      %1328 = vset.pattern.permute.xlu0 0
      %1329 = vperm.xlu0 %1328, %v778
      %v1330 = vpop.permute.xlu0 %1329
      %1333 = vset.pattern.permute.xlu0 0
      %1334 = vperm.xlu0 %1333, %v779
      %v1335 = vpop.permute.xlu0 %1334
      %1338 = vset.pattern.permute.xlu0 0
      %1339 = vperm.xlu0 %1338, %v780
      %v1340 = vpop.permute.xlu0 %1339
      %1343 = vset.pattern.permute.xlu0 0
      %1344 = vperm.xlu0 %1343, %v781
      %v1345 = vpop.permute.xlu0 %1344
      %1348 = vset.pattern.permute.xlu0 0
      %1349 = vperm.xlu0 %1348, %v782
      %v1350 = vpop.permute.xlu0 %1349
      %1353 = vset.pattern.permute.xlu0 0
      %1354 = vperm.xlu0 %1353, %v783
      %v1355 = vpop.permute.xlu0 %1354
      %1358 = vset.pattern.permute.xlu0 0
      %1359 = vperm.xlu0 %1358, %v784
      %v1360 = vpop.permute.xlu0 %1359
      %1363 = vset.pattern.permute.xlu0 0
      %1364 = vperm.xlu0 %1363, %v785
      %v1365 = vpop.permute.xlu0 %1364
      %1368 = vset.pattern.permute.xlu0 0
      %1369 = vperm.xlu0 %1368, %v786
      %v1370 = vpop.permute.xlu0 %1369
      %1373 = vset.pattern.permute.xlu0 0
      %1374 = vperm.xlu0 %1373, %v787
      %v1375 = vpop.permute.xlu0 %1374
      %1378 = vset.pattern.permute.xlu0 0
      %1379 = vperm.xlu0 %1378, %v788
      %v1380 = vpop.permute.xlu0 %1379
      %1383 = vset.pattern.permute.xlu0 0
      %1384 = vperm.xlu0 %1383, %v789
      %v1385 = vpop.permute.xlu0 %1384
      %1388 = vset.pattern.permute.xlu0 0
      %1389 = vperm.xlu0 %1388, %v790
      %v1390 = vpop.permute.xlu0 %1389
      %1393 = vset.pattern.permute.xlu0 0
      %1394 = vperm.xlu0 %1393, %v791
      %v1395 = vpop.permute.xlu0 %1394
      %1398 = vset.pattern.permute.xlu0 0
      %1399 = vperm.xlu0 %1398, %v792
      %v1400 = vpop.permute.xlu0 %1399
      %1403 = vset.pattern.permute.xlu0 0
      %1404 = vperm.xlu0 %1403, %v793
      %v1405 = vpop.permute.xlu0 %1404
      %1408 = vset.pattern.permute.xlu0 0
      %1409 = vperm.xlu0 %1408, %v794
      %v1410 = vpop.permute.xlu0 %1409
      %1413 = vset.pattern.permute.xlu0 0
      %1414 = vperm.xlu0 %1413, %v795
      %v1415 = vpop.permute.xlu0 %1414
      %1418 = vset.pattern.permute.xlu0 0
      %1419 = vperm.xlu0 %1418, %v796
      %v1420 = vpop.permute.xlu0 %1419
      %1423 = vset.pattern.permute.xlu0 0
      %1424 = vperm.xlu0 %1423, %v797
      %v1425 = vpop.permute.xlu0 %1424
      %1428 = vset.pattern.permute.xlu0 0
      %1429 = vperm.xlu0 %1428, %v798
      %v1430 = vpop.permute.xlu0 %1429
      %1433 = vset.pattern.permute.xlu0 0
      %1434 = vperm.xlu0 %1433, %v799
      %v1435 = vpop.permute.xlu0 %1434
      %1438 = vset.pattern.permute.xlu0 0
      %1439 = vperm.xlu0 %1438, %v800
      %v1440 = vpop.permute.xlu0 %1439
      %v1442 = vlaneseq
      %v1443 = vshrl.u32 %v1442, 7
      %v1444 = vsub.s32 0, %v1443
      %v1445 = vrot.slane %v801, %v1444
      %v1446 = vmul.f32 %v805, %v1445
      %v1447 = vmul.f32 %v810, %v1445
      %v1448 = vmul.f32 %v815, %v1445
      %v1449 = vmul.f32 %v820, %v1445
      %v1450 = vmul.f32 %v825, %v1445
      %v1451 = vmul.f32 %v830, %v1445
      %v1452 = vmul.f32 %v835, %v1445
      %v1453 = vmul.f32 %v840, %v1445
      %v1454 = vmul.f32 %v845, %v1445
      %v1455 = vmul.f32 %v850, %v1445
      %v1456 = vmul.f32 %v855, %v1445
      %v1457 = vmul.f32 %v860, %v1445
      %v1458 = vmul.f32 %v865, %v1445
      %v1459 = vmul.f32 %v870, %v1445
      %v1460 = vmul.f32 %v875, %v1445
      %v1461 = vmul.f32 %v880, %v1445
      %v1462 = vmul.f32 %v885, %v1445
      %v1463 = vmul.f32 %v890, %v1445
      %v1464 = vmul.f32 %v895, %v1445
      %v1465 = vmul.f32 %v900, %v1445
      %v1466 = vmul.f32 %v905, %v1445
      %v1467 = vmul.f32 %v910, %v1445
      %v1468 = vmul.f32 %v915, %v1445
      %v1469 = vmul.f32 %v920, %v1445
      %v1470 = vmul.f32 %v925, %v1445
      %v1471 = vmul.f32 %v930, %v1445
      %v1472 = vmul.f32 %v935, %v1445
      %v1473 = vmul.f32 %v940, %v1445
      %v1474 = vmul.f32 %v945, %v1445
      %v1475 = vmul.f32 %v950, %v1445
      %v1476 = vmul.f32 %v955, %v1445
      %v1477 = vmul.f32 %v960, %v1445
      %v1478 = vmul.f32 %v965, %v1445
      %v1479 = vmul.f32 %v970, %v1445
      %v1480 = vmul.f32 %v975, %v1445
      %v1481 = vmul.f32 %v980, %v1445
      %v1482 = vmul.f32 %v985, %v1445
      %v1483 = vmul.f32 %v990, %v1445
      %v1484 = vmul.f32 %v995, %v1445
      %v1485 = vmul.f32 %v1000, %v1445
      %v1486 = vmul.f32 %v1005, %v1445
      %v1487 = vmul.f32 %v1010, %v1445
      %v1488 = vmul.f32 %v1015, %v1445
      %v1489 = vmul.f32 %v1020, %v1445
      %v1490 = vmul.f32 %v1025, %v1445
      %v1491 = vmul.f32 %v1030, %v1445
      %v1492 = vmul.f32 %v1035, %v1445
      %v1493 = vmul.f32 %v1040, %v1445
      %v1494 = vmul.f32 %v1045, %v1445
      %v1495 = vmul.f32 %v1050, %v1445
      %v1496 = vmul.f32 %v1055, %v1445
      %v1497 = vmul.f32 %v1060, %v1445
      %v1498 = vmul.f32 %v1065, %v1445
      %v1499 = vmul.f32 %v1070, %v1445
      %v1500 = vmul.f32 %v1075, %v1445
      %v1501 = vmul.f32 %v1080, %v1445
      %v1502 = vmul.f32 %v1085, %v1445
      %v1503 = vmul.f32 %v1090, %v1445
      %v1504 = vmul.f32 %v1095, %v1445
      %v1505 = vmul.f32 %v1100, %v1445
      %v1506 = vmul.f32 %v1105, %v1445
      %v1507 = vmul.f32 %v1110, %v1445
      %v1508 = vmul.f32 %v1115, %v1445
      %v1509 = vmul.f32 %v1120, %v1445
      %v1510 = vmul.f32 %v1125, %v1445
      %v1511 = vmul.f32 %v1130, %v1445
      %v1512 = vmul.f32 %v1135, %v1445
      %v1513 = vmul.f32 %v1140, %v1445
      %v1514 = vmul.f32 %v1145, %v1445
      %v1515 = vmul.f32 %v1150, %v1445
      %v1516 = vmul.f32 %v1155, %v1445
      %v1517 = vmul.f32 %v1160, %v1445
      %v1518 = vmul.f32 %v1165, %v1445
      %v1519 = vmul.f32 %v1170, %v1445
      %v1520 = vmul.f32 %v1175, %v1445
      %v1521 = vmul.f32 %v1180, %v1445
      %v1522 = vmul.f32 %v1185, %v1445
      %v1523 = vmul.f32 %v1190, %v1445
      %v1524 = vmul.f32 %v1195, %v1445
      %v1525 = vmul.f32 %v1200, %v1445
      %v1526 = vmul.f32 %v1205, %v1445
      %v1527 = vmul.f32 %v1210, %v1445
      %v1528 = vmul.f32 %v1215, %v1445
      %v1529 = vmul.f32 %v1220, %v1445
      %v1530 = vmul.f32 %v1225, %v1445
      %v1531 = vmul.f32 %v1230, %v1445
      %v1532 = vmul.f32 %v1235, %v1445
      %v1533 = vmul.f32 %v1240, %v1445
      %v1534 = vmul.f32 %v1245, %v1445
      %v1535 = vmul.f32 %v1250, %v1445
      %v1536 = vmul.f32 %v1255, %v1445
      %v1537 = vmul.f32 %v1260, %v1445
      %v1538 = vmul.f32 %v1265, %v1445
      %v1539 = vmul.f32 %v1270, %v1445
      %v1540 = vmul.f32 %v1275, %v1445
      %v1541 = vmul.f32 %v1280, %v1445
      %v1542 = vmul.f32 %v1285, %v1445
      %v1543 = vmul.f32 %v1290, %v1445
      %v1544 = vmul.f32 %v1295, %v1445
      %v1545 = vmul.f32 %v1300, %v1445
      %v1546 = vmul.f32 %v1305, %v1445
      %v1547 = vmul.f32 %v1310, %v1445
      %v1548 = vmul.f32 %v1315, %v1445
      %v1549 = vmul.f32 %v1320, %v1445
      %v1550 = vmul.f32 %v1325, %v1445
      %v1551 = vmul.f32 %v1330, %v1445
      %v1552 = vmul.f32 %v1335, %v1445
      %v1553 = vmul.f32 %v1340, %v1445
      %v1554 = vmul.f32 %v1345, %v1445
      %v1555 = vmul.f32 %v1350, %v1445
      %v1556 = vmul.f32 %v1355, %v1445
      %v1557 = vmul.f32 %v1360, %v1445
      %v1558 = vmul.f32 %v1365, %v1445
      %v1559 = vmul.f32 %v1370, %v1445
      %v1560 = vmul.f32 %v1375, %v1445
      %v1561 = vmul.f32 %v1380, %v1445
      %v1562 = vmul.f32 %v1385, %v1445
      %v1563 = vmul.f32 %v1390, %v1445
      %v1564 = vmul.f32 %v1395, %v1445
      %v1565 = vmul.f32 %v1400, %v1445
      %v1566 = vmul.f32 %v1405, %v1445
      %v1567 = vmul.f32 %v1410, %v1445
      %v1568 = vmul.f32 %v1415, %v1445
      %v1569 = vmul.f32 %v1420, %v1445
      %v1570 = vmul.f32 %v1425, %v1445
      %v1571 = vmul.f32 %v1430, %v1445
      %v1572 = vmul.f32 %v1435, %v1445
      %v1573 = vmul.f32 %v1440, %v1445
      %1574 = vset.pattern.permute.xlu0 1
      %1575 = vperm.xlu0 %1574, %v673
      %v1576 = vpop.permute.xlu0 %1575
      %1578 = vset.pattern.permute.xlu0 1
      %1579 = vperm.xlu0 %1578, %v674
      %v1580 = vpop.permute.xlu0 %1579
      %1582 = vset.pattern.permute.xlu0 1
      %1583 = vperm.xlu0 %1582, %v675
      %v1584 = vpop.permute.xlu0 %1583
      %1586 = vset.pattern.permute.xlu0 1
      %1587 = vperm.xlu0 %1586, %v676
      %v1588 = vpop.permute.xlu0 %1587
      %1590 = vset.pattern.permute.xlu0 1
      %1591 = vperm.xlu0 %1590, %v677
      %v1592 = vpop.permute.xlu0 %1591
      %1594 = vset.pattern.permute.xlu0 1
      %1595 = vperm.xlu0 %1594, %v678
      %v1596 = vpop.permute.xlu0 %1595
      %1598 = vset.pattern.permute.xlu0 1
      %1599 = vperm.xlu0 %1598, %v679
      %v1600 = vpop.permute.xlu0 %1599
      %1602 = vset.pattern.permute.xlu0 1
      %1603 = vperm.xlu0 %1602, %v680
      %v1604 = vpop.permute.xlu0 %1603
      %1606 = vset.pattern.permute.xlu0 1
      %1607 = vperm.xlu0 %1606, %v681
      %v1608 = vpop.permute.xlu0 %1607
      %1610 = vset.pattern.permute.xlu0 1
      %1611 = vperm.xlu0 %1610, %v682
      %v1612 = vpop.permute.xlu0 %1611
      %1614 = vset.pattern.permute.xlu0 1
      %1615 = vperm.xlu0 %1614, %v683
      %v1616 = vpop.permute.xlu0 %1615
      %1618 = vset.pattern.permute.xlu0 1
      %1619 = vperm.xlu0 %1618, %v684
      %v1620 = vpop.permute.xlu0 %1619
      %1622 = vset.pattern.permute.xlu0 1
      %1623 = vperm.xlu0 %1622, %v685
      %v1624 = vpop.permute.xlu0 %1623
      %1626 = vset.pattern.permute.xlu0 1
      %1627 = vperm.xlu0 %1626, %v686
      %v1628 = vpop.permute.xlu0 %1627
      %1630 = vset.pattern.permute.xlu0 1
      %1631 = vperm.xlu0 %1630, %v687
      %v1632 = vpop.permute.xlu0 %1631
      %1634 = vset.pattern.permute.xlu0 1
      %1635 = vperm.xlu0 %1634, %v688
      %v1636 = vpop.permute.xlu0 %1635
      %1638 = vset.pattern.permute.xlu0 1
      %1639 = vperm.xlu0 %1638, %v689
      %v1640 = vpop.permute.xlu0 %1639
      %1642 = vset.pattern.permute.xlu0 1
      %1643 = vperm.xlu0 %1642, %v690
      %v1644 = vpop.permute.xlu0 %1643
      %1646 = vset.pattern.permute.xlu0 1
      %1647 = vperm.xlu0 %1646, %v691
      %v1648 = vpop.permute.xlu0 %1647
      %1650 = vset.pattern.permute.xlu0 1
      %1651 = vperm.xlu0 %1650, %v692
      %v1652 = vpop.permute.xlu0 %1651
      %1654 = vset.pattern.permute.xlu0 1
      %1655 = vperm.xlu0 %1654, %v693
      %v1656 = vpop.permute.xlu0 %1655
      %1658 = vset.pattern.permute.xlu0 1
      %1659 = vperm.xlu0 %1658, %v694
      %v1660 = vpop.permute.xlu0 %1659
      %1662 = vset.pattern.permute.xlu0 1
      %1663 = vperm.xlu0 %1662, %v695
      %v1664 = vpop.permute.xlu0 %1663
      %1666 = vset.pattern.permute.xlu0 1
      %1667 = vperm.xlu0 %1666, %v696
      %v1668 = vpop.permute.xlu0 %1667
      %1670 = vset.pattern.permute.xlu0 1
      %1671 = vperm.xlu0 %1670, %v697
      %v1672 = vpop.permute.xlu0 %1671
      %1674 = vset.pattern.permute.xlu0 1
      %1675 = vperm.xlu0 %1674, %v698
      %v1676 = vpop.permute.xlu0 %1675
      %1678 = vset.pattern.permute.xlu0 1
      %1679 = vperm.xlu0 %1678, %v699
      %v1680 = vpop.permute.xlu0 %1679
      %1682 = vset.pattern.permute.xlu0 1
      %1683 = vperm.xlu0 %1682, %v700
      %v1684 = vpop.permute.xlu0 %1683
      %1686 = vset.pattern.permute.xlu0 1
      %1687 = vperm.xlu0 %1686, %v701
      %v1688 = vpop.permute.xlu0 %1687
      %1690 = vset.pattern.permute.xlu0 1
      %1691 = vperm.xlu0 %1690, %v702
      %v1692 = vpop.permute.xlu0 %1691
      %1694 = vset.pattern.permute.xlu0 1
      %1695 = vperm.xlu0 %1694, %v703
      %v1696 = vpop.permute.xlu0 %1695
      %1698 = vset.pattern.permute.xlu0 1
      %1699 = vperm.xlu0 %1698, %v704
      %v1700 = vpop.permute.xlu0 %1699
      %1702 = vset.pattern.permute.xlu0 1
      %1703 = vperm.xlu0 %1702, %v705
      %v1704 = vpop.permute.xlu0 %1703
      %1706 = vset.pattern.permute.xlu0 1
      %1707 = vperm.xlu0 %1706, %v706
      %v1708 = vpop.permute.xlu0 %1707
      %1710 = vset.pattern.permute.xlu0 1
      %1711 = vperm.xlu0 %1710, %v707
      %v1712 = vpop.permute.xlu0 %1711
      %1714 = vset.pattern.permute.xlu0 1
      %1715 = vperm.xlu0 %1714, %v708
      %v1716 = vpop.permute.xlu0 %1715
      %1718 = vset.pattern.permute.xlu0 1
      %1719 = vperm.xlu0 %1718, %v709
      %v1720 = vpop.permute.xlu0 %1719
      %1722 = vset.pattern.permute.xlu0 1
      %1723 = vperm.xlu0 %1722, %v710
      %v1724 = vpop.permute.xlu0 %1723
      %1726 = vset.pattern.permute.xlu0 1
      %1727 = vperm.xlu0 %1726, %v711
      %v1728 = vpop.permute.xlu0 %1727
      %1730 = vset.pattern.permute.xlu0 1
      %1731 = vperm.xlu0 %1730, %v712
      %v1732 = vpop.permute.xlu0 %1731
      %1734 = vset.pattern.permute.xlu0 1
      %1735 = vperm.xlu0 %1734, %v713
      %v1736 = vpop.permute.xlu0 %1735
      %1738 = vset.pattern.permute.xlu0 1
      %1739 = vperm.xlu0 %1738, %v714
      %v1740 = vpop.permute.xlu0 %1739
      %1742 = vset.pattern.permute.xlu0 1
      %1743 = vperm.xlu0 %1742, %v715
      %v1744 = vpop.permute.xlu0 %1743
      %1746 = vset.pattern.permute.xlu0 1
      %1747 = vperm.xlu0 %1746, %v716
      %v1748 = vpop.permute.xlu0 %1747
      %1750 = vset.pattern.permute.xlu0 1
      %1751 = vperm.xlu0 %1750, %v717
      %v1752 = vpop.permute.xlu0 %1751
      %1754 = vset.pattern.permute.xlu0 1
      %1755 = vperm.xlu0 %1754, %v718
      %v1756 = vpop.permute.xlu0 %1755
      %1758 = vset.pattern.permute.xlu0 1
      %1759 = vperm.xlu0 %1758, %v719
      %v1760 = vpop.permute.xlu0 %1759
      %1762 = vset.pattern.permute.xlu0 1
      %1763 = vperm.xlu0 %1762, %v720
      %v1764 = vpop.permute.xlu0 %1763
      %1766 = vset.pattern.permute.xlu0 1
      %1767 = vperm.xlu0 %1766, %v721
      %v1768 = vpop.permute.xlu0 %1767
      %1770 = vset.pattern.permute.xlu0 1
      %1771 = vperm.xlu0 %1770, %v722
      %v1772 = vpop.permute.xlu0 %1771
      %1774 = vset.pattern.permute.xlu0 1
      %1775 = vperm.xlu0 %1774, %v723
      %v1776 = vpop.permute.xlu0 %1775
      %1778 = vset.pattern.permute.xlu0 1
      %1779 = vperm.xlu0 %1778, %v724
      %v1780 = vpop.permute.xlu0 %1779
      %1782 = vset.pattern.permute.xlu0 1
      %1783 = vperm.xlu0 %1782, %v725
      %v1784 = vpop.permute.xlu0 %1783
      %1786 = vset.pattern.permute.xlu0 1
      %1787 = vperm.xlu0 %1786, %v726
      %v1788 = vpop.permute.xlu0 %1787
      %1790 = vset.pattern.permute.xlu0 1
      %1791 = vperm.xlu0 %1790, %v727
      %v1792 = vpop.permute.xlu0 %1791
      %1794 = vset.pattern.permute.xlu0 1
      %1795 = vperm.xlu0 %1794, %v728
      %v1796 = vpop.permute.xlu0 %1795
      %1798 = vset.pattern.permute.xlu0 1
      %1799 = vperm.xlu0 %1798, %v729
      %v1800 = vpop.permute.xlu0 %1799
      %1802 = vset.pattern.permute.xlu0 1
      %1803 = vperm.xlu0 %1802, %v730
      %v1804 = vpop.permute.xlu0 %1803
      %1806 = vset.pattern.permute.xlu0 1
      %1807 = vperm.xlu0 %1806, %v731
      %v1808 = vpop.permute.xlu0 %1807
      %1810 = vset.pattern.permute.xlu0 1
      %1811 = vperm.xlu0 %1810, %v732
      %v1812 = vpop.permute.xlu0 %1811
      %1814 = vset.pattern.permute.xlu0 1
      %1815 = vperm.xlu0 %1814, %v733
      %v1816 = vpop.permute.xlu0 %1815
      %1818 = vset.pattern.permute.xlu0 1
      %1819 = vperm.xlu0 %1818, %v734
      %v1820 = vpop.permute.xlu0 %1819
      %1822 = vset.pattern.permute.xlu0 1
      %1823 = vperm.xlu0 %1822, %v735
      %v1824 = vpop.permute.xlu0 %1823
      %1826 = vset.pattern.permute.xlu0 1
      %1827 = vperm.xlu0 %1826, %v736
      %v1828 = vpop.permute.xlu0 %1827
      %1830 = vset.pattern.permute.xlu0 1
      %1831 = vperm.xlu0 %1830, %v737
      %v1832 = vpop.permute.xlu0 %1831
      %1834 = vset.pattern.permute.xlu0 1
      %1835 = vperm.xlu0 %1834, %v738
      %v1836 = vpop.permute.xlu0 %1835
      %1838 = vset.pattern.permute.xlu0 1
      %1839 = vperm.xlu0 %1838, %v739
      %v1840 = vpop.permute.xlu0 %1839
      %1842 = vset.pattern.permute.xlu0 1
      %1843 = vperm.xlu0 %1842, %v740
      %v1844 = vpop.permute.xlu0 %1843
      %1846 = vset.pattern.permute.xlu0 1
      %1847 = vperm.xlu0 %1846, %v741
      %v1848 = vpop.permute.xlu0 %1847
      %1850 = vset.pattern.permute.xlu0 1
      %1851 = vperm.xlu0 %1850, %v742
      %v1852 = vpop.permute.xlu0 %1851
      %1854 = vset.pattern.permute.xlu0 1
      %1855 = vperm.xlu0 %1854, %v743
      %v1856 = vpop.permute.xlu0 %1855
      %1858 = vset.pattern.permute.xlu0 1
      %1859 = vperm.xlu0 %1858, %v744
      %v1860 = vpop.permute.xlu0 %1859
      %1862 = vset.pattern.permute.xlu0 1
      %1863 = vperm.xlu0 %1862, %v745
      %v1864 = vpop.permute.xlu0 %1863
      %1866 = vset.pattern.permute.xlu0 1
      %1867 = vperm.xlu0 %1866, %v746
      %v1868 = vpop.permute.xlu0 %1867
      %1870 = vset.pattern.permute.xlu0 1
      %1871 = vperm.xlu0 %1870, %v747
      %v1872 = vpop.permute.xlu0 %1871
      %1874 = vset.pattern.permute.xlu0 1
      %1875 = vperm.xlu0 %1874, %v748
      %v1876 = vpop.permute.xlu0 %1875
      %1878 = vset.pattern.permute.xlu0 1
      %1879 = vperm.xlu0 %1878, %v749
      %v1880 = vpop.permute.xlu0 %1879
      %1882 = vset.pattern.permute.xlu0 1
      %1883 = vperm.xlu0 %1882, %v750
      %v1884 = vpop.permute.xlu0 %1883
      %1886 = vset.pattern.permute.xlu0 1
      %1887 = vperm.xlu0 %1886, %v751
      %v1888 = vpop.permute.xlu0 %1887
      %1890 = vset.pattern.permute.xlu0 1
      %1891 = vperm.xlu0 %1890, %v752
      %v1892 = vpop.permute.xlu0 %1891
      %1894 = vset.pattern.permute.xlu0 1
      %1895 = vperm.xlu0 %1894, %v753
      %v1896 = vpop.permute.xlu0 %1895
      %1898 = vset.pattern.permute.xlu0 1
      %1899 = vperm.xlu0 %1898, %v754
      %v1900 = vpop.permute.xlu0 %1899
      %1902 = vset.pattern.permute.xlu0 1
      %1903 = vperm.xlu0 %1902, %v755
      %v1904 = vpop.permute.xlu0 %1903
      %1906 = vset.pattern.permute.xlu0 1
      %1907 = vperm.xlu0 %1906, %v756
      %v1908 = vpop.permute.xlu0 %1907
      %1910 = vset.pattern.permute.xlu0 1
      %1911 = vperm.xlu0 %1910, %v757
      %v1912 = vpop.permute.xlu0 %1911
      %1914 = vset.pattern.permute.xlu0 1
      %1915 = vperm.xlu0 %1914, %v758
      %v1916 = vpop.permute.xlu0 %1915
      %1918 = vset.pattern.permute.xlu0 1
      %1919 = vperm.xlu0 %1918, %v759
      %v1920 = vpop.permute.xlu0 %1919
      %1922 = vset.pattern.permute.xlu0 1
      %1923 = vperm.xlu0 %1922, %v760
      %v1924 = vpop.permute.xlu0 %1923
      %1926 = vset.pattern.permute.xlu0 1
      %1927 = vperm.xlu0 %1926, %v761
      %v1928 = vpop.permute.xlu0 %1927
      %1930 = vset.pattern.permute.xlu0 1
      %1931 = vperm.xlu0 %1930, %v762
      %v1932 = vpop.permute.xlu0 %1931
      %1934 = vset.pattern.permute.xlu0 1
      %1935 = vperm.xlu0 %1934, %v763
      %v1936 = vpop.permute.xlu0 %1935
      %1938 = vset.pattern.permute.xlu0 1
      %1939 = vperm.xlu0 %1938, %v764
      %v1940 = vpop.permute.xlu0 %1939
      %1942 = vset.pattern.permute.xlu0 1
      %1943 = vperm.xlu0 %1942, %v765
      %v1944 = vpop.permute.xlu0 %1943
      %1946 = vset.pattern.permute.xlu0 1
      %1947 = vperm.xlu0 %1946, %v766
      %v1948 = vpop.permute.xlu0 %1947
      %1950 = vset.pattern.permute.xlu0 1
      %1951 = vperm.xlu0 %1950, %v767
      %v1952 = vpop.permute.xlu0 %1951
      %1954 = vset.pattern.permute.xlu0 1
      %1955 = vperm.xlu0 %1954, %v768
      %v1956 = vpop.permute.xlu0 %1955
      %1958 = vset.pattern.permute.xlu0 1
      %1959 = vperm.xlu0 %1958, %v769
      %v1960 = vpop.permute.xlu0 %1959
      %1962 = vset.pattern.permute.xlu0 1
      %1963 = vperm.xlu0 %1962, %v770
      %v1964 = vpop.permute.xlu0 %1963
      %1966 = vset.pattern.permute.xlu0 1
      %1967 = vperm.xlu0 %1966, %v771
      %v1968 = vpop.permute.xlu0 %1967
      %1970 = vset.pattern.permute.xlu0 1
      %1971 = vperm.xlu0 %1970, %v772
      %v1972 = vpop.permute.xlu0 %1971
      %1974 = vset.pattern.permute.xlu0 1
      %1975 = vperm.xlu0 %1974, %v773
      %v1976 = vpop.permute.xlu0 %1975
      %1978 = vset.pattern.permute.xlu0 1
      %1979 = vperm.xlu0 %1978, %v774
      %v1980 = vpop.permute.xlu0 %1979
      %1982 = vset.pattern.permute.xlu0 1
      %1983 = vperm.xlu0 %1982, %v775
      %v1984 = vpop.permute.xlu0 %1983
      %1986 = vset.pattern.permute.xlu0 1
      %1987 = vperm.xlu0 %1986, %v776
      %v1988 = vpop.permute.xlu0 %1987
      %1990 = vset.pattern.permute.xlu0 1
      %1991 = vperm.xlu0 %1990, %v777
      %v1992 = vpop.permute.xlu0 %1991
      %1994 = vset.pattern.permute.xlu0 1
      %1995 = vperm.xlu0 %1994, %v778
      %v1996 = vpop.permute.xlu0 %1995
      %1998 = vset.pattern.permute.xlu0 1
      %1999 = vperm.xlu0 %1998, %v779
      %v2000 = vpop.permute.xlu0 %1999
      %2002 = vset.pattern.permute.xlu0 1
      %2003 = vperm.xlu0 %2002, %v780
      %v2004 = vpop.permute.xlu0 %2003
      %2006 = vset.pattern.permute.xlu0 1
      %2007 = vperm.xlu0 %2006, %v781
      %v2008 = vpop.permute.xlu0 %2007
      %2010 = vset.pattern.permute.xlu0 1
      %2011 = vperm.xlu0 %2010, %v782
      %v2012 = vpop.permute.xlu0 %2011
      %2014 = vset.pattern.permute.xlu0 1
      %2015 = vperm.xlu0 %2014, %v783
      %v2016 = vpop.permute.xlu0 %2015
      %2018 = vset.pattern.permute.xlu0 1
      %2019 = vperm.xlu0 %2018, %v784
      %v2020 = vpop.permute.xlu0 %2019
      %2022 = vset.pattern.permute.xlu0 1
      %2023 = vperm.xlu0 %2022, %v785
      %v2024 = vpop.permute.xlu0 %2023
      %2026 = vset.pattern.permute.xlu0 1
      %2027 = vperm.xlu0 %2026, %v786
      %v2028 = vpop.permute.xlu0 %2027
      %2030 = vset.pattern.permute.xlu0 1
      %2031 = vperm.xlu0 %2030, %v787
      %v2032 = vpop.permute.xlu0 %2031
      %2034 = vset.pattern.permute.xlu0 1
      %2035 = vperm.xlu0 %2034, %v788
      %v2036 = vpop.permute.xlu0 %2035
      %2038 = vset.pattern.permute.xlu0 1
      %2039 = vperm.xlu0 %2038, %v789
      %v2040 = vpop.permute.xlu0 %2039
      %2042 = vset.pattern.permute.xlu0 1
      %2043 = vperm.xlu0 %2042, %v790
      %v2044 = vpop.permute.xlu0 %2043
      %2046 = vset.pattern.permute.xlu0 1
      %2047 = vperm.xlu0 %2046, %v791
      %v2048 = vpop.permute.xlu0 %2047
      %2050 = vset.pattern.permute.xlu0 1
      %2051 = vperm.xlu0 %2050, %v792
      %v2052 = vpop.permute.xlu0 %2051
      %2054 = vset.pattern.permute.xlu0 1
      %2055 = vperm.xlu0 %2054, %v793
      %v2056 = vpop.permute.xlu0 %2055
      %2058 = vset.pattern.permute.xlu0 1
      %2059 = vperm.xlu0 %2058, %v794
      %v2060 = vpop.permute.xlu0 %2059
      %2062 = vset.pattern.permute.xlu0 1
      %2063 = vperm.xlu0 %2062, %v795
      %v2064 = vpop.permute.xlu0 %2063
      %2066 = vset.pattern.permute.xlu0 1
      %2067 = vperm.xlu0 %2066, %v796
      %v2068 = vpop.permute.xlu0 %2067
      %2070 = vset.pattern.permute.xlu0 1
      %2071 = vperm.xlu0 %2070, %v797
      %v2072 = vpop.permute.xlu0 %2071
      %2074 = vset.pattern.permute.xlu0 1
      %2075 = vperm.xlu0 %2074, %v798
      %v2076 = vpop.permute.xlu0 %2075
      %2078 = vset.pattern.permute.xlu0 1
      %2079 = vperm.xlu0 %2078, %v799
      %v2080 = vpop.permute.xlu0 %2079
      %2082 = vset.pattern.permute.xlu0 1
      %2083 = vperm.xlu0 %2082, %v800
      %v2084 = vpop.permute.xlu0 %2083
      %v2086 = vlaneseq
      %v2087 = vshrl.u32 %v2086, 7
      %v2088 = vsub.s32 1, %v2087
      %v2089 = vrot.slane %v801, %v2088
      %v2090 = vmul.f32 %v1576, %v2089
      %v2091 = vmul.f32 %v1580, %v2089
      %v2092 = vmul.f32 %v1584, %v2089
      %v2093 = vmul.f32 %v1588, %v2089
      %v2094 = vmul.f32 %v1592, %v2089
      %v2095 = vmul.f32 %v1596, %v2089
      %v2096 = vmul.f32 %v1600, %v2089
      %v2097 = vmul.f32 %v1604, %v2089
      %v2098 = vmul.f32 %v1608, %v2089
      %v2099 = vmul.f32 %v1612, %v2089
      %v2100 = vmul.f32 %v1616, %v2089
      %v2101 = vmul.f32 %v1620, %v2089
      %v2102 = vmul.f32 %v1624, %v2089
      %v2103 = vmul.f32 %v1628, %v2089
      %v2104 = vmul.f32 %v1632, %v2089
      %v2105 = vmul.f32 %v1636, %v2089
      %v2106 = vmul.f32 %v1640, %v2089
      %v2107 = vmul.f32 %v1644, %v2089
      %v2108 = vmul.f32 %v1648, %v2089
      %v2109 = vmul.f32 %v1652, %v2089
      %v2110 = vmul.f32 %v1656, %v2089
      %v2111 = vmul.f32 %v1660, %v2089
      %v2112 = vmul.f32 %v1664, %v2089
      %v2113 = vmul.f32 %v1668, %v2089
      %v2114 = vmul.f32 %v1672, %v2089
      %v2115 = vmul.f32 %v1676, %v2089
      %v2116 = vmul.f32 %v1680, %v2089
      %v2117 = vmul.f32 %v1684, %v2089
      %v2118 = vmul.f32 %v1688, %v2089
      %v2119 = vmul.f32 %v1692, %v2089
      %v2120 = vmul.f32 %v1696, %v2089
      %v2121 = vmul.f32 %v1700, %v2089
      %v2122 = vmul.f32 %v1704, %v2089
      %v2123 = vmul.f32 %v1708, %v2089
      %v2124 = vmul.f32 %v1712, %v2089
      %v2125 = vmul.f32 %v1716, %v2089
      %v2126 = vmul.f32 %v1720, %v2089
      %v2127 = vmul.f32 %v1724, %v2089
      %v2128 = vmul.f32 %v1728, %v2089
      %v2129 = vmul.f32 %v1732, %v2089
      %v2130 = vmul.f32 %v1736, %v2089
      %v2131 = vmul.f32 %v1740, %v2089
      %v2132 = vmul.f32 %v1744, %v2089
      %v2133 = vmul.f32 %v1748, %v2089
      %v2134 = vmul.f32 %v1752, %v2089
      %v2135 = vmul.f32 %v1756, %v2089
      %v2136 = vmul.f32 %v1760, %v2089
      %v2137 = vmul.f32 %v1764, %v2089
      %v2138 = vmul.f32 %v1768, %v2089
      %v2139 = vmul.f32 %v1772, %v2089
      %v2140 = vmul.f32 %v1776, %v2089
      %v2141 = vmul.f32 %v1780, %v2089
      %v2142 = vmul.f32 %v1784, %v2089
      %v2143 = vmul.f32 %v1788, %v2089
      %v2144 = vmul.f32 %v1792, %v2089
      %v2145 = vmul.f32 %v1796, %v2089
      %v2146 = vmul.f32 %v1800, %v2089
      %v2147 = vmul.f32 %v1804, %v2089
      %v2148 = vmul.f32 %v1808, %v2089
      %v2149 = vmul.f32 %v1812, %v2089
      %v2150 = vmul.f32 %v1816, %v2089
      %v2151 = vmul.f32 %v1820, %v2089
      %v2152 = vmul.f32 %v1824, %v2089
      %v2153 = vmul.f32 %v1828, %v2089
      %v2154 = vmul.f32 %v1832, %v2089
      %v2155 = vmul.f32 %v1836, %v2089
      %v2156 = vmul.f32 %v1840, %v2089
      %v2157 = vmul.f32 %v1844, %v2089
      %v2158 = vmul.f32 %v1848, %v2089
      %v2159 = vmul.f32 %v1852, %v2089
      %v2160 = vmul.f32 %v1856, %v2089
      %v2161 = vmul.f32 %v1860, %v2089
      %v2162 = vmul.f32 %v1864, %v2089
      %v2163 = vmul.f32 %v1868, %v2089
      %v2164 = vmul.f32 %v1872, %v2089
      %v2165 = vmul.f32 %v1876, %v2089
      %v2166 = vmul.f32 %v1880, %v2089
      %v2167 = vmul.f32 %v1884, %v2089
      %v2168 = vmul.f32 %v1888, %v2089
      %v2169 = vmul.f32 %v1892, %v2089
      %v2170 = vmul.f32 %v1896, %v2089
      %v2171 = vmul.f32 %v1900, %v2089
      %v2172 = vmul.f32 %v1904, %v2089
      %v2173 = vmul.f32 %v1908, %v2089
      %v2174 = vmul.f32 %v1912, %v2089
      %v2175 = vmul.f32 %v1916, %v2089
      %v2176 = vmul.f32 %v1920, %v2089
      %v2177 = vmul.f32 %v1924, %v2089
      %v2178 = vmul.f32 %v1928, %v2089
      %v2179 = vmul.f32 %v1932, %v2089
      %v2180 = vmul.f32 %v1936, %v2089
      %v2181 = vmul.f32 %v1940, %v2089
      %v2182 = vmul.f32 %v1944, %v2089
      %v2183 = vmul.f32 %v1948, %v2089
      %v2184 = vmul.f32 %v1952, %v2089
      %v2185 = vmul.f32 %v1956, %v2089
      %v2186 = vmul.f32 %v1960, %v2089
      %v2187 = vmul.f32 %v1964, %v2089
      %v2188 = vmul.f32 %v1968, %v2089
      %v2189 = vmul.f32 %v1972, %v2089
      %v2190 = vmul.f32 %v1976, %v2089
      %v2191 = vmul.f32 %v1980, %v2089
      %v2192 = vmul.f32 %v1984, %v2089
      %v2193 = vmul.f32 %v1988, %v2089
      %v2194 = vmul.f32 %v1992, %v2089
      %v2195 = vmul.f32 %v1996, %v2089
      %v2196 = vmul.f32 %v2000, %v2089
      %v2197 = vmul.f32 %v2004, %v2089
      %v2198 = vmul.f32 %v2008, %v2089
      %v2199 = vmul.f32 %v2012, %v2089
      %v2200 = vmul.f32 %v2016, %v2089
      %v2201 = vmul.f32 %v2020, %v2089
      %v2202 = vmul.f32 %v2024, %v2089
      %v2203 = vmul.f32 %v2028, %v2089
      %v2204 = vmul.f32 %v2032, %v2089
      %v2205 = vmul.f32 %v2036, %v2089
      %v2206 = vmul.f32 %v2040, %v2089
      %v2207 = vmul.f32 %v2044, %v2089
      %v2208 = vmul.f32 %v2048, %v2089
      %v2209 = vmul.f32 %v2052, %v2089
      %v2210 = vmul.f32 %v2056, %v2089
      %v2211 = vmul.f32 %v2060, %v2089
      %v2212 = vmul.f32 %v2064, %v2089
      %v2213 = vmul.f32 %v2068, %v2089
      %v2214 = vmul.f32 %v2072, %v2089
      %v2215 = vmul.f32 %v2076, %v2089
      %v2216 = vmul.f32 %v2080, %v2089
      %v2217 = vmul.f32 %v2084, %v2089
      %v2218 = vadd.f32 %v1446, %v2090
      %v2219 = vadd.f32 %v1447, %v2091
      %v2220 = vadd.f32 %v1448, %v2092
      %v2221 = vadd.f32 %v1449, %v2093
      %v2222 = vadd.f32 %v1450, %v2094
      %v2223 = vadd.f32 %v1451, %v2095
      %v2224 = vadd.f32 %v1452, %v2096
      %v2225 = vadd.f32 %v1453, %v2097
      %v2226 = vadd.f32 %v1454, %v2098
      %v2227 = vadd.f32 %v1455, %v2099
      %v2228 = vadd.f32 %v1456, %v2100
      %v2229 = vadd.f32 %v1457, %v2101
      %v2230 = vadd.f32 %v1458, %v2102
      %v2231 = vadd.f32 %v1459, %v2103
      %v2232 = vadd.f32 %v1460, %v2104
      %v2233 = vadd.f32 %v1461, %v2105
      %v2234 = vadd.f32 %v1462, %v2106
      %v2235 = vadd.f32 %v1463, %v2107
      %v2236 = vadd.f32 %v1464, %v2108
      %v2237 = vadd.f32 %v1465, %v2109
      %v2238 = vadd.f32 %v1466, %v2110
      %v2239 = vadd.f32 %v1467, %v2111
      %v2240 = vadd.f32 %v1468, %v2112
      %v2241 = vadd.f32 %v1469, %v2113
      %v2242 = vadd.f32 %v1470, %v2114
      %v2243 = vadd.f32 %v1471, %v2115
      %v2244 = vadd.f32 %v1472, %v2116
      %v2245 = vadd.f32 %v1473, %v2117
      %v2246 = vadd.f32 %v1474, %v2118
      %v2247 = vadd.f32 %v1475, %v2119
      %v2248 = vadd.f32 %v1476, %v2120
      %v2249 = vadd.f32 %v1477, %v2121
      %v2250 = vadd.f32 %v1478, %v2122
      %v2251 = vadd.f32 %v1479, %v2123
      %v2252 = vadd.f32 %v1480, %v2124
      %v2253 = vadd.f32 %v1481, %v2125
      %v2254 = vadd.f32 %v1482, %v2126
      %v2255 = vadd.f32 %v1483, %v2127
      %v2256 = vadd.f32 %v1484, %v2128
      %v2257 = vadd.f32 %v1485, %v2129
      %v2258 = vadd.f32 %v1486, %v2130
      %v2259 = vadd.f32 %v1487, %v2131
      %v2260 = vadd.f32 %v1488, %v2132
      %v2261 = vadd.f32 %v1489, %v2133
      %v2262 = vadd.f32 %v1490, %v2134
      %v2263 = vadd.f32 %v1491, %v2135
      %v2264 = vadd.f32 %v1492, %v2136
      %v2265 = vadd.f32 %v1493, %v2137
      %v2266 = vadd.f32 %v1494, %v2138
      %v2267 = vadd.f32 %v1495, %v2139
      %v2268 = vadd.f32 %v1496, %v2140
      %v2269 = vadd.f32 %v1497, %v2141
      %v2270 = vadd.f32 %v1498, %v2142
      %v2271 = vadd.f32 %v1499, %v2143
      %v2272 = vadd.f32 %v1500, %v2144
      %v2273 = vadd.f32 %v1501, %v2145
      %v2274 = vadd.f32 %v1502, %v2146
      %v2275 = vadd.f32 %v1503, %v2147
      %v2276 = vadd.f32 %v1504, %v2148
      %v2277 = vadd.f32 %v1505, %v2149
      %v2278 = vadd.f32 %v1506, %v2150
      %v2279 = vadd.f32 %v1507, %v2151
      %v2280 = vadd.f32 %v1508, %v2152
      %v2281 = vadd.f32 %v1509, %v2153
      %v2282 = vadd.f32 %v1510, %v2154
      %v2283 = vadd.f32 %v1511, %v2155
      %v2284 = vadd.f32 %v1512, %v2156
      %v2285 = vadd.f32 %v1513, %v2157
      %v2286 = vadd.f32 %v1514, %v2158
      %v2287 = vadd.f32 %v1515, %v2159
      %v2288 = vadd.f32 %v1516, %v2160
      %v2289 = vadd.f32 %v1517, %v2161
      %v2290 = vadd.f32 %v1518, %v2162
      %v2291 = vadd.f32 %v1519, %v2163
      %v2292 = vadd.f32 %v1520, %v2164
      %v2293 = vadd.f32 %v1521, %v2165
      %v2294 = vadd.f32 %v1522, %v2166
      %v2295 = vadd.f32 %v1523, %v2167
      %v2296 = vadd.f32 %v1524, %v2168
      %v2297 = vadd.f32 %v1525, %v2169
      %v2298 = vadd.f32 %v1526, %v2170
      %v2299 = vadd.f32 %v1527, %v2171
      %v2300 = vadd.f32 %v1528, %v2172
      %v2301 = vadd.f32 %v1529, %v2173
      %v2302 = vadd.f32 %v1530, %v2174
      %v2303 = vadd.f32 %v1531, %v2175
      %v2304 = vadd.f32 %v1532, %v2176
      %v2305 = vadd.f32 %v1533, %v2177
      %v2306 = vadd.f32 %v1534, %v2178
      %v2307 = vadd.f32 %v1535, %v2179
      %v2308 = vadd.f32 %v1536, %v2180
      %v2309 = vadd.f32 %v1537, %v2181
      %v2310 = vadd.f32 %v1538, %v2182
      %v2311 = vadd.f32 %v1539, %v2183
      %v2312 = vadd.f32 %v1540, %v2184
      %v2313 = vadd.f32 %v1541, %v2185
      %v2314 = vadd.f32 %v1542, %v2186
      %v2315 = vadd.f32 %v1543, %v2187
      %v2316 = vadd.f32 %v1544, %v2188
      %v2317 = vadd.f32 %v1545, %v2189
      %v2318 = vadd.f32 %v1546, %v2190
      %v2319 = vadd.f32 %v1547, %v2191
      %v2320 = vadd.f32 %v1548, %v2192
      %v2321 = vadd.f32 %v1549, %v2193
      %v2322 = vadd.f32 %v1550, %v2194
      %v2323 = vadd.f32 %v1551, %v2195
      %v2324 = vadd.f32 %v1552, %v2196
      %v2325 = vadd.f32 %v1553, %v2197
      %v2326 = vadd.f32 %v1554, %v2198
      %v2327 = vadd.f32 %v1555, %v2199
      %v2328 = vadd.f32 %v1556, %v2200
      %v2329 = vadd.f32 %v1557, %v2201
      %v2330 = vadd.f32 %v1558, %v2202
      %v2331 = vadd.f32 %v1559, %v2203
      %v2332 = vadd.f32 %v1560, %v2204
      %v2333 = vadd.f32 %v1561, %v2205
      %v2334 = vadd.f32 %v1562, %v2206
      %v2335 = vadd.f32 %v1563, %v2207
      %v2336 = vadd.f32 %v1564, %v2208
      %v2337 = vadd.f32 %v1565, %v2209
      %v2338 = vadd.f32 %v1566, %v2210
      %v2339 = vadd.f32 %v1567, %v2211
      %v2340 = vadd.f32 %v1568, %v2212
      %v2341 = vadd.f32 %v1569, %v2213
      %v2342 = vadd.f32 %v1570, %v2214
      %v2343 = vadd.f32 %v1571, %v2215
      %v2344 = vadd.f32 %v1572, %v2216
      %v2345 = vadd.f32 %v1573, %v2217
      %2346 = vset.pattern.permute.xlu0 2
      %2347 = vperm.xlu0 %2346, %v673
      %v2348 = vpop.permute.xlu0 %2347
      %2350 = vset.pattern.permute.xlu0 2
      %2351 = vperm.xlu0 %2350, %v674
      %v2352 = vpop.permute.xlu0 %2351
      %2354 = vset.pattern.permute.xlu0 2
      %2355 = vperm.xlu0 %2354, %v675
      %v2356 = vpop.permute.xlu0 %2355
      %2358 = vset.pattern.permute.xlu0 2
      %2359 = vperm.xlu0 %2358, %v676
      %v2360 = vpop.permute.xlu0 %2359
      %2362 = vset.pattern.permute.xlu0 2
      %2363 = vperm.xlu0 %2362, %v677
      %v2364 = vpop.permute.xlu0 %2363
      %2366 = vset.pattern.permute.xlu0 2
      %2367 = vperm.xlu0 %2366, %v678
      %v2368 = vpop.permute.xlu0 %2367
      %2370 = vset.pattern.permute.xlu0 2
      %2371 = vperm.xlu0 %2370, %v679
      %v2372 = vpop.permute.xlu0 %2371
      %2374 = vset.pattern.permute.xlu0 2
      %2375 = vperm.xlu0 %2374, %v680
      %v2376 = vpop.permute.xlu0 %2375
      %2378 = vset.pattern.permute.xlu0 2
      %2379 = vperm.xlu0 %2378, %v681
      %v2380 = vpop.permute.xlu0 %2379
      %2382 = vset.pattern.permute.xlu0 2
      %2383 = vperm.xlu0 %2382, %v682
      %v2384 = vpop.permute.xlu0 %2383
      %2386 = vset.pattern.permute.xlu0 2
      %2387 = vperm.xlu0 %2386, %v683
      %v2388 = vpop.permute.xlu0 %2387
      %2390 = vset.pattern.permute.xlu0 2
      %2391 = vperm.xlu0 %2390, %v684
      %v2392 = vpop.permute.xlu0 %2391
      %2394 = vset.pattern.permute.xlu0 2
      %2395 = vperm.xlu0 %2394, %v685
      %v2396 = vpop.permute.xlu0 %2395
      %2398 = vset.pattern.permute.xlu0 2
      %2399 = vperm.xlu0 %2398, %v686
      %v2400 = vpop.permute.xlu0 %2399
      %2402 = vset.pattern.permute.xlu0 2
      %2403 = vperm.xlu0 %2402, %v687
      %v2404 = vpop.permute.xlu0 %2403
      %2406 = vset.pattern.permute.xlu0 2
      %2407 = vperm.xlu0 %2406, %v688
      %v2408 = vpop.permute.xlu0 %2407
      %2410 = vset.pattern.permute.xlu0 2
      %2411 = vperm.xlu0 %2410, %v689
      %v2412 = vpop.permute.xlu0 %2411
      %2414 = vset.pattern.permute.xlu0 2
      %2415 = vperm.xlu0 %2414, %v690
      %v2416 = vpop.permute.xlu0 %2415
      %2418 = vset.pattern.permute.xlu0 2
      %2419 = vperm.xlu0 %2418, %v691
      %v2420 = vpop.permute.xlu0 %2419
      %2422 = vset.pattern.permute.xlu0 2
      %2423 = vperm.xlu0 %2422, %v692
      %v2424 = vpop.permute.xlu0 %2423
      %2426 = vset.pattern.permute.xlu0 2
      %2427 = vperm.xlu0 %2426, %v693
      %v2428 = vpop.permute.xlu0 %2427
      %2430 = vset.pattern.permute.xlu0 2
      %2431 = vperm.xlu0 %2430, %v694
      %v2432 = vpop.permute.xlu0 %2431
      %2434 = vset.pattern.permute.xlu0 2
      %2435 = vperm.xlu0 %2434, %v695
      %v2436 = vpop.permute.xlu0 %2435
      %2438 = vset.pattern.permute.xlu0 2
      %2439 = vperm.xlu0 %2438, %v696
      %v2440 = vpop.permute.xlu0 %2439
      %2442 = vset.pattern.permute.xlu0 2
      %2443 = vperm.xlu0 %2442, %v697
      %v2444 = vpop.permute.xlu0 %2443
      %2446 = vset.pattern.permute.xlu0 2
      %2447 = vperm.xlu0 %2446, %v698
      %v2448 = vpop.permute.xlu0 %2447
      %2450 = vset.pattern.permute.xlu0 2
      %2451 = vperm.xlu0 %2450, %v699
      %v2452 = vpop.permute.xlu0 %2451
      %2454 = vset.pattern.permute.xlu0 2
      %2455 = vperm.xlu0 %2454, %v700
      %v2456 = vpop.permute.xlu0 %2455
      %2458 = vset.pattern.permute.xlu0 2
      %2459 = vperm.xlu0 %2458, %v701
      %v2460 = vpop.permute.xlu0 %2459
      %2462 = vset.pattern.permute.xlu0 2
      %2463 = vperm.xlu0 %2462, %v702
      %v2464 = vpop.permute.xlu0 %2463
      %2466 = vset.pattern.permute.xlu0 2
      %2467 = vperm.xlu0 %2466, %v703
      %v2468 = vpop.permute.xlu0 %2467
      %2470 = vset.pattern.permute.xlu0 2
      %2471 = vperm.xlu0 %2470, %v704
      %v2472 = vpop.permute.xlu0 %2471
      %2474 = vset.pattern.permute.xlu0 2
      %2475 = vperm.xlu0 %2474, %v705
      %v2476 = vpop.permute.xlu0 %2475
      %2478 = vset.pattern.permute.xlu0 2
      %2479 = vperm.xlu0 %2478, %v706
      %v2480 = vpop.permute.xlu0 %2479
      %2482 = vset.pattern.permute.xlu0 2
      %2483 = vperm.xlu0 %2482, %v707
      %v2484 = vpop.permute.xlu0 %2483
      %2486 = vset.pattern.permute.xlu0 2
      %2487 = vperm.xlu0 %2486, %v708
      %v2488 = vpop.permute.xlu0 %2487
      %2490 = vset.pattern.permute.xlu0 2
      %2491 = vperm.xlu0 %2490, %v709
      %v2492 = vpop.permute.xlu0 %2491
      %2494 = vset.pattern.permute.xlu0 2
      %2495 = vperm.xlu0 %2494, %v710
      %v2496 = vpop.permute.xlu0 %2495
      %2498 = vset.pattern.permute.xlu0 2
      %2499 = vperm.xlu0 %2498, %v711
      %v2500 = vpop.permute.xlu0 %2499
      %2502 = vset.pattern.permute.xlu0 2
      %2503 = vperm.xlu0 %2502, %v712
      %v2504 = vpop.permute.xlu0 %2503
      %2506 = vset.pattern.permute.xlu0 2
      %2507 = vperm.xlu0 %2506, %v713
      %v2508 = vpop.permute.xlu0 %2507
      %2510 = vset.pattern.permute.xlu0 2
      %2511 = vperm.xlu0 %2510, %v714
      %v2512 = vpop.permute.xlu0 %2511
      %2514 = vset.pattern.permute.xlu0 2
      %2515 = vperm.xlu0 %2514, %v715
      %v2516 = vpop.permute.xlu0 %2515
      %2518 = vset.pattern.permute.xlu0 2
      %2519 = vperm.xlu0 %2518, %v716
      %v2520 = vpop.permute.xlu0 %2519
      %2522 = vset.pattern.permute.xlu0 2
      %2523 = vperm.xlu0 %2522, %v717
      %v2524 = vpop.permute.xlu0 %2523
      %2526 = vset.pattern.permute.xlu0 2
      %2527 = vperm.xlu0 %2526, %v718
      %v2528 = vpop.permute.xlu0 %2527
      %2530 = vset.pattern.permute.xlu0 2
      %2531 = vperm.xlu0 %2530, %v719
      %v2532 = vpop.permute.xlu0 %2531
      %2534 = vset.pattern.permute.xlu0 2
      %2535 = vperm.xlu0 %2534, %v720
      %v2536 = vpop.permute.xlu0 %2535
      %2538 = vset.pattern.permute.xlu0 2
      %2539 = vperm.xlu0 %2538, %v721
      %v2540 = vpop.permute.xlu0 %2539
      %2542 = vset.pattern.permute.xlu0 2
      %2543 = vperm.xlu0 %2542, %v722
      %v2544 = vpop.permute.xlu0 %2543
      %2546 = vset.pattern.permute.xlu0 2
      %2547 = vperm.xlu0 %2546, %v723
      %v2548 = vpop.permute.xlu0 %2547
      %2550 = vset.pattern.permute.xlu0 2
      %2551 = vperm.xlu0 %2550, %v724
      %v2552 = vpop.permute.xlu0 %2551
      %2554 = vset.pattern.permute.xlu0 2
      %2555 = vperm.xlu0 %2554, %v725
      %v2556 = vpop.permute.xlu0 %2555
      %2558 = vset.pattern.permute.xlu0 2
      %2559 = vperm.xlu0 %2558, %v726
      %v2560 = vpop.permute.xlu0 %2559
      %2562 = vset.pattern.permute.xlu0 2
      %2563 = vperm.xlu0 %2562, %v727
      %v2564 = vpop.permute.xlu0 %2563
      %2566 = vset.pattern.permute.xlu0 2
      %2567 = vperm.xlu0 %2566, %v728
      %v2568 = vpop.permute.xlu0 %2567
      %2570 = vset.pattern.permute.xlu0 2
      %2571 = vperm.xlu0 %2570, %v729
      %v2572 = vpop.permute.xlu0 %2571
      %2574 = vset.pattern.permute.xlu0 2
      %2575 = vperm.xlu0 %2574, %v730
      %v2576 = vpop.permute.xlu0 %2575
      %2578 = vset.pattern.permute.xlu0 2
      %2579 = vperm.xlu0 %2578, %v731
      %v2580 = vpop.permute.xlu0 %2579
      %2582 = vset.pattern.permute.xlu0 2
      %2583 = vperm.xlu0 %2582, %v732
      %v2584 = vpop.permute.xlu0 %2583
      %2586 = vset.pattern.permute.xlu0 2
      %2587 = vperm.xlu0 %2586, %v733
      %v2588 = vpop.permute.xlu0 %2587
      %2590 = vset.pattern.permute.xlu0 2
      %2591 = vperm.xlu0 %2590, %v734
      %v2592 = vpop.permute.xlu0 %2591
      %2594 = vset.pattern.permute.xlu0 2
      %2595 = vperm.xlu0 %2594, %v735
      %v2596 = vpop.permute.xlu0 %2595
      %2598 = vset.pattern.permute.xlu0 2
      %2599 = vperm.xlu0 %2598, %v736
      %v2600 = vpop.permute.xlu0 %2599
      %2602 = vset.pattern.permute.xlu0 2
      %2603 = vperm.xlu0 %2602, %v737
      %v2604 = vpop.permute.xlu0 %2603
      %2606 = vset.pattern.permute.xlu0 2
      %2607 = vperm.xlu0 %2606, %v738
      %v2608 = vpop.permute.xlu0 %2607
      %2610 = vset.pattern.permute.xlu0 2
      %2611 = vperm.xlu0 %2610, %v739
      %v2612 = vpop.permute.xlu0 %2611
      %2614 = vset.pattern.permute.xlu0 2
      %2615 = vperm.xlu0 %2614, %v740
      %v2616 = vpop.permute.xlu0 %2615
      %2618 = vset.pattern.permute.xlu0 2
      %2619 = vperm.xlu0 %2618, %v741
      %v2620 = vpop.permute.xlu0 %2619
      %2622 = vset.pattern.permute.xlu0 2
      %2623 = vperm.xlu0 %2622, %v742
      %v2624 = vpop.permute.xlu0 %2623
      %2626 = vset.pattern.permute.xlu0 2
      %2627 = vperm.xlu0 %2626, %v743
      %v2628 = vpop.permute.xlu0 %2627
      %2630 = vset.pattern.permute.xlu0 2
      %2631 = vperm.xlu0 %2630, %v744
      %v2632 = vpop.permute.xlu0 %2631
      %2634 = vset.pattern.permute.xlu0 2
      %2635 = vperm.xlu0 %2634, %v745
      %v2636 = vpop.permute.xlu0 %2635
      %2638 = vset.pattern.permute.xlu0 2
      %2639 = vperm.xlu0 %2638, %v746
      %v2640 = vpop.permute.xlu0 %2639
      %2642 = vset.pattern.permute.xlu0 2
      %2643 = vperm.xlu0 %2642, %v747
      %v2644 = vpop.permute.xlu0 %2643
      %2646 = vset.pattern.permute.xlu0 2
      %2647 = vperm.xlu0 %2646, %v748
      %v2648 = vpop.permute.xlu0 %2647
      %2650 = vset.pattern.permute.xlu0 2
      %2651 = vperm.xlu0 %2650, %v749
      %v2652 = vpop.permute.xlu0 %2651
      %2654 = vset.pattern.permute.xlu0 2
      %2655 = vperm.xlu0 %2654, %v750
      %v2656 = vpop.permute.xlu0 %2655
      %2658 = vset.pattern.permute.xlu0 2
      %2659 = vperm.xlu0 %2658, %v751
      %v2660 = vpop.permute.xlu0 %2659
      %2662 = vset.pattern.permute.xlu0 2
      %2663 = vperm.xlu0 %2662, %v752
      %v2664 = vpop.permute.xlu0 %2663
      %2666 = vset.pattern.permute.xlu0 2
      %2667 = vperm.xlu0 %2666, %v753
      %v2668 = vpop.permute.xlu0 %2667
      %2670 = vset.pattern.permute.xlu0 2
      %2671 = vperm.xlu0 %2670, %v754
      %v2672 = vpop.permute.xlu0 %2671
      %2674 = vset.pattern.permute.xlu0 2
      %2675 = vperm.xlu0 %2674, %v755
      %v2676 = vpop.permute.xlu0 %2675
      %2678 = vset.pattern.permute.xlu0 2
      %2679 = vperm.xlu0 %2678, %v756
      %v2680 = vpop.permute.xlu0 %2679
      %2682 = vset.pattern.permute.xlu0 2
      %2683 = vperm.xlu0 %2682, %v757
      %v2684 = vpop.permute.xlu0 %2683
      %2686 = vset.pattern.permute.xlu0 2
      %2687 = vperm.xlu0 %2686, %v758
      %v2688 = vpop.permute.xlu0 %2687
      %2690 = vset.pattern.permute.xlu0 2
      %2691 = vperm.xlu0 %2690, %v759
      %v2692 = vpop.permute.xlu0 %2691
      %2694 = vset.pattern.permute.xlu0 2
      %2695 = vperm.xlu0 %2694, %v760
      %v2696 = vpop.permute.xlu0 %2695
      %2698 = vset.pattern.permute.xlu0 2
      %2699 = vperm.xlu0 %2698, %v761
      %v2700 = vpop.permute.xlu0 %2699
      %2702 = vset.pattern.permute.xlu0 2
      %2703 = vperm.xlu0 %2702, %v762
      %v2704 = vpop.permute.xlu0 %2703
      %2706 = vset.pattern.permute.xlu0 2
      %2707 = vperm.xlu0 %2706, %v763
      %v2708 = vpop.permute.xlu0 %2707
      %2710 = vset.pattern.permute.xlu0 2
      %2711 = vperm.xlu0 %2710, %v764
      %v2712 = vpop.permute.xlu0 %2711
      %2714 = vset.pattern.permute.xlu0 2
      %2715 = vperm.xlu0 %2714, %v765
      %v2716 = vpop.permute.xlu0 %2715
      %2718 = vset.pattern.permute.xlu0 2
      %2719 = vperm.xlu0 %2718, %v766
      %v2720 = vpop.permute.xlu0 %2719
      %2722 = vset.pattern.permute.xlu0 2
      %2723 = vperm.xlu0 %2722, %v767
      %v2724 = vpop.permute.xlu0 %2723
      %2726 = vset.pattern.permute.xlu0 2
      %2727 = vperm.xlu0 %2726, %v768
      %v2728 = vpop.permute.xlu0 %2727
      %2730 = vset.pattern.permute.xlu0 2
      %2731 = vperm.xlu0 %2730, %v769
      %v2732 = vpop.permute.xlu0 %2731
      %2734 = vset.pattern.permute.xlu0 2
      %2735 = vperm.xlu0 %2734, %v770
      %v2736 = vpop.permute.xlu0 %2735
      %2738 = vset.pattern.permute.xlu0 2
      %2739 = vperm.xlu0 %2738, %v771
      %v2740 = vpop.permute.xlu0 %2739
      %2742 = vset.pattern.permute.xlu0 2
      %2743 = vperm.xlu0 %2742, %v772
      %v2744 = vpop.permute.xlu0 %2743
      %2746 = vset.pattern.permute.xlu0 2
      %2747 = vperm.xlu0 %2746, %v773
      %v2748 = vpop.permute.xlu0 %2747
      %2750 = vset.pattern.permute.xlu0 2
      %2751 = vperm.xlu0 %2750, %v774
      %v2752 = vpop.permute.xlu0 %2751
      %2754 = vset.pattern.permute.xlu0 2
      %2755 = vperm.xlu0 %2754, %v775
      %v2756 = vpop.permute.xlu0 %2755
      %2758 = vset.pattern.permute.xlu0 2
      %2759 = vperm.xlu0 %2758, %v776
      %v2760 = vpop.permute.xlu0 %2759
      %2762 = vset.pattern.permute.xlu0 2
      %2763 = vperm.xlu0 %2762, %v777
      %v2764 = vpop.permute.xlu0 %2763
      %2766 = vset.pattern.permute.xlu0 2
      %2767 = vperm.xlu0 %2766, %v778
      %v2768 = vpop.permute.xlu0 %2767
      %2770 = vset.pattern.permute.xlu0 2
      %2771 = vperm.xlu0 %2770, %v779
      %v2772 = vpop.permute.xlu0 %2771
      %2774 = vset.pattern.permute.xlu0 2
      %2775 = vperm.xlu0 %2774, %v780
      %v2776 = vpop.permute.xlu0 %2775
      %2778 = vset.pattern.permute.xlu0 2
      %2779 = vperm.xlu0 %2778, %v781
      %v2780 = vpop.permute.xlu0 %2779
      %2782 = vset.pattern.permute.xlu0 2
      %2783 = vperm.xlu0 %2782, %v782
      %v2784 = vpop.permute.xlu0 %2783
      %2786 = vset.pattern.permute.xlu0 2
      %2787 = vperm.xlu0 %2786, %v783
      %v2788 = vpop.permute.xlu0 %2787
      %2790 = vset.pattern.permute.xlu0 2
      %2791 = vperm.xlu0 %2790, %v784
      %v2792 = vpop.permute.xlu0 %2791
      %2794 = vset.pattern.permute.xlu0 2
      %2795 = vperm.xlu0 %2794, %v785
      %v2796 = vpop.permute.xlu0 %2795
      %2798 = vset.pattern.permute.xlu0 2
      %2799 = vperm.xlu0 %2798, %v786
      %v2800 = vpop.permute.xlu0 %2799
      %2802 = vset.pattern.permute.xlu0 2
      %2803 = vperm.xlu0 %2802, %v787
      %v2804 = vpop.permute.xlu0 %2803
      %2806 = vset.pattern.permute.xlu0 2
      %2807 = vperm.xlu0 %2806, %v788
      %v2808 = vpop.permute.xlu0 %2807
      %2810 = vset.pattern.permute.xlu0 2
      %2811 = vperm.xlu0 %2810, %v789
      %v2812 = vpop.permute.xlu0 %2811
      %2814 = vset.pattern.permute.xlu0 2
      %2815 = vperm.xlu0 %2814, %v790
      %v2816 = vpop.permute.xlu0 %2815
      %2818 = vset.pattern.permute.xlu0 2
      %2819 = vperm.xlu0 %2818, %v791
      %v2820 = vpop.permute.xlu0 %2819
      %2822 = vset.pattern.permute.xlu0 2
      %2823 = vperm.xlu0 %2822, %v792
      %v2824 = vpop.permute.xlu0 %2823
      %2826 = vset.pattern.permute.xlu0 2
      %2827 = vperm.xlu0 %2826, %v793
      %v2828 = vpop.permute.xlu0 %2827
      %2830 = vset.pattern.permute.xlu0 2
      %2831 = vperm.xlu0 %2830, %v794
      %v2832 = vpop.permute.xlu0 %2831
      %2834 = vset.pattern.permute.xlu0 2
      %2835 = vperm.xlu0 %2834, %v795
      %v2836 = vpop.permute.xlu0 %2835
      %2838 = vset.pattern.permute.xlu0 2
      %2839 = vperm.xlu0 %2838, %v796
      %v2840 = vpop.permute.xlu0 %2839
      %2842 = vset.pattern.permute.xlu0 2
      %2843 = vperm.xlu0 %2842, %v797
      %v2844 = vpop.permute.xlu0 %2843
      %2846 = vset.pattern.permute.xlu0 2
      %2847 = vperm.xlu0 %2846, %v798
      %v2848 = vpop.permute.xlu0 %2847
      %2850 = vset.pattern.permute.xlu0 2
      %2851 = vperm.xlu0 %2850, %v799
      %v2852 = vpop.permute.xlu0 %2851
      %2854 = vset.pattern.permute.xlu0 2
      %2855 = vperm.xlu0 %2854, %v800
      %v2856 = vpop.permute.xlu0 %2855
      %v2858 = vlaneseq
      %v2859 = vshrl.u32 %v2858, 7
      %v2860 = vsub.s32 2, %v2859
      %v2861 = vrot.slane %v801, %v2860
      %v2862 = vmul.f32 %v2348, %v2861
      %v2863 = vmul.f32 %v2352, %v2861
      %v2864 = vmul.f32 %v2356, %v2861
      %v2865 = vmul.f32 %v2360, %v2861
      %v2866 = vmul.f32 %v2364, %v2861
      %v2867 = vmul.f32 %v2368, %v2861
      %v2868 = vmul.f32 %v2372, %v2861
      %v2869 = vmul.f32 %v2376, %v2861
      %v2870 = vmul.f32 %v2380, %v2861
      %v2871 = vmul.f32 %v2384, %v2861
      %v2872 = vmul.f32 %v2388, %v2861
      %v2873 = vmul.f32 %v2392, %v2861
      %v2874 = vmul.f32 %v2396, %v2861
      %v2875 = vmul.f32 %v2400, %v2861
      %v2876 = vmul.f32 %v2404, %v2861
      %v2877 = vmul.f32 %v2408, %v2861
      %v2878 = vmul.f32 %v2412, %v2861
      %v2879 = vmul.f32 %v2416, %v2861
      %v2880 = vmul.f32 %v2420, %v2861
      %v2881 = vmul.f32 %v2424, %v2861
      %v2882 = vmul.f32 %v2428, %v2861
      %v2883 = vmul.f32 %v2432, %v2861
      %v2884 = vmul.f32 %v2436, %v2861
      %v2885 = vmul.f32 %v2440, %v2861
      %v2886 = vmul.f32 %v2444, %v2861
      %v2887 = vmul.f32 %v2448, %v2861
      %v2888 = vmul.f32 %v2452, %v2861
      %v2889 = vmul.f32 %v2456, %v2861
      %v2890 = vmul.f32 %v2460, %v2861
      %v2891 = vmul.f32 %v2464, %v2861
      %v2892 = vmul.f32 %v2468, %v2861
      %v2893 = vmul.f32 %v2472, %v2861
      %v2894 = vmul.f32 %v2476, %v2861
      %v2895 = vmul.f32 %v2480, %v2861
      %v2896 = vmul.f32 %v2484, %v2861
      %v2897 = vmul.f32 %v2488, %v2861
      %v2898 = vmul.f32 %v2492, %v2861
      %v2899 = vmul.f32 %v2496, %v2861
      %v2900 = vmul.f32 %v2500, %v2861
      %v2901 = vmul.f32 %v2504, %v2861
      %v2902 = vmul.f32 %v2508, %v2861
      %v2903 = vmul.f32 %v2512, %v2861
      %v2904 = vmul.f32 %v2516, %v2861
      %v2905 = vmul.f32 %v2520, %v2861
      %v2906 = vmul.f32 %v2524, %v2861
      %v2907 = vmul.f32 %v2528, %v2861
      %v2908 = vmul.f32 %v2532, %v2861
      %v2909 = vmul.f32 %v2536, %v2861
      %v2910 = vmul.f32 %v2540, %v2861
      %v2911 = vmul.f32 %v2544, %v2861
      %v2912 = vmul.f32 %v2548, %v2861
      %v2913 = vmul.f32 %v2552, %v2861
      %v2914 = vmul.f32 %v2556, %v2861
      %v2915 = vmul.f32 %v2560, %v2861
      %v2916 = vmul.f32 %v2564, %v2861
      %v2917 = vmul.f32 %v2568, %v2861
      %v2918 = vmul.f32 %v2572, %v2861
      %v2919 = vmul.f32 %v2576, %v2861
      %v2920 = vmul.f32 %v2580, %v2861
      %v2921 = vmul.f32 %v2584, %v2861
      %v2922 = vmul.f32 %v2588, %v2861
      %v2923 = vmul.f32 %v2592, %v2861
      %v2924 = vmul.f32 %v2596, %v2861
      %v2925 = vmul.f32 %v2600, %v2861
      %v2926 = vmul.f32 %v2604, %v2861
      %v2927 = vmul.f32 %v2608, %v2861
      %v2928 = vmul.f32 %v2612, %v2861
      %v2929 = vmul.f32 %v2616, %v2861
      %v2930 = vmul.f32 %v2620, %v2861
      %v2931 = vmul.f32 %v2624, %v2861
      %v2932 = vmul.f32 %v2628, %v2861
      %v2933 = vmul.f32 %v2632, %v2861
      %v2934 = vmul.f32 %v2636, %v2861
      %v2935 = vmul.f32 %v2640, %v2861
      %v2936 = vmul.f32 %v2644, %v2861
      %v2937 = vmul.f32 %v2648, %v2861
      %v2938 = vmul.f32 %v2652, %v2861
      %v2939 = vmul.f32 %v2656, %v2861
      %v2940 = vmul.f32 %v2660, %v2861
      %v2941 = vmul.f32 %v2664, %v2861
      %v2942 = vmul.f32 %v2668, %v2861
      %v2943 = vmul.f32 %v2672, %v2861
      %v2944 = vmul.f32 %v2676, %v2861
      %v2945 = vmul.f32 %v2680, %v2861
      %v2946 = vmul.f32 %v2684, %v2861
      %v2947 = vmul.f32 %v2688, %v2861
      %v2948 = vmul.f32 %v2692, %v2861
      %v2949 = vmul.f32 %v2696, %v2861
      %v2950 = vmul.f32 %v2700, %v2861
      %v2951 = vmul.f32 %v2704, %v2861
      %v2952 = vmul.f32 %v2708, %v2861
      %v2953 = vmul.f32 %v2712, %v2861
      %v2954 = vmul.f32 %v2716, %v2861
      %v2955 = vmul.f32 %v2720, %v2861
      %v2956 = vmul.f32 %v2724, %v2861
      %v2957 = vmul.f32 %v2728, %v2861
      %v2958 = vmul.f32 %v2732, %v2861
      %v2959 = vmul.f32 %v2736, %v2861
      %v2960 = vmul.f32 %v2740, %v2861
      %v2961 = vmul.f32 %v2744, %v2861
      %v2962 = vmul.f32 %v2748, %v2861
      %v2963 = vmul.f32 %v2752, %v2861
      %v2964 = vmul.f32 %v2756, %v2861
      %v2965 = vmul.f32 %v2760, %v2861
      %v2966 = vmul.f32 %v2764, %v2861
      %v2967 = vmul.f32 %v2768, %v2861
      %v2968 = vmul.f32 %v2772, %v2861
      %v2969 = vmul.f32 %v2776, %v2861
      %v2970 = vmul.f32 %v2780, %v2861
      %v2971 = vmul.f32 %v2784, %v2861
      %v2972 = vmul.f32 %v2788, %v2861
      %v2973 = vmul.f32 %v2792, %v2861
      %v2974 = vmul.f32 %v2796, %v2861
      %v2975 = vmul.f32 %v2800, %v2861
      %v2976 = vmul.f32 %v2804, %v2861
      %v2977 = vmul.f32 %v2808, %v2861
      %v2978 = vmul.f32 %v2812, %v2861
      %v2979 = vmul.f32 %v2816, %v2861
      %v2980 = vmul.f32 %v2820, %v2861
      %v2981 = vmul.f32 %v2824, %v2861
      %v2982 = vmul.f32 %v2828, %v2861
      %v2983 = vmul.f32 %v2832, %v2861
      %v2984 = vmul.f32 %v2836, %v2861
      %v2985 = vmul.f32 %v2840, %v2861
      %v2986 = vmul.f32 %v2844, %v2861
      %v2987 = vmul.f32 %v2848, %v2861
      %v2988 = vmul.f32 %v2852, %v2861
      %v2989 = vmul.f32 %v2856, %v2861
      %v2990 = vadd.f32 %v2218, %v2862
      %v2991 = vadd.f32 %v2219, %v2863
      %v2992 = vadd.f32 %v2220, %v2864
      %v2993 = vadd.f32 %v2221, %v2865
      %v2994 = vadd.f32 %v2222, %v2866
      %v2995 = vadd.f32 %v2223, %v2867
      %v2996 = vadd.f32 %v2224, %v2868
      %v2997 = vadd.f32 %v2225, %v2869
      %v2998 = vadd.f32 %v2226, %v2870
      %v2999 = vadd.f32 %v2227, %v2871
      %v3000 = vadd.f32 %v2228, %v2872
      %v3001 = vadd.f32 %v2229, %v2873
      %v3002 = vadd.f32 %v2230, %v2874
      %v3003 = vadd.f32 %v2231, %v2875
      %v3004 = vadd.f32 %v2232, %v2876
      %v3005 = vadd.f32 %v2233, %v2877
      %v3006 = vadd.f32 %v2234, %v2878
      %v3007 = vadd.f32 %v2235, %v2879
      %v3008 = vadd.f32 %v2236, %v2880
      %v3009 = vadd.f32 %v2237, %v2881
      %v3010 = vadd.f32 %v2238, %v2882
      %v3011 = vadd.f32 %v2239, %v2883
      %v3012 = vadd.f32 %v2240, %v2884
      %v3013 = vadd.f32 %v2241, %v2885
      %v3014 = vadd.f32 %v2242, %v2886
      %v3015 = vadd.f32 %v2243, %v2887
      %v3016 = vadd.f32 %v2244, %v2888
      %v3017 = vadd.f32 %v2245, %v2889
      %v3018 = vadd.f32 %v2246, %v2890
      %v3019 = vadd.f32 %v2247, %v2891
      %v3020 = vadd.f32 %v2248, %v2892
      %v3021 = vadd.f32 %v2249, %v2893
      %v3022 = vadd.f32 %v2250, %v2894
      %v3023 = vadd.f32 %v2251, %v2895
      %v3024 = vadd.f32 %v2252, %v2896
      %v3025 = vadd.f32 %v2253, %v2897
      %v3026 = vadd.f32 %v2254, %v2898
      %v3027 = vadd.f32 %v2255, %v2899
      %v3028 = vadd.f32 %v2256, %v2900
      %v3029 = vadd.f32 %v2257, %v2901
      %v3030 = vadd.f32 %v2258, %v2902
      %v3031 = vadd.f32 %v2259, %v2903
      %v3032 = vadd.f32 %v2260, %v2904
      %v3033 = vadd.f32 %v2261, %v2905
      %v3034 = vadd.f32 %v2262, %v2906
      %v3035 = vadd.f32 %v2263, %v2907
      %v3036 = vadd.f32 %v2264, %v2908
      %v3037 = vadd.f32 %v2265, %v2909
      %v3038 = vadd.f32 %v2266, %v2910
      %v3039 = vadd.f32 %v2267, %v2911
      %v3040 = vadd.f32 %v2268, %v2912
      %v3041 = vadd.f32 %v2269, %v2913
      %v3042 = vadd.f32 %v2270, %v2914
      %v3043 = vadd.f32 %v2271, %v2915
      %v3044 = vadd.f32 %v2272, %v2916
      %v3045 = vadd.f32 %v2273, %v2917
      %v3046 = vadd.f32 %v2274, %v2918
      %v3047 = vadd.f32 %v2275, %v2919
      %v3048 = vadd.f32 %v2276, %v2920
      %v3049 = vadd.f32 %v2277, %v2921
      %v3050 = vadd.f32 %v2278, %v2922
      %v3051 = vadd.f32 %v2279, %v2923
      %v3052 = vadd.f32 %v2280, %v2924
      %v3053 = vadd.f32 %v2281, %v2925
      %v3054 = vadd.f32 %v2282, %v2926
      %v3055 = vadd.f32 %v2283, %v2927
      %v3056 = vadd.f32 %v2284, %v2928
      %v3057 = vadd.f32 %v2285, %v2929
      %v3058 = vadd.f32 %v2286, %v2930
      %v3059 = vadd.f32 %v2287, %v2931
      %v3060 = vadd.f32 %v2288, %v2932
      %v3061 = vadd.f32 %v2289, %v2933
      %v3062 = vadd.f32 %v2290, %v2934
      %v3063 = vadd.f32 %v2291, %v2935
      %v3064 = vadd.f32 %v2292, %v2936
      %v3065 = vadd.f32 %v2293, %v2937
      %v3066 = vadd.f32 %v2294, %v2938
      %v3067 = vadd.f32 %v2295, %v2939
      %v3068 = vadd.f32 %v2296, %v2940
      %v3069 = vadd.f32 %v2297, %v2941
      %v3070 = vadd.f32 %v2298, %v2942
      %v3071 = vadd.f32 %v2299, %v2943
      %v3072 = vadd.f32 %v2300, %v2944
      %v3073 = vadd.f32 %v2301, %v2945
      %v3074 = vadd.f32 %v2302, %v2946
      %v3075 = vadd.f32 %v2303, %v2947
      %v3076 = vadd.f32 %v2304, %v2948
      %v3077 = vadd.f32 %v2305, %v2949
      %v3078 = vadd.f32 %v2306, %v2950
      %v3079 = vadd.f32 %v2307, %v2951
      %v3080 = vadd.f32 %v2308, %v2952
      %v3081 = vadd.f32 %v2309, %v2953
      %v3082 = vadd.f32 %v2310, %v2954
      %v3083 = vadd.f32 %v2311, %v2955
      %v3084 = vadd.f32 %v2312, %v2956
      %v3085 = vadd.f32 %v2313, %v2957
      %v3086 = vadd.f32 %v2314, %v2958
      %v3087 = vadd.f32 %v2315, %v2959
      %v3088 = vadd.f32 %v2316, %v2960
      %v3089 = vadd.f32 %v2317, %v2961
      %v3090 = vadd.f32 %v2318, %v2962
      %v3091 = vadd.f32 %v2319, %v2963
      %v3092 = vadd.f32 %v2320, %v2964
      %v3093 = vadd.f32 %v2321, %v2965
      %v3094 = vadd.f32 %v2322, %v2966
      %v3095 = vadd.f32 %v2323, %v2967
      %v3096 = vadd.f32 %v2324, %v2968
      %v3097 = vadd.f32 %v2325, %v2969
      %v3098 = vadd.f32 %v2326, %v2970
      %v3099 = vadd.f32 %v2327, %v2971
      %v3100 = vadd.f32 %v2328, %v2972
      %v3101 = vadd.f32 %v2329, %v2973
      %v3102 = vadd.f32 %v2330, %v2974
      %v3103 = vadd.f32 %v2331, %v2975
      %v3104 = vadd.f32 %v2332, %v2976
      %v3105 = vadd.f32 %v2333, %v2977
      %v3106 = vadd.f32 %v2334, %v2978
      %v3107 = vadd.f32 %v2335, %v2979
      %v3108 = vadd.f32 %v2336, %v2980
      %v3109 = vadd.f32 %v2337, %v2981
      %v3110 = vadd.f32 %v2338, %v2982
      %v3111 = vadd.f32 %v2339, %v2983
      %v3112 = vadd.f32 %v2340, %v2984
      %v3113 = vadd.f32 %v2341, %v2985
      %v3114 = vadd.f32 %v2342, %v2986
      %v3115 = vadd.f32 %v2343, %v2987
      %v3116 = vadd.f32 %v2344, %v2988
      %v3117 = vadd.f32 %v2345, %v2989
      %v3118 = vld [vmem:[%s521] sm:$0x1]
      %v3120 = vlaneseq
      %v3121 = vshrl.u32 %v3120, 7
      %v3122 = vsub.s32 0, %v3121
      %v3123 = vrot.slane %v3118, %v3122
      %v3125 = vadd.f32 %v2990, %v3123
      %v3126 = vadd.f32 %v2991, %v3123
      %v3127 = vadd.f32 %v2992, %v3123
      %v3128 = vadd.f32 %v2993, %v3123
      %v3129 = vadd.f32 %v2994, %v3123
      %v3130 = vadd.f32 %v2995, %v3123
      %v3131 = vadd.f32 %v2996, %v3123
      %v3132 = vadd.f32 %v2997, %v3123
      %v3133 = vadd.f32 %v2998, %v3123
      %v3134 = vadd.f32 %v2999, %v3123
      %v3135 = vadd.f32 %v3000, %v3123
      %v3136 = vadd.f32 %v3001, %v3123
      %v3137 = vadd.f32 %v3002, %v3123
      %v3138 = vadd.f32 %v3003, %v3123
      %v3139 = vadd.f32 %v3004, %v3123
      %v3140 = vadd.f32 %v3005, %v3123
      %v3141 = vadd.f32 %v3006, %v3123
      %v3142 = vadd.f32 %v3007, %v3123
      %v3143 = vadd.f32 %v3008, %v3123
      %v3144 = vadd.f32 %v3009, %v3123
      %v3145 = vadd.f32 %v3010, %v3123
      %v3146 = vadd.f32 %v3011, %v3123
      %v3147 = vadd.f32 %v3012, %v3123
      %v3148 = vadd.f32 %v3013, %v3123
      %v3149 = vadd.f32 %v3014, %v3123
      %v3150 = vadd.f32 %v3015, %v3123
      %v3151 = vadd.f32 %v3016, %v3123
      %v3152 = vadd.f32 %v3017, %v3123
      %v3153 = vadd.f32 %v3018, %v3123
      %v3154 = vadd.f32 %v3019, %v3123
      %v3155 = vadd.f32 %v3020, %v3123
      %v3156 = vadd.f32 %v3021, %v3123
      %v3157 = vadd.f32 %v3022, %v3123
      %v3158 = vadd.f32 %v3023, %v3123
      %v3159 = vadd.f32 %v3024, %v3123
      %v3160 = vadd.f32 %v3025, %v3123
      %v3161 = vadd.f32 %v3026, %v3123
      %v3162 = vadd.f32 %v3027, %v3123
      %v3163 = vadd.f32 %v3028, %v3123
      %v3164 = vadd.f32 %v3029, %v3123
      %v3165 = vadd.f32 %v3030, %v3123
      %v3166 = vadd.f32 %v3031, %v3123
      %v3167 = vadd.f32 %v3032, %v3123
      %v3168 = vadd.f32 %v3033, %v3123
      %v3169 = vadd.f32 %v3034, %v3123
      %v3170 = vadd.f32 %v3035, %v3123
      %v3171 = vadd.f32 %v3036, %v3123
      %v3172 = vadd.f32 %v3037, %v3123
      %v3173 = vadd.f32 %v3038, %v3123
      %v3174 = vadd.f32 %v3039, %v3123
      %v3175 = vadd.f32 %v3040, %v3123
      %v3176 = vadd.f32 %v3041, %v3123
      %v3177 = vadd.f32 %v3042, %v3123
      %v3178 = vadd.f32 %v3043, %v3123
      %v3179 = vadd.f32 %v3044, %v3123
      %v3180 = vadd.f32 %v3045, %v3123
      %v3181 = vadd.f32 %v3046, %v3123
      %v3182 = vadd.f32 %v3047, %v3123
      %v3183 = vadd.f32 %v3048, %v3123
      %v3184 = vadd.f32 %v3049, %v3123
      %v3185 = vadd.f32 %v3050, %v3123
      %v3186 = vadd.f32 %v3051, %v3123
      %v3187 = vadd.f32 %v3052, %v3123
      %v3188 = vadd.f32 %v3053, %v3123
      %v3189 = vadd.f32 %v3054, %v3123
      %v3190 = vadd.f32 %v3055, %v3123
      %v3191 = vadd.f32 %v3056, %v3123
      %v3192 = vadd.f32 %v3057, %v3123
      %v3193 = vadd.f32 %v3058, %v3123
      %v3194 = vadd.f32 %v3059, %v3123
      %v3195 = vadd.f32 %v3060, %v3123
      %v3196 = vadd.f32 %v3061, %v3123
      %v3197 = vadd.f32 %v3062, %v3123
      %v3198 = vadd.f32 %v3063, %v3123
      %v3199 = vadd.f32 %v3064, %v3123
      %v3200 = vadd.f32 %v3065, %v3123
      %v3201 = vadd.f32 %v3066, %v3123
      %v3202 = vadd.f32 %v3067, %v3123
      %v3203 = vadd.f32 %v3068, %v3123
      %v3204 = vadd.f32 %v3069, %v3123
      %v3205 = vadd.f32 %v3070, %v3123
      %v3206 = vadd.f32 %v3071, %v3123
      %v3207 = vadd.f32 %v3072, %v3123
      %v3208 = vadd.f32 %v3073, %v3123
      %v3209 = vadd.f32 %v3074, %v3123
      %v3210 = vadd.f32 %v3075, %v3123
      %v3211 = vadd.f32 %v3076, %v3123
      %v3212 = vadd.f32 %v3077, %v3123
      %v3213 = vadd.f32 %v3078, %v3123
      %v3214 = vadd.f32 %v3079, %v3123
      %v3215 = vadd.f32 %v3080, %v3123
      %v3216 = vadd.f32 %v3081, %v3123
      %v3217 = vadd.f32 %v3082, %v3123
      %v3218 = vadd.f32 %v3083, %v3123
      %v3219 = vadd.f32 %v3084, %v3123
      %v3220 = vadd.f32 %v3085, %v3123
      %v3221 = vadd.f32 %v3086, %v3123
      %v3222 = vadd.f32 %v3087, %v3123
      %v3223 = vadd.f32 %v3088, %v3123
      %v3224 = vadd.f32 %v3089, %v3123
      %v3225 = vadd.f32 %v3090, %v3123
      %v3226 = vadd.f32 %v3091, %v3123
      %v3227 = vadd.f32 %v3092, %v3123
      %v3228 = vadd.f32 %v3093, %v3123
      %v3229 = vadd.f32 %v3094, %v3123
      %v3230 = vadd.f32 %v3095, %v3123
      %v3231 = vadd.f32 %v3096, %v3123
      %v3232 = vadd.f32 %v3097, %v3123
      %v3233 = vadd.f32 %v3098, %v3123
      %v3234 = vadd.f32 %v3099, %v3123
      %v3235 = vadd.f32 %v3100, %v3123
      %v3236 = vadd.f32 %v3101, %v3123
      %v3237 = vadd.f32 %v3102, %v3123
      %v3238 = vadd.f32 %v3103, %v3123
      %v3239 = vadd.f32 %v3104, %v3123
      %v3240 = vadd.f32 %v3105, %v3123
      %v3241 = vadd.f32 %v3106, %v3123
      %v3242 = vadd.f32 %v3107, %v3123
      %v3243 = vadd.f32 %v3108, %v3123
      %v3244 = vadd.f32 %v3109, %v3123
      %v3245 = vadd.f32 %v3110, %v3123
      %v3246 = vadd.f32 %v3111, %v3123
      %v3247 = vadd.f32 %v3112, %v3123
      %v3248 = vadd.f32 %v3113, %v3123
      %v3249 = vadd.f32 %v3114, %v3123
      %v3250 = vadd.f32 %v3115, %v3123
      %v3251 = vadd.f32 %v3116, %v3123
      %v3252 = vadd.f32 %v3117, %v3123
      %v3253 = vpack.c.bf16 %v546, %v545
      %v3254 = vpack.c.bf16 %v548, %v547
      %v3255 = vpack.c.bf16 %v550, %v549
      %v3256 = vpack.c.bf16 %v552, %v551
      %v3257 = vpack.c.bf16 %v554, %v553
      %v3258 = vpack.c.bf16 %v556, %v555
      %v3259 = vpack.c.bf16 %v558, %v557
      %v3260 = vpack.c.bf16 %v560, %v559
      %v3261 = vpack.c.bf16 %v562, %v561
      %v3262 = vpack.c.bf16 %v564, %v563
      %v3263 = vpack.c.bf16 %v566, %v565
      %v3264 = vpack.c.bf16 %v568, %v567
      %v3265 = vpack.c.bf16 %v570, %v569
      %v3266 = vpack.c.bf16 %v572, %v571
      %v3267 = vpack.c.bf16 %v574, %v573
      %v3268 = vpack.c.bf16 %v576, %v575
      %v3269 = vpack.c.bf16 %v578, %v577
      %v3270 = vpack.c.bf16 %v580, %v579
      %v3271 = vpack.c.bf16 %v582, %v581
      %v3272 = vpack.c.bf16 %v584, %v583
      %v3273 = vpack.c.bf16 %v586, %v585
      %v3274 = vpack.c.bf16 %v588, %v587
      %v3275 = vpack.c.bf16 %v590, %v589
      %v3276 = vpack.c.bf16 %v592, %v591
      %v3277 = vpack.c.bf16 %v594, %v593
      %v3278 = vpack.c.bf16 %v596, %v595
      %v3279 = vpack.c.bf16 %v598, %v597
      %v3280 = vpack.c.bf16 %v600, %v599
      %v3281 = vpack.c.bf16 %v602, %v601
      %v3282 = vpack.c.bf16 %v604, %v603
      %v3283 = vpack.c.bf16 %v606, %v605
      %v3284 = vpack.c.bf16 %v608, %v607
      %v3285 = vpack.c.bf16 %v610, %v609
      %v3286 = vpack.c.bf16 %v612, %v611
      %v3287 = vpack.c.bf16 %v614, %v613
      %v3288 = vpack.c.bf16 %v616, %v615
      %v3289 = vpack.c.bf16 %v618, %v617
      %v3290 = vpack.c.bf16 %v620, %v619
      %v3291 = vpack.c.bf16 %v622, %v621
      %v3292 = vpack.c.bf16 %v624, %v623
      %v3293 = vpack.c.bf16 %v626, %v625
      %v3294 = vpack.c.bf16 %v628, %v627
      %v3295 = vpack.c.bf16 %v630, %v629
      %v3296 = vpack.c.bf16 %v632, %v631
      %v3297 = vpack.c.bf16 %v634, %v633
      %v3298 = vpack.c.bf16 %v636, %v635
      %v3299 = vpack.c.bf16 %v638, %v637
      %v3300 = vpack.c.bf16 %v640, %v639
      %v3301 = vpack.c.bf16 %v642, %v641
      %v3302 = vpack.c.bf16 %v644, %v643
      %v3303 = vpack.c.bf16 %v646, %v645
      %v3304 = vpack.c.bf16 %v648, %v647
      %v3305 = vpack.c.bf16 %v650, %v649
      %v3306 = vpack.c.bf16 %v652, %v651
      %v3307 = vpack.c.bf16 %v654, %v653
      %v3308 = vpack.c.bf16 %v656, %v655
      %v3309 = vpack.c.bf16 %v658, %v657
      %v3310 = vpack.c.bf16 %v660, %v659
      %v3311 = vpack.c.bf16 %v662, %v661
      %v3312 = vpack.c.bf16 %v664, %v663
      %v3313 = vpack.c.bf16 %v666, %v665
      %v3314 = vpack.c.bf16 %v668, %v667
      %v3315 = vpack.c.bf16 %v670, %v669
      %v3316 = vpack.c.bf16 %v672, %v671
      %v3317 = vld [vmem:[%s4] sm:$0xf]
      %v3318 = vpack.c.bf16 %v674, %v673
      %v3319 = vpack.c.bf16 %v676, %v675
      %v3320 = vpack.c.bf16 %v678, %v677
      %v3321 = vpack.c.bf16 %v680, %v679
      %v3322 = vpack.c.bf16 %v682, %v681
      %v3323 = vpack.c.bf16 %v684, %v683
      %v3324 = vpack.c.bf16 %v686, %v685
      %v3325 = vpack.c.bf16 %v688, %v687
      %v3326 = vpack.c.bf16 %v690, %v689
      %v3327 = vpack.c.bf16 %v692, %v691
      %v3328 = vpack.c.bf16 %v694, %v693
      %v3329 = vpack.c.bf16 %v696, %v695
      %v3330 = vpack.c.bf16 %v698, %v697
      %v3331 = vpack.c.bf16 %v700, %v699
      %v3332 = vpack.c.bf16 %v702, %v701
      %v3333 = vpack.c.bf16 %v704, %v703
      %v3334 = vpack.c.bf16 %v706, %v705
      %v3335 = vpack.c.bf16 %v708, %v707
      %v3336 = vpack.c.bf16 %v710, %v709
      %v3337 = vpack.c.bf16 %v712, %v711
      %v3338 = vpack.c.bf16 %v714, %v713
      %v3339 = vpack.c.bf16 %v716, %v715
      %v3340 = vpack.c.bf16 %v718, %v717
      %v3341 = vpack.c.bf16 %v720, %v719
      %v3342 = vpack.c.bf16 %v722, %v721
      %v3343 = vpack.c.bf16 %v724, %v723
      %v3344 = vpack.c.bf16 %v726, %v725
      %v3345 = vpack.c.bf16 %v728, %v727
      %v3346 = vpack.c.bf16 %v730, %v729
      %v3347 = vpack.c.bf16 %v732, %v731
      %v3348 = vpack.c.bf16 %v734, %v733
      %v3349 = vpack.c.bf16 %v736, %v735
      %v3350 = vpack.c.bf16 %v738, %v737
      %v3351 = vpack.c.bf16 %v740, %v739
      %v3352 = vpack.c.bf16 %v742, %v741
      %v3353 = vpack.c.bf16 %v744, %v743
      %v3354 = vpack.c.bf16 %v746, %v745
      %v3355 = vpack.c.bf16 %v748, %v747
      %v3356 = vpack.c.bf16 %v750, %v749
      %v3357 = vpack.c.bf16 %v752, %v751
      %v3358 = vpack.c.bf16 %v754, %v753
      %v3359 = vpack.c.bf16 %v756, %v755
      %v3360 = vpack.c.bf16 %v758, %v757
      %v3361 = vpack.c.bf16 %v760, %v759
      %v3362 = vpack.c.bf16 %v762, %v761
      %v3363 = vpack.c.bf16 %v764, %v763
      %v3364 = vpack.c.bf16 %v766, %v765
      %v3365 = vpack.c.bf16 %v768, %v767
      %v3366 = vpack.c.bf16 %v770, %v769
      %v3367 = vpack.c.bf16 %v772, %v771
      %v3368 = vpack.c.bf16 %v774, %v773
      %v3369 = vpack.c.bf16 %v776, %v775
      %v3370 = vpack.c.bf16 %v778, %v777
      %v3371 = vpack.c.bf16 %v780, %v779
      %v3372 = vpack.c.bf16 %v782, %v781
      %v3373 = vpack.c.bf16 %v784, %v783
      %v3374 = vpack.c.bf16 %v786, %v785
      %v3375 = vpack.c.bf16 %v788, %v787
      %v3376 = vpack.c.bf16 %v790, %v789
      %v3377 = vpack.c.bf16 %v792, %v791
      %v3378 = vpack.c.bf16 %v794, %v793
      %v3379 = vpack.c.bf16 %v796, %v795
      %v3380 = vpack.c.bf16 %v798, %v797
      %v3381 = vpack.c.bf16 %v800, %v799
      %v3382 = vld [vmem:[%s526] sm:$0xf]
      %v3385 = vunpack.c.l.s4 1983009808
      %v3386 = vunpack.c.0.s8 %v3385
      %v3387 = vlaneseq
      %v3388 = vshrl.u32 %v3387, 7
      %v3389 = vsub.s32 %v3386, %v3388
      %v3390 = vrot.slane %v3382, %v3389
      %v3391 = vcombine.high %v3390, %v3390
      %vm3392 = vcmask 23552
      %v3394 = vsel %vm3392, %v3318, 0
      %v3397 = vsel %vm3392, %v3319, 0
      %v3400 = vsel %vm3392, %v3320, 0
      %v3403 = vsel %vm3392, %v3321, 0
      %v3406 = vsel %vm3392, %v3322, 0
      %v3409 = vsel %vm3392, %v3323, 0
      %v3412 = vsel %vm3392, %v3324, 0
      %v3415 = vsel %vm3392, %v3325, 0
      %v3418 = vsel %vm3392, %v3326, 0
      %v3421 = vsel %vm3392, %v3327, 0
      %v3424 = vsel %vm3392, %v3328, 0
      %v3427 = vsel %vm3392, %v3329, 0
      %v3430 = vsel %vm3392, %v3330, 0
      %v3433 = vsel %vm3392, %v3331, 0
      %v3436 = vsel %vm3392, %v3332, 0
      %v3439 = vsel %vm3392, %v3333, 0
      %v3442 = vsel %vm3392, %v3334, 0
      %v3445 = vsel %vm3392, %v3335, 0
      %v3448 = vsel %vm3392, %v3336, 0
      %v3451 = vsel %vm3392, %v3337, 0
      %v3454 = vsel %vm3392, %v3338, 0
      %v3457 = vsel %vm3392, %v3339, 0
      %v3460 = vsel %vm3392, %v3340, 0
      %v3463 = vsel %vm3392, %v3341, 0
      %v3466 = vsel %vm3392, %v3342, 0
      %v3469 = vsel %vm3392, %v3343, 0
      %v3472 = vsel %vm3392, %v3344, 0
      %v3475 = vsel %vm3392, %v3345, 0
      %v3478 = vsel %vm3392, %v3346, 0
      %v3481 = vsel %vm3392, %v3347, 0
      %v3484 = vsel %vm3392, %v3348, 0
      %v3487 = vsel %vm3392, %v3349, 0
      %v3490 = vsel %vm3392, %v3350, 0
      %v3493 = vsel %vm3392, %v3351, 0
      %v3496 = vsel %vm3392, %v3352, 0
      %v3499 = vsel %vm3392, %v3353, 0
      %v3502 = vsel %vm3392, %v3354, 0
      %v3505 = vsel %vm3392, %v3355, 0
      %v3508 = vsel %vm3392, %v3356, 0
      %v3511 = vsel %vm3392, %v3357, 0
      %v3514 = vsel %vm3392, %v3358, 0
      %v3517 = vsel %vm3392, %v3359, 0
      %v3520 = vsel %vm3392, %v3360, 0
      %v3523 = vsel %vm3392, %v3361, 0
      %v3526 = vsel %vm3392, %v3362, 0
      %v3529 = vsel %vm3392, %v3363, 0
      %v3532 = vsel %vm3392, %v3364, 0
      %v3535 = vsel %vm3392, %v3365, 0
      %v3538 = vsel %vm3392, %v3366, 0
      %v3541 = vsel %vm3392, %v3367, 0
      %v3544 = vsel %vm3392, %v3368, 0
      %v3547 = vsel %vm3392, %v3369, 0
      %v3550 = vsel %vm3392, %v3370, 0
      %v3553 = vsel %vm3392, %v3371, 0
      %v3556 = vsel %vm3392, %v3372, 0
      %v3559 = vsel %vm3392, %v3373, 0
      %v3562 = vsel %vm3392, %v3374, 0
      %v3565 = vsel %vm3392, %v3375, 0
      %v3568 = vsel %vm3392, %v3376, 0
      %v3571 = vsel %vm3392, %v3377, 0
      %v3574 = vsel %vm3392, %v3378, 0
      %v3577 = vsel %vm3392, %v3379, 0
      %v3580 = vsel %vm3392, %v3380, 0
      %v3583 = vsel %vm3392, %v3381, 0
      %vm3585 = vcmask 1040384
      %vm3586 = vcmask 1041408
      %v3587 = vsel %vm3585, 4294967295, 65535
      %v3588 = vsel %vm3586, %v3587, 0
      %v3590 = vand.u32 %v3390, %v3588
      %v3593 = vand.u32 %v3391, %v3588
      %3595 = vmatprep.subr.bf16.mxu0 %v3593
      %3596 = vmatpush1.bf16.msra.mxu0 %v3590
      %3597 = vmatprep.subr.bf16.mxu0 0
      %3598 = vmatpush1.bf16.msra.mxu0 0
      %3599 = vmatprep.subr.bf16.mxu0 0
      %3600 = vmatpush1.bf16.msra.mxu0 0
      %3601 = vmatprep.subr.bf16.mxu0 0
      %3602 = vmatpush1.bf16.msra.mxu0 0
      %3603 = vmatprep.subr.bf16.mxu0 0
      %3604 = vmatpush1.bf16.msra.mxu0 0
      %3605 = vmatprep.subr.bf16.mxu0 0
      %3606 = vmatpush1.bf16.msra.mxu0 0
      %3607 = vmatprep.subr.bf16.mxu0 0
      %3608 = vmatpush1.bf16.msra.mxu0 0
      %3609 = vmatprep.subr.bf16.mxu0 0
      %3610 = vmatpush1.bf16.msra.mxu0 0
      %3611 = vmatprep.subr.bf16.mxu0 0
      %3612 = vmatpush1.bf16.msra.mxu0 0
      %3613 = vmatprep.subr.bf16.mxu0 0
      %3614 = vmatpush1.bf16.msra.mxu0 0
      %3615 = vmatprep.subr.bf16.mxu0 0
      %3616 = vmatpush1.bf16.msra.mxu0 0
      %3617 = vmatprep.subr.bf16.mxu0 0
      %3618 = vmatpush1.bf16.msra.mxu0 0
      %3619 = vmatprep.subr.bf16.mxu0 0
      %3620 = vmatpush1.bf16.msra.mxu0 0
      %3621 = vmatprep.subr.bf16.mxu0 0
      %3622 = vmatpush1.bf16.msra.mxu0 0
      %3623 = vmatprep.subr.bf16.mxu0 0
      %3624 = vmatpush1.bf16.msra.mxu0 0
      %3625 = vmatprep.subr.bf16.mxu0 0
      %3626 = vmatpush1.bf16.msra.mxu0 0
      %3627 = vmatprep.mubr.bf16.mxu0 0
      %3628 = vmatmul.mubr.bf16.gmra.mrb[0].mxu0 %v3394
      %v3629 = vpop.f32.mrb[0].mxu0
      %v3630 = vadd.f32 0.0, %v3629
      %v3631 = vpop.f32.mrb[0].mxu0
      %v3632 = vadd.f32 0.0, %v3631
      %v3633 = vpop.f32.mrb[0].mxu0
      %v3634 = vadd.f32 0.0, %v3633
      %v3635 = vpop.f32.mrb[0].mxu0
      %v3636 = vadd.f32 0.0, %v3635
      %3637 = vmatprep.mubr.bf16.mxu0 0
      %3638 = vmatmul.mubr.bf16.gmra.mrb[0].mxu0 %v3397
      %v3639 = vpop.f32.mrb[0].mxu0
      %v3640 = vadd.f32 0.0, %v3639
      %v3641 = vpop.f32.mrb[0].mxu0
      %v3642 = vadd.f32 0.0, %v3641
      %v3643 = vpop.f32.mrb[0].mxu0
      %v3644 = vadd.f32 0.0, %v3643
      %v3645 = vpop.f32.mrb[0].mxu0
      %v3646 = vadd.f32 0.0, %v3645
      %3647 = vmatprep.mubr.bf16.mxu0 0
      %3648 = vmatmul.mubr.bf16.gmra.mrb[0].mxu0 %v3400
      %v3649 = vpop.f32.mrb[0].mxu0
      %v3650 = vadd.f32 0.0, %v3649
      %v3651 = vpop.f32.mrb[0].mxu0
      %v3652 = vadd.f32 0.0, %v3651
      %v3653 = vpop.f32.mrb[0].mxu0
      %v3654 = vadd.f32 0.0, %v3653
      %v3655 = vpop.f32.mrb[0].mxu0
      %v3656 = vadd.f32 0.0, %v3655
      %3657 = vmatprep.mubr.bf16.mxu0 0
      %3658 = vmatmul.mubr.bf16.gmra.mrb[0].mxu0 %v3403
      %v3659 = vpop.f32.mrb[0].mxu0
      %v3660 = vadd.f32 0.0, %v3659
      %v3661 = vpop.f32.mrb[0].mxu0
      %v3662 = vadd.f32 0.0, %v3661
      %v3663 = vpop.f32.mrb[0].mxu0
      %v3664 = vadd.f32 0.0, %v3663
      %v3665 = vpop.f32.mrb[0].mxu0
      %v3666 = vadd.f32 0.0, %v3665
      %3667 = vmatprep.mubr.bf16.mxu0 0
      %3668 = vmatmul.mubr.bf16.gmra.mrb[0].mxu0 %v3406
      %v3669 = vpop.f32.mrb[0].mxu0
      %v3670 = vadd.f32 0.0, %v3669
      %v3671 = vpop.f32.mrb[0].mxu0
      %v3672 = vadd.f32 0.0, %v3671
      %v3673 = vpop.f32.mrb[0].mxu0
      %v3674 = vadd.f32 0.0, %v3673
      %v3675 = vpop.f32.mrb[0].mxu0
      %v3676 = vadd.f32 0.0, %v3675
      %3677 = vmatprep.mubr.bf16.mxu0 0
      %3678 = vmatmul.mubr.bf16.gmra.mrb[0].mxu0 %v3409
      %v3679 = vpop.f32.mrb[0].mxu0
      %v3680 = vadd.f32 0.0, %v3679
      %v3681 = vpop.f32.mrb[0].mxu0
      %v3682 = vadd.f32 0.0, %v3681
      %v3683 = vpop.f32.mrb[0].mxu0
      %v3684 = vadd.f32 0.0, %v3683
      %v3685 = vpop.f32.mrb[0].mxu0
      %v3686 = vadd.f32 0.0, %v3685
      %3687 = vmatprep.mubr.bf16.mxu0 0
      %3688 = vmatmul.mubr.bf16.gmra.mrb[0].mxu0 %v3412
      %v3689 = vpop.f32.mrb[0].mxu0
      %v3690 = vadd.f32 0.0, %v3689
      %v3691 = vpop.f32.mrb[0].mxu0
      %v3692 = vadd.f32 0.0, %v3691
      %v3693 = vpop.f32.mrb[0].mxu0
      %v3694 = vadd.f32 0.0, %v3693
      %v3695 = vpop.f32.mrb[0].mxu0
      %v3696 = vadd.f32 0.0, %v3695
      %3697 = vmatprep.mubr.bf16.mxu0 0
      %3698 = vmatmul.mubr.bf16.gmra.mrb[0].mxu0 %v3415
      %v3699 = vpop.f32.mrb[0].mxu0
      %v3700 = vadd.f32 0.0, %v3699
      %v3701 = vpop.f32.mrb[0].mxu0
      %v3702 = vadd.f32 0.0, %v3701
      %v3703 = vpop.f32.mrb[0].mxu0
      %v3704 = vadd.f32 0.0, %v3703
      %v3705 = vpop.f32.mrb[0].mxu0
      %v3706 = vadd.f32 0.0, %v3705
      %3707 = vmatprep.mubr.bf16.mxu0 0
      %3708 = vmatmul.mubr.bf16.gmra.mrb[0].mxu0 %v3418
      %v3709 = vpop.f32.mrb[0].mxu0
      %v3710 = vadd.f32 0.0, %v3709
      %v3711 = vpop.f32.mrb[0].mxu0
      %v3712 = vadd.f32 0.0, %v3711
      %v3713 = vpop.f32.mrb[0].mxu0
      %v3714 = vadd.f32 0.0, %v3713
      %v3715 = vpop.f32.mrb[0].mxu0
      %v3716 = vadd.f32 0.0, %v3715
      %3717 = vmatprep.mubr.bf16.mxu0 0
      %3718 = vmatmul.mubr.bf16.gmra.mrb[0].mxu0 %v3421
      %v3719 = vpop.f32.mrb[0].mxu0
      %v3720 = vadd.f32 0.0, %v3719
      %v3721 = vpop.f32.mrb[0].mxu0
      %v3722 = vadd.f32 0.0, %v3721
      %v3723 = vpop.f32.mrb[0].mxu0
      %v3724 = vadd.f32 0.0, %v3723
      %v3725 = vpop.f32.mrb[0].mxu0
      %v3726 = vadd.f32 0.0, %v3725
      %3727 = vmatprep.mubr.bf16.mxu0 0
      %3728 = vmatmul.mubr.bf16.gmra.mrb[0].mxu0 %v3424
      %v3729 = vpop.f32.mrb[0].mxu0
      %v3730 = vadd.f32 0.0, %v3729
      %v3731 = vpop.f32.mrb[0].mxu0
      %v3732 = vadd.f32 0.0, %v3731
      %v3733 = vpop.f32.mrb[0].mxu0
      %v3734 = vadd.f32 0.0, %v3733
      %v3735 = vpop.f32.mrb[0].mxu0
      %v3736 = vadd.f32 0.0, %v3735
      %3737 = vmatprep.mubr.bf16.mxu0 0
      %3738 = vmatmul.mubr.bf16.gmra.mrb[0].mxu0 %v3427
      %v3739 = vpop.f32.mrb[0].mxu0
      %v3740 = vadd.f32 0.0, %v3739
      %v3741 = vpop.f32.mrb[0].mxu0
      %v3742 = vadd.f32 0.0, %v3741
      %v3743 = vpop.f32.mrb[0].mxu0
      %v3744 = vadd.f32 0.0, %v3743
      %v3745 = vpop.f32.mrb[0].mxu0
      %v3746 = vadd.f32 0.0, %v3745
      %3747 = vmatprep.mubr.bf16.mxu0 0
      %3748 = vmatmul.mubr.bf16.gmra.mrb[0].mxu0 %v3430
      %v3749 = vpop.f32.mrb[0].mxu0
      %v3750 = vadd.f32 0.0, %v3749
      %v3751 = vpop.f32.mrb[0].mxu0
      %v3752 = vadd.f32 0.0, %v3751
      %v3753 = vpop.f32.mrb[0].mxu0
      %v3754 = vadd.f32 0.0, %v3753
      %v3755 = vpop.f32.mrb[0].mxu0
      %v3756 = vadd.f32 0.0, %v3755
      %3757 = vmatprep.mubr.bf16.mxu0 0
      %3758 = vmatmul.mubr.bf16.gmra.mrb[0].mxu0 %v3433
      %v3759 = vpop.f32.mrb[0].mxu0
      %v3760 = vadd.f32 0.0, %v3759
      %v3761 = vpop.f32.mrb[0].mxu0
      %v3762 = vadd.f32 0.0, %v3761
      %v3763 = vpop.f32.mrb[0].mxu0
      %v3764 = vadd.f32 0.0, %v3763
      %v3765 = vpop.f32.mrb[0].mxu0
      %v3766 = vadd.f32 0.0, %v3765
      %3767 = vmatprep.mubr.bf16.mxu0 0
      %3768 = vmatmul.mubr.bf16.gmra.mrb[0].mxu0 %v3436
      %v3769 = vpop.f32.mrb[0].mxu0
      %v3770 = vadd.f32 0.0, %v3769
      %v3771 = vpop.f32.mrb[0].mxu0
      %v3772 = vadd.f32 0.0, %v3771
      %v3773 = vpop.f32.mrb[0].mxu0
      %v3774 = vadd.f32 0.0, %v3773
      %v3775 = vpop.f32.mrb[0].mxu0
      %v3776 = vadd.f32 0.0, %v3775
      %3777 = vmatprep.mubr.bf16.mxu0 0
      %3778 = vmatmul.mubr.bf16.gmra.mrb[0].mxu0 %v3439
      %v3779 = vpop.f32.mrb[0].mxu0
      %v3780 = vadd.f32 0.0, %v3779
      %v3781 = vpop.f32.mrb[0].mxu0
      %v3782 = vadd.f32 0.0, %v3781
      %v3783 = vpop.f32.mrb[0].mxu0
      %v3784 = vadd.f32 0.0, %v3783
      %v3785 = vpop.f32.mrb[0].mxu0
      %v3786 = vadd.f32 0.0, %v3785
      %3787 = vmatprep.mubr.bf16.mxu0 0
      %3788 = vmatmul.mubr.bf16.gmra.mrb[0].mxu0 %v3442
      %v3789 = vpop.f32.mrb[0].mxu0
      %v3790 = vadd.f32 0.0, %v3789
      %v3791 = vpop.f32.mrb[0].mxu0
      %v3792 = vadd.f32 0.0, %v3791
      %v3793 = vpop.f32.mrb[0].mxu0
      %v3794 = vadd.f32 0.0, %v3793
      %v3795 = vpop.f32.mrb[0].mxu0
      %v3796 = vadd.f32 0.0, %v3795
      %3797 = vmatprep.mubr.bf16.mxu0 0
      %3798 = vmatmul.mubr.bf16.gmra.mrb[0].mxu0 %v3445
      %v3799 = vpop.f32.mrb[0].mxu0
      %v3800 = vadd.f32 0.0, %v3799
      %v3801 = vpop.f32.mrb[0].mxu0
      %v3802 = vadd.f32 0.0, %v3801
      %v3803 = vpop.f32.mrb[0].mxu0
      %v3804 = vadd.f32 0.0, %v3803
      %v3805 = vpop.f32.mrb[0].mxu0
      %v3806 = vadd.f32 0.0, %v3805
      %3807 = vmatprep.mubr.bf16.mxu0 0
      %3808 = vmatmul.mubr.bf16.gmra.mrb[0].mxu0 %v3448
      %v3809 = vpop.f32.mrb[0].mxu0
      %v3810 = vadd.f32 0.0, %v3809
      %v3811 = vpop.f32.mrb[0].mxu0
      %v3812 = vadd.f32 0.0, %v3811
      %v3813 = vpop.f32.mrb[0].mxu0
      %v3814 = vadd.f32 0.0, %v3813
      %v3815 = vpop.f32.mrb[0].mxu0
      %v3816 = vadd.f32 0.0, %v3815
      %3817 = vmatprep.mubr.bf16.mxu0 0
      %3818 = vmatmul.mubr.bf16.gmra.mrb[0].mxu0 %v3451
      %v3819 = vpop.f32.mrb[0].mxu0
      %v3820 = vadd.f32 0.0, %v3819
      %v3821 = vpop.f32.mrb[0].mxu0
      %v3822 = vadd.f32 0.0, %v3821
      %v3823 = vpop.f32.mrb[0].mxu0
      %v3824 = vadd.f32 0.0, %v3823
      %v3825 = vpop.f32.mrb[0].mxu0
      %v3826 = vadd.f32 0.0, %v3825
      %3827 = vmatprep.mubr.bf16.mxu0 0
      %3828 = vmatmul.mubr.bf16.gmra.mrb[0].mxu0 %v3454
      %v3829 = vpop.f32.mrb[0].mxu0
      %v3830 = vadd.f32 0.0, %v3829
      %v3831 = vpop.f32.mrb[0].mxu0
      %v3832 = vadd.f32 0.0, %v3831
      %v3833 = vpop.f32.mrb[0].mxu0
      %v3834 = vadd.f32 0.0, %v3833
      %v3835 = vpop.f32.mrb[0].mxu0
      %v3836 = vadd.f32 0.0, %v3835
      %3837 = vmatprep.mubr.bf16.mxu0 0
      %3838 = vmatmul.mubr.bf16.gmra.mrb[0].mxu0 %v3457
      %v3839 = vpop.f32.mrb[0].mxu0
      %v3840 = vadd.f32 0.0, %v3839
      %v3841 = vpop.f32.mrb[0].mxu0
      %v3842 = vadd.f32 0.0, %v3841
      %v3843 = vpop.f32.mrb[0].mxu0
      %v3844 = vadd.f32 0.0, %v3843
      %v3845 = vpop.f32.mrb[0].mxu0
      %v3846 = vadd.f32 0.0, %v3845
      %3847 = vmatprep.mubr.bf16.mxu0 0
      %3848 = vmatmul.mubr.bf16.gmra.mrb[0].mxu0 %v3460
      %v3849 = vpop.f32.mrb[0].mxu0
      %v3850 = vadd.f32 0.0, %v3849
      %v3851 = vpop.f32.mrb[0].mxu0
      %v3852 = vadd.f32 0.0, %v3851
      %v3853 = vpop.f32.mrb[0].mxu0
      %v3854 = vadd.f32 0.0, %v3853
      %v3855 = vpop.f32.mrb[0].mxu0
      %v3856 = vadd.f32 0.0, %v3855
      %3857 = vmatprep.mubr.bf16.mxu0 0
      %3858 = vmatmul.mubr.bf16.gmra.mrb[0].mxu0 %v3463
      %v3859 = vpop.f32.mrb[0].mxu0
      %v3860 = vadd.f32 0.0, %v3859
      %v3861 = vpop.f32.mrb[0].mxu0
      %v3862 = vadd.f32 0.0, %v3861
      %v3863 = vpop.f32.mrb[0].mxu0
      %v3864 = vadd.f32 0.0, %v3863
      %v3865 = vpop.f32.mrb[0].mxu0
      %v3866 = vadd.f32 0.0, %v3865
      %3867 = vmatprep.mubr.bf16.mxu0 0
      %3868 = vmatmul.mubr.bf16.gmra.mrb[0].mxu0 %v3466
      %v3869 = vpop.f32.mrb[0].mxu0
      %v3870 = vadd.f32 0.0, %v3869
      %v3871 = vpop.f32.mrb[0].mxu0
      %v3872 = vadd.f32 0.0, %v3871
      %v3873 = vpop.f32.mrb[0].mxu0
      %v3874 = vadd.f32 0.0, %v3873
      %v3875 = vpop.f32.mrb[0].mxu0
      %v3876 = vadd.f32 0.0, %v3875
      %3877 = vmatprep.mubr.bf16.mxu0 0
      %3878 = vmatmul.mubr.bf16.gmra.mrb[0].mxu0 %v3469
      %v3879 = vpop.f32.mrb[0].mxu0
      %v3880 = vadd.f32 0.0, %v3879
      %v3881 = vpop.f32.mrb[0].mxu0
      %v3882 = vadd.f32 0.0, %v3881
      %v3883 = vpop.f32.mrb[0].mxu0
      %v3884 = vadd.f32 0.0, %v3883
      %v3885 = vpop.f32.mrb[0].mxu0
      %v3886 = vadd.f32 0.0, %v3885
      %3887 = vmatprep.mubr.bf16.mxu0 0
      %3888 = vmatmul.mubr.bf16.gmra.mrb[0].mxu0 %v3472
      %v3889 = vpop.f32.mrb[0].mxu0
      %v3890 = vadd.f32 0.0, %v3889
      %v3891 = vpop.f32.mrb[0].mxu0
      %v3892 = vadd.f32 0.0, %v3891
      %v3893 = vpop.f32.mrb[0].mxu0
      %v3894 = vadd.f32 0.0, %v3893
      %v3895 = vpop.f32.mrb[0].mxu0
      %v3896 = vadd.f32 0.0, %v3895
      %3897 = vmatprep.mubr.bf16.mxu0 0
      %3898 = vmatmul.mubr.bf16.gmra.mrb[0].mxu0 %v3475
      %v3899 = vpop.f32.mrb[0].mxu0
      %v3900 = vadd.f32 0.0, %v3899
      %v3901 = vpop.f32.mrb[0].mxu0
      %v3902 = vadd.f32 0.0, %v3901
      %v3903 = vpop.f32.mrb[0].mxu0
      %v3904 = vadd.f32 0.0, %v3903
      %v3905 = vpop.f32.mrb[0].mxu0
      %v3906 = vadd.f32 0.0, %v3905
      %3907 = vmatprep.mubr.bf16.mxu0 0
      %3908 = vmatmul.mubr.bf16.gmra.mrb[0].mxu0 %v3478
      %v3909 = vpop.f32.mrb[0].mxu0
      %v3910 = vadd.f32 0.0, %v3909
      %v3911 = vpop.f32.mrb[0].mxu0
      %v3912 = vadd.f32 0.0, %v3911
      %v3913 = vpop.f32.mrb[0].mxu0
      %v3914 = vadd.f32 0.0, %v3913
      %v3915 = vpop.f32.mrb[0].mxu0
      %v3916 = vadd.f32 0.0, %v3915
      %3917 = vmatprep.mubr.bf16.mxu0 0
      %3918 = vmatmul.mubr.bf16.gmra.mrb[0].mxu0 %v3481
      %v3919 = vpop.f32.mrb[0].mxu0
      %v3920 = vadd.f32 0.0, %v3919
      %v3921 = vpop.f32.mrb[0].mxu0
      %v3922 = vadd.f32 0.0, %v3921
      %v3923 = vpop.f32.mrb[0].mxu0
      %v3924 = vadd.f32 0.0, %v3923
      %v3925 = vpop.f32.mrb[0].mxu0
      %v3926 = vadd.f32 0.0, %v3925
      %3927 = vmatprep.mubr.bf16.mxu0 0
      %3928 = vmatmul.mubr.bf16.gmra.mrb[0].mxu0 %v3484
      %v3929 = vpop.f32.mrb[0].mxu0
      %v3930 = vadd.f32 0.0, %v3929
      %v3931 = vpop.f32.mrb[0].mxu0
      %v3932 = vadd.f32 0.0, %v3931
      %v3933 = vpop.f32.mrb[0].mxu0
      %v3934 = vadd.f32 0.0, %v3933
      %v3935 = vpop.f32.mrb[0].mxu0
      %v3936 = vadd.f32 0.0, %v3935
      %3937 = vmatprep.mubr.bf16.mxu0 0
      %3938 = vmatmul.mubr.bf16.gmra.mrb[0].mxu0 %v3487
      %v3939 = vpop.f32.mrb[0].mxu0
      %v3940 = vadd.f32 0.0, %v3939
      %v3941 = vpop.f32.mrb[0].mxu0
      %v3942 = vadd.f32 0.0, %v3941
      %v3943 = vpop.f32.mrb[0].mxu0
      %v3944 = vadd.f32 0.0, %v3943
      %v3945 = vpop.f32.mrb[0].mxu0
      %v3946 = vadd.f32 0.0, %v3945
      %3947 = vmatprep.mubr.bf16.mxu0 0
      %3948 = vmatmul.mubr.bf16.gmra.mrb[0].mxu0 %v3490
      %v3949 = vpop.f32.mrb[0].mxu0
      %v3950 = vadd.f32 0.0, %v3949
      %v3951 = vpop.f32.mrb[0].mxu0
      %v3952 = vadd.f32 0.0, %v3951
      %v3953 = vpop.f32.mrb[0].mxu0
      %v3954 = vadd.f32 0.0, %v3953
      %v3955 = vpop.f32.mrb[0].mxu0
      %v3956 = vadd.f32 0.0, %v3955
      %3957 = vmatprep.mubr.bf16.mxu0 0
      %3958 = vmatmul.mubr.bf16.gmra.mrb[0].mxu0 %v3493
      %v3959 = vpop.f32.mrb[0].mxu0
      %v3960 = vadd.f32 0.0, %v3959
      %v3961 = vpop.f32.mrb[0].mxu0
      %v3962 = vadd.f32 0.0, %v3961
      %v3963 = vpop.f32.mrb[0].mxu0
      %v3964 = vadd.f32 0.0, %v3963
      %v3965 = vpop.f32.mrb[0].mxu0
      %v3966 = vadd.f32 0.0, %v3965
      %3967 = vmatprep.mubr.bf16.mxu0 0
      %3968 = vmatmul.mubr.bf16.gmra.mrb[0].mxu0 %v3496
      %v3969 = vpop.f32.mrb[0].mxu0
      %v3970 = vadd.f32 0.0, %v3969
      %v3971 = vpop.f32.mrb[0].mxu0
      %v3972 = vadd.f32 0.0, %v3971
      %v3973 = vpop.f32.mrb[0].mxu0
      %v3974 = vadd.f32 0.0, %v3973
      %v3975 = vpop.f32.mrb[0].mxu0
      %v3976 = vadd.f32 0.0, %v3975
      %3977 = vmatprep.mubr.bf16.mxu0 0
      %3978 = vmatmul.mubr.bf16.gmra.mrb[0].mxu0 %v3499
      %v3979 = vpop.f32.mrb[0].mxu0
      %v3980 = vadd.f32 0.0, %v3979
      %v3981 = vpop.f32.mrb[0].mxu0
      %v3982 = vadd.f32 0.0, %v3981
      %v3983 = vpop.f32.mrb[0].mxu0
      %v3984 = vadd.f32 0.0, %v3983
      %v3985 = vpop.f32.mrb[0].mxu0
      %v3986 = vadd.f32 0.0, %v3985
      %3987 = vmatprep.mubr.bf16.mxu0 0
      %3988 = vmatmul.mubr.bf16.gmra.mrb[0].mxu0 %v3502
      %v3989 = vpop.f32.mrb[0].mxu0
      %v3990 = vadd.f32 0.0, %v3989
      %v3991 = vpop.f32.mrb[0].mxu0
      %v3992 = vadd.f32 0.0, %v3991
      %v3993 = vpop.f32.mrb[0].mxu0
      %v3994 = vadd.f32 0.0, %v3993
      %v3995 = vpop.f32.mrb[0].mxu0
      %v3996 = vadd.f32 0.0, %v3995
      %3997 = vmatprep.mubr.bf16.mxu0 0
      %3998 = vmatmul.mubr.bf16.gmra.mrb[0].mxu0 %v3505
      %v3999 = vpop.f32.mrb[0].mxu0
      %v4000 = vadd.f32 0.0, %v3999
      %v4001 = vpop.f32.mrb[0].mxu0
      %v4002 = vadd.f32 0.0, %v4001
      %v4003 = vpop.f32.mrb[0].mxu0
      %v4004 = vadd.f32 0.0, %v4003
      %v4005 = vpop.f32.mrb[0].mxu0
      %v4006 = vadd.f32 0.0, %v4005
      %4007 = vmatprep.mubr.bf16.mxu0 0
      %4008 = vmatmul.mubr.bf16.gmra.mrb[0].mxu0 %v3508
      %v4009 = vpop.f32.mrb[0].mxu0
      %v4010 = vadd.f32 0.0, %v4009
      %v4011 = vpop.f32.mrb[0].mxu0
      %v4012 = vadd.f32 0.0, %v4011
      %v4013 = vpop.f32.mrb[0].mxu0
      %v4014 = vadd.f32 0.0, %v4013
      %v4015 = vpop.f32.mrb[0].mxu0
      %v4016 = vadd.f32 0.0, %v4015
      %4017 = vmatprep.mubr.bf16.mxu0 0
      %4018 = vmatmul.mubr.bf16.gmra.mrb[0].mxu0 %v3511
      %v4019 = vpop.f32.mrb[0].mxu0
      %v4020 = vadd.f32 0.0, %v4019
      %v4021 = vpop.f32.mrb[0].mxu0
      %v4022 = vadd.f32 0.0, %v4021
      %v4023 = vpop.f32.mrb[0].mxu0
      %v4024 = vadd.f32 0.0, %v4023
      %v4025 = vpop.f32.mrb[0].mxu0
      %v4026 = vadd.f32 0.0, %v4025
      %4027 = vmatprep.mubr.bf16.mxu0 0
      %4028 = vmatmul.mubr.bf16.gmra.mrb[0].mxu0 %v3514
      %v4029 = vpop.f32.mrb[0].mxu0
      %v4030 = vadd.f32 0.0, %v4029
      %v4031 = vpop.f32.mrb[0].mxu0
      %v4032 = vadd.f32 0.0, %v4031
      %v4033 = vpop.f32.mrb[0].mxu0
      %v4034 = vadd.f32 0.0, %v4033
      %v4035 = vpop.f32.mrb[0].mxu0
      %v4036 = vadd.f32 0.0, %v4035
      %4037 = vmatprep.mubr.bf16.mxu0 0
      %4038 = vmatmul.mubr.bf16.gmra.mrb[0].mxu0 %v3517
      %v4039 = vpop.f32.mrb[0].mxu0
      %v4040 = vadd.f32 0.0, %v4039
      %v4041 = vpop.f32.mrb[0].mxu0
      %v4042 = vadd.f32 0.0, %v4041
      %v4043 = vpop.f32.mrb[0].mxu0
      %v4044 = vadd.f32 0.0, %v4043
      %v4045 = vpop.f32.mrb[0].mxu0
      %v4046 = vadd.f32 0.0, %v4045
      %4047 = vmatprep.mubr.bf16.mxu0 0
      %4048 = vmatmul.mubr.bf16.gmra.mrb[0].mxu0 %v3520
      %v4049 = vpop.f32.mrb[0].mxu0
      %v4050 = vadd.f32 0.0, %v4049
      %v4051 = vpop.f32.mrb[0].mxu0
      %v4052 = vadd.f32 0.0, %v4051
      %v4053 = vpop.f32.mrb[0].mxu0
      %v4054 = vadd.f32 0.0, %v4053
      %v4055 = vpop.f32.mrb[0].mxu0
      %v4056 = vadd.f32 0.0, %v4055
      %4057 = vmatprep.mubr.bf16.mxu0 0
      %4058 = vmatmul.mubr.bf16.gmra.mrb[0].mxu0 %v3523
      %v4059 = vpop.f32.mrb[0].mxu0
      %v4060 = vadd.f32 0.0, %v4059
      %v4061 = vpop.f32.mrb[0].mxu0
      %v4062 = vadd.f32 0.0, %v4061
      %v4063 = vpop.f32.mrb[0].mxu0
      %v4064 = vadd.f32 0.0, %v4063
      %v4065 = vpop.f32.mrb[0].mxu0
      %v4066 = vadd.f32 0.0, %v4065
      %4067 = vmatprep.mubr.bf16.mxu0 0
      %4068 = vmatmul.mubr.bf16.gmra.mrb[0].mxu0 %v3526
      %v4069 = vpop.f32.mrb[0].mxu0
      %v4070 = vadd.f32 0.0, %v4069
      %v4071 = vpop.f32.mrb[0].mxu0
      %v4072 = vadd.f32 0.0, %v4071
      %v4073 = vpop.f32.mrb[0].mxu0
      %v4074 = vadd.f32 0.0, %v4073
      %v4075 = vpop.f32.mrb[0].mxu0
      %v4076 = vadd.f32 0.0, %v4075
      %4077 = vmatprep.mubr.bf16.mxu0 0
      %4078 = vmatmul.mubr.bf16.gmra.mrb[0].mxu0 %v3529
      %v4079 = vpop.f32.mrb[0].mxu0
      %v4080 = vadd.f32 0.0, %v4079
      %v4081 = vpop.f32.mrb[0].mxu0
      %v4082 = vadd.f32 0.0, %v4081
      %v4083 = vpop.f32.mrb[0].mxu0
      %v4084 = vadd.f32 0.0, %v4083
      %v4085 = vpop.f32.mrb[0].mxu0
      %v4086 = vadd.f32 0.0, %v4085
      %4087 = vmatprep.mubr.bf16.mxu0 0
      %4088 = vmatmul.mubr.bf16.gmra.mrb[0].mxu0 %v3532
      %v4089 = vpop.f32.mrb[0].mxu0
      %v4090 = vadd.f32 0.0, %v4089
      %v4091 = vpop.f32.mrb[0].mxu0
      %v4092 = vadd.f32 0.0, %v4091
      %v4093 = vpop.f32.mrb[0].mxu0
      %v4094 = vadd.f32 0.0, %v4093
      %v4095 = vpop.f32.mrb[0].mxu0
      %v4096 = vadd.f32 0.0, %v4095
      %4097 = vmatprep.mubr.bf16.mxu0 0
      %4098 = vmatmul.mubr.bf16.gmra.mrb[0].mxu0 %v3535
      %v4099 = vpop.f32.mrb[0].mxu0
      %v4100 = vadd.f32 0.0, %v4099
      %v4101 = vpop.f32.mrb[0].mxu0
      %v4102 = vadd.f32 0.0, %v4101
      %v4103 = vpop.f32.mrb[0].mxu0
      %v4104 = vadd.f32 0.0, %v4103
      %v4105 = vpop.f32.mrb[0].mxu0
      %v4106 = vadd.f32 0.0, %v4105
      %4107 = vmatprep.mubr.bf16.mxu0 0
      %4108 = vmatmul.mubr.bf16.gmra.mrb[0].mxu0 %v3538
      %v4109 = vpop.f32.mrb[0].mxu0
      %v4110 = vadd.f32 0.0, %v4109
      %v4111 = vpop.f32.mrb[0].mxu0
      %v4112 = vadd.f32 0.0, %v4111
      %v4113 = vpop.f32.mrb[0].mxu0
      %v4114 = vadd.f32 0.0, %v4113
      %v4115 = vpop.f32.mrb[0].mxu0
      %v4116 = vadd.f32 0.0, %v4115
      %4117 = vmatprep.mubr.bf16.mxu0 0
      %4118 = vmatmul.mubr.bf16.gmra.mrb[0].mxu0 %v3541
      %v4119 = vpop.f32.mrb[0].mxu0
      %v4120 = vadd.f32 0.0, %v4119
      %v4121 = vpop.f32.mrb[0].mxu0
      %v4122 = vadd.f32 0.0, %v4121
      %v4123 = vpop.f32.mrb[0].mxu0
      %v4124 = vadd.f32 0.0, %v4123
      %v4125 = vpop.f32.mrb[0].mxu0
      %v4126 = vadd.f32 0.0, %v4125
      %4127 = vmatprep.mubr.bf16.mxu0 0
      %4128 = vmatmul.mubr.bf16.gmra.mrb[0].mxu0 %v3544
      %v4129 = vpop.f32.mrb[0].mxu0
      %v4130 = vadd.f32 0.0, %v4129
      %v4131 = vpop.f32.mrb[0].mxu0
      %v4132 = vadd.f32 0.0, %v4131
      %v4133 = vpop.f32.mrb[0].mxu0
      %v4134 = vadd.f32 0.0, %v4133
      %v4135 = vpop.f32.mrb[0].mxu0
      %v4136 = vadd.f32 0.0, %v4135
      %4137 = vmatprep.mubr.bf16.mxu0 0
      %4138 = vmatmul.mubr.bf16.gmra.mrb[0].mxu0 %v3547
      %v4139 = vpop.f32.mrb[0].mxu0
      %v4140 = vadd.f32 0.0, %v4139
      %v4141 = vpop.f32.mrb[0].mxu0
      %v4142 = vadd.f32 0.0, %v4141
      %v4143 = vpop.f32.mrb[0].mxu0
      %v4144 = vadd.f32 0.0, %v4143
      %v4145 = vpop.f32.mrb[0].mxu0
      %v4146 = vadd.f32 0.0, %v4145
      %4147 = vmatprep.mubr.bf16.mxu0 0
      %4148 = vmatmul.mubr.bf16.gmra.mrb[0].mxu0 %v3550
      %v4149 = vpop.f32.mrb[0].mxu0
      %v4150 = vadd.f32 0.0, %v4149
      %v4151 = vpop.f32.mrb[0].mxu0
      %v4152 = vadd.f32 0.0, %v4151
      %v4153 = vpop.f32.mrb[0].mxu0
      %v4154 = vadd.f32 0.0, %v4153
      %v4155 = vpop.f32.mrb[0].mxu0
      %v4156 = vadd.f32 0.0, %v4155
      %4157 = vmatprep.mubr.bf16.mxu0 0
      %4158 = vmatmul.mubr.bf16.gmra.mrb[0].mxu0 %v3553
      %v4159 = vpop.f32.mrb[0].mxu0
      %v4160 = vadd.f32 0.0, %v4159
      %v4161 = vpop.f32.mrb[0].mxu0
      %v4162 = vadd.f32 0.0, %v4161
      %v4163 = vpop.f32.mrb[0].mxu0
      %v4164 = vadd.f32 0.0, %v4163
      %v4165 = vpop.f32.mrb[0].mxu0
      %v4166 = vadd.f32 0.0, %v4165
      %4167 = vmatprep.mubr.bf16.mxu0 0
      %4168 = vmatmul.mubr.bf16.gmra.mrb[0].mxu0 %v3556
      %v4169 = vpop.f32.mrb[0].mxu0
      %v4170 = vadd.f32 0.0, %v4169
      %v4171 = vpop.f32.mrb[0].mxu0
      %v4172 = vadd.f32 0.0, %v4171
      %v4173 = vpop.f32.mrb[0].mxu0
      %v4174 = vadd.f32 0.0, %v4173
      %v4175 = vpop.f32.mrb[0].mxu0
      %v4176 = vadd.f32 0.0, %v4175
      %4177 = vmatprep.mubr.bf16.mxu0 0
      %4178 = vmatmul.mubr.bf16.gmra.mrb[0].mxu0 %v3559
      %v4179 = vpop.f32.mrb[0].mxu0
      %v4180 = vadd.f32 0.0, %v4179
      %v4181 = vpop.f32.mrb[0].mxu0
      %v4182 = vadd.f32 0.0, %v4181
      %v4183 = vpop.f32.mrb[0].mxu0
      %v4184 = vadd.f32 0.0, %v4183
      %v4185 = vpop.f32.mrb[0].mxu0
      %v4186 = vadd.f32 0.0, %v4185
      %4187 = vmatprep.mubr.bf16.mxu0 0
      %4188 = vmatmul.mubr.bf16.gmra.mrb[0].mxu0 %v3562
      %v4189 = vpop.f32.mrb[0].mxu0
      %v4190 = vadd.f32 0.0, %v4189
      %v4191 = vpop.f32.mrb[0].mxu0
      %v4192 = vadd.f32 0.0, %v4191
      %v4193 = vpop.f32.mrb[0].mxu0
      %v4194 = vadd.f32 0.0, %v4193
      %v4195 = vpop.f32.mrb[0].mxu0
      %v4196 = vadd.f32 0.0, %v4195
      %4197 = vmatprep.mubr.bf16.mxu0 0
      %4198 = vmatmul.mubr.bf16.gmra.mrb[0].mxu0 %v3565
      %v4199 = vpop.f32.mrb[0].mxu0
      %v4200 = vadd.f32 0.0, %v4199
      %v4201 = vpop.f32.mrb[0].mxu0
      %v4202 = vadd.f32 0.0, %v4201
      %v4203 = vpop.f32.mrb[0].mxu0
      %v4204 = vadd.f32 0.0, %v4203
      %v4205 = vpop.f32.mrb[0].mxu0
      %v4206 = vadd.f32 0.0, %v4205
      %4207 = vmatprep.mubr.bf16.mxu0 0
      %4208 = vmatmul.mubr.bf16.gmra.mrb[0].mxu0 %v3568
      %v4209 = vpop.f32.mrb[0].mxu0
      %v4210 = vadd.f32 0.0, %v4209
      %v4211 = vpop.f32.mrb[0].mxu0
      %v4212 = vadd.f32 0.0, %v4211
      %v4213 = vpop.f32.mrb[0].mxu0
      %v4214 = vadd.f32 0.0, %v4213
      %v4215 = vpop.f32.mrb[0].mxu0
      %v4216 = vadd.f32 0.0, %v4215
      %4217 = vmatprep.mubr.bf16.mxu0 0
      %4218 = vmatmul.mubr.bf16.gmra.mrb[0].mxu0 %v3571
      %v4219 = vpop.f32.mrb[0].mxu0
      %v4220 = vadd.f32 0.0, %v4219
      %v4221 = vpop.f32.mrb[0].mxu0
      %v4222 = vadd.f32 0.0, %v4221
      %v4223 = vpop.f32.mrb[0].mxu0
      %v4224 = vadd.f32 0.0, %v4223
      %v4225 = vpop.f32.mrb[0].mxu0
      %v4226 = vadd.f32 0.0, %v4225
      %4227 = vmatprep.mubr.bf16.mxu0 0
      %4228 = vmatmul.mubr.bf16.gmra.mrb[0].mxu0 %v3574
      %v4229 = vpop.f32.mrb[0].mxu0
      %v4230 = vadd.f32 0.0, %v4229
      %v4231 = vpop.f32.mrb[0].mxu0
      %v4232 = vadd.f32 0.0, %v4231
      %v4233 = vpop.f32.mrb[0].mxu0
      %v4234 = vadd.f32 0.0, %v4233
      %v4235 = vpop.f32.mrb[0].mxu0
      %v4236 = vadd.f32 0.0, %v4235
      %4237 = vmatprep.mubr.bf16.mxu0 0
      %4238 = vmatmul.mubr.bf16.gmra.mrb[0].mxu0 %v3577
      %v4239 = vpop.f32.mrb[0].mxu0
      %v4240 = vadd.f32 0.0, %v4239
      %v4241 = vpop.f32.mrb[0].mxu0
      %v4242 = vadd.f32 0.0, %v4241
      %v4243 = vpop.f32.mrb[0].mxu0
      %v4244 = vadd.f32 0.0, %v4243
      %v4245 = vpop.f32.mrb[0].mxu0
      %v4246 = vadd.f32 0.0, %v4245
      %4247 = vmatprep.mubr.bf16.mxu0 0
      %4248 = vmatmul.mubr.bf16.gmra.mrb[0].mxu0 %v3580
      %v4249 = vpop.f32.mrb[0].mxu0
      %v4250 = vadd.f32 0.0, %v4249
      %v4251 = vpop.f32.mrb[0].mxu0
      %v4252 = vadd.f32 0.0, %v4251
      %v4253 = vpop.f32.mrb[0].mxu0
      %v4254 = vadd.f32 0.0, %v4253
      %v4255 = vpop.f32.mrb[0].mxu0
      %v4256 = vadd.f32 0.0, %v4255
      %4257 = vmatprep.mubr.bf16.mxu0 0
      %4258 = vmatmul.mubr.bf16.gmra.mrb[0].mxu0 %v3583
      %v4259 = vpop.f32.mrb[0].mxu0
      %v4260 = vadd.f32 0.0, %v4259
      %v4261 = vpop.f32.mrb[0].mxu0
      %v4262 = vadd.f32 0.0, %v4261
      %v4263 = vpop.f32.mrb[0].mxu0
      %v4264 = vadd.f32 0.0, %v4263
      %v4265 = vpop.f32.mrb[0].mxu0
      %v4266 = vadd.f32 0.0, %v4265
      %4267 = vdwg.mxu0
      %v4270 = vunpack.c.l.s4 1983009808
      %v4271 = vunpack.c.0.s8 %v4270
      %v4272 = vlaneseq
      %v4273 = vshrl.u32 %v4272, 7
      %v4274 = vsub.s32 %v4271, %v4273
      %v4275 = vrot.slane %v3317, %v4274
      %v4276 = vcombine.high %v4275, %v4275
      %v4278 = vsel %vm3392, %v3253, 0
      %v4281 = vsel %vm3392, %v3254, 0
      %v4284 = vsel %vm3392, %v3255, 0
      %v4287 = vsel %vm3392, %v3256, 0
      %v4290 = vsel %vm3392, %v3257, 0
      %v4293 = vsel %vm3392, %v3258, 0
      %v4296 = vsel %vm3392, %v3259, 0
      %v4299 = vsel %vm3392, %v3260, 0
      %v4302 = vsel %vm3392, %v3261, 0
      %v4305 = vsel %vm3392, %v3262, 0
      %v4308 = vsel %vm3392, %v3263, 0
      %v4311 = vsel %vm3392, %v3264, 0
      %v4314 = vsel %vm3392, %v3265, 0
      %v4317 = vsel %vm3392, %v3266, 0
      %v4320 = vsel %vm3392, %v3267, 0
      %v4323 = vsel %vm3392, %v3268, 0
      %v4326 = vsel %vm3392, %v3269, 0
      %v4329 = vsel %vm3392, %v3270, 0
      %v4332 = vsel %vm3392, %v3271, 0
      %v4335 = vsel %vm3392, %v3272, 0
      %v4338 = vsel %vm3392, %v3273, 0
      %v4341 = vsel %vm3392, %v3274, 0
      %v4344 = vsel %vm3392, %v3275, 0
      %v4347 = vsel %vm3392, %v3276, 0
      %v4350 = vsel %vm3392, %v3277, 0
      %v4353 = vsel %vm3392, %v3278, 0
      %v4356 = vsel %vm3392, %v3279, 0
      %v4359 = vsel %vm3392, %v3280, 0
      %v4362 = vsel %vm3392, %v3281, 0
      %v4365 = vsel %vm3392, %v3282, 0
      %v4368 = vsel %vm3392, %v3283, 0
      %v4371 = vsel %vm3392, %v3284, 0
      %v4374 = vsel %vm3392, %v3285, 0
      %v4377 = vsel %vm3392, %v3286, 0
      %v4380 = vsel %vm3392, %v3287, 0
      %v4383 = vsel %vm3392, %v3288, 0
      %v4386 = vsel %vm3392, %v3289, 0
      %v4389 = vsel %vm3392, %v3290, 0
      %v4392 = vsel %vm3392, %v3291, 0
      %v4395 = vsel %vm3392, %v3292, 0
      %v4398 = vsel %vm3392, %v3293, 0
      %v4401 = vsel %vm3392, %v3294, 0
      %v4404 = vsel %vm3392, %v3295, 0
      %v4407 = vsel %vm3392, %v3296, 0
      %v4410 = vsel %vm3392, %v3297, 0
      %v4413 = vsel %vm3392, %v3298, 0
      %v4416 = vsel %vm3392, %v3299, 0
      %v4419 = vsel %vm3392, %v3300, 0
      %v4422 = vsel %vm3392, %v3301, 0
      %v4425 = vsel %vm3392, %v3302, 0
      %v4428 = vsel %vm3392, %v3303, 0
      %v4431 = vsel %vm3392, %v3304, 0
      %v4434 = vsel %vm3392, %v3305, 0
      %v4437 = vsel %vm3392, %v3306, 0
      %v4440 = vsel %vm3392, %v3307, 0
      %v4443 = vsel %vm3392, %v3308, 0
      %v4446 = vsel %vm3392, %v3309, 0
      %v4449 = vsel %vm3392, %v3310, 0
      %v4452 = vsel %vm3392, %v3311, 0
      %v4455 = vsel %vm3392, %v3312, 0
      %v4458 = vsel %vm3392, %v3313, 0
      %v4461 = vsel %vm3392, %v3314, 0
      %v4464 = vsel %vm3392, %v3315, 0
      %v4467 = vsel %vm3392, %v3316, 0
      %v4470 = vand.u32 %v4275, %v3588
      %v4473 = vand.u32 %v4276, %v3588
      %4475 = vmatprep.subr.bf16.mxu0 %v4473
      %4476 = vmatpush1.bf16.msra.mxu0 %v4470
      %4477 = vmatprep.subr.bf16.mxu0 0
      %4478 = vmatpush1.bf16.msra.mxu0 0
      %4479 = vmatprep.subr.bf16.mxu0 0
      %4480 = vmatpush1.bf16.msra.mxu0 0
      %4481 = vmatprep.subr.bf16.mxu0 0
      %4482 = vmatpush1.bf16.msra.mxu0 0
      %4483 = vmatprep.subr.bf16.mxu0 0
      %4484 = vmatpush1.bf16.msra.mxu0 0
      %4485 = vmatprep.subr.bf16.mxu0 0
      %4486 = vmatpush1.bf16.msra.mxu0 0
      %4487 = vmatprep.subr.bf16.mxu0 0
      %4488 = vmatpush1.bf16.msra.mxu0 0
      %4489 = vmatprep.subr.bf16.mxu0 0
      %4490 = vmatpush1.bf16.msra.mxu0 0
      %4491 = vmatprep.subr.bf16.mxu0 0
      %4492 = vmatpush1.bf16.msra.mxu0 0
      %4493 = vmatprep.subr.bf16.mxu0 0
      %4494 = vmatpush1.bf16.msra.mxu0 0
      %4495 = vmatprep.subr.bf16.mxu0 0
      %4496 = vmatpush1.bf16.msra.mxu0 0
      %4497 = vmatprep.subr.bf16.mxu0 0
      %4498 = vmatpush1.bf16.msra.mxu0 0
      %4499 = vmatprep.subr.bf16.mxu0 0
      %4500 = vmatpush1.bf16.msra.mxu0 0
      %4501 = vmatprep.subr.bf16.mxu0 0
      %4502 = vmatpush1.bf16.msra.mxu0 0
      %4503 = vmatprep.subr.bf16.mxu0 0
      %4504 = vmatpush1.bf16.msra.mxu0 0
      %4505 = vmatprep.subr.bf16.mxu0 0
      %4506 = vmatpush1.bf16.msra.mxu0 0
      %4507 = vmatprep.mubr.bf16.mxu0 0
      %4508 = vmatmul.mubr.bf16.gmra.mrb[0].mxu0 %v4278
      %v4509 = vpop.f32.mrb[0].mxu0
      %v4510 = vadd.f32 %v3630, %v4509
      %v4511 = vpop.f32.mrb[0].mxu0
      %v4512 = vadd.f32 %v3632, %v4511
      %v4513 = vpop.f32.mrb[0].mxu0
      %v4514 = vadd.f32 %v3634, %v4513
      %v4515 = vpop.f32.mrb[0].mxu0
      %v4516 = vadd.f32 %v3636, %v4515
      %4517 = vmatprep.mubr.bf16.mxu0 0
      %4518 = vmatmul.mubr.bf16.gmra.mrb[0].mxu0 %v4281
      %v4519 = vpop.f32.mrb[0].mxu0
      %v4520 = vadd.f32 %v3640, %v4519
      %v4521 = vpop.f32.mrb[0].mxu0
      %v4522 = vadd.f32 %v3642, %v4521
      %v4523 = vpop.f32.mrb[0].mxu0
      %v4524 = vadd.f32 %v3644, %v4523
      %v4525 = vpop.f32.mrb[0].mxu0
      %v4526 = vadd.f32 %v3646, %v4525
      %4527 = vmatprep.mubr.bf16.mxu0 0
      %4528 = vmatmul.mubr.bf16.gmra.mrb[0].mxu0 %v4284
      %v4529 = vpop.f32.mrb[0].mxu0
      %v4530 = vadd.f32 %v3650, %v4529
      %v4531 = vpop.f32.mrb[0].mxu0
      %v4532 = vadd.f32 %v3652, %v4531
      %v4533 = vpop.f32.mrb[0].mxu0
      %v4534 = vadd.f32 %v3654, %v4533
      %v4535 = vpop.f32.mrb[0].mxu0
      %v4536 = vadd.f32 %v3656, %v4535
      %4537 = vmatprep.mubr.bf16.mxu0 0
      %4538 = vmatmul.mubr.bf16.gmra.mrb[0].mxu0 %v4287
      %v4539 = vpop.f32.mrb[0].mxu0
      %v4540 = vadd.f32 %v3660, %v4539
      %v4541 = vpop.f32.mrb[0].mxu0
      %v4542 = vadd.f32 %v3662, %v4541
      %v4543 = vpop.f32.mrb[0].mxu0
      %v4544 = vadd.f32 %v3664, %v4543
      %v4545 = vpop.f32.mrb[0].mxu0
      %v4546 = vadd.f32 %v3666, %v4545
      %4547 = vmatprep.mubr.bf16.mxu0 0
      %4548 = vmatmul.mubr.bf16.gmra.mrb[0].mxu0 %v4290
      %v4549 = vpop.f32.mrb[0].mxu0
      %v4550 = vadd.f32 %v3670, %v4549
      %v4551 = vpop.f32.mrb[0].mxu0
      %v4552 = vadd.f32 %v3672, %v4551
      %v4553 = vpop.f32.mrb[0].mxu0
      %v4554 = vadd.f32 %v3674, %v4553
      %v4555 = vpop.f32.mrb[0].mxu0
      %v4556 = vadd.f32 %v3676, %v4555
      %4557 = vmatprep.mubr.bf16.mxu0 0
      %4558 = vmatmul.mubr.bf16.gmra.mrb[0].mxu0 %v4293
      %v4559 = vpop.f32.mrb[0].mxu0
      %v4560 = vadd.f32 %v3680, %v4559
      %v4561 = vpop.f32.mrb[0].mxu0
      %v4562 = vadd.f32 %v3682, %v4561
      %v4563 = vpop.f32.mrb[0].mxu0
      %v4564 = vadd.f32 %v3684, %v4563
      %v4565 = vpop.f32.mrb[0].mxu0
      %v4566 = vadd.f32 %v3686, %v4565
      %4567 = vmatprep.mubr.bf16.mxu0 0
      %4568 = vmatmul.mubr.bf16.gmra.mrb[0].mxu0 %v4296
      %v4569 = vpop.f32.mrb[0].mxu0
      %v4570 = vadd.f32 %v3690, %v4569
      %v4571 = vpop.f32.mrb[0].mxu0
      %v4572 = vadd.f32 %v3692, %v4571
      %v4573 = vpop.f32.mrb[0].mxu0
      %v4574 = vadd.f32 %v3694, %v4573
      %v4575 = vpop.f32.mrb[0].mxu0
      %v4576 = vadd.f32 %v3696, %v4575
      %4577 = vmatprep.mubr.bf16.mxu0 0
      %4578 = vmatmul.mubr.bf16.gmra.mrb[0].mxu0 %v4299
      %v4579 = vpop.f32.mrb[0].mxu0
      %v4580 = vadd.f32 %v3700, %v4579
      %v4581 = vpop.f32.mrb[0].mxu0
      %v4582 = vadd.f32 %v3702, %v4581
      %v4583 = vpop.f32.mrb[0].mxu0
      %v4584 = vadd.f32 %v3704, %v4583
      %v4585 = vpop.f32.mrb[0].mxu0
      %v4586 = vadd.f32 %v3706, %v4585
      %4587 = vmatprep.mubr.bf16.mxu0 0
      %4588 = vmatmul.mubr.bf16.gmra.mrb[0].mxu0 %v4302
      %v4589 = vpop.f32.mrb[0].mxu0
      %v4590 = vadd.f32 %v3710, %v4589
      %v4591 = vpop.f32.mrb[0].mxu0
      %v4592 = vadd.f32 %v3712, %v4591
      %v4593 = vpop.f32.mrb[0].mxu0
      %v4594 = vadd.f32 %v3714, %v4593
      %v4595 = vpop.f32.mrb[0].mxu0
      %v4596 = vadd.f32 %v3716, %v4595
      %4597 = vmatprep.mubr.bf16.mxu0 0
      %4598 = vmatmul.mubr.bf16.gmra.mrb[0].mxu0 %v4305
      %v4599 = vpop.f32.mrb[0].mxu0
      %v4600 = vadd.f32 %v3720, %v4599
      %v4601 = vpop.f32.mrb[0].mxu0
      %v4602 = vadd.f32 %v3722, %v4601
      %v4603 = vpop.f32.mrb[0].mxu0
      %v4604 = vadd.f32 %v3724, %v4603
      %v4605 = vpop.f32.mrb[0].mxu0
      %v4606 = vadd.f32 %v3726, %v4605
      %4607 = vmatprep.mubr.bf16.mxu0 0
      %4608 = vmatmul.mubr.bf16.gmra.mrb[0].mxu0 %v4308
      %v4609 = vpop.f32.mrb[0].mxu0
      %v4610 = vadd.f32 %v3730, %v4609
      %v4611 = vpop.f32.mrb[0].mxu0
      %v4612 = vadd.f32 %v3732, %v4611
      %v4613 = vpop.f32.mrb[0].mxu0
      %v4614 = vadd.f32 %v3734, %v4613
      %v4615 = vpop.f32.mrb[0].mxu0
      %v4616 = vadd.f32 %v3736, %v4615
      %4617 = vmatprep.mubr.bf16.mxu0 0
      %4618 = vmatmul.mubr.bf16.gmra.mrb[0].mxu0 %v4311
      %v4619 = vpop.f32.mrb[0].mxu0
      %v4620 = vadd.f32 %v3740, %v4619
      %v4621 = vpop.f32.mrb[0].mxu0
      %v4622 = vadd.f32 %v3742, %v4621
      %v4623 = vpop.f32.mrb[0].mxu0
      %v4624 = vadd.f32 %v3744, %v4623
      %v4625 = vpop.f32.mrb[0].mxu0
      %v4626 = vadd.f32 %v3746, %v4625
      %4627 = vmatprep.mubr.bf16.mxu0 0
      %4628 = vmatmul.mubr.bf16.gmra.mrb[0].mxu0 %v4314
      %v4629 = vpop.f32.mrb[0].mxu0
      %v4630 = vadd.f32 %v3750, %v4629
      %v4631 = vpop.f32.mrb[0].mxu0
      %v4632 = vadd.f32 %v3752, %v4631
      %v4633 = vpop.f32.mrb[0].mxu0
      %v4634 = vadd.f32 %v3754, %v4633
      %v4635 = vpop.f32.mrb[0].mxu0
      %v4636 = vadd.f32 %v3756, %v4635
      %4637 = vmatprep.mubr.bf16.mxu0 0
      %4638 = vmatmul.mubr.bf16.gmra.mrb[0].mxu0 %v4317
      %v4639 = vpop.f32.mrb[0].mxu0
      %v4640 = vadd.f32 %v3760, %v4639
      %v4641 = vpop.f32.mrb[0].mxu0
      %v4642 = vadd.f32 %v3762, %v4641
      %v4643 = vpop.f32.mrb[0].mxu0
      %v4644 = vadd.f32 %v3764, %v4643
      %v4645 = vpop.f32.mrb[0].mxu0
      %v4646 = vadd.f32 %v3766, %v4645
      %4647 = vmatprep.mubr.bf16.mxu0 0
      %4648 = vmatmul.mubr.bf16.gmra.mrb[0].mxu0 %v4320
      %v4649 = vpop.f32.mrb[0].mxu0
      %v4650 = vadd.f32 %v3770, %v4649
      %v4651 = vpop.f32.mrb[0].mxu0
      %v4652 = vadd.f32 %v3772, %v4651
      %v4653 = vpop.f32.mrb[0].mxu0
      %v4654 = vadd.f32 %v3774, %v4653
      %v4655 = vpop.f32.mrb[0].mxu0
      %v4656 = vadd.f32 %v3776, %v4655
      %4657 = vmatprep.mubr.bf16.mxu0 0
      %4658 = vmatmul.mubr.bf16.gmra.mrb[0].mxu0 %v4323
      %v4659 = vpop.f32.mrb[0].mxu0
      %v4660 = vadd.f32 %v3780, %v4659
      %v4661 = vpop.f32.mrb[0].mxu0
      %v4662 = vadd.f32 %v3782, %v4661
      %v4663 = vpop.f32.mrb[0].mxu0
      %v4664 = vadd.f32 %v3784, %v4663
      %v4665 = vpop.f32.mrb[0].mxu0
      %v4666 = vadd.f32 %v3786, %v4665
      %4667 = vmatprep.mubr.bf16.mxu0 0
      %4668 = vmatmul.mubr.bf16.gmra.mrb[0].mxu0 %v4326
      %v4669 = vpop.f32.mrb[0].mxu0
      %v4670 = vadd.f32 %v3790, %v4669
      %v4671 = vpop.f32.mrb[0].mxu0
      %v4672 = vadd.f32 %v3792, %v4671
      %v4673 = vpop.f32.mrb[0].mxu0
      %v4674 = vadd.f32 %v3794, %v4673
      %v4675 = vpop.f32.mrb[0].mxu0
      %v4676 = vadd.f32 %v3796, %v4675
      %4677 = vmatprep.mubr.bf16.mxu0 0
      %4678 = vmatmul.mubr.bf16.gmra.mrb[0].mxu0 %v4329
      %v4679 = vpop.f32.mrb[0].mxu0
      %v4680 = vadd.f32 %v3800, %v4679
      %v4681 = vpop.f32.mrb[0].mxu0
      %v4682 = vadd.f32 %v3802, %v4681
      %v4683 = vpop.f32.mrb[0].mxu0
      %v4684 = vadd.f32 %v3804, %v4683
      %v4685 = vpop.f32.mrb[0].mxu0
      %v4686 = vadd.f32 %v3806, %v4685
      %4687 = vmatprep.mubr.bf16.mxu0 0
      %4688 = vmatmul.mubr.bf16.gmra.mrb[0].mxu0 %v4332
      %v4689 = vpop.f32.mrb[0].mxu0
      %v4690 = vadd.f32 %v3810, %v4689
      %v4691 = vpop.f32.mrb[0].mxu0
      %v4692 = vadd.f32 %v3812, %v4691
      %v4693 = vpop.f32.mrb[0].mxu0
      %v4694 = vadd.f32 %v3814, %v4693
      %v4695 = vpop.f32.mrb[0].mxu0
      %v4696 = vadd.f32 %v3816, %v4695
      %4697 = vmatprep.mubr.bf16.mxu0 0
      %4698 = vmatmul.mubr.bf16.gmra.mrb[0].mxu0 %v4335
      %v4699 = vpop.f32.mrb[0].mxu0
      %v4700 = vadd.f32 %v3820, %v4699
      %v4701 = vpop.f32.mrb[0].mxu0
      %v4702 = vadd.f32 %v3822, %v4701
      %v4703 = vpop.f32.mrb[0].mxu0
      %v4704 = vadd.f32 %v3824, %v4703
      %v4705 = vpop.f32.mrb[0].mxu0
      %v4706 = vadd.f32 %v3826, %v4705
      %4707 = vmatprep.mubr.bf16.mxu0 0
      %4708 = vmatmul.mubr.bf16.gmra.mrb[0].mxu0 %v4338
      %v4709 = vpop.f32.mrb[0].mxu0
      %v4710 = vadd.f32 %v3830, %v4709
      %v4711 = vpop.f32.mrb[0].mxu0
      %v4712 = vadd.f32 %v3832, %v4711
      %v4713 = vpop.f32.mrb[0].mxu0
      %v4714 = vadd.f32 %v3834, %v4713
      %v4715 = vpop.f32.mrb[0].mxu0
      %v4716 = vadd.f32 %v3836, %v4715
      %4717 = vmatprep.mubr.bf16.mxu0 0
      %4718 = vmatmul.mubr.bf16.gmra.mrb[0].mxu0 %v4341
      %v4719 = vpop.f32.mrb[0].mxu0
      %v4720 = vadd.f32 %v3840, %v4719
      %v4721 = vpop.f32.mrb[0].mxu0
      %v4722 = vadd.f32 %v3842, %v4721
      %v4723 = vpop.f32.mrb[0].mxu0
      %v4724 = vadd.f32 %v3844, %v4723
      %v4725 = vpop.f32.mrb[0].mxu0
      %v4726 = vadd.f32 %v3846, %v4725
      %4727 = vmatprep.mubr.bf16.mxu0 0
      %4728 = vmatmul.mubr.bf16.gmra.mrb[0].mxu0 %v4344
      %v4729 = vpop.f32.mrb[0].mxu0
      %v4730 = vadd.f32 %v3850, %v4729
      %v4731 = vpop.f32.mrb[0].mxu0
      %v4732 = vadd.f32 %v3852, %v4731
      %v4733 = vpop.f32.mrb[0].mxu0
      %v4734 = vadd.f32 %v3854, %v4733
      %v4735 = vpop.f32.mrb[0].mxu0
      %v4736 = vadd.f32 %v3856, %v4735
      %4737 = vmatprep.mubr.bf16.mxu0 0
      %4738 = vmatmul.mubr.bf16.gmra.mrb[0].mxu0 %v4347
      %v4739 = vpop.f32.mrb[0].mxu0
      %v4740 = vadd.f32 %v3860, %v4739
      %v4741 = vpop.f32.mrb[0].mxu0
      %v4742 = vadd.f32 %v3862, %v4741
      %v4743 = vpop.f32.mrb[0].mxu0
      %v4744 = vadd.f32 %v3864, %v4743
      %v4745 = vpop.f32.mrb[0].mxu0
      %v4746 = vadd.f32 %v3866, %v4745
      %4747 = vmatprep.mubr.bf16.mxu0 0
      %4748 = vmatmul.mubr.bf16.gmra.mrb[0].mxu0 %v4350
      %v4749 = vpop.f32.mrb[0].mxu0
      %v4750 = vadd.f32 %v3870, %v4749
      %v4751 = vpop.f32.mrb[0].mxu0
      %v4752 = vadd.f32 %v3872, %v4751
      %v4753 = vpop.f32.mrb[0].mxu0
      %v4754 = vadd.f32 %v3874, %v4753
      %v4755 = vpop.f32.mrb[0].mxu0
      %v4756 = vadd.f32 %v3876, %v4755
      %4757 = vmatprep.mubr.bf16.mxu0 0
      %4758 = vmatmul.mubr.bf16.gmra.mrb[0].mxu0 %v4353
      %v4759 = vpop.f32.mrb[0].mxu0
      %v4760 = vadd.f32 %v3880, %v4759
      %v4761 = vpop.f32.mrb[0].mxu0
      %v4762 = vadd.f32 %v3882, %v4761
      %v4763 = vpop.f32.mrb[0].mxu0
      %v4764 = vadd.f32 %v3884, %v4763
      %v4765 = vpop.f32.mrb[0].mxu0
      %v4766 = vadd.f32 %v3886, %v4765
      %4767 = vmatprep.mubr.bf16.mxu0 0
      %4768 = vmatmul.mubr.bf16.gmra.mrb[0].mxu0 %v4356
      %v4769 = vpop.f32.mrb[0].mxu0
      %v4770 = vadd.f32 %v3890, %v4769
      %v4771 = vpop.f32.mrb[0].mxu0
      %v4772 = vadd.f32 %v3892, %v4771
      %v4773 = vpop.f32.mrb[0].mxu0
      %v4774 = vadd.f32 %v3894, %v4773
      %v4775 = vpop.f32.mrb[0].mxu0
      %v4776 = vadd.f32 %v3896, %v4775
      %4777 = vmatprep.mubr.bf16.mxu0 0
      %4778 = vmatmul.mubr.bf16.gmra.mrb[0].mxu0 %v4359
      %v4779 = vpop.f32.mrb[0].mxu0
      %v4780 = vadd.f32 %v3900, %v4779
      %v4781 = vpop.f32.mrb[0].mxu0
      %v4782 = vadd.f32 %v3902, %v4781
      %v4783 = vpop.f32.mrb[0].mxu0
      %v4784 = vadd.f32 %v3904, %v4783
      %v4785 = vpop.f32.mrb[0].mxu0
      %v4786 = vadd.f32 %v3906, %v4785
      %4787 = vmatprep.mubr.bf16.mxu0 0
      %4788 = vmatmul.mubr.bf16.gmra.mrb[0].mxu0 %v4362
      %v4789 = vpop.f32.mrb[0].mxu0
      %v4790 = vadd.f32 %v3910, %v4789
      %v4791 = vpop.f32.mrb[0].mxu0
      %v4792 = vadd.f32 %v3912, %v4791
      %v4793 = vpop.f32.mrb[0].mxu0
      %v4794 = vadd.f32 %v3914, %v4793
      %v4795 = vpop.f32.mrb[0].mxu0
      %v4796 = vadd.f32 %v3916, %v4795
      %4797 = vmatprep.mubr.bf16.mxu0 0
      %4798 = vmatmul.mubr.bf16.gmra.mrb[0].mxu0 %v4365
      %v4799 = vpop.f32.mrb[0].mxu0
      %v4800 = vadd.f32 %v3920, %v4799
      %v4801 = vpop.f32.mrb[0].mxu0
      %v4802 = vadd.f32 %v3922, %v4801
      %v4803 = vpop.f32.mrb[0].mxu0
      %v4804 = vadd.f32 %v3924, %v4803
      %v4805 = vpop.f32.mrb[0].mxu0
      %v4806 = vadd.f32 %v3926, %v4805
      %4807 = vmatprep.mubr.bf16.mxu0 0
      %4808 = vmatmul.mubr.bf16.gmra.mrb[0].mxu0 %v4368
      %v4809 = vpop.f32.mrb[0].mxu0
      %v4810 = vadd.f32 %v3930, %v4809
      %v4811 = vpop.f32.mrb[0].mxu0
      %v4812 = vadd.f32 %v3932, %v4811
      %v4813 = vpop.f32.mrb[0].mxu0
      %v4814 = vadd.f32 %v3934, %v4813
      %v4815 = vpop.f32.mrb[0].mxu0
      %v4816 = vadd.f32 %v3936, %v4815
      %4817 = vmatprep.mubr.bf16.mxu0 0
      %4818 = vmatmul.mubr.bf16.gmra.mrb[0].mxu0 %v4371
      %v4819 = vpop.f32.mrb[0].mxu0
      %v4820 = vadd.f32 %v3940, %v4819
      %v4821 = vpop.f32.mrb[0].mxu0
      %v4822 = vadd.f32 %v3942, %v4821
      %v4823 = vpop.f32.mrb[0].mxu0
      %v4824 = vadd.f32 %v3944, %v4823
      %v4825 = vpop.f32.mrb[0].mxu0
      %v4826 = vadd.f32 %v3946, %v4825
      %4827 = vmatprep.mubr.bf16.mxu0 0
      %4828 = vmatmul.mubr.bf16.gmra.mrb[0].mxu0 %v4374
      %v4829 = vpop.f32.mrb[0].mxu0
      %v4830 = vadd.f32 %v3950, %v4829
      %v4831 = vpop.f32.mrb[0].mxu0
      %v4832 = vadd.f32 %v3952, %v4831
      %v4833 = vpop.f32.mrb[0].mxu0
      %v4834 = vadd.f32 %v3954, %v4833
      %v4835 = vpop.f32.mrb[0].mxu0
      %v4836 = vadd.f32 %v3956, %v4835
      %4837 = vmatprep.mubr.bf16.mxu0 0
      %4838 = vmatmul.mubr.bf16.gmra.mrb[0].mxu0 %v4377
      %v4839 = vpop.f32.mrb[0].mxu0
      %v4840 = vadd.f32 %v3960, %v4839
      %v4841 = vpop.f32.mrb[0].mxu0
      %v4842 = vadd.f32 %v3962, %v4841
      %v4843 = vpop.f32.mrb[0].mxu0
      %v4844 = vadd.f32 %v3964, %v4843
      %v4845 = vpop.f32.mrb[0].mxu0
      %v4846 = vadd.f32 %v3966, %v4845
      %4847 = vmatprep.mubr.bf16.mxu0 0
      %4848 = vmatmul.mubr.bf16.gmra.mrb[0].mxu0 %v4380
      %v4849 = vpop.f32.mrb[0].mxu0
      %v4850 = vadd.f32 %v3970, %v4849
      %v4851 = vpop.f32.mrb[0].mxu0
      %v4852 = vadd.f32 %v3972, %v4851
      %v4853 = vpop.f32.mrb[0].mxu0
      %v4854 = vadd.f32 %v3974, %v4853
      %v4855 = vpop.f32.mrb[0].mxu0
      %v4856 = vadd.f32 %v3976, %v4855
      %4857 = vmatprep.mubr.bf16.mxu0 0
      %4858 = vmatmul.mubr.bf16.gmra.mrb[0].mxu0 %v4383
      %v4859 = vpop.f32.mrb[0].mxu0
      %v4860 = vadd.f32 %v3980, %v4859
      %v4861 = vpop.f32.mrb[0].mxu0
      %v4862 = vadd.f32 %v3982, %v4861
      %v4863 = vpop.f32.mrb[0].mxu0
      %v4864 = vadd.f32 %v3984, %v4863
      %v4865 = vpop.f32.mrb[0].mxu0
      %v4866 = vadd.f32 %v3986, %v4865
      %4867 = vmatprep.mubr.bf16.mxu0 0
      %4868 = vmatmul.mubr.bf16.gmra.mrb[0].mxu0 %v4386
      %v4869 = vpop.f32.mrb[0].mxu0
      %v4870 = vadd.f32 %v3990, %v4869
      %v4871 = vpop.f32.mrb[0].mxu0
      %v4872 = vadd.f32 %v3992, %v4871
      %v4873 = vpop.f32.mrb[0].mxu0
      %v4874 = vadd.f32 %v3994, %v4873
      %v4875 = vpop.f32.mrb[0].mxu0
      %v4876 = vadd.f32 %v3996, %v4875
      %4877 = vmatprep.mubr.bf16.mxu0 0
      %4878 = vmatmul.mubr.bf16.gmra.mrb[0].mxu0 %v4389
      %v4879 = vpop.f32.mrb[0].mxu0
      %v4880 = vadd.f32 %v4000, %v4879
      %v4881 = vpop.f32.mrb[0].mxu0
      %v4882 = vadd.f32 %v4002, %v4881
      %v4883 = vpop.f32.mrb[0].mxu0
      %v4884 = vadd.f32 %v4004, %v4883
      %v4885 = vpop.f32.mrb[0].mxu0
      %v4886 = vadd.f32 %v4006, %v4885
      %4887 = vmatprep.mubr.bf16.mxu0 0
      %4888 = vmatmul.mubr.bf16.gmra.mrb[0].mxu0 %v4392
      %v4889 = vpop.f32.mrb[0].mxu0
      %v4890 = vadd.f32 %v4010, %v4889
      %v4891 = vpop.f32.mrb[0].mxu0
      %v4892 = vadd.f32 %v4012, %v4891
      %v4893 = vpop.f32.mrb[0].mxu0
      %v4894 = vadd.f32 %v4014, %v4893
      %v4895 = vpop.f32.mrb[0].mxu0
      %v4896 = vadd.f32 %v4016, %v4895
      %4897 = vmatprep.mubr.bf16.mxu0 0
      %4898 = vmatmul.mubr.bf16.gmra.mrb[0].mxu0 %v4395
      %v4899 = vpop.f32.mrb[0].mxu0
      %v4900 = vadd.f32 %v4020, %v4899
      %v4901 = vpop.f32.mrb[0].mxu0
      %v4902 = vadd.f32 %v4022, %v4901
      %v4903 = vpop.f32.mrb[0].mxu0
      %v4904 = vadd.f32 %v4024, %v4903
      %v4905 = vpop.f32.mrb[0].mxu0
      %v4906 = vadd.f32 %v4026, %v4905
      %4907 = vmatprep.mubr.bf16.mxu0 0
      %4908 = vmatmul.mubr.bf16.gmra.mrb[0].mxu0 %v4398
      %v4909 = vpop.f32.mrb[0].mxu0
      %v4910 = vadd.f32 %v4030, %v4909
      %v4911 = vpop.f32.mrb[0].mxu0
      %v4912 = vadd.f32 %v4032, %v4911
      %v4913 = vpop.f32.mrb[0].mxu0
      %v4914 = vadd.f32 %v4034, %v4913
      %v4915 = vpop.f32.mrb[0].mxu0
      %v4916 = vadd.f32 %v4036, %v4915
      %4917 = vmatprep.mubr.bf16.mxu0 0
      %4918 = vmatmul.mubr.bf16.gmra.mrb[0].mxu0 %v4401
      %v4919 = vpop.f32.mrb[0].mxu0
      %v4920 = vadd.f32 %v4040, %v4919
      %v4921 = vpop.f32.mrb[0].mxu0
      %v4922 = vadd.f32 %v4042, %v4921
      %v4923 = vpop.f32.mrb[0].mxu0
      %v4924 = vadd.f32 %v4044, %v4923
      %v4925 = vpop.f32.mrb[0].mxu0
      %v4926 = vadd.f32 %v4046, %v4925
      %4927 = vmatprep.mubr.bf16.mxu0 0
      %4928 = vmatmul.mubr.bf16.gmra.mrb[0].mxu0 %v4404
      %v4929 = vpop.f32.mrb[0].mxu0
      %v4930 = vadd.f32 %v4050, %v4929
      %v4931 = vpop.f32.mrb[0].mxu0
      %v4932 = vadd.f32 %v4052, %v4931
      %v4933 = vpop.f32.mrb[0].mxu0
      %v4934 = vadd.f32 %v4054, %v4933
      %v4935 = vpop.f32.mrb[0].mxu0
      %v4936 = vadd.f32 %v4056, %v4935
      %4937 = vmatprep.mubr.bf16.mxu0 0
      %4938 = vmatmul.mubr.bf16.gmra.mrb[0].mxu0 %v4407
      %v4939 = vpop.f32.mrb[0].mxu0
      %v4940 = vadd.f32 %v4060, %v4939
      %v4941 = vpop.f32.mrb[0].mxu0
      %v4942 = vadd.f32 %v4062, %v4941
      %v4943 = vpop.f32.mrb[0].mxu0
      %v4944 = vadd.f32 %v4064, %v4943
      %v4945 = vpop.f32.mrb[0].mxu0
      %v4946 = vadd.f32 %v4066, %v4945
      %4947 = vmatprep.mubr.bf16.mxu0 0
      %4948 = vmatmul.mubr.bf16.gmra.mrb[0].mxu0 %v4410
      %v4949 = vpop.f32.mrb[0].mxu0
      %v4950 = vadd.f32 %v4070, %v4949
      %v4951 = vpop.f32.mrb[0].mxu0
      %v4952 = vadd.f32 %v4072, %v4951
      %v4953 = vpop.f32.mrb[0].mxu0
      %v4954 = vadd.f32 %v4074, %v4953
      %v4955 = vpop.f32.mrb[0].mxu0
      %v4956 = vadd.f32 %v4076, %v4955
      %4957 = vmatprep.mubr.bf16.mxu0 0
      %4958 = vmatmul.mubr.bf16.gmra.mrb[0].mxu0 %v4413
      %v4959 = vpop.f32.mrb[0].mxu0
      %v4960 = vadd.f32 %v4080, %v4959
      %v4961 = vpop.f32.mrb[0].mxu0
      %v4962 = vadd.f32 %v4082, %v4961
      %v4963 = vpop.f32.mrb[0].mxu0
      %v4964 = vadd.f32 %v4084, %v4963
      %v4965 = vpop.f32.mrb[0].mxu0
      %v4966 = vadd.f32 %v4086, %v4965
      %4967 = vmatprep.mubr.bf16.mxu0 0
      %4968 = vmatmul.mubr.bf16.gmra.mrb[0].mxu0 %v4416
      %v4969 = vpop.f32.mrb[0].mxu0
      %v4970 = vadd.f32 %v4090, %v4969
      %v4971 = vpop.f32.mrb[0].mxu0
      %v4972 = vadd.f32 %v4092, %v4971
      %v4973 = vpop.f32.mrb[0].mxu0
      %v4974 = vadd.f32 %v4094, %v4973
      %v4975 = vpop.f32.mrb[0].mxu0
      %v4976 = vadd.f32 %v4096, %v4975
      %4977 = vmatprep.mubr.bf16.mxu0 0
      %4978 = vmatmul.mubr.bf16.gmra.mrb[0].mxu0 %v4419
      %v4979 = vpop.f32.mrb[0].mxu0
      %v4980 = vadd.f32 %v4100, %v4979
      %v4981 = vpop.f32.mrb[0].mxu0
      %v4982 = vadd.f32 %v4102, %v4981
      %v4983 = vpop.f32.mrb[0].mxu0
      %v4984 = vadd.f32 %v4104, %v4983
      %v4985 = vpop.f32.mrb[0].mxu0
      %v4986 = vadd.f32 %v4106, %v4985
      %4987 = vmatprep.mubr.bf16.mxu0 0
      %4988 = vmatmul.mubr.bf16.gmra.mrb[0].mxu0 %v4422
      %v4989 = vpop.f32.mrb[0].mxu0
      %v4990 = vadd.f32 %v4110, %v4989
      %v4991 = vpop.f32.mrb[0].mxu0
      %v4992 = vadd.f32 %v4112, %v4991
      %v4993 = vpop.f32.mrb[0].mxu0
      %v4994 = vadd.f32 %v4114, %v4993
      %v4995 = vpop.f32.mrb[0].mxu0
      %v4996 = vadd.f32 %v4116, %v4995
      %4997 = vmatprep.mubr.bf16.mxu0 0
      %4998 = vmatmul.mubr.bf16.gmra.mrb[0].mxu0 %v4425
      %v4999 = vpop.f32.mrb[0].mxu0
      %v5000 = vadd.f32 %v4120, %v4999
      %v5001 = vpop.f32.mrb[0].mxu0
      %v5002 = vadd.f32 %v4122, %v5001
      %v5003 = vpop.f32.mrb[0].mxu0
      %v5004 = vadd.f32 %v4124, %v5003
      %v5005 = vpop.f32.mrb[0].mxu0
      %v5006 = vadd.f32 %v4126, %v5005
      %5007 = vmatprep.mubr.bf16.mxu0 0
      %5008 = vmatmul.mubr.bf16.gmra.mrb[0].mxu0 %v4428
      %v5009 = vpop.f32.mrb[0].mxu0
      %v5010 = vadd.f32 %v4130, %v5009
      %v5011 = vpop.f32.mrb[0].mxu0
      %v5012 = vadd.f32 %v4132, %v5011
      %v5013 = vpop.f32.mrb[0].mxu0
      %v5014 = vadd.f32 %v4134, %v5013
      %v5015 = vpop.f32.mrb[0].mxu0
      %v5016 = vadd.f32 %v4136, %v5015
      %5017 = vmatprep.mubr.bf16.mxu0 0
      %5018 = vmatmul.mubr.bf16.gmra.mrb[0].mxu0 %v4431
      %v5019 = vpop.f32.mrb[0].mxu0
      %v5020 = vadd.f32 %v4140, %v5019
      %v5021 = vpop.f32.mrb[0].mxu0
      %v5022 = vadd.f32 %v4142, %v5021
      %v5023 = vpop.f32.mrb[0].mxu0
      %v5024 = vadd.f32 %v4144, %v5023
      %v5025 = vpop.f32.mrb[0].mxu0
      %v5026 = vadd.f32 %v4146, %v5025
      %5027 = vmatprep.mubr.bf16.mxu0 0
      %5028 = vmatmul.mubr.bf16.gmra.mrb[0].mxu0 %v4434
      %v5029 = vpop.f32.mrb[0].mxu0
      %v5030 = vadd.f32 %v4150, %v5029
      %v5031 = vpop.f32.mrb[0].mxu0
      %v5032 = vadd.f32 %v4152, %v5031
      %v5033 = vpop.f32.mrb[0].mxu0
      %v5034 = vadd.f32 %v4154, %v5033
      %v5035 = vpop.f32.mrb[0].mxu0
      %v5036 = vadd.f32 %v4156, %v5035
      %5037 = vmatprep.mubr.bf16.mxu0 0
      %5038 = vmatmul.mubr.bf16.gmra.mrb[0].mxu0 %v4437
      %v5039 = vpop.f32.mrb[0].mxu0
      %v5040 = vadd.f32 %v4160, %v5039
      %v5041 = vpop.f32.mrb[0].mxu0
      %v5042 = vadd.f32 %v4162, %v5041
      %v5043 = vpop.f32.mrb[0].mxu0
      %v5044 = vadd.f32 %v4164, %v5043
      %v5045 = vpop.f32.mrb[0].mxu0
      %v5046 = vadd.f32 %v4166, %v5045
      %5047 = vmatprep.mubr.bf16.mxu0 0
      %5048 = vmatmul.mubr.bf16.gmra.mrb[0].mxu0 %v4440
      %v5049 = vpop.f32.mrb[0].mxu0
      %v5050 = vadd.f32 %v4170, %v5049
      %v5051 = vpop.f32.mrb[0].mxu0
      %v5052 = vadd.f32 %v4172, %v5051
      %v5053 = vpop.f32.mrb[0].mxu0
      %v5054 = vadd.f32 %v4174, %v5053
      %v5055 = vpop.f32.mrb[0].mxu0
      %v5056 = vadd.f32 %v4176, %v5055
      %5057 = vmatprep.mubr.bf16.mxu0 0
      %5058 = vmatmul.mubr.bf16.gmra.mrb[0].mxu0 %v4443
      %v5059 = vpop.f32.mrb[0].mxu0
      %v5060 = vadd.f32 %v4180, %v5059
      %v5061 = vpop.f32.mrb[0].mxu0
      %v5062 = vadd.f32 %v4182, %v5061
      %v5063 = vpop.f32.mrb[0].mxu0
      %v5064 = vadd.f32 %v4184, %v5063
      %v5065 = vpop.f32.mrb[0].mxu0
      %v5066 = vadd.f32 %v4186, %v5065
      %5067 = vmatprep.mubr.bf16.mxu0 0
      %5068 = vmatmul.mubr.bf16.gmra.mrb[0].mxu0 %v4446
      %v5069 = vpop.f32.mrb[0].mxu0
      %v5070 = vadd.f32 %v4190, %v5069
      %v5071 = vpop.f32.mrb[0].mxu0
      %v5072 = vadd.f32 %v4192, %v5071
      %v5073 = vpop.f32.mrb[0].mxu0
      %v5074 = vadd.f32 %v4194, %v5073
      %v5075 = vpop.f32.mrb[0].mxu0
      %v5076 = vadd.f32 %v4196, %v5075
      %5077 = vmatprep.mubr.bf16.mxu0 0
      %5078 = vmatmul.mubr.bf16.gmra.mrb[0].mxu0 %v4449
      %v5079 = vpop.f32.mrb[0].mxu0
      %v5080 = vadd.f32 %v4200, %v5079
      %v5081 = vpop.f32.mrb[0].mxu0
      %v5082 = vadd.f32 %v4202, %v5081
      %v5083 = vpop.f32.mrb[0].mxu0
      %v5084 = vadd.f32 %v4204, %v5083
      %v5085 = vpop.f32.mrb[0].mxu0
      %v5086 = vadd.f32 %v4206, %v5085
      %5087 = vmatprep.mubr.bf16.mxu0 0
      %5088 = vmatmul.mubr.bf16.gmra.mrb[0].mxu0 %v4452
      %v5089 = vpop.f32.mrb[0].mxu0
      %v5090 = vadd.f32 %v4210, %v5089
      %v5091 = vpop.f32.mrb[0].mxu0
      %v5092 = vadd.f32 %v4212, %v5091
      %v5093 = vpop.f32.mrb[0].mxu0
      %v5094 = vadd.f32 %v4214, %v5093
      %v5095 = vpop.f32.mrb[0].mxu0
      %v5096 = vadd.f32 %v4216, %v5095
      %5097 = vmatprep.mubr.bf16.mxu0 0
      %5098 = vmatmul.mubr.bf16.gmra.mrb[0].mxu0 %v4455
      %v5099 = vpop.f32.mrb[0].mxu0
      %v5100 = vadd.f32 %v4220, %v5099
      %v5101 = vpop.f32.mrb[0].mxu0
      %v5102 = vadd.f32 %v4222, %v5101
      %v5103 = vpop.f32.mrb[0].mxu0
      %v5104 = vadd.f32 %v4224, %v5103
      %v5105 = vpop.f32.mrb[0].mxu0
      %v5106 = vadd.f32 %v4226, %v5105
      %5107 = vmatprep.mubr.bf16.mxu0 0
      %5108 = vmatmul.mubr.bf16.gmra.mrb[0].mxu0 %v4458
      %v5109 = vpop.f32.mrb[0].mxu0
      %v5110 = vadd.f32 %v4230, %v5109
      %v5111 = vpop.f32.mrb[0].mxu0
      %v5112 = vadd.f32 %v4232, %v5111
      %v5113 = vpop.f32.mrb[0].mxu0
      %v5114 = vadd.f32 %v4234, %v5113
      %v5115 = vpop.f32.mrb[0].mxu0
      %v5116 = vadd.f32 %v4236, %v5115
      %5117 = vmatprep.mubr.bf16.mxu0 0
      %5118 = vmatmul.mubr.bf16.gmra.mrb[0].mxu0 %v4461
      %v5119 = vpop.f32.mrb[0].mxu0
      %v5120 = vadd.f32 %v4240, %v5119
      %v5121 = vpop.f32.mrb[0].mxu0
      %v5122 = vadd.f32 %v4242, %v5121
      %v5123 = vpop.f32.mrb[0].mxu0
      %v5124 = vadd.f32 %v4244, %v5123
      %v5125 = vpop.f32.mrb[0].mxu0
      %v5126 = vadd.f32 %v4246, %v5125
      %5127 = vmatprep.mubr.bf16.mxu0 0
      %5128 = vmatmul.mubr.bf16.gmra.mrb[0].mxu0 %v4464
      %v5129 = vpop.f32.mrb[0].mxu0
      %v5130 = vadd.f32 %v4250, %v5129
      %v5131 = vpop.f32.mrb[0].mxu0
      %v5132 = vadd.f32 %v4252, %v5131
      %v5133 = vpop.f32.mrb[0].mxu0
      %v5134 = vadd.f32 %v4254, %v5133
      %v5135 = vpop.f32.mrb[0].mxu0
      %v5136 = vadd.f32 %v4256, %v5135
      %5137 = vmatprep.mubr.bf16.mxu0 0
      %5138 = vmatmul.mubr.bf16.gmra.mrb[0].mxu0 %v4467
      %v5139 = vpop.f32.mrb[0].mxu0
      %v5140 = vadd.f32 %v4260, %v5139
      %v5141 = vpop.f32.mrb[0].mxu0
      %v5142 = vadd.f32 %v4262, %v5141
      %v5143 = vpop.f32.mrb[0].mxu0
      %v5144 = vadd.f32 %v4264, %v5143
      %v5145 = vpop.f32.mrb[0].mxu0
      %v5146 = vadd.f32 %v4266, %v5145
      %5147 = vdwg.mxu0
      %v5148 = vld [vmem:[%s530] sm:$0x3]
      %v5150 = vlaneseq
      %v5151 = vshrl.u32 %v5150, 7
      %v5152 = vsub.s32 0, %v5151
      %v5153 = vrot.slane %v5148, %v5152
      %v5154 = vlaneseq
      %v5155 = vshrl.u32 %v5154, 7
      %v5156 = vsub.s32 1, %v5155
      %v5157 = vrot.slane %v5148, %v5156
      %v5160 = vadd.f32 %v4510, %v5153
      %v5161 = vadd.f32 %v4512, %v5157
      %v5162 = vadd.f32 %v4514, %v5153
      %v5163 = vadd.f32 %v4516, %v5157
      %v5164 = vadd.f32 %v4520, %v5153
      %v5165 = vadd.f32 %v4522, %v5157
      %v5166 = vadd.f32 %v4524, %v5153
      %v5167 = vadd.f32 %v4526, %v5157
      %v5168 = vadd.f32 %v4530, %v5153
      %v5169 = vadd.f32 %v4532, %v5157
      %v5170 = vadd.f32 %v4534, %v5153
      %v5171 = vadd.f32 %v4536, %v5157
      %v5172 = vadd.f32 %v4540, %v5153
      %v5173 = vadd.f32 %v4542, %v5157
      %v5174 = vadd.f32 %v4544, %v5153
      %v5175 = vadd.f32 %v4546, %v5157
      %v5176 = vadd.f32 %v4550, %v5153
      %v5177 = vadd.f32 %v4552, %v5157
      %v5178 = vadd.f32 %v4554, %v5153
      %v5179 = vadd.f32 %v4556, %v5157
      %v5180 = vadd.f32 %v4560, %v5153
      %v5181 = vadd.f32 %v4562, %v5157
      %v5182 = vadd.f32 %v4564, %v5153
      %v5183 = vadd.f32 %v4566, %v5157
      %v5184 = vadd.f32 %v4570, %v5153
      %v5185 = vadd.f32 %v4572, %v5157
      %v5186 = vadd.f32 %v4574, %v5153
      %v5187 = vadd.f32 %v4576, %v5157
      %v5188 = vadd.f32 %v4580, %v5153
      %v5189 = vadd.f32 %v4582, %v5157
      %v5190 = vadd.f32 %v4584, %v5153
      %v5191 = vadd.f32 %v4586, %v5157
      %v5192 = vadd.f32 %v4590, %v5153
      %v5193 = vadd.f32 %v4592, %v5157
      %v5194 = vadd.f32 %v4594, %v5153
      %v5195 = vadd.f32 %v4596, %v5157
      %v5196 = vadd.f32 %v4600, %v5153
      %v5197 = vadd.f32 %v4602, %v5157
      %v5198 = vadd.f32 %v4604, %v5153
      %v5199 = vadd.f32 %v4606, %v5157
      %v5200 = vadd.f32 %v4610, %v5153
      %v5201 = vadd.f32 %v4612, %v5157
      %v5202 = vadd.f32 %v4614, %v5153
      %v5203 = vadd.f32 %v4616, %v5157
      %v5204 = vadd.f32 %v4620, %v5153
      %v5205 = vadd.f32 %v4622, %v5157
      %v5206 = vadd.f32 %v4624, %v5153
      %v5207 = vadd.f32 %v4626, %v5157
      %v5208 = vadd.f32 %v4630, %v5153
      %v5209 = vadd.f32 %v4632, %v5157
      %v5210 = vadd.f32 %v4634, %v5153
      %v5211 = vadd.f32 %v4636, %v5157
      %v5212 = vadd.f32 %v4640, %v5153
      %v5213 = vadd.f32 %v4642, %v5157
      %v5214 = vadd.f32 %v4644, %v5153
      %v5215 = vadd.f32 %v4646, %v5157
      %v5216 = vadd.f32 %v4650, %v5153
      %v5217 = vadd.f32 %v4652, %v5157
      %v5218 = vadd.f32 %v4654, %v5153
      %v5219 = vadd.f32 %v4656, %v5157
      %v5220 = vadd.f32 %v4660, %v5153
      %v5221 = vadd.f32 %v4662, %v5157
      %v5222 = vadd.f32 %v4664, %v5153
      %v5223 = vadd.f32 %v4666, %v5157
      %v5224 = vadd.f32 %v4670, %v5153
      %v5225 = vadd.f32 %v4672, %v5157
      %v5226 = vadd.f32 %v4674, %v5153
      %v5227 = vadd.f32 %v4676, %v5157
      %v5228 = vadd.f32 %v4680, %v5153
      %v5229 = vadd.f32 %v4682, %v5157
      %v5230 = vadd.f32 %v4684, %v5153
      %v5231 = vadd.f32 %v4686, %v5157
      %v5232 = vadd.f32 %v4690, %v5153
      %v5233 = vadd.f32 %v4692, %v5157
      %v5234 = vadd.f32 %v4694, %v5153
      %v5235 = vadd.f32 %v4696, %v5157
      %v5236 = vadd.f32 %v4700, %v5153
      %v5237 = vadd.f32 %v4702, %v5157
      %v5238 = vadd.f32 %v4704, %v5153
      %v5239 = vadd.f32 %v4706, %v5157
      %v5240 = vadd.f32 %v4710, %v5153
      %v5241 = vadd.f32 %v4712, %v5157
      %v5242 = vadd.f32 %v4714, %v5153
      %v5243 = vadd.f32 %v4716, %v5157
      %v5244 = vadd.f32 %v4720, %v5153
      %v5245 = vadd.f32 %v4722, %v5157
      %v5246 = vadd.f32 %v4724, %v5153
      %v5247 = vadd.f32 %v4726, %v5157
      %v5248 = vadd.f32 %v4730, %v5153
      %v5249 = vadd.f32 %v4732, %v5157
      %v5250 = vadd.f32 %v4734, %v5153
      %v5251 = vadd.f32 %v4736, %v5157
      %v5252 = vadd.f32 %v4740, %v5153
      %v5253 = vadd.f32 %v4742, %v5157
      %v5254 = vadd.f32 %v4744, %v5153
      %v5255 = vadd.f32 %v4746, %v5157
      %v5256 = vadd.f32 %v4750, %v5153
      %v5257 = vadd.f32 %v4752, %v5157
      %v5258 = vadd.f32 %v4754, %v5153
      %v5259 = vadd.f32 %v4756, %v5157
      %v5260 = vadd.f32 %v4760, %v5153
      %v5261 = vadd.f32 %v4762, %v5157
      %v5262 = vadd.f32 %v4764, %v5153
      %v5263 = vadd.f32 %v4766, %v5157
      %v5264 = vadd.f32 %v4770, %v5153
      %v5265 = vadd.f32 %v4772, %v5157
      %v5266 = vadd.f32 %v4774, %v5153
      %v5267 = vadd.f32 %v4776, %v5157
      %v5268 = vadd.f32 %v4780, %v5153
      %v5269 = vadd.f32 %v4782, %v5157
      %v5270 = vadd.f32 %v4784, %v5153
      %v5271 = vadd.f32 %v4786, %v5157
      %v5272 = vadd.f32 %v4790, %v5153
      %v5273 = vadd.f32 %v4792, %v5157
      %v5274 = vadd.f32 %v4794, %v5153
      %v5275 = vadd.f32 %v4796, %v5157
      %v5276 = vadd.f32 %v4800, %v5153
      %v5277 = vadd.f32 %v4802, %v5157
      %v5278 = vadd.f32 %v4804, %v5153
      %v5279 = vadd.f32 %v4806, %v5157
      %v5280 = vadd.f32 %v4810, %v5153
      %v5281 = vadd.f32 %v4812, %v5157
      %v5282 = vadd.f32 %v4814, %v5153
      %v5283 = vadd.f32 %v4816, %v5157
      %v5284 = vadd.f32 %v4820, %v5153
      %v5285 = vadd.f32 %v4822, %v5157
      %v5286 = vadd.f32 %v4824, %v5153
      %v5287 = vadd.f32 %v4826, %v5157
      %v5288 = vadd.f32 %v4830, %v5153
      %v5289 = vadd.f32 %v4832, %v5157
      %v5290 = vadd.f32 %v4834, %v5153
      %v5291 = vadd.f32 %v4836, %v5157
      %v5292 = vadd.f32 %v4840, %v5153
      %v5293 = vadd.f32 %v4842, %v5157
      %v5294 = vadd.f32 %v4844, %v5153
      %v5295 = vadd.f32 %v4846, %v5157
      %v5296 = vadd.f32 %v4850, %v5153
      %v5297 = vadd.f32 %v4852, %v5157
      %v5298 = vadd.f32 %v4854, %v5153
      %v5299 = vadd.f32 %v4856, %v5157
      %v5300 = vadd.f32 %v4860, %v5153
      %v5301 = vadd.f32 %v4862, %v5157
      %v5302 = vadd.f32 %v4864, %v5153
      %v5303 = vadd.f32 %v4866, %v5157
      %v5304 = vadd.f32 %v4870, %v5153
      %v5305 = vadd.f32 %v4872, %v5157
      %v5306 = vadd.f32 %v4874, %v5153
      %v5307 = vadd.f32 %v4876, %v5157
      %v5308 = vadd.f32 %v4880, %v5153
      %v5309 = vadd.f32 %v4882, %v5157
      %v5310 = vadd.f32 %v4884, %v5153
      %v5311 = vadd.f32 %v4886, %v5157
      %v5312 = vadd.f32 %v4890, %v5153
      %v5313 = vadd.f32 %v4892, %v5157
      %v5314 = vadd.f32 %v4894, %v5153
      %v5315 = vadd.f32 %v4896, %v5157
      %v5316 = vadd.f32 %v4900, %v5153
      %v5317 = vadd.f32 %v4902, %v5157
      %v5318 = vadd.f32 %v4904, %v5153
      %v5319 = vadd.f32 %v4906, %v5157
      %v5320 = vadd.f32 %v4910, %v5153
      %v5321 = vadd.f32 %v4912, %v5157
      %v5322 = vadd.f32 %v4914, %v5153
      %v5323 = vadd.f32 %v4916, %v5157
      %v5324 = vadd.f32 %v4920, %v5153
      %v5325 = vadd.f32 %v4922, %v5157
      %v5326 = vadd.f32 %v4924, %v5153
      %v5327 = vadd.f32 %v4926, %v5157
      %v5328 = vadd.f32 %v4930, %v5153
      %v5329 = vadd.f32 %v4932, %v5157
      %v5330 = vadd.f32 %v4934, %v5153
      %v5331 = vadd.f32 %v4936, %v5157
      %v5332 = vadd.f32 %v4940, %v5153
      %v5333 = vadd.f32 %v4942, %v5157
      %v5334 = vadd.f32 %v4944, %v5153
      %v5335 = vadd.f32 %v4946, %v5157
      %v5336 = vadd.f32 %v4950, %v5153
      %v5337 = vadd.f32 %v4952, %v5157
      %v5338 = vadd.f32 %v4954, %v5153
      %v5339 = vadd.f32 %v4956, %v5157
      %v5340 = vadd.f32 %v4960, %v5153
      %v5341 = vadd.f32 %v4962, %v5157
      %v5342 = vadd.f32 %v4964, %v5153
      %v5343 = vadd.f32 %v4966, %v5157
      %v5344 = vadd.f32 %v4970, %v5153
      %v5345 = vadd.f32 %v4972, %v5157
      %v5346 = vadd.f32 %v4974, %v5153
      %v5347 = vadd.f32 %v4976, %v5157
      %v5348 = vadd.f32 %v4980, %v5153
      %v5349 = vadd.f32 %v4982, %v5157
      %v5350 = vadd.f32 %v4984, %v5153
      %v5351 = vadd.f32 %v4986, %v5157
      %v5352 = vadd.f32 %v4990, %v5153
      %v5353 = vadd.f32 %v4992, %v5157
      %v5354 = vadd.f32 %v4994, %v5153
      %v5355 = vadd.f32 %v4996, %v5157
      %v5356 = vadd.f32 %v5000, %v5153
      %v5357 = vadd.f32 %v5002, %v5157
      %v5358 = vadd.f32 %v5004, %v5153
      %v5359 = vadd.f32 %v5006, %v5157
      %v5360 = vadd.f32 %v5010, %v5153
      %v5361 = vadd.f32 %v5012, %v5157
      %v5362 = vadd.f32 %v5014, %v5153
      %v5363 = vadd.f32 %v5016, %v5157
      %v5364 = vadd.f32 %v5020, %v5153
      %v5365 = vadd.f32 %v5022, %v5157
      %v5366 = vadd.f32 %v5024, %v5153
      %v5367 = vadd.f32 %v5026, %v5157
      %v5368 = vadd.f32 %v5030, %v5153
      %v5369 = vadd.f32 %v5032, %v5157
      %v5370 = vadd.f32 %v5034, %v5153
      %v5371 = vadd.f32 %v5036, %v5157
      %v5372 = vadd.f32 %v5040, %v5153
      %v5373 = vadd.f32 %v5042, %v5157
      %v5374 = vadd.f32 %v5044, %v5153
      %v5375 = vadd.f32 %v5046, %v5157
      %v5376 = vadd.f32 %v5050, %v5153
      %v5377 = vadd.f32 %v5052, %v5157
      %v5378 = vadd.f32 %v5054, %v5153
      %v5379 = vadd.f32 %v5056, %v5157
      %v5380 = vadd.f32 %v5060, %v5153
      %v5381 = vadd.f32 %v5062, %v5157
      %v5382 = vadd.f32 %v5064, %v5153
      %v5383 = vadd.f32 %v5066, %v5157
      %v5384 = vadd.f32 %v5070, %v5153
      %v5385 = vadd.f32 %v5072, %v5157
      %v5386 = vadd.f32 %v5074, %v5153
      %v5387 = vadd.f32 %v5076, %v5157
      %v5388 = vadd.f32 %v5080, %v5153
      %v5389 = vadd.f32 %v5082, %v5157
      %v5390 = vadd.f32 %v5084, %v5153
      %v5391 = vadd.f32 %v5086, %v5157
      %v5392 = vadd.f32 %v5090, %v5153
      %v5393 = vadd.f32 %v5092, %v5157
      %v5394 = vadd.f32 %v5094, %v5153
      %v5395 = vadd.f32 %v5096, %v5157
      %v5396 = vadd.f32 %v5100, %v5153
      %v5397 = vadd.f32 %v5102, %v5157
      %v5398 = vadd.f32 %v5104, %v5153
      %v5399 = vadd.f32 %v5106, %v5157
      %v5400 = vadd.f32 %v5110, %v5153
      %v5401 = vadd.f32 %v5112, %v5157
      %v5402 = vadd.f32 %v5114, %v5153
      %v5403 = vadd.f32 %v5116, %v5157
      %v5404 = vadd.f32 %v5120, %v5153
      %v5405 = vadd.f32 %v5122, %v5157
      %v5406 = vadd.f32 %v5124, %v5153
      %v5407 = vadd.f32 %v5126, %v5157
      %v5408 = vadd.f32 %v5130, %v5153
      %v5409 = vadd.f32 %v5132, %v5157
      %v5410 = vadd.f32 %v5134, %v5153
      %v5411 = vadd.f32 %v5136, %v5157
      %v5412 = vadd.f32 %v5140, %v5153
      %v5413 = vadd.f32 %v5142, %v5157
      %v5414 = vadd.f32 %v5144, %v5153
      %v5415 = vadd.f32 %v5146, %v5157
      %v5416 = vmax.f32 %v5160, 0.0
      %v5417 = vmax.f32 %v5161, 0.0
      %v5418 = vmax.f32 %v5162, 0.0
      %v5419 = vmax.f32 %v5163, 0.0
      %v5420 = vmax.f32 %v5164, 0.0
      %v5421 = vmax.f32 %v5165, 0.0
      %v5422 = vmax.f32 %v5166, 0.0
      %v5423 = vmax.f32 %v5167, 0.0
      %v5424 = vmax.f32 %v5168, 0.0
      %v5425 = vmax.f32 %v5169, 0.0
      %v5426 = vmax.f32 %v5170, 0.0
      %v5427 = vmax.f32 %v5171, 0.0
      %v5428 = vmax.f32 %v5172, 0.0
      %v5429 = vmax.f32 %v5173, 0.0
      %v5430 = vmax.f32 %v5174, 0.0
      %v5431 = vmax.f32 %v5175, 0.0
      %v5432 = vmax.f32 %v5176, 0.0
      %v5433 = vmax.f32 %v5177, 0.0
      %v5434 = vmax.f32 %v5178, 0.0
      %v5435 = vmax.f32 %v5179, 0.0
      %v5436 = vmax.f32 %v5180, 0.0
      %v5437 = vmax.f32 %v5181, 0.0
      %v5438 = vmax.f32 %v5182, 0.0
      %v5439 = vmax.f32 %v5183, 0.0
      %v5440 = vmax.f32 %v5184, 0.0
      %v5441 = vmax.f32 %v5185, 0.0
      %v5442 = vmax.f32 %v5186, 0.0
      %v5443 = vmax.f32 %v5187, 0.0
      %v5444 = vmax.f32 %v5188, 0.0
      %v5445 = vmax.f32 %v5189, 0.0
      %v5446 = vmax.f32 %v5190, 0.0
      %v5447 = vmax.f32 %v5191, 0.0
      %v5448 = vmax.f32 %v5192, 0.0
      %v5449 = vmax.f32 %v5193, 0.0
      %v5450 = vmax.f32 %v5194, 0.0
      %v5451 = vmax.f32 %v5195, 0.0
      %v5452 = vmax.f32 %v5196, 0.0
      %v5453 = vmax.f32 %v5197, 0.0
      %v5454 = vmax.f32 %v5198, 0.0
      %v5455 = vmax.f32 %v5199, 0.0
      %v5456 = vmax.f32 %v5200, 0.0
      %v5457 = vmax.f32 %v5201, 0.0
      %v5458 = vmax.f32 %v5202, 0.0
      %v5459 = vmax.f32 %v5203, 0.0
      %v5460 = vmax.f32 %v5204, 0.0
      %v5461 = vmax.f32 %v5205, 0.0
      %v5462 = vmax.f32 %v5206, 0.0
      %v5463 = vmax.f32 %v5207, 0.0
      %v5464 = vmax.f32 %v5208, 0.0
      %v5465 = vmax.f32 %v5209, 0.0
      %v5466 = vmax.f32 %v5210, 0.0
      %v5467 = vmax.f32 %v5211, 0.0
      %v5468 = vmax.f32 %v5212, 0.0
      %v5469 = vmax.f32 %v5213, 0.0
      %v5470 = vmax.f32 %v5214, 0.0
      %v5471 = vmax.f32 %v5215, 0.0
      %v5472 = vmax.f32 %v5216, 0.0
      %v5473 = vmax.f32 %v5217, 0.0
      %v5474 = vmax.f32 %v5218, 0.0
      %v5475 = vmax.f32 %v5219, 0.0
      %v5476 = vmax.f32 %v5220, 0.0
      %v5477 = vmax.f32 %v5221, 0.0
      %v5478 = vmax.f32 %v5222, 0.0
      %v5479 = vmax.f32 %v5223, 0.0
      %v5480 = vmax.f32 %v5224, 0.0
      %v5481 = vmax.f32 %v5225, 0.0
      %v5482 = vmax.f32 %v5226, 0.0
      %v5483 = vmax.f32 %v5227, 0.0
      %v5484 = vmax.f32 %v5228, 0.0
      %v5485 = vmax.f32 %v5229, 0.0
      %v5486 = vmax.f32 %v5230, 0.0
      %v5487 = vmax.f32 %v5231, 0.0
      %v5488 = vmax.f32 %v5232, 0.0
      %v5489 = vmax.f32 %v5233, 0.0
      %v5490 = vmax.f32 %v5234, 0.0
      %v5491 = vmax.f32 %v5235, 0.0
      %v5492 = vmax.f32 %v5236, 0.0
      %v5493 = vmax.f32 %v5237, 0.0
      %v5494 = vmax.f32 %v5238, 0.0
      %v5495 = vmax.f32 %v5239, 0.0
      %v5496 = vmax.f32 %v5240, 0.0
      %v5497 = vmax.f32 %v5241, 0.0
      %v5498 = vmax.f32 %v5242, 0.0
      %v5499 = vmax.f32 %v5243, 0.0
      %v5500 = vmax.f32 %v5244, 0.0
      %v5501 = vmax.f32 %v5245, 0.0
      %v5502 = vmax.f32 %v5246, 0.0
      %v5503 = vmax.f32 %v5247, 0.0
      %v5504 = vmax.f32 %v5248, 0.0
      %v5505 = vmax.f32 %v5249, 0.0
      %v5506 = vmax.f32 %v5250, 0.0
      %v5507 = vmax.f32 %v5251, 0.0
      %v5508 = vmax.f32 %v5252, 0.0
      %v5509 = vmax.f32 %v5253, 0.0
      %v5510 = vmax.f32 %v5254, 0.0
      %v5511 = vmax.f32 %v5255, 0.0
      %v5512 = vmax.f32 %v5256, 0.0
      %v5513 = vmax.f32 %v5257, 0.0
      %v5514 = vmax.f32 %v5258, 0.0
      %v5515 = vmax.f32 %v5259, 0.0
      %v5516 = vmax.f32 %v5260, 0.0
      %v5517 = vmax.f32 %v5261, 0.0
      %v5518 = vmax.f32 %v5262, 0.0
      %v5519 = vmax.f32 %v5263, 0.0
      %v5520 = vmax.f32 %v5264, 0.0
      %v5521 = vmax.f32 %v5265, 0.0
      %v5522 = vmax.f32 %v5266, 0.0
      %v5523 = vmax.f32 %v5267, 0.0
      %v5524 = vmax.f32 %v5268, 0.0
      %v5525 = vmax.f32 %v5269, 0.0
      %v5526 = vmax.f32 %v5270, 0.0
      %v5527 = vmax.f32 %v5271, 0.0
      %v5528 = vmax.f32 %v5272, 0.0
      %v5529 = vmax.f32 %v5273, 0.0
      %v5530 = vmax.f32 %v5274, 0.0
      %v5531 = vmax.f32 %v5275, 0.0
      %v5532 = vmax.f32 %v5276, 0.0
      %v5533 = vmax.f32 %v5277, 0.0
      %v5534 = vmax.f32 %v5278, 0.0
      %v5535 = vmax.f32 %v5279, 0.0
      %v5536 = vmax.f32 %v5280, 0.0
      %v5537 = vmax.f32 %v5281, 0.0
      %v5538 = vmax.f32 %v5282, 0.0
      %v5539 = vmax.f32 %v5283, 0.0
      %v5540 = vmax.f32 %v5284, 0.0
      %v5541 = vmax.f32 %v5285, 0.0
      %v5542 = vmax.f32 %v5286, 0.0
      %v5543 = vmax.f32 %v5287, 0.0
      %v5544 = vmax.f32 %v5288, 0.0
      %v5545 = vmax.f32 %v5289, 0.0
      %v5546 = vmax.f32 %v5290, 0.0
      %v5547 = vmax.f32 %v5291, 0.0
      %v5548 = vmax.f32 %v5292, 0.0
      %v5549 = vmax.f32 %v5293, 0.0
      %v5550 = vmax.f32 %v5294, 0.0
      %v5551 = vmax.f32 %v5295, 0.0
      %v5552 = vmax.f32 %v5296, 0.0
      %v5553 = vmax.f32 %v5297, 0.0
      %v5554 = vmax.f32 %v5298, 0.0
      %v5555 = vmax.f32 %v5299, 0.0
      %v5556 = vmax.f32 %v5300, 0.0
      %v5557 = vmax.f32 %v5301, 0.0
      %v5558 = vmax.f32 %v5302, 0.0
      %v5559 = vmax.f32 %v5303, 0.0
      %v5560 = vmax.f32 %v5304, 0.0
      %v5561 = vmax.f32 %v5305, 0.0
      %v5562 = vmax.f32 %v5306, 0.0
      %v5563 = vmax.f32 %v5307, 0.0
      %v5564 = vmax.f32 %v5308, 0.0
      %v5565 = vmax.f32 %v5309, 0.0
      %v5566 = vmax.f32 %v5310, 0.0
      %v5567 = vmax.f32 %v5311, 0.0
      %v5568 = vmax.f32 %v5312, 0.0
      %v5569 = vmax.f32 %v5313, 0.0
      %v5570 = vmax.f32 %v5314, 0.0
      %v5571 = vmax.f32 %v5315, 0.0
      %v5572 = vmax.f32 %v5316, 0.0
      %v5573 = vmax.f32 %v5317, 0.0
      %v5574 = vmax.f32 %v5318, 0.0
      %v5575 = vmax.f32 %v5319, 0.0
      %v5576 = vmax.f32 %v5320, 0.0
      %v5577 = vmax.f32 %v5321, 0.0
      %v5578 = vmax.f32 %v5322, 0.0
      %v5579 = vmax.f32 %v5323, 0.0
      %v5580 = vmax.f32 %v5324, 0.0
      %v5581 = vmax.f32 %v5325, 0.0
      %v5582 = vmax.f32 %v5326, 0.0
      %v5583 = vmax.f32 %v5327, 0.0
      %v5584 = vmax.f32 %v5328, 0.0
      %v5585 = vmax.f32 %v5329, 0.0
      %v5586 = vmax.f32 %v5330, 0.0
      %v5587 = vmax.f32 %v5331, 0.0
      %v5588 = vmax.f32 %v5332, 0.0
      %v5589 = vmax.f32 %v5333, 0.0
      %v5590 = vmax.f32 %v5334, 0.0
      %v5591 = vmax.f32 %v5335, 0.0
      %v5592 = vmax.f32 %v5336, 0.0
      %v5593 = vmax.f32 %v5337, 0.0
      %v5594 = vmax.f32 %v5338, 0.0
      %v5595 = vmax.f32 %v5339, 0.0
      %v5596 = vmax.f32 %v5340, 0.0
      %v5597 = vmax.f32 %v5341, 0.0
      %v5598 = vmax.f32 %v5342, 0.0
      %v5599 = vmax.f32 %v5343, 0.0
      %v5600 = vmax.f32 %v5344, 0.0
      %v5601 = vmax.f32 %v5345, 0.0
      %v5602 = vmax.f32 %v5346, 0.0
      %v5603 = vmax.f32 %v5347, 0.0
      %v5604 = vmax.f32 %v5348, 0.0
      %v5605 = vmax.f32 %v5349, 0.0
      %v5606 = vmax.f32 %v5350, 0.0
      %v5607 = vmax.f32 %v5351, 0.0
      %v5608 = vmax.f32 %v5352, 0.0
      %v5609 = vmax.f32 %v5353, 0.0
      %v5610 = vmax.f32 %v5354, 0.0
      %v5611 = vmax.f32 %v5355, 0.0
      %v5612 = vmax.f32 %v5356, 0.0
      %v5613 = vmax.f32 %v5357, 0.0
      %v5614 = vmax.f32 %v5358, 0.0
      %v5615 = vmax.f32 %v5359, 0.0
      %v5616 = vmax.f32 %v5360, 0.0
      %v5617 = vmax.f32 %v5361, 0.0
      %v5618 = vmax.f32 %v5362, 0.0
      %v5619 = vmax.f32 %v5363, 0.0
      %v5620 = vmax.f32 %v5364, 0.0
      %v5621 = vmax.f32 %v5365, 0.0
      %v5622 = vmax.f32 %v5366, 0.0
      %v5623 = vmax.f32 %v5367, 0.0
      %v5624 = vmax.f32 %v5368, 0.0
      %v5625 = vmax.f32 %v5369, 0.0
      %v5626 = vmax.f32 %v5370, 0.0
      %v5627 = vmax.f32 %v5371, 0.0
      %v5628 = vmax.f32 %v5372, 0.0
      %v5629 = vmax.f32 %v5373, 0.0
      %v5630 = vmax.f32 %v5374, 0.0
      %v5631 = vmax.f32 %v5375, 0.0
      %v5632 = vmax.f32 %v5376, 0.0
      %v5633 = vmax.f32 %v5377, 0.0
      %v5634 = vmax.f32 %v5378, 0.0
      %v5635 = vmax.f32 %v5379, 0.0
      %v5636 = vmax.f32 %v5380, 0.0
      %v5637 = vmax.f32 %v5381, 0.0
      %v5638 = vmax.f32 %v5382, 0.0
      %v5639 = vmax.f32 %v5383, 0.0
      %v5640 = vmax.f32 %v5384, 0.0
      %v5641 = vmax.f32 %v5385, 0.0
      %v5642 = vmax.f32 %v5386, 0.0
      %v5643 = vmax.f32 %v5387, 0.0
      %v5644 = vmax.f32 %v5388, 0.0
      %v5645 = vmax.f32 %v5389, 0.0
      %v5646 = vmax.f32 %v5390, 0.0
      %v5647 = vmax.f32 %v5391, 0.0
      %v5648 = vmax.f32 %v5392, 0.0
      %v5649 = vmax.f32 %v5393, 0.0
      %v5650 = vmax.f32 %v5394, 0.0
      %v5651 = vmax.f32 %v5395, 0.0
      %v5652 = vmax.f32 %v5396, 0.0
      %v5653 = vmax.f32 %v5397, 0.0
      %v5654 = vmax.f32 %v5398, 0.0
      %v5655 = vmax.f32 %v5399, 0.0
      %v5656 = vmax.f32 %v5400, 0.0
      %v5657 = vmax.f32 %v5401, 0.0
      %v5658 = vmax.f32 %v5402, 0.0
      %v5659 = vmax.f32 %v5403, 0.0
      %v5660 = vmax.f32 %v5404, 0.0
      %v5661 = vmax.f32 %v5405, 0.0
      %v5662 = vmax.f32 %v5406, 0.0
      %v5663 = vmax.f32 %v5407, 0.0
      %v5664 = vmax.f32 %v5408, 0.0
      %v5665 = vmax.f32 %v5409, 0.0
      %v5666 = vmax.f32 %v5410, 0.0
      %v5667 = vmax.f32 %v5411, 0.0
      %v5668 = vmax.f32 %v5412, 0.0
      %v5669 = vmax.f32 %v5413, 0.0
      %v5670 = vmax.f32 %v5414, 0.0
      %v5671 = vmax.f32 %v5415, 0.0
      %v5672 = vpack.c.bf16 %v5418, %v5416
      %v5673 = vpack.c.bf16 %v5419, %v5417
      %v5674 = vpack.c.bf16 %v5422, %v5420
      %v5675 = vpack.c.bf16 %v5423, %v5421
      %v5676 = vpack.c.bf16 %v5426, %v5424
      %v5677 = vpack.c.bf16 %v5427, %v5425
      %v5678 = vpack.c.bf16 %v5430, %v5428
      %v5679 = vpack.c.bf16 %v5431, %v5429
      %v5680 = vpack.c.bf16 %v5434, %v5432
      %v5681 = vpack.c.bf16 %v5435, %v5433
      %v5682 = vpack.c.bf16 %v5438, %v5436
      %v5683 = vpack.c.bf16 %v5439, %v5437
      %v5684 = vpack.c.bf16 %v5442, %v5440
      %v5685 = vpack.c.bf16 %v5443, %v5441
      %v5686 = vpack.c.bf16 %v5446, %v5444
      %v5687 = vpack.c.bf16 %v5447, %v5445
      %v5688 = vpack.c.bf16 %v5450, %v5448
      %v5689 = vpack.c.bf16 %v5451, %v5449
      %v5690 = vpack.c.bf16 %v5454, %v5452
      %v5691 = vpack.c.bf16 %v5455, %v5453
      %v5692 = vpack.c.bf16 %v5458, %v5456
      %v5693 = vpack.c.bf16 %v5459, %v5457
      %v5694 = vpack.c.bf16 %v5462, %v5460
      %v5695 = vpack.c.bf16 %v5463, %v5461
      %v5696 = vpack.c.bf16 %v5466, %v5464
      %v5697 = vpack.c.bf16 %v5467, %v5465
      %v5698 = vpack.c.bf16 %v5470, %v5468
      %v5699 = vpack.c.bf16 %v5471, %v5469
      %v5700 = vpack.c.bf16 %v5474, %v5472
      %v5701 = vpack.c.bf16 %v5475, %v5473
      %v5702 = vpack.c.bf16 %v5478, %v5476
      %v5703 = vpack.c.bf16 %v5479, %v5477
      %v5704 = vpack.c.bf16 %v5482, %v5480
      %v5705 = vpack.c.bf16 %v5483, %v5481
      %v5706 = vpack.c.bf16 %v5486, %v5484
      %v5707 = vpack.c.bf16 %v5487, %v5485
      %v5708 = vpack.c.bf16 %v5490, %v5488
      %v5709 = vpack.c.bf16 %v5491, %v5489
      %v5710 = vpack.c.bf16 %v5494, %v5492
      %v5711 = vpack.c.bf16 %v5495, %v5493
      %v5712 = vpack.c.bf16 %v5498, %v5496
      %v5713 = vpack.c.bf16 %v5499, %v5497
      %v5714 = vpack.c.bf16 %v5502, %v5500
      %v5715 = vpack.c.bf16 %v5503, %v5501
      %v5716 = vpack.c.bf16 %v5506, %v5504
      %v5717 = vpack.c.bf16 %v5507, %v5505
      %v5718 = vpack.c.bf16 %v5510, %v5508
      %v5719 = vpack.c.bf16 %v5511, %v5509
      %v5720 = vpack.c.bf16 %v5514, %v5512
      %v5721 = vpack.c.bf16 %v5515, %v5513
      %v5722 = vpack.c.bf16 %v5518, %v5516
      %v5723 = vpack.c.bf16 %v5519, %v5517
      %v5724 = vpack.c.bf16 %v5522, %v5520
      %v5725 = vpack.c.bf16 %v5523, %v5521
      %v5726 = vpack.c.bf16 %v5526, %v5524
      %v5727 = vpack.c.bf16 %v5527, %v5525
      %v5728 = vpack.c.bf16 %v5530, %v5528
      %v5729 = vpack.c.bf16 %v5531, %v5529
      %v5730 = vpack.c.bf16 %v5534, %v5532
      %v5731 = vpack.c.bf16 %v5535, %v5533
      %v5732 = vpack.c.bf16 %v5538, %v5536
      %v5733 = vpack.c.bf16 %v5539, %v5537
      %v5734 = vpack.c.bf16 %v5542, %v5540
      %v5735 = vpack.c.bf16 %v5543, %v5541
      %v5736 = vpack.c.bf16 %v5546, %v5544
      %v5737 = vpack.c.bf16 %v5547, %v5545
      %v5738 = vpack.c.bf16 %v5550, %v5548
      %v5739 = vpack.c.bf16 %v5551, %v5549
      %v5740 = vpack.c.bf16 %v5554, %v5552
      %v5741 = vpack.c.bf16 %v5555, %v5553
      %v5742 = vpack.c.bf16 %v5558, %v5556
      %v5743 = vpack.c.bf16 %v5559, %v5557
      %v5744 = vpack.c.bf16 %v5562, %v5560
      %v5745 = vpack.c.bf16 %v5563, %v5561
      %v5746 = vpack.c.bf16 %v5566, %v5564
      %v5747 = vpack.c.bf16 %v5567, %v5565
      %v5748 = vpack.c.bf16 %v5570, %v5568
      %v5749 = vpack.c.bf16 %v5571, %v5569
      %v5750 = vpack.c.bf16 %v5574, %v5572
      %v5751 = vpack.c.bf16 %v5575, %v5573
      %v5752 = vpack.c.bf16 %v5578, %v5576
      %v5753 = vpack.c.bf16 %v5579, %v5577
      %v5754 = vpack.c.bf16 %v5582, %v5580
      %v5755 = vpack.c.bf16 %v5583, %v5581
      %v5756 = vpack.c.bf16 %v5586, %v5584
      %v5757 = vpack.c.bf16 %v5587, %v5585
      %v5758 = vpack.c.bf16 %v5590, %v5588
      %v5759 = vpack.c.bf16 %v5591, %v5589
      %v5760 = vpack.c.bf16 %v5594, %v5592
      %v5761 = vpack.c.bf16 %v5595, %v5593
      %v5762 = vpack.c.bf16 %v5598, %v5596
      %v5763 = vpack.c.bf16 %v5599, %v5597
      %v5764 = vpack.c.bf16 %v5602, %v5600
      %v5765 = vpack.c.bf16 %v5603, %v5601
      %v5766 = vpack.c.bf16 %v5606, %v5604
      %v5767 = vpack.c.bf16 %v5607, %v5605
      %v5768 = vpack.c.bf16 %v5610, %v5608
      %v5769 = vpack.c.bf16 %v5611, %v5609
      %v5770 = vpack.c.bf16 %v5614, %v5612
      %v5771 = vpack.c.bf16 %v5615, %v5613
      %v5772 = vpack.c.bf16 %v5618, %v5616
      %v5773 = vpack.c.bf16 %v5619, %v5617
      %v5774 = vpack.c.bf16 %v5622, %v5620
      %v5775 = vpack.c.bf16 %v5623, %v5621
      %v5776 = vpack.c.bf16 %v5626, %v5624
      %v5777 = vpack.c.bf16 %v5627, %v5625
      %v5778 = vpack.c.bf16 %v5630, %v5628
      %v5779 = vpack.c.bf16 %v5631, %v5629
      %v5780 = vpack.c.bf16 %v5634, %v5632
      %v5781 = vpack.c.bf16 %v5635, %v5633
      %v5782 = vpack.c.bf16 %v5638, %v5636
      %v5783 = vpack.c.bf16 %v5639, %v5637
      %v5784 = vpack.c.bf16 %v5642, %v5640
      %v5785 = vpack.c.bf16 %v5643, %v5641
      %v5786 = vpack.c.bf16 %v5646, %v5644
      %v5787 = vpack.c.bf16 %v5647, %v5645
      %v5788 = vpack.c.bf16 %v5650, %v5648
      %v5789 = vpack.c.bf16 %v5651, %v5649
      %v5790 = vpack.c.bf16 %v5654, %v5652
      %v5791 = vpack.c.bf16 %v5655, %v5653
      %v5792 = vpack.c.bf16 %v5658, %v5656
      %v5793 = vpack.c.bf16 %v5659, %v5657
      %v5794 = vpack.c.bf16 %v5662, %v5660
      %v5795 = vpack.c.bf16 %v5663, %v5661
      %v5796 = vpack.c.bf16 %v5666, %v5664
      %v5797 = vpack.c.bf16 %v5667, %v5665
      %v5798 = vpack.c.bf16 %v5670, %v5668
      %v5799 = vpack.c.bf16 %v5671, %v5669
      %v5800 = vld [vmem:[%s7] sm:$0xff]
      %v5801 = vld [vmem:[%s7 + $0x8] sm:$0xff]
      %v5802 = vld [vmem:[%s7 + $0x10] sm:$0xff]
      %v5803 = vld [vmem:[%s7 + $0x18] sm:$0xff]
      %v5804 = vld [vmem:[%s7 + $0x20] sm:$0xff]
      %v5805 = vld [vmem:[%s7 + $0x28] sm:$0xff]
      %v5806 = vld [vmem:[%s7 + $0x30] sm:$0xff]
      %v5807 = vld [vmem:[%s7 + $0x38] sm:$0xff]
      %v5808 = vld [vmem:[%s7 + $0x40] sm:$0xff]
      %v5809 = vld [vmem:[%s7 + $0x48] sm:$0xff]
      %v5810 = vld [vmem:[%s7 + $0x50] sm:$0xff]
      %v5811 = vld [vmem:[%s7 + $0x58] sm:$0xff]
      %v5812 = vld [vmem:[%s7 + $0x60] sm:$0xff]
      %v5813 = vld [vmem:[%s7 + $0x68] sm:$0xff]
      %v5814 = vld [vmem:[%s7 + $0x70] sm:$0xff]
      %v5815 = vld [vmem:[%s7 + $0x78] sm:$0xff]
      %v5816 = vld [vmem:[%s7 + $0x80] sm:$0xff]
      %v5817 = vld [vmem:[%s7 + $0x88] sm:$0xff]
      %v5818 = vld [vmem:[%s7 + $0x90] sm:$0xff]
      %v5819 = vld [vmem:[%s7 + $0x98] sm:$0xff]
      %v5820 = vld [vmem:[%s7 + $0xa0] sm:$0xff]
      %v5821 = vld [vmem:[%s7 + $0xa8] sm:$0xff]
      %v5822 = vld [vmem:[%s7 + $0xb0] sm:$0xff]
      %v5823 = vld [vmem:[%s7 + $0xb8] sm:$0xff]
      %v5824 = vld [vmem:[%s7 + $0xc0] sm:$0xff]
      %v5825 = vld [vmem:[%s7 + $0xc8] sm:$0xff]
      %v5826 = vld [vmem:[%s7 + $0xd0] sm:$0xff]
      %v5827 = vld [vmem:[%s7 + $0xd8] sm:$0xff]
      %v5828 = vld [vmem:[%s7 + $0xe0] sm:$0xff]
      %v5829 = vld [vmem:[%s7 + $0xe8] sm:$0xff]
      %v5830 = vld [vmem:[%s7 + $0xf0] sm:$0xff]
      %v5831 = vld [vmem:[%s7 + $0xf8] sm:$0xff]
      %v5832 = vld [vmem:[%s8] sm:$0x3]
      %v5834 = vlaneseq
      %v5835 = vshrl.u32 %v5834, 7
      %v5836 = vsub.s32 0, %v5835
      %v5837 = vrot.slane %v5832, %v5836
      %v5838 = vlaneseq
      %v5839 = vshrl.u32 %v5838, 7
      %v5840 = vsub.s32 1, %v5839
      %v5841 = vrot.slane %v5832, %v5840
      %v5876 = vunpack.c.l.b16 %v5800
      %v5877 = vunpack.c.h.b16 %v5800
      %v5878 = vunpack.c.l.b16 %v5801
      %v5879 = vunpack.c.h.b16 %v5801
      %v5880 = vunpack.c.l.b16 %v5802
      %v5881 = vunpack.c.h.b16 %v5802
      %v5882 = vunpack.c.l.b16 %v5803
      %v5883 = vunpack.c.h.b16 %v5803
      %v5884 = vunpack.c.l.b16 %v5804
      %v5885 = vunpack.c.h.b16 %v5804
      %v5886 = vunpack.c.l.b16 %v5805
      %v5887 = vunpack.c.h.b16 %v5805
      %v5888 = vunpack.c.l.b16 %v5806
      %v5889 = vunpack.c.h.b16 %v5806
      %v5890 = vunpack.c.l.b16 %v5807
      %v5891 = vunpack.c.h.b16 %v5807
      %v5892 = vunpack.c.l.b16 %v5808
      %v5893 = vunpack.c.h.b16 %v5808
      %v5894 = vunpack.c.l.b16 %v5809
      %v5895 = vunpack.c.h.b16 %v5809
      %v5896 = vunpack.c.l.b16 %v5810
      %v5897 = vunpack.c.h.b16 %v5810
      %v5898 = vunpack.c.l.b16 %v5811
      %v5899 = vunpack.c.h.b16 %v5811
      %v5900 = vunpack.c.l.b16 %v5812
      %v5901 = vunpack.c.h.b16 %v5812
      %v5902 = vunpack.c.l.b16 %v5813
      %v5903 = vunpack.c.h.b16 %v5813
      %v5904 = vunpack.c.l.b16 %v5814
      %v5905 = vunpack.c.h.b16 %v5814
      %v5906 = vunpack.c.l.b16 %v5815
      %v5907 = vunpack.c.h.b16 %v5815
      %v5908 = vunpack.c.l.b16 %v5816
      %v5909 = vunpack.c.h.b16 %v5816
      %v5910 = vunpack.c.l.b16 %v5817
      %v5911 = vunpack.c.h.b16 %v5817
      %v5912 = vunpack.c.l.b16 %v5818
      %v5913 = vunpack.c.h.b16 %v5818
      %v5914 = vunpack.c.l.b16 %v5819
      %v5915 = vunpack.c.h.b16 %v5819
      %v5916 = vunpack.c.l.b16 %v5820
      %v5917 = vunpack.c.h.b16 %v5820
      %v5918 = vunpack.c.l.b16 %v5821
      %v5919 = vunpack.c.h.b16 %v5821
      %v5920 = vunpack.c.l.b16 %v5822
      %v5921 = vunpack.c.h.b16 %v5822
      %v5922 = vunpack.c.l.b16 %v5823
      %v5923 = vunpack.c.h.b16 %v5823
      %v5924 = vunpack.c.l.b16 %v5824
      %v5925 = vunpack.c.h.b16 %v5824
      %v5926 = vunpack.c.l.b16 %v5825
      %v5927 = vunpack.c.h.b16 %v5825
      %v5928 = vunpack.c.l.b16 %v5826
      %v5929 = vunpack.c.h.b16 %v5826
      %v5930 = vunpack.c.l.b16 %v5827
      %v5931 = vunpack.c.h.b16 %v5827
      %v5932 = vunpack.c.l.b16 %v5828
      %v5933 = vunpack.c.h.b16 %v5828
      %v5934 = vunpack.c.l.b16 %v5829
      %v5935 = vunpack.c.h.b16 %v5829
      %v5936 = vunpack.c.l.b16 %v5830
      %v5937 = vunpack.c.h.b16 %v5830
      %v5938 = vunpack.c.l.b16 %v5831
      %v5939 = vunpack.c.h.b16 %v5831
      %v5940 = vpack.c.b16 %v5878, %v5876
      %v5941 = vpack.c.b16 %v5879, %v5877
      %v5942 = vpack.c.b16 %v5882, %v5880
      %v5943 = vpack.c.b16 %v5883, %v5881
      %v5944 = vpack.c.b16 %v5886, %v5884
      %v5945 = vpack.c.b16 %v5887, %v5885
      %v5946 = vpack.c.b16 %v5890, %v5888
      %v5947 = vpack.c.b16 %v5891, %v5889
      %v5948 = vpack.c.b16 %v5894, %v5892
      %v5949 = vpack.c.b16 %v5895, %v5893
      %v5950 = vpack.c.b16 %v5898, %v5896
      %v5951 = vpack.c.b16 %v5899, %v5897
      %v5952 = vpack.c.b16 %v5902, %v5900
      %v5953 = vpack.c.b16 %v5903, %v5901
      %v5954 = vpack.c.b16 %v5906, %v5904
      %v5955 = vpack.c.b16 %v5907, %v5905
      %v5956 = vpack.c.b16 %v5910, %v5908
      %v5957 = vpack.c.b16 %v5911, %v5909
      %v5958 = vpack.c.b16 %v5914, %v5912
      %v5959 = vpack.c.b16 %v5915, %v5913
      %v5960 = vpack.c.b16 %v5918, %v5916
      %v5961 = vpack.c.b16 %v5919, %v5917
      %v5962 = vpack.c.b16 %v5922, %v5920
      %v5963 = vpack.c.b16 %v5923, %v5921
      %v5964 = vpack.c.b16 %v5926, %v5924
      %v5965 = vpack.c.b16 %v5927, %v5925
      %v5966 = vpack.c.b16 %v5930, %v5928
      %v5967 = vpack.c.b16 %v5931, %v5929
      %v5968 = vpack.c.b16 %v5934, %v5932
      %v5969 = vpack.c.b16 %v5935, %v5933
      %v5970 = vpack.c.b16 %v5938, %v5936
      %v5971 = vpack.c.b16 %v5939, %v5937
      %6004 = vmatprep.subr.bf16.mxu0 %v5941
      %6005 = vmatpush1.bf16.msra.mxu0 %v5940
      %6006 = vmatprep.subr.bf16.mxu0 %v5943
      %6007 = vmatpush1.bf16.msra.mxu0 %v5942
      %6008 = vmatprep.subr.bf16.mxu0 %v5945
      %6009 = vmatpush1.bf16.msra.mxu0 %v5944
      %6010 = vmatprep.subr.bf16.mxu0 %v5947
      %6011 = vmatpush1.bf16.msra.mxu0 %v5946
      %6012 = vmatprep.subr.bf16.mxu0 %v5949
      %6013 = vmatpush1.bf16.msra.mxu0 %v5948
      %6014 = vmatprep.subr.bf16.mxu0 %v5951
      %6015 = vmatpush1.bf16.msra.mxu0 %v5950
      %6016 = vmatprep.subr.bf16.mxu0 %v5953
      %6017 = vmatpush1.bf16.msra.mxu0 %v5952
      %6018 = vmatprep.subr.bf16.mxu0 %v5955
      %6019 = vmatpush1.bf16.msra.mxu0 %v5954
      %6020 = vmatprep.subr.bf16.mxu0 %v5957
      %6021 = vmatpush1.bf16.msra.mxu0 %v5956
      %6022 = vmatprep.subr.bf16.mxu0 %v5959
      %6023 = vmatpush1.bf16.msra.mxu0 %v5958
      %6024 = vmatprep.subr.bf16.mxu0 %v5961
      %6025 = vmatpush1.bf16.msra.mxu0 %v5960
      %6026 = vmatprep.subr.bf16.mxu0 %v5963
      %6027 = vmatpush1.bf16.msra.mxu0 %v5962
      %6028 = vmatprep.subr.bf16.mxu0 %v5965
      %6029 = vmatpush1.bf16.msra.mxu0 %v5964
      %6030 = vmatprep.subr.bf16.mxu0 %v5967
      %6031 = vmatpush1.bf16.msra.mxu0 %v5966
      %6032 = vmatprep.subr.bf16.mxu0 %v5969
      %6033 = vmatpush1.bf16.msra.mxu0 %v5968
      %6034 = vmatprep.subr.bf16.mxu0 %v5971
      %6035 = vmatpush1.bf16.msra.mxu0 %v5970
      %6036 = vmatprep.mubr.bf16.mxu0 %v5673
      %6037 = vmatmul.mubr.bf16.gmra.mrb[0].mxu0 %v5672
      %v6038 = vpop.f32.mrb[0].mxu0
      %v6039 = vadd.f32 %v5837, %v6038
      %v6040 = vpop.f32.mrb[0].mxu0
      %v6041 = vadd.f32 %v5841, %v6040
      %v6042 = vpop.f32.mrb[0].mxu0
      %v6043 = vadd.f32 %v5837, %v6042
      %v6044 = vpop.f32.mrb[0].mxu0
      %v6045 = vadd.f32 %v5841, %v6044
      %6046 = vmatprep.mubr.bf16.mxu0 %v5675
      %6047 = vmatmul.mubr.bf16.gmra.mrb[0].mxu0 %v5674
      %v6048 = vpop.f32.mrb[0].mxu0
      %v6049 = vadd.f32 %v5837, %v6048
      %v6050 = vpop.f32.mrb[0].mxu0
      %v6051 = vadd.f32 %v5841, %v6050
      %v6052 = vpop.f32.mrb[0].mxu0
      %v6053 = vadd.f32 %v5837, %v6052
      %v6054 = vpop.f32.mrb[0].mxu0
      %v6055 = vadd.f32 %v5841, %v6054
      %6056 = vmatprep.mubr.bf16.mxu0 %v5677
      %6057 = vmatmul.mubr.bf16.gmra.mrb[0].mxu0 %v5676
      %v6058 = vpop.f32.mrb[0].mxu0
      %v6059 = vadd.f32 %v5837, %v6058
      %v6060 = vpop.f32.mrb[0].mxu0
      %v6061 = vadd.f32 %v5841, %v6060
      %v6062 = vpop.f32.mrb[0].mxu0
      %v6063 = vadd.f32 %v5837, %v6062
      %v6064 = vpop.f32.mrb[0].mxu0
      %v6065 = vadd.f32 %v5841, %v6064
      %6066 = vmatprep.mubr.bf16.mxu0 %v5679
      %6067 = vmatmul.mubr.bf16.gmra.mrb[0].mxu0 %v5678
      %v6068 = vpop.f32.mrb[0].mxu0
      %v6069 = vadd.f32 %v5837, %v6068
      %v6070 = vpop.f32.mrb[0].mxu0
      %v6071 = vadd.f32 %v5841, %v6070
      %v6072 = vpop.f32.mrb[0].mxu0
      %v6073 = vadd.f32 %v5837, %v6072
      %v6074 = vpop.f32.mrb[0].mxu0
      %v6075 = vadd.f32 %v5841, %v6074
      %6076 = vmatprep.mubr.bf16.mxu0 %v5681
      %6077 = vmatmul.mubr.bf16.gmra.mrb[0].mxu0 %v5680
      %v6078 = vpop.f32.mrb[0].mxu0
      %v6079 = vadd.f32 %v5837, %v6078
      %v6080 = vpop.f32.mrb[0].mxu0
      %v6081 = vadd.f32 %v5841, %v6080
      %v6082 = vpop.f32.mrb[0].mxu0
      %v6083 = vadd.f32 %v5837, %v6082
      %v6084 = vpop.f32.mrb[0].mxu0
      %v6085 = vadd.f32 %v5841, %v6084
      %6086 = vmatprep.mubr.bf16.mxu0 %v5683
      %6087 = vmatmul.mubr.bf16.gmra.mrb[0].mxu0 %v5682
      %v6088 = vpop.f32.mrb[0].mxu0
      %v6089 = vadd.f32 %v5837, %v6088
      %v6090 = vpop.f32.mrb[0].mxu0
      %v6091 = vadd.f32 %v5841, %v6090
      %v6092 = vpop.f32.mrb[0].mxu0
      %v6093 = vadd.f32 %v5837, %v6092
      %v6094 = vpop.f32.mrb[0].mxu0
      %v6095 = vadd.f32 %v5841, %v6094
      %6096 = vmatprep.mubr.bf16.mxu0 %v5685
      %6097 = vmatmul.mubr.bf16.gmra.mrb[0].mxu0 %v5684
      %v6098 = vpop.f32.mrb[0].mxu0
      %v6099 = vadd.f32 %v5837, %v6098
      %v6100 = vpop.f32.mrb[0].mxu0
      %v6101 = vadd.f32 %v5841, %v6100
      %v6102 = vpop.f32.mrb[0].mxu0
      %v6103 = vadd.f32 %v5837, %v6102
      %v6104 = vpop.f32.mrb[0].mxu0
      %v6105 = vadd.f32 %v5841, %v6104
      %6106 = vmatprep.mubr.bf16.mxu0 %v5687
      %6107 = vmatmul.mubr.bf16.gmra.mrb[0].mxu0 %v5686
      %v6108 = vpop.f32.mrb[0].mxu0
      %v6109 = vadd.f32 %v5837, %v6108
      %v6110 = vpop.f32.mrb[0].mxu0
      %v6111 = vadd.f32 %v5841, %v6110
      %v6112 = vpop.f32.mrb[0].mxu0
      %v6113 = vadd.f32 %v5837, %v6112
      %v6114 = vpop.f32.mrb[0].mxu0
      %v6115 = vadd.f32 %v5841, %v6114
      %6116 = vmatprep.mubr.bf16.mxu0 %v5689
      %6117 = vmatmul.mubr.bf16.gmra.mrb[0].mxu0 %v5688
      %v6118 = vpop.f32.mrb[0].mxu0
      %v6119 = vadd.f32 %v5837, %v6118
      %v6120 = vpop.f32.mrb[0].mxu0
      %v6121 = vadd.f32 %v5841, %v6120
      %v6122 = vpop.f32.mrb[0].mxu0
      %v6123 = vadd.f32 %v5837, %v6122
      %v6124 = vpop.f32.mrb[0].mxu0
      %v6125 = vadd.f32 %v5841, %v6124
      %6126 = vmatprep.mubr.bf16.mxu0 %v5691
      %6127 = vmatmul.mubr.bf16.gmra.mrb[0].mxu0 %v5690
      %v6128 = vpop.f32.mrb[0].mxu0
      %v6129 = vadd.f32 %v5837, %v6128
      %v6130 = vpop.f32.mrb[0].mxu0
      %v6131 = vadd.f32 %v5841, %v6130
      %v6132 = vpop.f32.mrb[0].mxu0
      %v6133 = vadd.f32 %v5837, %v6132
      %v6134 = vpop.f32.mrb[0].mxu0
      %v6135 = vadd.f32 %v5841, %v6134
      %6136 = vmatprep.mubr.bf16.mxu0 %v5693
      %6137 = vmatmul.mubr.bf16.gmra.mrb[0].mxu0 %v5692
      %v6138 = vpop.f32.mrb[0].mxu0
      %v6139 = vadd.f32 %v5837, %v6138
      %v6140 = vpop.f32.mrb[0].mxu0
      %v6141 = vadd.f32 %v5841, %v6140
      %v6142 = vpop.f32.mrb[0].mxu0
      %v6143 = vadd.f32 %v5837, %v6142
      %v6144 = vpop.f32.mrb[0].mxu0
      %v6145 = vadd.f32 %v5841, %v6144
      %6146 = vmatprep.mubr.bf16.mxu0 %v5695
      %6147 = vmatmul.mubr.bf16.gmra.mrb[0].mxu0 %v5694
      %v6148 = vpop.f32.mrb[0].mxu0
      %v6149 = vadd.f32 %v5837, %v6148
      %v6150 = vpop.f32.mrb[0].mxu0
      %v6151 = vadd.f32 %v5841, %v6150
      %v6152 = vpop.f32.mrb[0].mxu0
      %v6153 = vadd.f32 %v5837, %v6152
      %v6154 = vpop.f32.mrb[0].mxu0
      %v6155 = vadd.f32 %v5841, %v6154
      %6156 = vmatprep.mubr.bf16.mxu0 %v5697
      %6157 = vmatmul.mubr.bf16.gmra.mrb[0].mxu0 %v5696
      %v6158 = vpop.f32.mrb[0].mxu0
      %v6159 = vadd.f32 %v5837, %v6158
      %v6160 = vpop.f32.mrb[0].mxu0
      %v6161 = vadd.f32 %v5841, %v6160
      %v6162 = vpop.f32.mrb[0].mxu0
      %v6163 = vadd.f32 %v5837, %v6162
      %v6164 = vpop.f32.mrb[0].mxu0
      %v6165 = vadd.f32 %v5841, %v6164
      %6166 = vmatprep.mubr.bf16.mxu0 %v5699
      %6167 = vmatmul.mubr.bf16.gmra.mrb[0].mxu0 %v5698
      %v6168 = vpop.f32.mrb[0].mxu0
      %v6169 = vadd.f32 %v5837, %v6168
      %v6170 = vpop.f32.mrb[0].mxu0
      %v6171 = vadd.f32 %v5841, %v6170
      %v6172 = vpop.f32.mrb[0].mxu0
      %v6173 = vadd.f32 %v5837, %v6172
      %v6174 = vpop.f32.mrb[0].mxu0
      %v6175 = vadd.f32 %v5841, %v6174
      %6176 = vmatprep.mubr.bf16.mxu0 %v5701
      %6177 = vmatmul.mubr.bf16.gmra.mrb[0].mxu0 %v5700
      %v6178 = vpop.f32.mrb[0].mxu0
      %v6179 = vadd.f32 %v5837, %v6178
      %v6180 = vpop.f32.mrb[0].mxu0
      %v6181 = vadd.f32 %v5841, %v6180
      %v6182 = vpop.f32.mrb[0].mxu0
      %v6183 = vadd.f32 %v5837, %v6182
      %v6184 = vpop.f32.mrb[0].mxu0
      %v6185 = vadd.f32 %v5841, %v6184
      %6186 = vmatprep.mubr.bf16.mxu0 %v5703
      %6187 = vmatmul.mubr.bf16.gmra.mrb[0].mxu0 %v5702
      %v6188 = vpop.f32.mrb[0].mxu0
      %v6189 = vadd.f32 %v5837, %v6188
      %v6190 = vpop.f32.mrb[0].mxu0
      %v6191 = vadd.f32 %v5841, %v6190
      %v6192 = vpop.f32.mrb[0].mxu0
      %v6193 = vadd.f32 %v5837, %v6192
      %v6194 = vpop.f32.mrb[0].mxu0
      %v6195 = vadd.f32 %v5841, %v6194
      %6196 = vmatprep.mubr.bf16.mxu0 %v5705
      %6197 = vmatmul.mubr.bf16.gmra.mrb[0].mxu0 %v5704
      %v6198 = vpop.f32.mrb[0].mxu0
      %v6199 = vadd.f32 %v5837, %v6198
      %v6200 = vpop.f32.mrb[0].mxu0
      %v6201 = vadd.f32 %v5841, %v6200
      %v6202 = vpop.f32.mrb[0].mxu0
      %v6203 = vadd.f32 %v5837, %v6202
      %v6204 = vpop.f32.mrb[0].mxu0
      %v6205 = vadd.f32 %v5841, %v6204
      %6206 = vmatprep.mubr.bf16.mxu0 %v5707
      %6207 = vmatmul.mubr.bf16.gmra.mrb[0].mxu0 %v5706
      %v6208 = vpop.f32.mrb[0].mxu0
      %v6209 = vadd.f32 %v5837, %v6208
      %v6210 = vpop.f32.mrb[0].mxu0
      %v6211 = vadd.f32 %v5841, %v6210
      %v6212 = vpop.f32.mrb[0].mxu0
      %v6213 = vadd.f32 %v5837, %v6212
      %v6214 = vpop.f32.mrb[0].mxu0
      %v6215 = vadd.f32 %v5841, %v6214
      %6216 = vmatprep.mubr.bf16.mxu0 %v5709
      %6217 = vmatmul.mubr.bf16.gmra.mrb[0].mxu0 %v5708
      %v6218 = vpop.f32.mrb[0].mxu0
      %v6219 = vadd.f32 %v5837, %v6218
      %v6220 = vpop.f32.mrb[0].mxu0
      %v6221 = vadd.f32 %v5841, %v6220
      %v6222 = vpop.f32.mrb[0].mxu0
      %v6223 = vadd.f32 %v5837, %v6222
      %v6224 = vpop.f32.mrb[0].mxu0
      %v6225 = vadd.f32 %v5841, %v6224
      %6226 = vmatprep.mubr.bf16.mxu0 %v5711
      %6227 = vmatmul.mubr.bf16.gmra.mrb[0].mxu0 %v5710
      %v6228 = vpop.f32.mrb[0].mxu0
      %v6229 = vadd.f32 %v5837, %v6228
      %v6230 = vpop.f32.mrb[0].mxu0
      %v6231 = vadd.f32 %v5841, %v6230
      %v6232 = vpop.f32.mrb[0].mxu0
      %v6233 = vadd.f32 %v5837, %v6232
      %v6234 = vpop.f32.mrb[0].mxu0
      %v6235 = vadd.f32 %v5841, %v6234
      %6236 = vmatprep.mubr.bf16.mxu0 %v5713
      %6237 = vmatmul.mubr.bf16.gmra.mrb[0].mxu0 %v5712
      %v6238 = vpop.f32.mrb[0].mxu0
      %v6239 = vadd.f32 %v5837, %v6238
      %v6240 = vpop.f32.mrb[0].mxu0
      %v6241 = vadd.f32 %v5841, %v6240
      %v6242 = vpop.f32.mrb[0].mxu0
      %v6243 = vadd.f32 %v5837, %v6242
      %v6244 = vpop.f32.mrb[0].mxu0
      %v6245 = vadd.f32 %v5841, %v6244
      %6246 = vmatprep.mubr.bf16.mxu0 %v5715
      %6247 = vmatmul.mubr.bf16.gmra.mrb[0].mxu0 %v5714
      %v6248 = vpop.f32.mrb[0].mxu0
      %v6249 = vadd.f32 %v5837, %v6248
      %v6250 = vpop.f32.mrb[0].mxu0
      %v6251 = vadd.f32 %v5841, %v6250
      %v6252 = vpop.f32.mrb[0].mxu0
      %v6253 = vadd.f32 %v5837, %v6252
      %v6254 = vpop.f32.mrb[0].mxu0
      %v6255 = vadd.f32 %v5841, %v6254
      %6256 = vmatprep.mubr.bf16.mxu0 %v5717
      %6257 = vmatmul.mubr.bf16.gmra.mrb[0].mxu0 %v5716
      %v6258 = vpop.f32.mrb[0].mxu0
      %v6259 = vadd.f32 %v5837, %v6258
      %v6260 = vpop.f32.mrb[0].mxu0
      %v6261 = vadd.f32 %v5841, %v6260
      %v6262 = vpop.f32.mrb[0].mxu0
      %v6263 = vadd.f32 %v5837, %v6262
      %v6264 = vpop.f32.mrb[0].mxu0
      %v6265 = vadd.f32 %v5841, %v6264
      %6266 = vmatprep.mubr.bf16.mxu0 %v5719
      %6267 = vmatmul.mubr.bf16.gmra.mrb[0].mxu0 %v5718
      %v6268 = vpop.f32.mrb[0].mxu0
      %v6269 = vadd.f32 %v5837, %v6268
      %v6270 = vpop.f32.mrb[0].mxu0
      %v6271 = vadd.f32 %v5841, %v6270
      %v6272 = vpop.f32.mrb[0].mxu0
      %v6273 = vadd.f32 %v5837, %v6272
      %v6274 = vpop.f32.mrb[0].mxu0
      %v6275 = vadd.f32 %v5841, %v6274
      %6276 = vmatprep.mubr.bf16.mxu0 %v5721
      %6277 = vmatmul.mubr.bf16.gmra.mrb[0].mxu0 %v5720
      %v6278 = vpop.f32.mrb[0].mxu0
      %v6279 = vadd.f32 %v5837, %v6278
      %v6280 = vpop.f32.mrb[0].mxu0
      %v6281 = vadd.f32 %v5841, %v6280
      %v6282 = vpop.f32.mrb[0].mxu0
      %v6283 = vadd.f32 %v5837, %v6282
      %v6284 = vpop.f32.mrb[0].mxu0
      %v6285 = vadd.f32 %v5841, %v6284
      %6286 = vmatprep.mubr.bf16.mxu0 %v5723
      %6287 = vmatmul.mubr.bf16.gmra.mrb[0].mxu0 %v5722
      %v6288 = vpop.f32.mrb[0].mxu0
      %v6289 = vadd.f32 %v5837, %v6288
      %v6290 = vpop.f32.mrb[0].mxu0
      %v6291 = vadd.f32 %v5841, %v6290
      %v6292 = vpop.f32.mrb[0].mxu0
      %v6293 = vadd.f32 %v5837, %v6292
      %v6294 = vpop.f32.mrb[0].mxu0
      %v6295 = vadd.f32 %v5841, %v6294
      %6296 = vmatprep.mubr.bf16.mxu0 %v5725
      %6297 = vmatmul.mubr.bf16.gmra.mrb[0].mxu0 %v5724
      %v6298 = vpop.f32.mrb[0].mxu0
      %v6299 = vadd.f32 %v5837, %v6298
      %v6300 = vpop.f32.mrb[0].mxu0
      %v6301 = vadd.f32 %v5841, %v6300
      %v6302 = vpop.f32.mrb[0].mxu0
      %v6303 = vadd.f32 %v5837, %v6302
      %v6304 = vpop.f32.mrb[0].mxu0
      %v6305 = vadd.f32 %v5841, %v6304
      %6306 = vmatprep.mubr.bf16.mxu0 %v5727
      %6307 = vmatmul.mubr.bf16.gmra.mrb[0].mxu0 %v5726
      %v6308 = vpop.f32.mrb[0].mxu0
      %v6309 = vadd.f32 %v5837, %v6308
      %v6310 = vpop.f32.mrb[0].mxu0
      %v6311 = vadd.f32 %v5841, %v6310
      %v6312 = vpop.f32.mrb[0].mxu0
      %v6313 = vadd.f32 %v5837, %v6312
      %v6314 = vpop.f32.mrb[0].mxu0
      %v6315 = vadd.f32 %v5841, %v6314
      %6316 = vmatprep.mubr.bf16.mxu0 %v5729
      %6317 = vmatmul.mubr.bf16.gmra.mrb[0].mxu0 %v5728
      %v6318 = vpop.f32.mrb[0].mxu0
      %v6319 = vadd.f32 %v5837, %v6318
      %v6320 = vpop.f32.mrb[0].mxu0
      %v6321 = vadd.f32 %v5841, %v6320
      %v6322 = vpop.f32.mrb[0].mxu0
      %v6323 = vadd.f32 %v5837, %v6322
      %v6324 = vpop.f32.mrb[0].mxu0
      %v6325 = vadd.f32 %v5841, %v6324
      %6326 = vmatprep.mubr.bf16.mxu0 %v5731
      %6327 = vmatmul.mubr.bf16.gmra.mrb[0].mxu0 %v5730
      %v6328 = vpop.f32.mrb[0].mxu0
      %v6329 = vadd.f32 %v5837, %v6328
      %v6330 = vpop.f32.mrb[0].mxu0
      %v6331 = vadd.f32 %v5841, %v6330
      %v6332 = vpop.f32.mrb[0].mxu0
      %v6333 = vadd.f32 %v5837, %v6332
      %v6334 = vpop.f32.mrb[0].mxu0
      %v6335 = vadd.f32 %v5841, %v6334
      %6336 = vmatprep.mubr.bf16.mxu0 %v5733
      %6337 = vmatmul.mubr.bf16.gmra.mrb[0].mxu0 %v5732
      %v6338 = vpop.f32.mrb[0].mxu0
      %v6339 = vadd.f32 %v5837, %v6338
      %v6340 = vpop.f32.mrb[0].mxu0
      %v6341 = vadd.f32 %v5841, %v6340
      %v6342 = vpop.f32.mrb[0].mxu0
      %v6343 = vadd.f32 %v5837, %v6342
      %v6344 = vpop.f32.mrb[0].mxu0
      %v6345 = vadd.f32 %v5841, %v6344
      %6346 = vmatprep.mubr.bf16.mxu0 %v5735
      %6347 = vmatmul.mubr.bf16.gmra.mrb[0].mxu0 %v5734
      %v6348 = vpop.f32.mrb[0].mxu0
      %v6349 = vadd.f32 %v5837, %v6348
      %v6350 = vpop.f32.mrb[0].mxu0
      %v6351 = vadd.f32 %v5841, %v6350
      %v6352 = vpop.f32.mrb[0].mxu0
      %v6353 = vadd.f32 %v5837, %v6352
      %v6354 = vpop.f32.mrb[0].mxu0
      %v6355 = vadd.f32 %v5841, %v6354
      %6356 = vmatprep.mubr.bf16.mxu0 %v5737
      %6357 = vmatmul.mubr.bf16.gmra.mrb[0].mxu0 %v5736
      %v6358 = vpop.f32.mrb[0].mxu0
      %v6359 = vadd.f32 %v5837, %v6358
      %v6360 = vpop.f32.mrb[0].mxu0
      %v6361 = vadd.f32 %v5841, %v6360
      %v6362 = vpop.f32.mrb[0].mxu0
      %v6363 = vadd.f32 %v5837, %v6362
      %v6364 = vpop.f32.mrb[0].mxu0
      %v6365 = vadd.f32 %v5841, %v6364
      %6366 = vmatprep.mubr.bf16.mxu0 %v5739
      %6367 = vmatmul.mubr.bf16.gmra.mrb[0].mxu0 %v5738
      %v6368 = vpop.f32.mrb[0].mxu0
      %v6369 = vadd.f32 %v5837, %v6368
      %v6370 = vpop.f32.mrb[0].mxu0
      %v6371 = vadd.f32 %v5841, %v6370
      %v6372 = vpop.f32.mrb[0].mxu0
      %v6373 = vadd.f32 %v5837, %v6372
      %v6374 = vpop.f32.mrb[0].mxu0
      %v6375 = vadd.f32 %v5841, %v6374
      %6376 = vmatprep.mubr.bf16.mxu0 %v5741
      %6377 = vmatmul.mubr.bf16.gmra.mrb[0].mxu0 %v5740
      %v6378 = vpop.f32.mrb[0].mxu0
      %v6379 = vadd.f32 %v5837, %v6378
      %v6380 = vpop.f32.mrb[0].mxu0
      %v6381 = vadd.f32 %v5841, %v6380
      %v6382 = vpop.f32.mrb[0].mxu0
      %v6383 = vadd.f32 %v5837, %v6382
      %v6384 = vpop.f32.mrb[0].mxu0
      %v6385 = vadd.f32 %v5841, %v6384
      %6386 = vmatprep.mubr.bf16.mxu0 %v5743
      %6387 = vmatmul.mubr.bf16.gmra.mrb[0].mxu0 %v5742
      %v6388 = vpop.f32.mrb[0].mxu0
      %v6389 = vadd.f32 %v5837, %v6388
      %v6390 = vpop.f32.mrb[0].mxu0
      %v6391 = vadd.f32 %v5841, %v6390
      %v6392 = vpop.f32.mrb[0].mxu0
      %v6393 = vadd.f32 %v5837, %v6392
      %v6394 = vpop.f32.mrb[0].mxu0
      %v6395 = vadd.f32 %v5841, %v6394
      %6396 = vmatprep.mubr.bf16.mxu0 %v5745
      %6397 = vmatmul.mubr.bf16.gmra.mrb[0].mxu0 %v5744
      %v6398 = vpop.f32.mrb[0].mxu0
      %v6399 = vadd.f32 %v5837, %v6398
      %v6400 = vpop.f32.mrb[0].mxu0
      %v6401 = vadd.f32 %v5841, %v6400
      %v6402 = vpop.f32.mrb[0].mxu0
      %v6403 = vadd.f32 %v5837, %v6402
      %v6404 = vpop.f32.mrb[0].mxu0
      %v6405 = vadd.f32 %v5841, %v6404
      %6406 = vmatprep.mubr.bf16.mxu0 %v5747
      %6407 = vmatmul.mubr.bf16.gmra.mrb[0].mxu0 %v5746
      %v6408 = vpop.f32.mrb[0].mxu0
      %v6409 = vadd.f32 %v5837, %v6408
      %v6410 = vpop.f32.mrb[0].mxu0
      %v6411 = vadd.f32 %v5841, %v6410
      %v6412 = vpop.f32.mrb[0].mxu0
      %v6413 = vadd.f32 %v5837, %v6412
      %v6414 = vpop.f32.mrb[0].mxu0
      %v6415 = vadd.f32 %v5841, %v6414
      %6416 = vmatprep.mubr.bf16.mxu0 %v5749
      %6417 = vmatmul.mubr.bf16.gmra.mrb[0].mxu0 %v5748
      %v6418 = vpop.f32.mrb[0].mxu0
      %v6419 = vadd.f32 %v5837, %v6418
      %v6420 = vpop.f32.mrb[0].mxu0
      %v6421 = vadd.f32 %v5841, %v6420
      %v6422 = vpop.f32.mrb[0].mxu0
      %v6423 = vadd.f32 %v5837, %v6422
      %v6424 = vpop.f32.mrb[0].mxu0
      %v6425 = vadd.f32 %v5841, %v6424
      %6426 = vmatprep.mubr.bf16.mxu0 %v5751
      %6427 = vmatmul.mubr.bf16.gmra.mrb[0].mxu0 %v5750
      %v6428 = vpop.f32.mrb[0].mxu0
      %v6429 = vadd.f32 %v5837, %v6428
      %v6430 = vpop.f32.mrb[0].mxu0
      %v6431 = vadd.f32 %v5841, %v6430
      %v6432 = vpop.f32.mrb[0].mxu0
      %v6433 = vadd.f32 %v5837, %v6432
      %v6434 = vpop.f32.mrb[0].mxu0
      %v6435 = vadd.f32 %v5841, %v6434
      %6436 = vmatprep.mubr.bf16.mxu0 %v5753
      %6437 = vmatmul.mubr.bf16.gmra.mrb[0].mxu0 %v5752
      %v6438 = vpop.f32.mrb[0].mxu0
      %v6439 = vadd.f32 %v5837, %v6438
      %v6440 = vpop.f32.mrb[0].mxu0
      %v6441 = vadd.f32 %v5841, %v6440
      %v6442 = vpop.f32.mrb[0].mxu0
      %v6443 = vadd.f32 %v5837, %v6442
      %v6444 = vpop.f32.mrb[0].mxu0
      %v6445 = vadd.f32 %v5841, %v6444
      %6446 = vmatprep.mubr.bf16.mxu0 %v5755
      %6447 = vmatmul.mubr.bf16.gmra.mrb[0].mxu0 %v5754
      %v6448 = vpop.f32.mrb[0].mxu0
      %v6449 = vadd.f32 %v5837, %v6448
      %v6450 = vpop.f32.mrb[0].mxu0
      %v6451 = vadd.f32 %v5841, %v6450
      %v6452 = vpop.f32.mrb[0].mxu0
      %v6453 = vadd.f32 %v5837, %v6452
      %v6454 = vpop.f32.mrb[0].mxu0
      %v6455 = vadd.f32 %v5841, %v6454
      %6456 = vmatprep.mubr.bf16.mxu0 %v5757
      %6457 = vmatmul.mubr.bf16.gmra.mrb[0].mxu0 %v5756
      %v6458 = vpop.f32.mrb[0].mxu0
      %v6459 = vadd.f32 %v5837, %v6458
      %v6460 = vpop.f32.mrb[0].mxu0
      %v6461 = vadd.f32 %v5841, %v6460
      %v6462 = vpop.f32.mrb[0].mxu0
      %v6463 = vadd.f32 %v5837, %v6462
      %v6464 = vpop.f32.mrb[0].mxu0
      %v6465 = vadd.f32 %v5841, %v6464
      %6466 = vmatprep.mubr.bf16.mxu0 %v5759
      %6467 = vmatmul.mubr.bf16.gmra.mrb[0].mxu0 %v5758
      %v6468 = vpop.f32.mrb[0].mxu0
      %v6469 = vadd.f32 %v5837, %v6468
      %v6470 = vpop.f32.mrb[0].mxu0
      %v6471 = vadd.f32 %v5841, %v6470
      %v6472 = vpop.f32.mrb[0].mxu0
      %v6473 = vadd.f32 %v5837, %v6472
      %v6474 = vpop.f32.mrb[0].mxu0
      %v6475 = vadd.f32 %v5841, %v6474
      %6476 = vmatprep.mubr.bf16.mxu0 %v5761
      %6477 = vmatmul.mubr.bf16.gmra.mrb[0].mxu0 %v5760
      %v6478 = vpop.f32.mrb[0].mxu0
      %v6479 = vadd.f32 %v5837, %v6478
      %v6480 = vpop.f32.mrb[0].mxu0
      %v6481 = vadd.f32 %v5841, %v6480
      %v6482 = vpop.f32.mrb[0].mxu0
      %v6483 = vadd.f32 %v5837, %v6482
      %v6484 = vpop.f32.mrb[0].mxu0
      %v6485 = vadd.f32 %v5841, %v6484
      %6486 = vmatprep.mubr.bf16.mxu0 %v5763
      %6487 = vmatmul.mubr.bf16.gmra.mrb[0].mxu0 %v5762
      %v6488 = vpop.f32.mrb[0].mxu0
      %v6489 = vadd.f32 %v5837, %v6488
      %v6490 = vpop.f32.mrb[0].mxu0
      %v6491 = vadd.f32 %v5841, %v6490
      %v6492 = vpop.f32.mrb[0].mxu0
      %v6493 = vadd.f32 %v5837, %v6492
      %v6494 = vpop.f32.mrb[0].mxu0
      %v6495 = vadd.f32 %v5841, %v6494
      %6496 = vmatprep.mubr.bf16.mxu0 %v5765
      %6497 = vmatmul.mubr.bf16.gmra.mrb[0].mxu0 %v5764
      %v6498 = vpop.f32.mrb[0].mxu0
      %v6499 = vadd.f32 %v5837, %v6498
      %v6500 = vpop.f32.mrb[0].mxu0
      %v6501 = vadd.f32 %v5841, %v6500
      %v6502 = vpop.f32.mrb[0].mxu0
      %v6503 = vadd.f32 %v5837, %v6502
      %v6504 = vpop.f32.mrb[0].mxu0
      %v6505 = vadd.f32 %v5841, %v6504
      %6506 = vmatprep.mubr.bf16.mxu0 %v5767
      %6507 = vmatmul.mubr.bf16.gmra.mrb[0].mxu0 %v5766
      %v6508 = vpop.f32.mrb[0].mxu0
      %v6509 = vadd.f32 %v5837, %v6508
      %v6510 = vpop.f32.mrb[0].mxu0
      %v6511 = vadd.f32 %v5841, %v6510
      %v6512 = vpop.f32.mrb[0].mxu0
      %v6513 = vadd.f32 %v5837, %v6512
      %v6514 = vpop.f32.mrb[0].mxu0
      %v6515 = vadd.f32 %v5841, %v6514
      %6516 = vmatprep.mubr.bf16.mxu0 %v5769
      %6517 = vmatmul.mubr.bf16.gmra.mrb[0].mxu0 %v5768
      %v6518 = vpop.f32.mrb[0].mxu0
      %v6519 = vadd.f32 %v5837, %v6518
      %v6520 = vpop.f32.mrb[0].mxu0
      %v6521 = vadd.f32 %v5841, %v6520
      %v6522 = vpop.f32.mrb[0].mxu0
      %v6523 = vadd.f32 %v5837, %v6522
      %v6524 = vpop.f32.mrb[0].mxu0
      %v6525 = vadd.f32 %v5841, %v6524
      %6526 = vmatprep.mubr.bf16.mxu0 %v5771
      %6527 = vmatmul.mubr.bf16.gmra.mrb[0].mxu0 %v5770
      %v6528 = vpop.f32.mrb[0].mxu0
      %v6529 = vadd.f32 %v5837, %v6528
      %v6530 = vpop.f32.mrb[0].mxu0
      %v6531 = vadd.f32 %v5841, %v6530
      %v6532 = vpop.f32.mrb[0].mxu0
      %v6533 = vadd.f32 %v5837, %v6532
      %v6534 = vpop.f32.mrb[0].mxu0
      %v6535 = vadd.f32 %v5841, %v6534
      %6536 = vmatprep.mubr.bf16.mxu0 %v5773
      %6537 = vmatmul.mubr.bf16.gmra.mrb[0].mxu0 %v5772
      %v6538 = vpop.f32.mrb[0].mxu0
      %v6539 = vadd.f32 %v5837, %v6538
      %v6540 = vpop.f32.mrb[0].mxu0
      %v6541 = vadd.f32 %v5841, %v6540
      %v6542 = vpop.f32.mrb[0].mxu0
      %v6543 = vadd.f32 %v5837, %v6542
      %v6544 = vpop.f32.mrb[0].mxu0
      %v6545 = vadd.f32 %v5841, %v6544
      %6546 = vmatprep.mubr.bf16.mxu0 %v5775
      %6547 = vmatmul.mubr.bf16.gmra.mrb[0].mxu0 %v5774
      %v6548 = vpop.f32.mrb[0].mxu0
      %v6549 = vadd.f32 %v5837, %v6548
      %v6550 = vpop.f32.mrb[0].mxu0
      %v6551 = vadd.f32 %v5841, %v6550
      %v6552 = vpop.f32.mrb[0].mxu0
      %v6553 = vadd.f32 %v5837, %v6552
      %v6554 = vpop.f32.mrb[0].mxu0
      %v6555 = vadd.f32 %v5841, %v6554
      %6556 = vmatprep.mubr.bf16.mxu0 %v5777
      %6557 = vmatmul.mubr.bf16.gmra.mrb[0].mxu0 %v5776
      %v6558 = vpop.f32.mrb[0].mxu0
      %v6559 = vadd.f32 %v5837, %v6558
      %v6560 = vpop.f32.mrb[0].mxu0
      %v6561 = vadd.f32 %v5841, %v6560
      %v6562 = vpop.f32.mrb[0].mxu0
      %v6563 = vadd.f32 %v5837, %v6562
      %v6564 = vpop.f32.mrb[0].mxu0
      %v6565 = vadd.f32 %v5841, %v6564
      %6566 = vmatprep.mubr.bf16.mxu0 %v5779
      %6567 = vmatmul.mubr.bf16.gmra.mrb[0].mxu0 %v5778
      %v6568 = vpop.f32.mrb[0].mxu0
      %v6569 = vadd.f32 %v5837, %v6568
      %v6570 = vpop.f32.mrb[0].mxu0
      %v6571 = vadd.f32 %v5841, %v6570
      %v6572 = vpop.f32.mrb[0].mxu0
      %v6573 = vadd.f32 %v5837, %v6572
      %v6574 = vpop.f32.mrb[0].mxu0
      %v6575 = vadd.f32 %v5841, %v6574
      %6576 = vmatprep.mubr.bf16.mxu0 %v5781
      %6577 = vmatmul.mubr.bf16.gmra.mrb[0].mxu0 %v5780
      %v6578 = vpop.f32.mrb[0].mxu0
      %v6579 = vadd.f32 %v5837, %v6578
      %v6580 = vpop.f32.mrb[0].mxu0
      %v6581 = vadd.f32 %v5841, %v6580
      %v6582 = vpop.f32.mrb[0].mxu0
      %v6583 = vadd.f32 %v5837, %v6582
      %v6584 = vpop.f32.mrb[0].mxu0
      %v6585 = vadd.f32 %v5841, %v6584
      %6586 = vmatprep.mubr.bf16.mxu0 %v5783
      %6587 = vmatmul.mubr.bf16.gmra.mrb[0].mxu0 %v5782
      %v6588 = vpop.f32.mrb[0].mxu0
      %v6589 = vadd.f32 %v5837, %v6588
      %v6590 = vpop.f32.mrb[0].mxu0
      %v6591 = vadd.f32 %v5841, %v6590
      %v6592 = vpop.f32.mrb[0].mxu0
      %v6593 = vadd.f32 %v5837, %v6592
      %v6594 = vpop.f32.mrb[0].mxu0
      %v6595 = vadd.f32 %v5841, %v6594
      %6596 = vmatprep.mubr.bf16.mxu0 %v5785
      %6597 = vmatmul.mubr.bf16.gmra.mrb[0].mxu0 %v5784
      %v6598 = vpop.f32.mrb[0].mxu0
      %v6599 = vadd.f32 %v5837, %v6598
      %v6600 = vpop.f32.mrb[0].mxu0
      %v6601 = vadd.f32 %v5841, %v6600
      %v6602 = vpop.f32.mrb[0].mxu0
      %v6603 = vadd.f32 %v5837, %v6602
      %v6604 = vpop.f32.mrb[0].mxu0
      %v6605 = vadd.f32 %v5841, %v6604
      %6606 = vmatprep.mubr.bf16.mxu0 %v5787
      %6607 = vmatmul.mubr.bf16.gmra.mrb[0].mxu0 %v5786
      %v6608 = vpop.f32.mrb[0].mxu0
      %v6609 = vadd.f32 %v5837, %v6608
      %v6610 = vpop.f32.mrb[0].mxu0
      %v6611 = vadd.f32 %v5841, %v6610
      %v6612 = vpop.f32.mrb[0].mxu0
      %v6613 = vadd.f32 %v5837, %v6612
      %v6614 = vpop.f32.mrb[0].mxu0
      %v6615 = vadd.f32 %v5841, %v6614
      %6616 = vmatprep.mubr.bf16.mxu0 %v5789
      %6617 = vmatmul.mubr.bf16.gmra.mrb[0].mxu0 %v5788
      %v6618 = vpop.f32.mrb[0].mxu0
      %v6619 = vadd.f32 %v5837, %v6618
      %v6620 = vpop.f32.mrb[0].mxu0
      %v6621 = vadd.f32 %v5841, %v6620
      %v6622 = vpop.f32.mrb[0].mxu0
      %v6623 = vadd.f32 %v5837, %v6622
      %v6624 = vpop.f32.mrb[0].mxu0
      %v6625 = vadd.f32 %v5841, %v6624
      %6626 = vmatprep.mubr.bf16.mxu0 %v5791
      %6627 = vmatmul.mubr.bf16.gmra.mrb[0].mxu0 %v5790
      %v6628 = vpop.f32.mrb[0].mxu0
      %v6629 = vadd.f32 %v5837, %v6628
      %v6630 = vpop.f32.mrb[0].mxu0
      %v6631 = vadd.f32 %v5841, %v6630
      %v6632 = vpop.f32.mrb[0].mxu0
      %v6633 = vadd.f32 %v5837, %v6632
      %v6634 = vpop.f32.mrb[0].mxu0
      %v6635 = vadd.f32 %v5841, %v6634
      %6636 = vmatprep.mubr.bf16.mxu0 %v5793
      %6637 = vmatmul.mubr.bf16.gmra.mrb[0].mxu0 %v5792
      %v6638 = vpop.f32.mrb[0].mxu0
      %v6639 = vadd.f32 %v5837, %v6638
      %v6640 = vpop.f32.mrb[0].mxu0
      %v6641 = vadd.f32 %v5841, %v6640
      %v6642 = vpop.f32.mrb[0].mxu0
      %v6643 = vadd.f32 %v5837, %v6642
      %v6644 = vpop.f32.mrb[0].mxu0
      %v6645 = vadd.f32 %v5841, %v6644
      %6646 = vmatprep.mubr.bf16.mxu0 %v5795
      %6647 = vmatmul.mubr.bf16.gmra.mrb[0].mxu0 %v5794
      %v6648 = vpop.f32.mrb[0].mxu0
      %v6649 = vadd.f32 %v5837, %v6648
      %v6650 = vpop.f32.mrb[0].mxu0
      %v6651 = vadd.f32 %v5841, %v6650
      %v6652 = vpop.f32.mrb[0].mxu0
      %v6653 = vadd.f32 %v5837, %v6652
      %v6654 = vpop.f32.mrb[0].mxu0
      %v6655 = vadd.f32 %v5841, %v6654
      %6656 = vmatprep.mubr.bf16.mxu0 %v5797
      %6657 = vmatmul.mubr.bf16.gmra.mrb[0].mxu0 %v5796
      %v6658 = vpop.f32.mrb[0].mxu0
      %v6659 = vadd.f32 %v5837, %v6658
      %v6660 = vpop.f32.mrb[0].mxu0
      %v6661 = vadd.f32 %v5841, %v6660
      %v6662 = vpop.f32.mrb[0].mxu0
      %v6663 = vadd.f32 %v5837, %v6662
      %v6664 = vpop.f32.mrb[0].mxu0
      %v6665 = vadd.f32 %v5841, %v6664
      %6666 = vmatprep.mubr.bf16.mxu0 %v5799
      %6667 = vmatmul.mubr.bf16.gmra.mrb[0].mxu0 %v5798
      %v6668 = vpop.f32.mrb[0].mxu0
      %v6669 = vadd.f32 %v5837, %v6668
      %v6670 = vpop.f32.mrb[0].mxu0
      %v6671 = vadd.f32 %v5841, %v6670
      %v6672 = vpop.f32.mrb[0].mxu0
      %v6673 = vadd.f32 %v5837, %v6672
      %v6674 = vpop.f32.mrb[0].mxu0
      %v6675 = vadd.f32 %v5841, %v6674
      %6676 = vdwg.mxu0
      %v6677 = vmax.f32 %v6039, 0.0
      %v6678 = vmax.f32 %v6041, 0.0
      %v6679 = vmax.f32 %v6043, 0.0
      %v6680 = vmax.f32 %v6045, 0.0
      %v6681 = vmax.f32 %v6049, 0.0
      %v6682 = vmax.f32 %v6051, 0.0
      %v6683 = vmax.f32 %v6053, 0.0
      %v6684 = vmax.f32 %v6055, 0.0
      %v6685 = vmax.f32 %v6059, 0.0
      %v6686 = vmax.f32 %v6061, 0.0
      %v6687 = vmax.f32 %v6063, 0.0
      %v6688 = vmax.f32 %v6065, 0.0
      %v6689 = vmax.f32 %v6069, 0.0
      %v6690 = vmax.f32 %v6071, 0.0
      %v6691 = vmax.f32 %v6073, 0.0
      %v6692 = vmax.f32 %v6075, 0.0
      %v6693 = vmax.f32 %v6079, 0.0
      %v6694 = vmax.f32 %v6081, 0.0
      %v6695 = vmax.f32 %v6083, 0.0
      %v6696 = vmax.f32 %v6085, 0.0
      %v6697 = vmax.f32 %v6089, 0.0
      %v6698 = vmax.f32 %v6091, 0.0
      %v6699 = vmax.f32 %v6093, 0.0
      %v6700 = vmax.f32 %v6095, 0.0
      %v6701 = vmax.f32 %v6099, 0.0
      %v6702 = vmax.f32 %v6101, 0.0
      %v6703 = vmax.f32 %v6103, 0.0
      %v6704 = vmax.f32 %v6105, 0.0
      %v6705 = vmax.f32 %v6109, 0.0
      %v6706 = vmax.f32 %v6111, 0.0
      %v6707 = vmax.f32 %v6113, 0.0
      %v6708 = vmax.f32 %v6115, 0.0
      %v6709 = vmax.f32 %v6119, 0.0
      %v6710 = vmax.f32 %v6121, 0.0
      %v6711 = vmax.f32 %v6123, 0.0
      %v6712 = vmax.f32 %v6125, 0.0
      %v6713 = vmax.f32 %v6129, 0.0
      %v6714 = vmax.f32 %v6131, 0.0
      %v6715 = vmax.f32 %v6133, 0.0
      %v6716 = vmax.f32 %v6135, 0.0
      %v6717 = vmax.f32 %v6139, 0.0
      %v6718 = vmax.f32 %v6141, 0.0
      %v6719 = vmax.f32 %v6143, 0.0
      %v6720 = vmax.f32 %v6145, 0.0
      %v6721 = vmax.f32 %v6149, 0.0
      %v6722 = vmax.f32 %v6151, 0.0
      %v6723 = vmax.f32 %v6153, 0.0
      %v6724 = vmax.f32 %v6155, 0.0
      %v6725 = vmax.f32 %v6159, 0.0
      %v6726 = vmax.f32 %v6161, 0.0
      %v6727 = vmax.f32 %v6163, 0.0
      %v6728 = vmax.f32 %v6165, 0.0
      %v6729 = vmax.f32 %v6169, 0.0
      %v6730 = vmax.f32 %v6171, 0.0
      %v6731 = vmax.f32 %v6173, 0.0
      %v6732 = vmax.f32 %v6175, 0.0
      %v6733 = vmax.f32 %v6179, 0.0
      %v6734 = vmax.f32 %v6181, 0.0
      %v6735 = vmax.f32 %v6183, 0.0
      %v6736 = vmax.f32 %v6185, 0.0
      %v6737 = vmax.f32 %v6189, 0.0
      %v6738 = vmax.f32 %v6191, 0.0
      %v6739 = vmax.f32 %v6193, 0.0
      %v6740 = vmax.f32 %v6195, 0.0
      %v6741 = vmax.f32 %v6199, 0.0
      %v6742 = vmax.f32 %v6201, 0.0
      %v6743 = vmax.f32 %v6203, 0.0
      %v6744 = vmax.f32 %v6205, 0.0
      %v6745 = vmax.f32 %v6209, 0.0
      %v6746 = vmax.f32 %v6211, 0.0
      %v6747 = vmax.f32 %v6213, 0.0
      %v6748 = vmax.f32 %v6215, 0.0
      %v6749 = vmax.f32 %v6219, 0.0
      %v6750 = vmax.f32 %v6221, 0.0
      %v6751 = vmax.f32 %v6223, 0.0
      %v6752 = vmax.f32 %v6225, 0.0
      %v6753 = vmax.f32 %v6229, 0.0
      %v6754 = vmax.f32 %v6231, 0.0
      %v6755 = vmax.f32 %v6233, 0.0
      %v6756 = vmax.f32 %v6235, 0.0
      %v6757 = vmax.f32 %v6239, 0.0
      %v6758 = vmax.f32 %v6241, 0.0
      %v6759 = vmax.f32 %v6243, 0.0
      %v6760 = vmax.f32 %v6245, 0.0
      %v6761 = vmax.f32 %v6249, 0.0
      %v6762 = vmax.f32 %v6251, 0.0
      %v6763 = vmax.f32 %v6253, 0.0
      %v6764 = vmax.f32 %v6255, 0.0
      %v6765 = vmax.f32 %v6259, 0.0
      %v6766 = vmax.f32 %v6261, 0.0
      %v6767 = vmax.f32 %v6263, 0.0
      %v6768 = vmax.f32 %v6265, 0.0
      %v6769 = vmax.f32 %v6269, 0.0
      %v6770 = vmax.f32 %v6271, 0.0
      %v6771 = vmax.f32 %v6273, 0.0
      %v6772 = vmax.f32 %v6275, 0.0
      %v6773 = vmax.f32 %v6279, 0.0
      %v6774 = vmax.f32 %v6281, 0.0
      %v6775 = vmax.f32 %v6283, 0.0
      %v6776 = vmax.f32 %v6285, 0.0
      %v6777 = vmax.f32 %v6289, 0.0
      %v6778 = vmax.f32 %v6291, 0.0
      %v6779 = vmax.f32 %v6293, 0.0
      %v6780 = vmax.f32 %v6295, 0.0
      %v6781 = vmax.f32 %v6299, 0.0
      %v6782 = vmax.f32 %v6301, 0.0
      %v6783 = vmax.f32 %v6303, 0.0
      %v6784 = vmax.f32 %v6305, 0.0
      %v6785 = vmax.f32 %v6309, 0.0
      %v6786 = vmax.f32 %v6311, 0.0
      %v6787 = vmax.f32 %v6313, 0.0
      %v6788 = vmax.f32 %v6315, 0.0
      %v6789 = vmax.f32 %v6319, 0.0
      %v6790 = vmax.f32 %v6321, 0.0
      %v6791 = vmax.f32 %v6323, 0.0
      %v6792 = vmax.f32 %v6325, 0.0
      %v6793 = vmax.f32 %v6329, 0.0
      %v6794 = vmax.f32 %v6331, 0.0
      %v6795 = vmax.f32 %v6333, 0.0
      %v6796 = vmax.f32 %v6335, 0.0
      %v6797 = vmax.f32 %v6339, 0.0
      %v6798 = vmax.f32 %v6341, 0.0
      %v6799 = vmax.f32 %v6343, 0.0
      %v6800 = vmax.f32 %v6345, 0.0
      %v6801 = vmax.f32 %v6349, 0.0
      %v6802 = vmax.f32 %v6351, 0.0
      %v6803 = vmax.f32 %v6353, 0.0
      %v6804 = vmax.f32 %v6355, 0.0
      %v6805 = vmax.f32 %v6359, 0.0
      %v6806 = vmax.f32 %v6361, 0.0
      %v6807 = vmax.f32 %v6363, 0.0
      %v6808 = vmax.f32 %v6365, 0.0
      %v6809 = vmax.f32 %v6369, 0.0
      %v6810 = vmax.f32 %v6371, 0.0
      %v6811 = vmax.f32 %v6373, 0.0
      %v6812 = vmax.f32 %v6375, 0.0
      %v6813 = vmax.f32 %v6379, 0.0
      %v6814 = vmax.f32 %v6381, 0.0
      %v6815 = vmax.f32 %v6383, 0.0
      %v6816 = vmax.f32 %v6385, 0.0
      %v6817 = vmax.f32 %v6389, 0.0
      %v6818 = vmax.f32 %v6391, 0.0
      %v6819 = vmax.f32 %v6393, 0.0
      %v6820 = vmax.f32 %v6395, 0.0
      %v6821 = vmax.f32 %v6399, 0.0
      %v6822 = vmax.f32 %v6401, 0.0
      %v6823 = vmax.f32 %v6403, 0.0
      %v6824 = vmax.f32 %v6405, 0.0
      %v6825 = vmax.f32 %v6409, 0.0
      %v6826 = vmax.f32 %v6411, 0.0
      %v6827 = vmax.f32 %v6413, 0.0
      %v6828 = vmax.f32 %v6415, 0.0
      %v6829 = vmax.f32 %v6419, 0.0
      %v6830 = vmax.f32 %v6421, 0.0
      %v6831 = vmax.f32 %v6423, 0.0
      %v6832 = vmax.f32 %v6425, 0.0
      %v6833 = vmax.f32 %v6429, 0.0
      %v6834 = vmax.f32 %v6431, 0.0
      %v6835 = vmax.f32 %v6433, 0.0
      %v6836 = vmax.f32 %v6435, 0.0
      %v6837 = vmax.f32 %v6439, 0.0
      %v6838 = vmax.f32 %v6441, 0.0
      %v6839 = vmax.f32 %v6443, 0.0
      %v6840 = vmax.f32 %v6445, 0.0
      %v6841 = vmax.f32 %v6449, 0.0
      %v6842 = vmax.f32 %v6451, 0.0
      %v6843 = vmax.f32 %v6453, 0.0
      %v6844 = vmax.f32 %v6455, 0.0
      %v6845 = vmax.f32 %v6459, 0.0
      %v6846 = vmax.f32 %v6461, 0.0
      %v6847 = vmax.f32 %v6463, 0.0
      %v6848 = vmax.f32 %v6465, 0.0
      %v6849 = vmax.f32 %v6469, 0.0
      %v6850 = vmax.f32 %v6471, 0.0
      %v6851 = vmax.f32 %v6473, 0.0
      %v6852 = vmax.f32 %v6475, 0.0
      %v6853 = vmax.f32 %v6479, 0.0
      %v6854 = vmax.f32 %v6481, 0.0
      %v6855 = vmax.f32 %v6483, 0.0
      %v6856 = vmax.f32 %v6485, 0.0
      %v6857 = vmax.f32 %v6489, 0.0
      %v6858 = vmax.f32 %v6491, 0.0
      %v6859 = vmax.f32 %v6493, 0.0
      %v6860 = vmax.f32 %v6495, 0.0
      %v6861 = vmax.f32 %v6499, 0.0
      %v6862 = vmax.f32 %v6501, 0.0
      %v6863 = vmax.f32 %v6503, 0.0
      %v6864 = vmax.f32 %v6505, 0.0
      %v6865 = vmax.f32 %v6509, 0.0
      %v6866 = vmax.f32 %v6511, 0.0
      %v6867 = vmax.f32 %v6513, 0.0
      %v6868 = vmax.f32 %v6515, 0.0
      %v6869 = vmax.f32 %v6519, 0.0
      %v6870 = vmax.f32 %v6521, 0.0
      %v6871 = vmax.f32 %v6523, 0.0
      %v6872 = vmax.f32 %v6525, 0.0
      %v6873 = vmax.f32 %v6529, 0.0
      %v6874 = vmax.f32 %v6531, 0.0
      %v6875 = vmax.f32 %v6533, 0.0
      %v6876 = vmax.f32 %v6535, 0.0
      %v6877 = vmax.f32 %v6539, 0.0
      %v6878 = vmax.f32 %v6541, 0.0
      %v6879 = vmax.f32 %v6543, 0.0
      %v6880 = vmax.f32 %v6545, 0.0
      %v6881 = vmax.f32 %v6549, 0.0
      %v6882 = vmax.f32 %v6551, 0.0
      %v6883 = vmax.f32 %v6553, 0.0
      %v6884 = vmax.f32 %v6555, 0.0
      %v6885 = vmax.f32 %v6559, 0.0
      %v6886 = vmax.f32 %v6561, 0.0
      %v6887 = vmax.f32 %v6563, 0.0
      %v6888 = vmax.f32 %v6565, 0.0
      %v6889 = vmax.f32 %v6569, 0.0
      %v6890 = vmax.f32 %v6571, 0.0
      %v6891 = vmax.f32 %v6573, 0.0
      %v6892 = vmax.f32 %v6575, 0.0
      %v6893 = vmax.f32 %v6579, 0.0
      %v6894 = vmax.f32 %v6581, 0.0
      %v6895 = vmax.f32 %v6583, 0.0
      %v6896 = vmax.f32 %v6585, 0.0
      %v6897 = vmax.f32 %v6589, 0.0
      %v6898 = vmax.f32 %v6591, 0.0
      %v6899 = vmax.f32 %v6593, 0.0
      %v6900 = vmax.f32 %v6595, 0.0
      %v6901 = vmax.f32 %v6599, 0.0
      %v6902 = vmax.f32 %v6601, 0.0
      %v6903 = vmax.f32 %v6603, 0.0
      %v6904 = vmax.f32 %v6605, 0.0
      %v6905 = vmax.f32 %v6609, 0.0
      %v6906 = vmax.f32 %v6611, 0.0
      %v6907 = vmax.f32 %v6613, 0.0
      %v6908 = vmax.f32 %v6615, 0.0
      %v6909 = vmax.f32 %v6619, 0.0
      %v6910 = vmax.f32 %v6621, 0.0
      %v6911 = vmax.f32 %v6623, 0.0
      %v6912 = vmax.f32 %v6625, 0.0
      %v6913 = vmax.f32 %v6629, 0.0
      %v6914 = vmax.f32 %v6631, 0.0
      %v6915 = vmax.f32 %v6633, 0.0
      %v6916 = vmax.f32 %v6635, 0.0
      %v6917 = vmax.f32 %v6639, 0.0
      %v6918 = vmax.f32 %v6641, 0.0
      %v6919 = vmax.f32 %v6643, 0.0
      %v6920 = vmax.f32 %v6645, 0.0
      %v6921 = vmax.f32 %v6649, 0.0
      %v6922 = vmax.f32 %v6651, 0.0
      %v6923 = vmax.f32 %v6653, 0.0
      %v6924 = vmax.f32 %v6655, 0.0
      %v6925 = vmax.f32 %v6659, 0.0
      %v6926 = vmax.f32 %v6661, 0.0
      %v6927 = vmax.f32 %v6663, 0.0
      %v6928 = vmax.f32 %v6665, 0.0
      %v6929 = vmax.f32 %v6669, 0.0
      %v6930 = vmax.f32 %v6671, 0.0
      %v6931 = vmax.f32 %v6673, 0.0
      %v6932 = vmax.f32 %v6675, 0.0
      %v6933 = vpack.c.bf16 %v6679, %v6677
      %v6934 = vpack.c.bf16 %v6680, %v6678
      %v6935 = vpack.c.bf16 %v6683, %v6681
      %v6936 = vpack.c.bf16 %v6684, %v6682
      %v6937 = vpack.c.bf16 %v6687, %v6685
      %v6938 = vpack.c.bf16 %v6688, %v6686
      %v6939 = vpack.c.bf16 %v6691, %v6689
      %v6940 = vpack.c.bf16 %v6692, %v6690
      %v6941 = vpack.c.bf16 %v6695, %v6693
      %v6942 = vpack.c.bf16 %v6696, %v6694
      %v6943 = vpack.c.bf16 %v6699, %v6697
      %v6944 = vpack.c.bf16 %v6700, %v6698
      %v6945 = vpack.c.bf16 %v6703, %v6701
      %v6946 = vpack.c.bf16 %v6704, %v6702
      %v6947 = vpack.c.bf16 %v6707, %v6705
      %v6948 = vpack.c.bf16 %v6708, %v6706
      %v6949 = vpack.c.bf16 %v6711, %v6709
      %v6950 = vpack.c.bf16 %v6712, %v6710
      %v6951 = vpack.c.bf16 %v6715, %v6713
      %v6952 = vpack.c.bf16 %v6716, %v6714
      %v6953 = vpack.c.bf16 %v6719, %v6717
      %v6954 = vpack.c.bf16 %v6720, %v6718
      %v6955 = vpack.c.bf16 %v6723, %v6721
      %v6956 = vpack.c.bf16 %v6724, %v6722
      %v6957 = vpack.c.bf16 %v6727, %v6725
      %v6958 = vpack.c.bf16 %v6728, %v6726
      %v6959 = vpack.c.bf16 %v6731, %v6729
      %v6960 = vpack.c.bf16 %v6732, %v6730
      %v6961 = vpack.c.bf16 %v6735, %v6733
      %v6962 = vpack.c.bf16 %v6736, %v6734
      %v6963 = vpack.c.bf16 %v6739, %v6737
      %v6964 = vpack.c.bf16 %v6740, %v6738
      %v6965 = vpack.c.bf16 %v6743, %v6741
      %v6966 = vpack.c.bf16 %v6744, %v6742
      %v6967 = vpack.c.bf16 %v6747, %v6745
      %v6968 = vpack.c.bf16 %v6748, %v6746
      %v6969 = vpack.c.bf16 %v6751, %v6749
      %v6970 = vpack.c.bf16 %v6752, %v6750
      %v6971 = vpack.c.bf16 %v6755, %v6753
      %v6972 = vpack.c.bf16 %v6756, %v6754
      %v6973 = vpack.c.bf16 %v6759, %v6757
      %v6974 = vpack.c.bf16 %v6760, %v6758
      %v6975 = vpack.c.bf16 %v6763, %v6761
      %v6976 = vpack.c.bf16 %v6764, %v6762
      %v6977 = vpack.c.bf16 %v6767, %v6765
      %v6978 = vpack.c.bf16 %v6768, %v6766
      %v6979 = vpack.c.bf16 %v6771, %v6769
      %v6980 = vpack.c.bf16 %v6772, %v6770
      %v6981 = vpack.c.bf16 %v6775, %v6773
      %v6982 = vpack.c.bf16 %v6776, %v6774
      %v6983 = vpack.c.bf16 %v6779, %v6777
      %v6984 = vpack.c.bf16 %v6780, %v6778
      %v6985 = vpack.c.bf16 %v6783, %v6781
      %v6986 = vpack.c.bf16 %v6784, %v6782
      %v6987 = vpack.c.bf16 %v6787, %v6785
      %v6988 = vpack.c.bf16 %v6788, %v6786
      %v6989 = vpack.c.bf16 %v6791, %v6789
      %v6990 = vpack.c.bf16 %v6792, %v6790
      %v6991 = vpack.c.bf16 %v6795, %v6793
      %v6992 = vpack.c.bf16 %v6796, %v6794
      %v6993 = vpack.c.bf16 %v6799, %v6797
      %v6994 = vpack.c.bf16 %v6800, %v6798
      %v6995 = vpack.c.bf16 %v6803, %v6801
      %v6996 = vpack.c.bf16 %v6804, %v6802
      %v6997 = vpack.c.bf16 %v6807, %v6805
      %v6998 = vpack.c.bf16 %v6808, %v6806
      %v6999 = vpack.c.bf16 %v6811, %v6809
      %v7000 = vpack.c.bf16 %v6812, %v6810
      %v7001 = vpack.c.bf16 %v6815, %v6813
      %v7002 = vpack.c.bf16 %v6816, %v6814
      %v7003 = vpack.c.bf16 %v6819, %v6817
      %v7004 = vpack.c.bf16 %v6820, %v6818
      %v7005 = vpack.c.bf16 %v6823, %v6821
      %v7006 = vpack.c.bf16 %v6824, %v6822
      %v7007 = vpack.c.bf16 %v6827, %v6825
      %v7008 = vpack.c.bf16 %v6828, %v6826
      %v7009 = vpack.c.bf16 %v6831, %v6829
      %v7010 = vpack.c.bf16 %v6832, %v6830
      %v7011 = vpack.c.bf16 %v6835, %v6833
      %v7012 = vpack.c.bf16 %v6836, %v6834
      %v7013 = vpack.c.bf16 %v6839, %v6837
      %v7014 = vpack.c.bf16 %v6840, %v6838
      %v7015 = vpack.c.bf16 %v6843, %v6841
      %v7016 = vpack.c.bf16 %v6844, %v6842
      %v7017 = vpack.c.bf16 %v6847, %v6845
      %v7018 = vpack.c.bf16 %v6848, %v6846
      %v7019 = vpack.c.bf16 %v6851, %v6849
      %v7020 = vpack.c.bf16 %v6852, %v6850
      %v7021 = vpack.c.bf16 %v6855, %v6853
      %v7022 = vpack.c.bf16 %v6856, %v6854
      %v7023 = vpack.c.bf16 %v6859, %v6857
      %v7024 = vpack.c.bf16 %v6860, %v6858
      %v7025 = vpack.c.bf16 %v6863, %v6861
      %v7026 = vpack.c.bf16 %v6864, %v6862
      %v7027 = vpack.c.bf16 %v6867, %v6865
      %v7028 = vpack.c.bf16 %v6868, %v6866
      %v7029 = vpack.c.bf16 %v6871, %v6869
      %v7030 = vpack.c.bf16 %v6872, %v6870
      %v7031 = vpack.c.bf16 %v6875, %v6873
      %v7032 = vpack.c.bf16 %v6876, %v6874
      %v7033 = vpack.c.bf16 %v6879, %v6877
      %v7034 = vpack.c.bf16 %v6880, %v6878
      %v7035 = vpack.c.bf16 %v6883, %v6881
      %v7036 = vpack.c.bf16 %v6884, %v6882
      %v7037 = vpack.c.bf16 %v6887, %v6885
      %v7038 = vpack.c.bf16 %v6888, %v6886
      %v7039 = vpack.c.bf16 %v6891, %v6889
      %v7040 = vpack.c.bf16 %v6892, %v6890
      %v7041 = vpack.c.bf16 %v6895, %v6893
      %v7042 = vpack.c.bf16 %v6896, %v6894
      %v7043 = vpack.c.bf16 %v6899, %v6897
      %v7044 = vpack.c.bf16 %v6900, %v6898
      %v7045 = vpack.c.bf16 %v6903, %v6901
      %v7046 = vpack.c.bf16 %v6904, %v6902
      %v7047 = vpack.c.bf16 %v6907, %v6905
      %v7048 = vpack.c.bf16 %v6908, %v6906
      %v7049 = vpack.c.bf16 %v6911, %v6909
      %v7050 = vpack.c.bf16 %v6912, %v6910
      %v7051 = vpack.c.bf16 %v6915, %v6913
      %v7052 = vpack.c.bf16 %v6916, %v6914
      %v7053 = vpack.c.bf16 %v6919, %v6917
      %v7054 = vpack.c.bf16 %v6920, %v6918
      %v7055 = vpack.c.bf16 %v6923, %v6921
      %v7056 = vpack.c.bf16 %v6924, %v6922
      %v7057 = vpack.c.bf16 %v6927, %v6925
      %v7058 = vpack.c.bf16 %v6928, %v6926
      %v7059 = vpack.c.bf16 %v6931, %v6929
      %v7060 = vpack.c.bf16 %v6932, %v6930
      %v7061 = vld [vmem:[%s9] sm:$0xf]
      %v7062 = vld [vmem:[%s9 + $0x4] sm:$0xf]
      %v7063 = vld [vmem:[%s9 + $0x8] sm:$0xf]
      %v7064 = vld [vmem:[%s9 + $0xc] sm:$0xf]
      %v7065 = vld [vmem:[%s9 + $0x10] sm:$0xf]
      %v7066 = vld [vmem:[%s9 + $0x14] sm:$0xf]
      %v7067 = vld [vmem:[%s9 + $0x18] sm:$0xf]
      %v7068 = vld [vmem:[%s9 + $0x1c] sm:$0xf]
      %v7069 = vld [vmem:[%s9 + $0x20] sm:$0xf]
      %v7070 = vld [vmem:[%s9 + $0x24] sm:$0xf]
      %v7071 = vld [vmem:[%s9 + $0x28] sm:$0xf]
      %v7072 = vld [vmem:[%s9 + $0x2c] sm:$0xf]
      %v7073 = vld [vmem:[%s9 + $0x30] sm:$0xf]
      %v7074 = vld [vmem:[%s9 + $0x34] sm:$0xf]
      %v7075 = vld [vmem:[%s9 + $0x38] sm:$0xf]
      %v7076 = vld [vmem:[%s9 + $0x3c] sm:$0xf]
      %v7077 = vld [vmem:[%s9 + $0x40] sm:$0xf]
      %v7078 = vld [vmem:[%s9 + $0x44] sm:$0xf]
      %v7079 = vld [vmem:[%s9 + $0x48] sm:$0xf]
      %v7080 = vld [vmem:[%s9 + $0x4c] sm:$0xf]
      %v7081 = vld [vmem:[%s9 + $0x50] sm:$0xf]
      %v7082 = vld [vmem:[%s9 + $0x54] sm:$0xf]
      %v7083 = vld [vmem:[%s9 + $0x58] sm:$0xf]
      %v7084 = vld [vmem:[%s9 + $0x5c] sm:$0xf]
      %v7085 = vld [vmem:[%s9 + $0x60] sm:$0xf]
      %v7086 = vld [vmem:[%s9 + $0x64] sm:$0xf]
      %v7087 = vld [vmem:[%s9 + $0x68] sm:$0xf]
      %v7088 = vld [vmem:[%s9 + $0x6c] sm:$0xf]
      %v7089 = vld [vmem:[%s9 + $0x70] sm:$0xf]
      %v7090 = vld [vmem:[%s9 + $0x74] sm:$0xf]
      %v7091 = vld [vmem:[%s9 + $0x78] sm:$0xf]
      %v7092 = vld [vmem:[%s9 + $0x7c] sm:$0xf]
      %v7093 = vld [vmem:[%s533] sm:$0x1]
      %v7095 = vlaneseq
      %v7096 = vshrl.u32 %v7095, 7
      %v7097 = vsub.s32 0, %v7096
      %v7098 = vrot.slane %v7093, %v7097
      %v7132 = vunpack.c.l.b16 %v7061
      %v7133 = vunpack.c.l.b16 %v7062
      %v7134 = vunpack.c.l.b16 %v7063
      %v7135 = vunpack.c.l.b16 %v7064
      %v7136 = vunpack.c.l.b16 %v7065
      %v7137 = vunpack.c.l.b16 %v7066
      %v7138 = vunpack.c.l.b16 %v7067
      %v7139 = vunpack.c.l.b16 %v7068
      %v7140 = vunpack.c.l.b16 %v7069
      %v7141 = vunpack.c.l.b16 %v7070
      %v7142 = vunpack.c.l.b16 %v7071
      %v7143 = vunpack.c.l.b16 %v7072
      %v7144 = vunpack.c.l.b16 %v7073
      %v7145 = vunpack.c.l.b16 %v7074
      %v7146 = vunpack.c.l.b16 %v7075
      %v7147 = vunpack.c.l.b16 %v7076
      %v7148 = vunpack.c.l.b16 %v7077
      %v7149 = vunpack.c.l.b16 %v7078
      %v7150 = vunpack.c.l.b16 %v7079
      %v7151 = vunpack.c.l.b16 %v7080
      %v7152 = vunpack.c.l.b16 %v7081
      %v7153 = vunpack.c.l.b16 %v7082
      %v7154 = vunpack.c.l.b16 %v7083
      %v7155 = vunpack.c.l.b16 %v7084
      %v7156 = vunpack.c.l.b16 %v7085
      %v7157 = vunpack.c.l.b16 %v7086
      %v7158 = vunpack.c.l.b16 %v7087
      %v7159 = vunpack.c.l.b16 %v7088
      %v7160 = vunpack.c.l.b16 %v7089
      %v7161 = vunpack.c.l.b16 %v7090
      %v7162 = vunpack.c.l.b16 %v7091
      %v7163 = vunpack.c.l.b16 %v7092
      %v7164 = vpack.c.b16 %v7133, %v7132
      %v7165 = vpack.c.b16 %v7135, %v7134
      %v7166 = vpack.c.b16 %v7137, %v7136
      %v7167 = vpack.c.b16 %v7139, %v7138
      %v7168 = vpack.c.b16 %v7141, %v7140
      %v7169 = vpack.c.b16 %v7143, %v7142
      %v7170 = vpack.c.b16 %v7145, %v7144
      %v7171 = vpack.c.b16 %v7147, %v7146
      %v7172 = vpack.c.b16 %v7149, %v7148
      %v7173 = vpack.c.b16 %v7151, %v7150
      %v7174 = vpack.c.b16 %v7153, %v7152
      %v7175 = vpack.c.b16 %v7155, %v7154
      %v7176 = vpack.c.b16 %v7157, %v7156
      %v7177 = vpack.c.b16 %v7159, %v7158
      %v7178 = vpack.c.b16 %v7161, %v7160
      %v7179 = vpack.c.b16 %v7163, %v7162
      %7196 = vmatprep.subr.bf16.mxu0 0
      %7197 = vmatpush1.bf16.msra.mxu0 %v7164
      %7198 = vmatprep.subr.bf16.mxu0 0
      %7199 = vmatpush1.bf16.msra.mxu0 %v7165
      %7200 = vmatprep.subr.bf16.mxu0 0
      %7201 = vmatpush1.bf16.msra.mxu0 %v7166
      %7202 = vmatprep.subr.bf16.mxu0 0
      %7203 = vmatpush1.bf16.msra.mxu0 %v7167
      %7204 = vmatprep.subr.bf16.mxu0 0
      %7205 = vmatpush1.bf16.msra.mxu0 %v7168
      %7206 = vmatprep.subr.bf16.mxu0 0
      %7207 = vmatpush1.bf16.msra.mxu0 %v7169
      %7208 = vmatprep.subr.bf16.mxu0 0
      %7209 = vmatpush1.bf16.msra.mxu0 %v7170
      %7210 = vmatprep.subr.bf16.mxu0 0
      %7211 = vmatpush1.bf16.msra.mxu0 %v7171
      %7212 = vmatprep.subr.bf16.mxu0 0
      %7213 = vmatpush1.bf16.msra.mxu0 %v7172
      %7214 = vmatprep.subr.bf16.mxu0 0
      %7215 = vmatpush1.bf16.msra.mxu0 %v7173
      %7216 = vmatprep.subr.bf16.mxu0 0
      %7217 = vmatpush1.bf16.msra.mxu0 %v7174
      %7218 = vmatprep.subr.bf16.mxu0 0
      %7219 = vmatpush1.bf16.msra.mxu0 %v7175
      %7220 = vmatprep.subr.bf16.mxu0 0
      %7221 = vmatpush1.bf16.msra.mxu0 %v7176
      %7222 = vmatprep.subr.bf16.mxu0 0
      %7223 = vmatpush1.bf16.msra.mxu0 %v7177
      %7224 = vmatprep.subr.bf16.mxu0 0
      %7225 = vmatpush1.bf16.msra.mxu0 %v7178
      %7226 = vmatprep.subr.bf16.mxu0 0
      %7227 = vmatpush1.bf16.msra.mxu0 %v7179
      %7228 = vmatprep.mubr.bf16.mxu0 %v6934
      %7229 = vmatmul.mubr.bf16.gmra.mrb[0].mxu0 %v6933
      %v7230 = vpop.f32.mrb[0].mxu0
      %v7231 = vadd.f32 %v7098, %v7230
      %v7232 = vpop.f32.mrb[0].mxu0
      %v7233 = vpop.f32.mrb[0].mxu0
      %v7234 = vadd.f32 %v7098, %v7233
      %v7235 = vpop.f32.mrb[0].mxu0
      %7236 = vmatprep.mubr.bf16.mxu0 %v6936
      %7237 = vmatmul.mubr.bf16.gmra.mrb[0].mxu0 %v6935
      %v7238 = vpop.f32.mrb[0].mxu0
      %v7239 = vadd.f32 %v7098, %v7238
      %v7240 = vpop.f32.mrb[0].mxu0
      %v7241 = vpop.f32.mrb[0].mxu0
      %v7242 = vadd.f32 %v7098, %v7241
      %v7243 = vpop.f32.mrb[0].mxu0
      %7244 = vmatprep.mubr.bf16.mxu0 %v6938
      %7245 = vmatmul.mubr.bf16.gmra.mrb[0].mxu0 %v6937
      %v7246 = vpop.f32.mrb[0].mxu0
      %v7247 = vadd.f32 %v7098, %v7246
      %v7248 = vpop.f32.mrb[0].mxu0
      %v7249 = vpop.f32.mrb[0].mxu0
      %v7250 = vadd.f32 %v7098, %v7249
      %v7251 = vpop.f32.mrb[0].mxu0
      %7252 = vmatprep.mubr.bf16.mxu0 %v6940
      %7253 = vmatmul.mubr.bf16.gmra.mrb[0].mxu0 %v6939
      %v7254 = vpop.f32.mrb[0].mxu0
      %v7255 = vadd.f32 %v7098, %v7254
      %v7256 = vpop.f32.mrb[0].mxu0
      %v7257 = vpop.f32.mrb[0].mxu0
      %v7258 = vadd.f32 %v7098, %v7257
      %v7259 = vpop.f32.mrb[0].mxu0
      %7260 = vmatprep.mubr.bf16.mxu0 %v6942
      %7261 = vmatmul.mubr.bf16.gmra.mrb[0].mxu0 %v6941
      %v7262 = vpop.f32.mrb[0].mxu0
      %v7263 = vadd.f32 %v7098, %v7262
      %v7264 = vpop.f32.mrb[0].mxu0
      %v7265 = vpop.f32.mrb[0].mxu0
      %v7266 = vadd.f32 %v7098, %v7265
      %v7267 = vpop.f32.mrb[0].mxu0
      %7268 = vmatprep.mubr.bf16.mxu0 %v6944
      %7269 = vmatmul.mubr.bf16.gmra.mrb[0].mxu0 %v6943
      %v7270 = vpop.f32.mrb[0].mxu0
      %v7271 = vadd.f32 %v7098, %v7270
      %v7272 = vpop.f32.mrb[0].mxu0
      %v7273 = vpop.f32.mrb[0].mxu0
      %v7274 = vadd.f32 %v7098, %v7273
      %v7275 = vpop.f32.mrb[0].mxu0
      %7276 = vmatprep.mubr.bf16.mxu0 %v6946
      %7277 = vmatmul.mubr.bf16.gmra.mrb[0].mxu0 %v6945
      %v7278 = vpop.f32.mrb[0].mxu0
      %v7279 = vadd.f32 %v7098, %v7278
      %v7280 = vpop.f32.mrb[0].mxu0
      %v7281 = vpop.f32.mrb[0].mxu0
      %v7282 = vadd.f32 %v7098, %v7281
      %v7283 = vpop.f32.mrb[0].mxu0
      %7284 = vmatprep.mubr.bf16.mxu0 %v6948
      %7285 = vmatmul.mubr.bf16.gmra.mrb[0].mxu0 %v6947
      %v7286 = vpop.f32.mrb[0].mxu0
      %v7287 = vadd.f32 %v7098, %v7286
      %v7288 = vpop.f32.mrb[0].mxu0
      %v7289 = vpop.f32.mrb[0].mxu0
      %v7290 = vadd.f32 %v7098, %v7289
      %v7291 = vpop.f32.mrb[0].mxu0
      %7292 = vmatprep.mubr.bf16.mxu0 %v6950
      %7293 = vmatmul.mubr.bf16.gmra.mrb[0].mxu0 %v6949
      %v7294 = vpop.f32.mrb[0].mxu0
      %v7295 = vadd.f32 %v7098, %v7294
      %v7296 = vpop.f32.mrb[0].mxu0
      %v7297 = vpop.f32.mrb[0].mxu0
      %v7298 = vadd.f32 %v7098, %v7297
      %v7299 = vpop.f32.mrb[0].mxu0
      %7300 = vmatprep.mubr.bf16.mxu0 %v6952
      %7301 = vmatmul.mubr.bf16.gmra.mrb[0].mxu0 %v6951
      %v7302 = vpop.f32.mrb[0].mxu0
      %v7303 = vadd.f32 %v7098, %v7302
      %v7304 = vpop.f32.mrb[0].mxu0
      %v7305 = vpop.f32.mrb[0].mxu0
      %v7306 = vadd.f32 %v7098, %v7305
      %v7307 = vpop.f32.mrb[0].mxu0
      %7308 = vmatprep.mubr.bf16.mxu0 %v6954
      %7309 = vmatmul.mubr.bf16.gmra.mrb[0].mxu0 %v6953
      %v7310 = vpop.f32.mrb[0].mxu0
      %v7311 = vadd.f32 %v7098, %v7310
      %v7312 = vpop.f32.mrb[0].mxu0
      %v7313 = vpop.f32.mrb[0].mxu0
      %v7314 = vadd.f32 %v7098, %v7313
      %v7315 = vpop.f32.mrb[0].mxu0
      %7316 = vmatprep.mubr.bf16.mxu0 %v6956
      %7317 = vmatmul.mubr.bf16.gmra.mrb[0].mxu0 %v6955
      %v7318 = vpop.f32.mrb[0].mxu0
      %v7319 = vadd.f32 %v7098, %v7318
      %v7320 = vpop.f32.mrb[0].mxu0
      %v7321 = vpop.f32.mrb[0].mxu0
      %v7322 = vadd.f32 %v7098, %v7321
      %v7323 = vpop.f32.mrb[0].mxu0
      %7324 = vmatprep.mubr.bf16.mxu0 %v6958
      %7325 = vmatmul.mubr.bf16.gmra.mrb[0].mxu0 %v6957
      %v7326 = vpop.f32.mrb[0].mxu0
      %v7327 = vadd.f32 %v7098, %v7326
      %v7328 = vpop.f32.mrb[0].mxu0
      %v7329 = vpop.f32.mrb[0].mxu0
      %v7330 = vadd.f32 %v7098, %v7329
      %v7331 = vpop.f32.mrb[0].mxu0
      %7332 = vmatprep.mubr.bf16.mxu0 %v6960
      %7333 = vmatmul.mubr.bf16.gmra.mrb[0].mxu0 %v6959
      %v7334 = vpop.f32.mrb[0].mxu0
      %v7335 = vadd.f32 %v7098, %v7334
      %v7336 = vpop.f32.mrb[0].mxu0
      %v7337 = vpop.f32.mrb[0].mxu0
      %v7338 = vadd.f32 %v7098, %v7337
      %v7339 = vpop.f32.mrb[0].mxu0
      %7340 = vmatprep.mubr.bf16.mxu0 %v6962
      %7341 = vmatmul.mubr.bf16.gmra.mrb[0].mxu0 %v6961
      %v7342 = vpop.f32.mrb[0].mxu0
      %v7343 = vadd.f32 %v7098, %v7342
      %v7344 = vpop.f32.mrb[0].mxu0
      %v7345 = vpop.f32.mrb[0].mxu0
      %v7346 = vadd.f32 %v7098, %v7345
      %v7347 = vpop.f32.mrb[0].mxu0
      %7348 = vmatprep.mubr.bf16.mxu0 %v6964
      %7349 = vmatmul.mubr.bf16.gmra.mrb[0].mxu0 %v6963
      %v7350 = vpop.f32.mrb[0].mxu0
      %v7351 = vadd.f32 %v7098, %v7350
      %v7352 = vpop.f32.mrb[0].mxu0
      %v7353 = vpop.f32.mrb[0].mxu0
      %v7354 = vadd.f32 %v7098, %v7353
      %v7355 = vpop.f32.mrb[0].mxu0
      %7356 = vmatprep.mubr.bf16.mxu0 %v6966
      %7357 = vmatmul.mubr.bf16.gmra.mrb[0].mxu0 %v6965
      %v7358 = vpop.f32.mrb[0].mxu0
      %v7359 = vadd.f32 %v7098, %v7358
      %v7360 = vpop.f32.mrb[0].mxu0
      %v7361 = vpop.f32.mrb[0].mxu0
      %v7362 = vadd.f32 %v7098, %v7361
      %v7363 = vpop.f32.mrb[0].mxu0
      %7364 = vmatprep.mubr.bf16.mxu0 %v6968
      %7365 = vmatmul.mubr.bf16.gmra.mrb[0].mxu0 %v6967
      %v7366 = vpop.f32.mrb[0].mxu0
      %v7367 = vadd.f32 %v7098, %v7366
      %v7368 = vpop.f32.mrb[0].mxu0
      %v7369 = vpop.f32.mrb[0].mxu0
      %v7370 = vadd.f32 %v7098, %v7369
      %v7371 = vpop.f32.mrb[0].mxu0
      %7372 = vmatprep.mubr.bf16.mxu0 %v6970
      %7373 = vmatmul.mubr.bf16.gmra.mrb[0].mxu0 %v6969
      %v7374 = vpop.f32.mrb[0].mxu0
      %v7375 = vadd.f32 %v7098, %v7374
      %v7376 = vpop.f32.mrb[0].mxu0
      %v7377 = vpop.f32.mrb[0].mxu0
      %v7378 = vadd.f32 %v7098, %v7377
      %v7379 = vpop.f32.mrb[0].mxu0
      %7380 = vmatprep.mubr.bf16.mxu0 %v6972
      %7381 = vmatmul.mubr.bf16.gmra.mrb[0].mxu0 %v6971
      %v7382 = vpop.f32.mrb[0].mxu0
      %v7383 = vadd.f32 %v7098, %v7382
      %v7384 = vpop.f32.mrb[0].mxu0
      %v7385 = vpop.f32.mrb[0].mxu0
      %v7386 = vadd.f32 %v7098, %v7385
      %v7387 = vpop.f32.mrb[0].mxu0
      %7388 = vmatprep.mubr.bf16.mxu0 %v6974
      %7389 = vmatmul.mubr.bf16.gmra.mrb[0].mxu0 %v6973
      %v7390 = vpop.f32.mrb[0].mxu0
      %v7391 = vadd.f32 %v7098, %v7390
      %v7392 = vpop.f32.mrb[0].mxu0
      %v7393 = vpop.f32.mrb[0].mxu0
      %v7394 = vadd.f32 %v7098, %v7393
      %v7395 = vpop.f32.mrb[0].mxu0
      %7396 = vmatprep.mubr.bf16.mxu0 %v6976
      %7397 = vmatmul.mubr.bf16.gmra.mrb[0].mxu0 %v6975
      %v7398 = vpop.f32.mrb[0].mxu0
      %v7399 = vadd.f32 %v7098, %v7398
      %v7400 = vpop.f32.mrb[0].mxu0
      %v7401 = vpop.f32.mrb[0].mxu0
      %v7402 = vadd.f32 %v7098, %v7401
      %v7403 = vpop.f32.mrb[0].mxu0
      %7404 = vmatprep.mubr.bf16.mxu0 %v6978
      %7405 = vmatmul.mubr.bf16.gmra.mrb[0].mxu0 %v6977
      %v7406 = vpop.f32.mrb[0].mxu0
      %v7407 = vadd.f32 %v7098, %v7406
      %v7408 = vpop.f32.mrb[0].mxu0
      %v7409 = vpop.f32.mrb[0].mxu0
      %v7410 = vadd.f32 %v7098, %v7409
      %v7411 = vpop.f32.mrb[0].mxu0
      %7412 = vmatprep.mubr.bf16.mxu0 %v6980
      %7413 = vmatmul.mubr.bf16.gmra.mrb[0].mxu0 %v6979
      %v7414 = vpop.f32.mrb[0].mxu0
      %v7415 = vadd.f32 %v7098, %v7414
      %v7416 = vpop.f32.mrb[0].mxu0
      %v7417 = vpop.f32.mrb[0].mxu0
      %v7418 = vadd.f32 %v7098, %v7417
      %v7419 = vpop.f32.mrb[0].mxu0
      %7420 = vmatprep.mubr.bf16.mxu0 %v6982
      %7421 = vmatmul.mubr.bf16.gmra.mrb[0].mxu0 %v6981
      %v7422 = vpop.f32.mrb[0].mxu0
      %v7423 = vadd.f32 %v7098, %v7422
      %v7424 = vpop.f32.mrb[0].mxu0
      %v7425 = vpop.f32.mrb[0].mxu0
      %v7426 = vadd.f32 %v7098, %v7425
      %v7427 = vpop.f32.mrb[0].mxu0
      %7428 = vmatprep.mubr.bf16.mxu0 %v6984
      %7429 = vmatmul.mubr.bf16.gmra.mrb[0].mxu0 %v6983
      %v7430 = vpop.f32.mrb[0].mxu0
      %v7431 = vadd.f32 %v7098, %v7430
      %v7432 = vpop.f32.mrb[0].mxu0
      %v7433 = vpop.f32.mrb[0].mxu0
      %v7434 = vadd.f32 %v7098, %v7433
      %v7435 = vpop.f32.mrb[0].mxu0
      %7436 = vmatprep.mubr.bf16.mxu0 %v6986
      %7437 = vmatmul.mubr.bf16.gmra.mrb[0].mxu0 %v6985
      %v7438 = vpop.f32.mrb[0].mxu0
      %v7439 = vadd.f32 %v7098, %v7438
      %v7440 = vpop.f32.mrb[0].mxu0
      %v7441 = vpop.f32.mrb[0].mxu0
      %v7442 = vadd.f32 %v7098, %v7441
      %v7443 = vpop.f32.mrb[0].mxu0
      %7444 = vmatprep.mubr.bf16.mxu0 %v6988
      %7445 = vmatmul.mubr.bf16.gmra.mrb[0].mxu0 %v6987
      %v7446 = vpop.f32.mrb[0].mxu0
      %v7447 = vadd.f32 %v7098, %v7446
      %v7448 = vpop.f32.mrb[0].mxu0
      %v7449 = vpop.f32.mrb[0].mxu0
      %v7450 = vadd.f32 %v7098, %v7449
      %v7451 = vpop.f32.mrb[0].mxu0
      %7452 = vmatprep.mubr.bf16.mxu0 %v6990
      %7453 = vmatmul.mubr.bf16.gmra.mrb[0].mxu0 %v6989
      %v7454 = vpop.f32.mrb[0].mxu0
      %v7455 = vadd.f32 %v7098, %v7454
      %v7456 = vpop.f32.mrb[0].mxu0
      %v7457 = vpop.f32.mrb[0].mxu0
      %v7458 = vadd.f32 %v7098, %v7457
      %v7459 = vpop.f32.mrb[0].mxu0
      %7460 = vmatprep.mubr.bf16.mxu0 %v6992
      %7461 = vmatmul.mubr.bf16.gmra.mrb[0].mxu0 %v6991
      %v7462 = vpop.f32.mrb[0].mxu0
      %v7463 = vadd.f32 %v7098, %v7462
      %v7464 = vpop.f32.mrb[0].mxu0
      %v7465 = vpop.f32.mrb[0].mxu0
      %v7466 = vadd.f32 %v7098, %v7465
      %v7467 = vpop.f32.mrb[0].mxu0
      %7468 = vmatprep.mubr.bf16.mxu0 %v6994
      %7469 = vmatmul.mubr.bf16.gmra.mrb[0].mxu0 %v6993
      %v7470 = vpop.f32.mrb[0].mxu0
      %v7471 = vadd.f32 %v7098, %v7470
      %v7472 = vpop.f32.mrb[0].mxu0
      %v7473 = vpop.f32.mrb[0].mxu0
      %v7474 = vadd.f32 %v7098, %v7473
      %v7475 = vpop.f32.mrb[0].mxu0
      %7476 = vmatprep.mubr.bf16.mxu0 %v6996
      %7477 = vmatmul.mubr.bf16.gmra.mrb[0].mxu0 %v6995
      %v7478 = vpop.f32.mrb[0].mxu0
      %v7479 = vadd.f32 %v7098, %v7478
      %v7480 = vpop.f32.mrb[0].mxu0
      %v7481 = vpop.f32.mrb[0].mxu0
      %v7482 = vadd.f32 %v7098, %v7481
      %v7483 = vpop.f32.mrb[0].mxu0
      %7484 = vmatprep.mubr.bf16.mxu0 %v6998
      %7485 = vmatmul.mubr.bf16.gmra.mrb[0].mxu0 %v6997
      %v7486 = vpop.f32.mrb[0].mxu0
      %v7487 = vadd.f32 %v7098, %v7486
      %v7488 = vpop.f32.mrb[0].mxu0
      %v7489 = vpop.f32.mrb[0].mxu0
      %v7490 = vadd.f32 %v7098, %v7489
      %v7491 = vpop.f32.mrb[0].mxu0
      %7492 = vmatprep.mubr.bf16.mxu0 %v7000
      %7493 = vmatmul.mubr.bf16.gmra.mrb[0].mxu0 %v6999
      %v7494 = vpop.f32.mrb[0].mxu0
      %v7495 = vadd.f32 %v7098, %v7494
      %v7496 = vpop.f32.mrb[0].mxu0
      %v7497 = vpop.f32.mrb[0].mxu0
      %v7498 = vadd.f32 %v7098, %v7497
      %v7499 = vpop.f32.mrb[0].mxu0
      %7500 = vmatprep.mubr.bf16.mxu0 %v7002
      %7501 = vmatmul.mubr.bf16.gmra.mrb[0].mxu0 %v7001
      %v7502 = vpop.f32.mrb[0].mxu0
      %v7503 = vadd.f32 %v7098, %v7502
      %v7504 = vpop.f32.mrb[0].mxu0
      %v7505 = vpop.f32.mrb[0].mxu0
      %v7506 = vadd.f32 %v7098, %v7505
      %v7507 = vpop.f32.mrb[0].mxu0
      %7508 = vmatprep.mubr.bf16.mxu0 %v7004
      %7509 = vmatmul.mubr.bf16.gmra.mrb[0].mxu0 %v7003
      %v7510 = vpop.f32.mrb[0].mxu0
      %v7511 = vadd.f32 %v7098, %v7510
      %v7512 = vpop.f32.mrb[0].mxu0
      %v7513 = vpop.f32.mrb[0].mxu0
      %v7514 = vadd.f32 %v7098, %v7513
      %v7515 = vpop.f32.mrb[0].mxu0
      %7516 = vmatprep.mubr.bf16.mxu0 %v7006
      %7517 = vmatmul.mubr.bf16.gmra.mrb[0].mxu0 %v7005
      %v7518 = vpop.f32.mrb[0].mxu0
      %v7519 = vadd.f32 %v7098, %v7518
      %v7520 = vpop.f32.mrb[0].mxu0
      %v7521 = vpop.f32.mrb[0].mxu0
      %v7522 = vadd.f32 %v7098, %v7521
      %v7523 = vpop.f32.mrb[0].mxu0
      %7524 = vmatprep.mubr.bf16.mxu0 %v7008
      %7525 = vmatmul.mubr.bf16.gmra.mrb[0].mxu0 %v7007
      %v7526 = vpop.f32.mrb[0].mxu0
      %v7527 = vadd.f32 %v7098, %v7526
      %v7528 = vpop.f32.mrb[0].mxu0
      %v7529 = vpop.f32.mrb[0].mxu0
      %v7530 = vadd.f32 %v7098, %v7529
      %v7531 = vpop.f32.mrb[0].mxu0
      %7532 = vmatprep.mubr.bf16.mxu0 %v7010
      %7533 = vmatmul.mubr.bf16.gmra.mrb[0].mxu0 %v7009
      %v7534 = vpop.f32.mrb[0].mxu0
      %v7535 = vadd.f32 %v7098, %v7534
      %v7536 = vpop.f32.mrb[0].mxu0
      %v7537 = vpop.f32.mrb[0].mxu0
      %v7538 = vadd.f32 %v7098, %v7537
      %v7539 = vpop.f32.mrb[0].mxu0
      %7540 = vmatprep.mubr.bf16.mxu0 %v7012
      %7541 = vmatmul.mubr.bf16.gmra.mrb[0].mxu0 %v7011
      %v7542 = vpop.f32.mrb[0].mxu0
      %v7543 = vadd.f32 %v7098, %v7542
      %v7544 = vpop.f32.mrb[0].mxu0
      %v7545 = vpop.f32.mrb[0].mxu0
      %v7546 = vadd.f32 %v7098, %v7545
      %v7547 = vpop.f32.mrb[0].mxu0
      %7548 = vmatprep.mubr.bf16.mxu0 %v7014
      %7549 = vmatmul.mubr.bf16.gmra.mrb[0].mxu0 %v7013
      %v7550 = vpop.f32.mrb[0].mxu0
      %v7551 = vadd.f32 %v7098, %v7550
      %v7552 = vpop.f32.mrb[0].mxu0
      %v7553 = vpop.f32.mrb[0].mxu0
      %v7554 = vadd.f32 %v7098, %v7553
      %v7555 = vpop.f32.mrb[0].mxu0
      %7556 = vmatprep.mubr.bf16.mxu0 %v7016
      %7557 = vmatmul.mubr.bf16.gmra.mrb[0].mxu0 %v7015
      %v7558 = vpop.f32.mrb[0].mxu0
      %v7559 = vadd.f32 %v7098, %v7558
      %v7560 = vpop.f32.mrb[0].mxu0
      %v7561 = vpop.f32.mrb[0].mxu0
      %v7562 = vadd.f32 %v7098, %v7561
      %v7563 = vpop.f32.mrb[0].mxu0
      %7564 = vmatprep.mubr.bf16.mxu0 %v7018
      %7565 = vmatmul.mubr.bf16.gmra.mrb[0].mxu0 %v7017
      %v7566 = vpop.f32.mrb[0].mxu0
      %v7567 = vadd.f32 %v7098, %v7566
      %v7568 = vpop.f32.mrb[0].mxu0
      %v7569 = vpop.f32.mrb[0].mxu0
      %v7570 = vadd.f32 %v7098, %v7569
      %v7571 = vpop.f32.mrb[0].mxu0
      %7572 = vmatprep.mubr.bf16.mxu0 %v7020
      %7573 = vmatmul.mubr.bf16.gmra.mrb[0].mxu0 %v7019
      %v7574 = vpop.f32.mrb[0].mxu0
      %v7575 = vadd.f32 %v7098, %v7574
      %v7576 = vpop.f32.mrb[0].mxu0
      %v7577 = vpop.f32.mrb[0].mxu0
      %v7578 = vadd.f32 %v7098, %v7577
      %v7579 = vpop.f32.mrb[0].mxu0
      %7580 = vmatprep.mubr.bf16.mxu0 %v7022
      %7581 = vmatmul.mubr.bf16.gmra.mrb[0].mxu0 %v7021
      %v7582 = vpop.f32.mrb[0].mxu0
      %v7583 = vadd.f32 %v7098, %v7582
      %v7584 = vpop.f32.mrb[0].mxu0
      %v7585 = vpop.f32.mrb[0].mxu0
      %v7586 = vadd.f32 %v7098, %v7585
      %v7587 = vpop.f32.mrb[0].mxu0
      %7588 = vmatprep.mubr.bf16.mxu0 %v7024
      %7589 = vmatmul.mubr.bf16.gmra.mrb[0].mxu0 %v7023
      %v7590 = vpop.f32.mrb[0].mxu0
      %v7591 = vadd.f32 %v7098, %v7590
      %v7592 = vpop.f32.mrb[0].mxu0
      %v7593 = vpop.f32.mrb[0].mxu0
      %v7594 = vadd.f32 %v7098, %v7593
      %v7595 = vpop.f32.mrb[0].mxu0
      %7596 = vmatprep.mubr.bf16.mxu0 %v7026
      %7597 = vmatmul.mubr.bf16.gmra.mrb[0].mxu0 %v7025
      %v7598 = vpop.f32.mrb[0].mxu0
      %v7599 = vadd.f32 %v7098, %v7598
      %v7600 = vpop.f32.mrb[0].mxu0
      %v7601 = vpop.f32.mrb[0].mxu0
      %v7602 = vadd.f32 %v7098, %v7601
      %v7603 = vpop.f32.mrb[0].mxu0
      %7604 = vmatprep.mubr.bf16.mxu0 %v7028
      %7605 = vmatmul.mubr.bf16.gmra.mrb[0].mxu0 %v7027
      %v7606 = vpop.f32.mrb[0].mxu0
      %v7607 = vadd.f32 %v7098, %v7606
      %v7608 = vpop.f32.mrb[0].mxu0
      %v7609 = vpop.f32.mrb[0].mxu0
      %v7610 = vadd.f32 %v7098, %v7609
      %v7611 = vpop.f32.mrb[0].mxu0
      %7612 = vmatprep.mubr.bf16.mxu0 %v7030
      %7613 = vmatmul.mubr.bf16.gmra.mrb[0].mxu0 %v7029
      %v7614 = vpop.f32.mrb[0].mxu0
      %v7615 = vadd.f32 %v7098, %v7614
      %v7616 = vpop.f32.mrb[0].mxu0
      %v7617 = vpop.f32.mrb[0].mxu0
      %v7618 = vadd.f32 %v7098, %v7617
      %v7619 = vpop.f32.mrb[0].mxu0
      %7620 = vmatprep.mubr.bf16.mxu0 %v7032
      %7621 = vmatmul.mubr.bf16.gmra.mrb[0].mxu0 %v7031
      %v7622 = vpop.f32.mrb[0].mxu0
      %v7623 = vadd.f32 %v7098, %v7622
      %v7624 = vpop.f32.mrb[0].mxu0
      %v7625 = vpop.f32.mrb[0].mxu0
      %v7626 = vadd.f32 %v7098, %v7625
      %v7627 = vpop.f32.mrb[0].mxu0
      %7628 = vmatprep.mubr.bf16.mxu0 %v7034
      %7629 = vmatmul.mubr.bf16.gmra.mrb[0].mxu0 %v7033
      %v7630 = vpop.f32.mrb[0].mxu0
      %v7631 = vadd.f32 %v7098, %v7630
      %v7632 = vpop.f32.mrb[0].mxu0
      %v7633 = vpop.f32.mrb[0].mxu0
      %v7634 = vadd.f32 %v7098, %v7633
      %v7635 = vpop.f32.mrb[0].mxu0
      %7636 = vmatprep.mubr.bf16.mxu0 %v7036
      %7637 = vmatmul.mubr.bf16.gmra.mrb[0].mxu0 %v7035
      %v7638 = vpop.f32.mrb[0].mxu0
      %v7639 = vadd.f32 %v7098, %v7638
      %v7640 = vpop.f32.mrb[0].mxu0
      %v7641 = vpop.f32.mrb[0].mxu0
      %v7642 = vadd.f32 %v7098, %v7641
      %v7643 = vpop.f32.mrb[0].mxu0
      %7644 = vmatprep.mubr.bf16.mxu0 %v7038
      %7645 = vmatmul.mubr.bf16.gmra.mrb[0].mxu0 %v7037
      %v7646 = vpop.f32.mrb[0].mxu0
      %v7647 = vadd.f32 %v7098, %v7646
      %v7648 = vpop.f32.mrb[0].mxu0
      %v7649 = vpop.f32.mrb[0].mxu0
      %v7650 = vadd.f32 %v7098, %v7649
      %v7651 = vpop.f32.mrb[0].mxu0
      %7652 = vmatprep.mubr.bf16.mxu0 %v7040
      %7653 = vmatmul.mubr.bf16.gmra.mrb[0].mxu0 %v7039
      %v7654 = vpop.f32.mrb[0].mxu0
      %v7655 = vadd.f32 %v7098, %v7654
      %v7656 = vpop.f32.mrb[0].mxu0
      %v7657 = vpop.f32.mrb[0].mxu0
      %v7658 = vadd.f32 %v7098, %v7657
      %v7659 = vpop.f32.mrb[0].mxu0
      %7660 = vmatprep.mubr.bf16.mxu0 %v7042
      %7661 = vmatmul.mubr.bf16.gmra.mrb[0].mxu0 %v7041
      %v7662 = vpop.f32.mrb[0].mxu0
      %v7663 = vadd.f32 %v7098, %v7662
      %v7664 = vpop.f32.mrb[0].mxu0
      %v7665 = vpop.f32.mrb[0].mxu0
      %v7666 = vadd.f32 %v7098, %v7665
      %v7667 = vpop.f32.mrb[0].mxu0
      %7668 = vmatprep.mubr.bf16.mxu0 %v7044
      %7669 = vmatmul.mubr.bf16.gmra.mrb[0].mxu0 %v7043
      %v7670 = vpop.f32.mrb[0].mxu0
      %v7671 = vadd.f32 %v7098, %v7670
      %v7672 = vpop.f32.mrb[0].mxu0
      %v7673 = vpop.f32.mrb[0].mxu0
      %v7674 = vadd.f32 %v7098, %v7673
      %v7675 = vpop.f32.mrb[0].mxu0
      %7676 = vmatprep.mubr.bf16.mxu0 %v7046
      %7677 = vmatmul.mubr.bf16.gmra.mrb[0].mxu0 %v7045
      %v7678 = vpop.f32.mrb[0].mxu0
      %v7679 = vadd.f32 %v7098, %v7678
      %v7680 = vpop.f32.mrb[0].mxu0
      %v7681 = vpop.f32.mrb[0].mxu0
      %v7682 = vadd.f32 %v7098, %v7681
      %v7683 = vpop.f32.mrb[0].mxu0
      %7684 = vmatprep.mubr.bf16.mxu0 %v7048
      %7685 = vmatmul.mubr.bf16.gmra.mrb[0].mxu0 %v7047
      %v7686 = vpop.f32.mrb[0].mxu0
      %v7687 = vadd.f32 %v7098, %v7686
      %v7688 = vpop.f32.mrb[0].mxu0
      %v7689 = vpop.f32.mrb[0].mxu0
      %v7690 = vadd.f32 %v7098, %v7689
      %v7691 = vpop.f32.mrb[0].mxu0
      %7692 = vmatprep.mubr.bf16.mxu0 %v7050
      %7693 = vmatmul.mubr.bf16.gmra.mrb[0].mxu0 %v7049
      %v7694 = vpop.f32.mrb[0].mxu0
      %v7695 = vadd.f32 %v7098, %v7694
      %v7696 = vpop.f32.mrb[0].mxu0
      %v7697 = vpop.f32.mrb[0].mxu0
      %v7698 = vadd.f32 %v7098, %v7697
      %v7699 = vpop.f32.mrb[0].mxu0
      %7700 = vmatprep.mubr.bf16.mxu0 %v7052
      %7701 = vmatmul.mubr.bf16.gmra.mrb[0].mxu0 %v7051
      %v7702 = vpop.f32.mrb[0].mxu0
      %v7703 = vadd.f32 %v7098, %v7702
      %v7704 = vpop.f32.mrb[0].mxu0
      %v7705 = vpop.f32.mrb[0].mxu0
      %v7706 = vadd.f32 %v7098, %v7705
      %v7707 = vpop.f32.mrb[0].mxu0
      %7708 = vmatprep.mubr.bf16.mxu0 %v7054
      %7709 = vmatmul.mubr.bf16.gmra.mrb[0].mxu0 %v7053
      %v7710 = vpop.f32.mrb[0].mxu0
      %v7711 = vadd.f32 %v7098, %v7710
      %v7712 = vpop.f32.mrb[0].mxu0
      %v7713 = vpop.f32.mrb[0].mxu0
      %v7714 = vadd.f32 %v7098, %v7713
      %v7715 = vpop.f32.mrb[0].mxu0
      %7716 = vmatprep.mubr.bf16.mxu0 %v7056
      %7717 = vmatmul.mubr.bf16.gmra.mrb[0].mxu0 %v7055
      %v7718 = vpop.f32.mrb[0].mxu0
      %v7719 = vadd.f32 %v7098, %v7718
      %v7720 = vpop.f32.mrb[0].mxu0
      %v7721 = vpop.f32.mrb[0].mxu0
      %v7722 = vadd.f32 %v7098, %v7721
      %v7723 = vpop.f32.mrb[0].mxu0
      %7724 = vmatprep.mubr.bf16.mxu0 %v7058
      %7725 = vmatmul.mubr.bf16.gmra.mrb[0].mxu0 %v7057
      %v7726 = vpop.f32.mrb[0].mxu0
      %v7727 = vadd.f32 %v7098, %v7726
      %v7728 = vpop.f32.mrb[0].mxu0
      %v7729 = vpop.f32.mrb[0].mxu0
      %v7730 = vadd.f32 %v7098, %v7729
      %v7731 = vpop.f32.mrb[0].mxu0
      %7732 = vmatprep.mubr.bf16.mxu0 %v7060
      %7733 = vmatmul.mubr.bf16.gmra.mrb[0].mxu0 %v7059
      %v7734 = vpop.f32.mrb[0].mxu0
      %v7735 = vadd.f32 %v7098, %v7734
      %v7736 = vpop.f32.mrb[0].mxu0
      %v7737 = vpop.f32.mrb[0].mxu0
      %v7738 = vadd.f32 %v7098, %v7737
      %v7739 = vpop.f32.mrb[0].mxu0
      %7740 = vdwg.mxu0
      %vm7741 = vcmask 367616
      %7742 = vst.msk [vmem:[%s542] sm:$0xff] %vm7741, %v7231
      %7743 = vst.msk [vmem:[%s542 + $0x8] sm:$0xff] %vm7741, %v7234
      %7744 = vst.msk [vmem:[%s542 + $0x10] sm:$0xff] %vm7741, %v7239
      %7745 = vst.msk [vmem:[%s542 + $0x18] sm:$0xff] %vm7741, %v7242
      %7746 = vst.msk [vmem:[%s542 + $0x20] sm:$0xff] %vm7741, %v7247
      %7747 = vst.msk [vmem:[%s542 + $0x28] sm:$0xff] %vm7741, %v7250
      %7748 = vst.msk [vmem:[%s542 + $0x30] sm:$0xff] %vm7741, %v7255
      %7749 = vst.msk [vmem:[%s542 + $0x38] sm:$0xff] %vm7741, %v7258
      %7750 = vst.msk [vmem:[%s542 + $0x40] sm:$0xff] %vm7741, %v7263
      %7751 = vst.msk [vmem:[%s542 + $0x48] sm:$0xff] %vm7741, %v7266
      %7752 = vst.msk [vmem:[%s542 + $0x50] sm:$0xff] %vm7741, %v7271
      %7753 = vst.msk [vmem:[%s542 + $0x58] sm:$0xff] %vm7741, %v7274
      %7754 = vst.msk [vmem:[%s542 + $0x60] sm:$0xff] %vm7741, %v7279
      %7755 = vst.msk [vmem:[%s542 + $0x68] sm:$0xff] %vm7741, %v7282
      %7756 = vst.msk [vmem:[%s542 + $0x70] sm:$0xff] %vm7741, %v7287
      %7757 = vst.msk [vmem:[%s542 + $0x78] sm:$0xff] %vm7741, %v7290
      %7758 = vst.msk [vmem:[%s542 + $0x80] sm:$0xff] %vm7741, %v7295
      %7759 = vst.msk [vmem:[%s542 + $0x88] sm:$0xff] %vm7741, %v7298
      %7760 = vst.msk [vmem:[%s542 + $0x90] sm:$0xff] %vm7741, %v7303
      %7761 = vst.msk [vmem:[%s542 + $0x98] sm:$0xff] %vm7741, %v7306
      %7762 = vst.msk [vmem:[%s542 + $0xa0] sm:$0xff] %vm7741, %v7311
      %7763 = vst.msk [vmem:[%s542 + $0xa8] sm:$0xff] %vm7741, %v7314
      %7764 = vst.msk [vmem:[%s542 + $0xb0] sm:$0xff] %vm7741, %v7319
      %7765 = vst.msk [vmem:[%s542 + $0xb8] sm:$0xff] %vm7741, %v7322
      %7766 = vst.msk [vmem:[%s542 + $0xc0] sm:$0xff] %vm7741, %v7327
      %7767 = vst.msk [vmem:[%s542 + $0xc8] sm:$0xff] %vm7741, %v7330
      %7768 = vst.msk [vmem:[%s542 + $0xd0] sm:$0xff] %vm7741, %v7335
      %7769 = vst.msk [vmem:[%s542 + $0xd8] sm:$0xff] %vm7741, %v7338
      %7770 = vst.msk [vmem:[%s542 + $0xe0] sm:$0xff] %vm7741, %v7343
      %7771 = vst.msk [vmem:[%s542 + $0xe8] sm:$0xff] %vm7741, %v7346
      %7772 = vst.msk [vmem:[%s542 + $0xf0] sm:$0xff] %vm7741, %v7351
      %7773 = vst.msk [vmem:[%s542 + $0xf8] sm:$0xff] %vm7741, %v7354
      %7774 = vst.msk [vmem:[%s542 + $0x100] sm:$0xff] %vm7741, %v7359
      %7775 = vst.msk [vmem:[%s542 + $0x108] sm:$0xff] %vm7741, %v7362
      %7776 = vst.msk [vmem:[%s542 + $0x110] sm:$0xff] %vm7741, %v7367
      %7777 = vst.msk [vmem:[%s542 + $0x118] sm:$0xff] %vm7741, %v7370
      %7778 = vst.msk [vmem:[%s542 + $0x120] sm:$0xff] %vm7741, %v7375
      %7779 = vst.msk [vmem:[%s542 + $0x128] sm:$0xff] %vm7741, %v7378
      %7780 = vst.msk [vmem:[%s542 + $0x130] sm:$0xff] %vm7741, %v7383
      %7781 = vst.msk [vmem:[%s542 + $0x138] sm:$0xff] %vm7741, %v7386
      %7782 = vst.msk [vmem:[%s542 + $0x140] sm:$0xff] %vm7741, %v7391
      %7783 = vst.msk [vmem:[%s542 + $0x148] sm:$0xff] %vm7741, %v7394
      %7784 = vst.msk [vmem:[%s542 + $0x150] sm:$0xff] %vm7741, %v7399
      %7785 = vst.msk [vmem:[%s542 + $0x158] sm:$0xff] %vm7741, %v7402
      %7786 = vst.msk [vmem:[%s542 + $0x160] sm:$0xff] %vm7741, %v7407
      %7787 = vst.msk [vmem:[%s542 + $0x168] sm:$0xff] %vm7741, %v7410
      %7788 = vst.msk [vmem:[%s542 + $0x170] sm:$0xff] %vm7741, %v7415
      %7789 = vst.msk [vmem:[%s542 + $0x178] sm:$0xff] %vm7741, %v7418
      %7790 = vst.msk [vmem:[%s542 + $0x180] sm:$0xff] %vm7741, %v7423
      %7791 = vst.msk [vmem:[%s542 + $0x188] sm:$0xff] %vm7741, %v7426
      %7792 = vst.msk [vmem:[%s542 + $0x190] sm:$0xff] %vm7741, %v7431
      %7793 = vst.msk [vmem:[%s542 + $0x198] sm:$0xff] %vm7741, %v7434
      %7794 = vst.msk [vmem:[%s542 + $0x1a0] sm:$0xff] %vm7741, %v7439
      %7795 = vst.msk [vmem:[%s542 + $0x1a8] sm:$0xff] %vm7741, %v7442
      %7796 = vst.msk [vmem:[%s542 + $0x1b0] sm:$0xff] %vm7741, %v7447
      %7797 = vst.msk [vmem:[%s542 + $0x1b8] sm:$0xff] %vm7741, %v7450
      %7798 = vst.msk [vmem:[%s542 + $0x1c0] sm:$0xff] %vm7741, %v7455
      %7799 = vst.msk [vmem:[%s542 + $0x1c8] sm:$0xff] %vm7741, %v7458
      %7800 = vst.msk [vmem:[%s542 + $0x1d0] sm:$0xff] %vm7741, %v7463
      %7801 = vst.msk [vmem:[%s542 + $0x1d8] sm:$0xff] %vm7741, %v7466
      %7802 = vst.msk [vmem:[%s542 + $0x1e0] sm:$0xff] %vm7741, %v7471
      %7803 = vst.msk [vmem:[%s542 + $0x1e8] sm:$0xff] %vm7741, %v7474
      %7804 = vst.msk [vmem:[%s542 + $0x1f0] sm:$0xff] %vm7741, %v7479
      %7805 = vst.msk [vmem:[%s542 + $0x1f8] sm:$0xff] %vm7741, %v7482
      %7806 = vst.msk [vmem:[%s542 + $0x200] sm:$0xff] %vm7741, %v7487
      %7807 = vst.msk [vmem:[%s542 + $0x208] sm:$0xff] %vm7741, %v7490
      %7808 = vst.msk [vmem:[%s542 + $0x210] sm:$0xff] %vm7741, %v7495
      %7809 = vst.msk [vmem:[%s542 + $0x218] sm:$0xff] %vm7741, %v7498
      %7810 = vst.msk [vmem:[%s542 + $0x220] sm:$0xff] %vm7741, %v7503
      %7811 = vst.msk [vmem:[%s542 + $0x228] sm:$0xff] %vm7741, %v7506
      %7812 = vst.msk [vmem:[%s542 + $0x230] sm:$0xff] %vm7741, %v7511
      %7813 = vst.msk [vmem:[%s542 + $0x238] sm:$0xff] %vm7741, %v7514
      %7814 = vst.msk [vmem:[%s542 + $0x240] sm:$0xff] %vm7741, %v7519
      %7815 = vst.msk [vmem:[%s542 + $0x248] sm:$0xff] %vm7741, %v7522
      %7816 = vst.msk [vmem:[%s542 + $0x250] sm:$0xff] %vm7741, %v7527
      %7817 = vst.msk [vmem:[%s542 + $0x258] sm:$0xff] %vm7741, %v7530
      %7818 = vst.msk [vmem:[%s542 + $0x260] sm:$0xff] %vm7741, %v7535
      %7819 = vst.msk [vmem:[%s542 + $0x268] sm:$0xff] %vm7741, %v7538
      %7820 = vst.msk [vmem:[%s542 + $0x270] sm:$0xff] %vm7741, %v7543
      %7821 = vst.msk [vmem:[%s542 + $0x278] sm:$0xff] %vm7741, %v7546
      %7822 = vst.msk [vmem:[%s542 + $0x280] sm:$0xff] %vm7741, %v7551
      %7823 = vst.msk [vmem:[%s542 + $0x288] sm:$0xff] %vm7741, %v7554
      %7824 = vst.msk [vmem:[%s542 + $0x290] sm:$0xff] %vm7741, %v7559
      %7825 = vst.msk [vmem:[%s542 + $0x298] sm:$0xff] %vm7741, %v7562
      %7826 = vst.msk [vmem:[%s542 + $0x2a0] sm:$0xff] %vm7741, %v7567
      %7827 = vst.msk [vmem:[%s542 + $0x2a8] sm:$0xff] %vm7741, %v7570
      %7828 = vst.msk [vmem:[%s542 + $0x2b0] sm:$0xff] %vm7741, %v7575
      %7829 = vst.msk [vmem:[%s542 + $0x2b8] sm:$0xff] %vm7741, %v7578
      %7830 = vst.msk [vmem:[%s542 + $0x2c0] sm:$0xff] %vm7741, %v7583
      %7831 = vst.msk [vmem:[%s542 + $0x2c8] sm:$0xff] %vm7741, %v7586
      %7832 = vst.msk [vmem:[%s542 + $0x2d0] sm:$0xff] %vm7741, %v7591
      %7833 = vst.msk [vmem:[%s542 + $0x2d8] sm:$0xff] %vm7741, %v7594
      %7834 = vst.msk [vmem:[%s542 + $0x2e0] sm:$0xff] %vm7741, %v7599
      %7835 = vst.msk [vmem:[%s542 + $0x2e8] sm:$0xff] %vm7741, %v7602
      %7836 = vst.msk [vmem:[%s542 + $0x2f0] sm:$0xff] %vm7741, %v7607
      %7837 = vst.msk [vmem:[%s542 + $0x2f8] sm:$0xff] %vm7741, %v7610
      %7838 = vst.msk [vmem:[%s542 + $0x300] sm:$0xff] %vm7741, %v7615
      %7839 = vst.msk [vmem:[%s542 + $0x308] sm:$0xff] %vm7741, %v7618
      %7840 = vst.msk [vmem:[%s542 + $0x310] sm:$0xff] %vm7741, %v7623
      %7841 = vst.msk [vmem:[%s542 + $0x318] sm:$0xff] %vm7741, %v7626
      %7842 = vst.msk [vmem:[%s542 + $0x320] sm:$0xff] %vm7741, %v7631
      %7843 = vst.msk [vmem:[%s542 + $0x328] sm:$0xff] %vm7741, %v7634
      %7844 = vst.msk [vmem:[%s542 + $0x330] sm:$0xff] %vm7741, %v7639
      %7845 = vst.msk [vmem:[%s542 + $0x338] sm:$0xff] %vm7741, %v7642
      %7846 = vst.msk [vmem:[%s542 + $0x340] sm:$0xff] %vm7741, %v7647
      %7847 = vst.msk [vmem:[%s542 + $0x348] sm:$0xff] %vm7741, %v7650
      %7848 = vst.msk [vmem:[%s542 + $0x350] sm:$0xff] %vm7741, %v7655
      %7849 = vst.msk [vmem:[%s542 + $0x358] sm:$0xff] %vm7741, %v7658
      %7850 = vst.msk [vmem:[%s542 + $0x360] sm:$0xff] %vm7741, %v7663
      %7851 = vst.msk [vmem:[%s542 + $0x368] sm:$0xff] %vm7741, %v7666
      %7852 = vst.msk [vmem:[%s542 + $0x370] sm:$0xff] %vm7741, %v7671
      %7853 = vst.msk [vmem:[%s542 + $0x378] sm:$0xff] %vm7741, %v7674
      %7854 = vst.msk [vmem:[%s542 + $0x380] sm:$0xff] %vm7741, %v7679
      %7855 = vst.msk [vmem:[%s542 + $0x388] sm:$0xff] %vm7741, %v7682
      %7856 = vst.msk [vmem:[%s542 + $0x390] sm:$0xff] %vm7741, %v7687
      %7857 = vst.msk [vmem:[%s542 + $0x398] sm:$0xff] %vm7741, %v7690
      %7858 = vst.msk [vmem:[%s542 + $0x3a0] sm:$0xff] %vm7741, %v7695
      %7859 = vst.msk [vmem:[%s542 + $0x3a8] sm:$0xff] %vm7741, %v7698
      %7860 = vst.msk [vmem:[%s542 + $0x3b0] sm:$0xff] %vm7741, %v7703
      %7861 = vst.msk [vmem:[%s542 + $0x3b8] sm:$0xff] %vm7741, %v7706
      %7862 = vst.msk [vmem:[%s542 + $0x3c0] sm:$0xff] %vm7741, %v7711
      %7863 = vst.msk [vmem:[%s542 + $0x3c8] sm:$0xff] %vm7741, %v7714
      %7864 = vst.msk [vmem:[%s542 + $0x3d0] sm:$0xff] %vm7741, %v7719
      %7865 = vst.msk [vmem:[%s542 + $0x3d8] sm:$0xff] %vm7741, %v7722
      %7866 = vst.msk [vmem:[%s542 + $0x3e0] sm:$0xff] %vm7741, %v7727
      %7867 = vst.msk [vmem:[%s542 + $0x3e8] sm:$0xff] %vm7741, %v7730
      %7868 = vst.msk [vmem:[%s542 + $0x3f0] sm:$0xff] %vm7741, %v7735
      %7869 = vst.msk [vmem:[%s542 + $0x3f8] sm:$0xff] %vm7741, %v7738
      %v7870 = vadd.f32 %v7231, %v3125
      %v7871 = vadd.f32 %v7234, %v3126
      %v7872 = vadd.f32 %v7239, %v3127
      %v7873 = vadd.f32 %v7242, %v3128
      %v7874 = vadd.f32 %v7247, %v3129
      %v7875 = vadd.f32 %v7250, %v3130
      %v7876 = vadd.f32 %v7255, %v3131
      %v7877 = vadd.f32 %v7258, %v3132
      %v7878 = vadd.f32 %v7263, %v3133
      %v7879 = vadd.f32 %v7266, %v3134
      %v7880 = vadd.f32 %v7271, %v3135
      %v7881 = vadd.f32 %v7274, %v3136
      %v7882 = vadd.f32 %v7279, %v3137
      %v7883 = vadd.f32 %v7282, %v3138
      %v7884 = vadd.f32 %v7287, %v3139
      %v7885 = vadd.f32 %v7290, %v3140
      %v7886 = vadd.f32 %v7295, %v3141
      %v7887 = vadd.f32 %v7298, %v3142
      %v7888 = vadd.f32 %v7303, %v3143
      %v7889 = vadd.f32 %v7306, %v3144
      %v7890 = vadd.f32 %v7311, %v3145
      %v7891 = vadd.f32 %v7314, %v3146
      %v7892 = vadd.f32 %v7319, %v3147
      %v7893 = vadd.f32 %v7322, %v3148
      %v7894 = vadd.f32 %v7327, %v3149
      %v7895 = vadd.f32 %v7330, %v3150
      %v7896 = vadd.f32 %v7335, %v3151
      %v7897 = vadd.f32 %v7338, %v3152
      %v7898 = vadd.f32 %v7343, %v3153
      %v7899 = vadd.f32 %v7346, %v3154
      %v7900 = vadd.f32 %v7351, %v3155
      %v7901 = vadd.f32 %v7354, %v3156
      %v7902 = vadd.f32 %v7359, %v3157
      %v7903 = vadd.f32 %v7362, %v3158
      %v7904 = vadd.f32 %v7367, %v3159
      %v7905 = vadd.f32 %v7370, %v3160
      %v7906 = vadd.f32 %v7375, %v3161
      %v7907 = vadd.f32 %v7378, %v3162
      %v7908 = vadd.f32 %v7383, %v3163
      %v7909 = vadd.f32 %v7386, %v3164
      %v7910 = vadd.f32 %v7391, %v3165
      %v7911 = vadd.f32 %v7394, %v3166
      %v7912 = vadd.f32 %v7399, %v3167
      %v7913 = vadd.f32 %v7402, %v3168
      %v7914 = vadd.f32 %v7407, %v3169
      %v7915 = vadd.f32 %v7410, %v3170
      %v7916 = vadd.f32 %v7415, %v3171
      %v7917 = vadd.f32 %v7418, %v3172
      %v7918 = vadd.f32 %v7423, %v3173
      %v7919 = vadd.f32 %v7426, %v3174
      %v7920 = vadd.f32 %v7431, %v3175
      %v7921 = vadd.f32 %v7434, %v3176
      %v7922 = vadd.f32 %v7439, %v3177
      %v7923 = vadd.f32 %v7442, %v3178
      %v7924 = vadd.f32 %v7447, %v3179
      %v7925 = vadd.f32 %v7450, %v3180
      %v7926 = vadd.f32 %v7455, %v3181
      %v7927 = vadd.f32 %v7458, %v3182
      %v7928 = vadd.f32 %v7463, %v3183
      %v7929 = vadd.f32 %v7466, %v3184
      %v7930 = vadd.f32 %v7471, %v3185
      %v7931 = vadd.f32 %v7474, %v3186
      %v7932 = vadd.f32 %v7479, %v3187
      %v7933 = vadd.f32 %v7482, %v3188
      %v7934 = vadd.f32 %v7487, %v3189
      %v7935 = vadd.f32 %v7490, %v3190
      %v7936 = vadd.f32 %v7495, %v3191
      %v7937 = vadd.f32 %v7498, %v3192
      %v7938 = vadd.f32 %v7503, %v3193
      %v7939 = vadd.f32 %v7506, %v3194
      %v7940 = vadd.f32 %v7511, %v3195
      %v7941 = vadd.f32 %v7514, %v3196
      %v7942 = vadd.f32 %v7519, %v3197
      %v7943 = vadd.f32 %v7522, %v3198
      %v7944 = vadd.f32 %v7527, %v3199
      %v7945 = vadd.f32 %v7530, %v3200
      %v7946 = vadd.f32 %v7535, %v3201
      %v7947 = vadd.f32 %v7538, %v3202
      %v7948 = vadd.f32 %v7543, %v3203
      %v7949 = vadd.f32 %v7546, %v3204
      %v7950 = vadd.f32 %v7551, %v3205
      %v7951 = vadd.f32 %v7554, %v3206
      %v7952 = vadd.f32 %v7559, %v3207
      %v7953 = vadd.f32 %v7562, %v3208
      %v7954 = vadd.f32 %v7567, %v3209
      %v7955 = vadd.f32 %v7570, %v3210
      %v7956 = vadd.f32 %v7575, %v3211
      %v7957 = vadd.f32 %v7578, %v3212
      %v7958 = vadd.f32 %v7583, %v3213
      %v7959 = vadd.f32 %v7586, %v3214
      %v7960 = vadd.f32 %v7591, %v3215
      %v7961 = vadd.f32 %v7594, %v3216
      %v7962 = vadd.f32 %v7599, %v3217
      %v7963 = vadd.f32 %v7602, %v3218
      %v7964 = vadd.f32 %v7607, %v3219
      %v7965 = vadd.f32 %v7610, %v3220
      %v7966 = vadd.f32 %v7615, %v3221
      %v7967 = vadd.f32 %v7618, %v3222
      %v7968 = vadd.f32 %v7623, %v3223
      %v7969 = vadd.f32 %v7626, %v3224
      %v7970 = vadd.f32 %v7631, %v3225
      %v7971 = vadd.f32 %v7634, %v3226
      %v7972 = vadd.f32 %v7639, %v3227
      %v7973 = vadd.f32 %v7642, %v3228
      %v7974 = vadd.f32 %v7647, %v3229
      %v7975 = vadd.f32 %v7650, %v3230
      %v7976 = vadd.f32 %v7655, %v3231
      %v7977 = vadd.f32 %v7658, %v3232
      %v7978 = vadd.f32 %v7663, %v3233
      %v7979 = vadd.f32 %v7666, %v3234
      %v7980 = vadd.f32 %v7671, %v3235
      %v7981 = vadd.f32 %v7674, %v3236
      %v7982 = vadd.f32 %v7679, %v3237
      %v7983 = vadd.f32 %v7682, %v3238
      %v7984 = vadd.f32 %v7687, %v3239
      %v7985 = vadd.f32 %v7690, %v3240
      %v7986 = vadd.f32 %v7695, %v3241
      %v7987 = vadd.f32 %v7698, %v3242
      %v7988 = vadd.f32 %v7703, %v3243
      %v7989 = vadd.f32 %v7706, %v3244
      %v7990 = vadd.f32 %v7711, %v3245
      %v7991 = vadd.f32 %v7714, %v3246
      %v7992 = vadd.f32 %v7719, %v3247
      %v7993 = vadd.f32 %v7722, %v3248
      %v7994 = vadd.f32 %v7727, %v3249
      %v7995 = vadd.f32 %v7730, %v3250
      %v7996 = vadd.f32 %v7735, %v3251
      %v7997 = vadd.f32 %v7738, %v3252
      %vm7998 = vcmask 146432
      %7999 = vst.msk [vmem:[%s542] sm:$0xff] %vm7998, %v7870
      %8000 = vst.msk [vmem:[%s542 + $0x8] sm:$0xff] %vm7998, %v7871
      %8001 = vst.msk [vmem:[%s542 + $0x10] sm:$0xff] %vm7998, %v7872
      %8002 = vst.msk [vmem:[%s542 + $0x18] sm:$0xff] %vm7998, %v7873
      %8003 = vst.msk [vmem:[%s542 + $0x20] sm:$0xff] %vm7998, %v7874
      %8004 = vst.msk [vmem:[%s542 + $0x28] sm:$0xff] %vm7998, %v7875
      %8005 = vst.msk [vmem:[%s542 + $0x30] sm:$0xff] %vm7998, %v7876
      %8006 = vst.msk [vmem:[%s542 + $0x38] sm:$0xff] %vm7998, %v7877
      %8007 = vst.msk [vmem:[%s542 + $0x40] sm:$0xff] %vm7998, %v7878
      %8008 = vst.msk [vmem:[%s542 + $0x48] sm:$0xff] %vm7998, %v7879
      %8009 = vst.msk [vmem:[%s542 + $0x50] sm:$0xff] %vm7998, %v7880
      %8010 = vst.msk [vmem:[%s542 + $0x58] sm:$0xff] %vm7998, %v7881
      %8011 = vst.msk [vmem:[%s542 + $0x60] sm:$0xff] %vm7998, %v7882
      %8012 = vst.msk [vmem:[%s542 + $0x68] sm:$0xff] %vm7998, %v7883
      %8013 = vst.msk [vmem:[%s542 + $0x70] sm:$0xff] %vm7998, %v7884
      %8014 = vst.msk [vmem:[%s542 + $0x78] sm:$0xff] %vm7998, %v7885
      %8015 = vst.msk [vmem:[%s542 + $0x80] sm:$0xff] %vm7998, %v7886
      %8016 = vst.msk [vmem:[%s542 + $0x88] sm:$0xff] %vm7998, %v7887
      %8017 = vst.msk [vmem:[%s542 + $0x90] sm:$0xff] %vm7998, %v7888
      %8018 = vst.msk [vmem:[%s542 + $0x98] sm:$0xff] %vm7998, %v7889
      %8019 = vst.msk [vmem:[%s542 + $0xa0] sm:$0xff] %vm7998, %v7890
      %8020 = vst.msk [vmem:[%s542 + $0xa8] sm:$0xff] %vm7998, %v7891
      %8021 = vst.msk [vmem:[%s542 + $0xb0] sm:$0xff] %vm7998, %v7892
      %8022 = vst.msk [vmem:[%s542 + $0xb8] sm:$0xff] %vm7998, %v7893
      %8023 = vst.msk [vmem:[%s542 + $0xc0] sm:$0xff] %vm7998, %v7894
      %8024 = vst.msk [vmem:[%s542 + $0xc8] sm:$0xff] %vm7998, %v7895
      %8025 = vst.msk [vmem:[%s542 + $0xd0] sm:$0xff] %vm7998, %v7896
      %8026 = vst.msk [vmem:[%s542 + $0xd8] sm:$0xff] %vm7998, %v7897
      %8027 = vst.msk [vmem:[%s542 + $0xe0] sm:$0xff] %vm7998, %v7898
      %8028 = vst.msk [vmem:[%s542 + $0xe8] sm:$0xff] %vm7998, %v7899
      %8029 = vst.msk [vmem:[%s542 + $0xf0] sm:$0xff] %vm7998, %v7900
      %8030 = vst.msk [vmem:[%s542 + $0xf8] sm:$0xff] %vm7998, %v7901
      %8031 = vst.msk [vmem:[%s542 + $0x100] sm:$0xff] %vm7998, %v7902
      %8032 = vst.msk [vmem:[%s542 + $0x108] sm:$0xff] %vm7998, %v7903
      %8033 = vst.msk [vmem:[%s542 + $0x110] sm:$0xff] %vm7998, %v7904
      %8034 = vst.msk [vmem:[%s542 + $0x118] sm:$0xff] %vm7998, %v7905
      %8035 = vst.msk [vmem:[%s542 + $0x120] sm:$0xff] %vm7998, %v7906
      %8036 = vst.msk [vmem:[%s542 + $0x128] sm:$0xff] %vm7998, %v7907
      %8037 = vst.msk [vmem:[%s542 + $0x130] sm:$0xff] %vm7998, %v7908
      %8038 = vst.msk [vmem:[%s542 + $0x138] sm:$0xff] %vm7998, %v7909
      %8039 = vst.msk [vmem:[%s542 + $0x140] sm:$0xff] %vm7998, %v7910
      %8040 = vst.msk [vmem:[%s542 + $0x148] sm:$0xff] %vm7998, %v7911
      %8041 = vst.msk [vmem:[%s542 + $0x150] sm:$0xff] %vm7998, %v7912
      %8042 = vst.msk [vmem:[%s542 + $0x158] sm:$0xff] %vm7998, %v7913
      %8043 = vst.msk [vmem:[%s542 + $0x160] sm:$0xff] %vm7998, %v7914
      %8044 = vst.msk [vmem:[%s542 + $0x168] sm:$0xff] %vm7998, %v7915
      %8045 = vst.msk [vmem:[%s542 + $0x170] sm:$0xff] %vm7998, %v7916
      %8046 = vst.msk [vmem:[%s542 + $0x178] sm:$0xff] %vm7998, %v7917
      %8047 = vst.msk [vmem:[%s542 + $0x180] sm:$0xff] %vm7998, %v7918
      %8048 = vst.msk [vmem:[%s542 + $0x188] sm:$0xff] %vm7998, %v7919
      %8049 = vst.msk [vmem:[%s542 + $0x190] sm:$0xff] %vm7998, %v7920
      %8050 = vst.msk [vmem:[%s542 + $0x198] sm:$0xff] %vm7998, %v7921
      %8051 = vst.msk [vmem:[%s542 + $0x1a0] sm:$0xff] %vm7998, %v7922
      %8052 = vst.msk [vmem:[%s542 + $0x1a8] sm:$0xff] %vm7998, %v7923
      %8053 = vst.msk [vmem:[%s542 + $0x1b0] sm:$0xff] %vm7998, %v7924
      %8054 = vst.msk [vmem:[%s542 + $0x1b8] sm:$0xff] %vm7998, %v7925
      %8055 = vst.msk [vmem:[%s542 + $0x1c0] sm:$0xff] %vm7998, %v7926
      %8056 = vst.msk [vmem:[%s542 + $0x1c8] sm:$0xff] %vm7998, %v7927
      %8057 = vst.msk [vmem:[%s542 + $0x1d0] sm:$0xff] %vm7998, %v7928
      %8058 = vst.msk [vmem:[%s542 + $0x1d8] sm:$0xff] %vm7998, %v7929
      %8059 = vst.msk [vmem:[%s542 + $0x1e0] sm:$0xff] %vm7998, %v7930
      %8060 = vst.msk [vmem:[%s542 + $0x1e8] sm:$0xff] %vm7998, %v7931
      %8061 = vst.msk [vmem:[%s542 + $0x1f0] sm:$0xff] %vm7998, %v7932
      %8062 = vst.msk [vmem:[%s542 + $0x1f8] sm:$0xff] %vm7998, %v7933
      %8063 = vst.msk [vmem:[%s542 + $0x200] sm:$0xff] %vm7998, %v7934
      %8064 = vst.msk [vmem:[%s542 + $0x208] sm:$0xff] %vm7998, %v7935
      %8065 = vst.msk [vmem:[%s542 + $0x210] sm:$0xff] %vm7998, %v7936
      %8066 = vst.msk [vmem:[%s542 + $0x218] sm:$0xff] %vm7998, %v7937
      %8067 = vst.msk [vmem:[%s542 + $0x220] sm:$0xff] %vm7998, %v7938
      %8068 = vst.msk [vmem:[%s542 + $0x228] sm:$0xff] %vm7998, %v7939
      %8069 = vst.msk [vmem:[%s542 + $0x230] sm:$0xff] %vm7998, %v7940
      %8070 = vst.msk [vmem:[%s542 + $0x238] sm:$0xff] %vm7998, %v7941
      %8071 = vst.msk [vmem:[%s542 + $0x240] sm:$0xff] %vm7998, %v7942
      %8072 = vst.msk [vmem:[%s542 + $0x248] sm:$0xff] %vm7998, %v7943
      %8073 = vst.msk [vmem:[%s542 + $0x250] sm:$0xff] %vm7998, %v7944
      %8074 = vst.msk [vmem:[%s542 + $0x258] sm:$0xff] %vm7998, %v7945
      %8075 = vst.msk [vmem:[%s542 + $0x260] sm:$0xff] %vm7998, %v7946
      %8076 = vst.msk [vmem:[%s542 + $0x268] sm:$0xff] %vm7998, %v7947
      %8077 = vst.msk [vmem:[%s542 + $0x270] sm:$0xff] %vm7998, %v7948
      %8078 = vst.msk [vmem:[%s542 + $0x278] sm:$0xff] %vm7998, %v7949
      %8079 = vst.msk [vmem:[%s542 + $0x280] sm:$0xff] %vm7998, %v7950
      %8080 = vst.msk [vmem:[%s542 + $0x288] sm:$0xff] %vm7998, %v7951
      %8081 = vst.msk [vmem:[%s542 + $0x290] sm:$0xff] %vm7998, %v7952
      %8082 = vst.msk [vmem:[%s542 + $0x298] sm:$0xff] %vm7998, %v7953
      %8083 = vst.msk [vmem:[%s542 + $0x2a0] sm:$0xff] %vm7998, %v7954
      %8084 = vst.msk [vmem:[%s542 + $0x2a8] sm:$0xff] %vm7998, %v7955
      %8085 = vst.msk [vmem:[%s542 + $0x2b0] sm:$0xff] %vm7998, %v7956
      %8086 = vst.msk [vmem:[%s542 + $0x2b8] sm:$0xff] %vm7998, %v7957
      %8087 = vst.msk [vmem:[%s542 + $0x2c0] sm:$0xff] %vm7998, %v7958
      %8088 = vst.msk [vmem:[%s542 + $0x2c8] sm:$0xff] %vm7998, %v7959
      %8089 = vst.msk [vmem:[%s542 + $0x2d0] sm:$0xff] %vm7998, %v7960
      %8090 = vst.msk [vmem:[%s542 + $0x2d8] sm:$0xff] %vm7998, %v7961
      %8091 = vst.msk [vmem:[%s542 + $0x2e0] sm:$0xff] %vm7998, %v7962
      %8092 = vst.msk [vmem:[%s542 + $0x2e8] sm:$0xff] %vm7998, %v7963
      %8093 = vst.msk [vmem:[%s542 + $0x2f0] sm:$0xff] %vm7998, %v7964
      %8094 = vst.msk [vmem:[%s542 + $0x2f8] sm:$0xff] %vm7998, %v7965
      %8095 = vst.msk [vmem:[%s542 + $0x300] sm:$0xff] %vm7998, %v7966
      %8096 = vst.msk [vmem:[%s542 + $0x308] sm:$0xff] %vm7998, %v7967
      %8097 = vst.msk [vmem:[%s542 + $0x310] sm:$0xff] %vm7998, %v7968
      %8098 = vst.msk [vmem:[%s542 + $0x318] sm:$0xff] %vm7998, %v7969
      %8099 = vst.msk [vmem:[%s542 + $0x320] sm:$0xff] %vm7998, %v7970
      %8100 = vst.msk [vmem:[%s542 + $0x328] sm:$0xff] %vm7998, %v7971
      %8101 = vst.msk [vmem:[%s542 + $0x330] sm:$0xff] %vm7998, %v7972
      %8102 = vst.msk [vmem:[%s542 + $0x338] sm:$0xff] %vm7998, %v7973
      %8103 = vst.msk [vmem:[%s542 + $0x340] sm:$0xff] %vm7998, %v7974
      %8104 = vst.msk [vmem:[%s542 + $0x348] sm:$0xff] %vm7998, %v7975
      %8105 = vst.msk [vmem:[%s542 + $0x350] sm:$0xff] %vm7998, %v7976
      %8106 = vst.msk [vmem:[%s542 + $0x358] sm:$0xff] %vm7998, %v7977
      %8107 = vst.msk [vmem:[%s542 + $0x360] sm:$0xff] %vm7998, %v7978
      %8108 = vst.msk [vmem:[%s542 + $0x368] sm:$0xff] %vm7998, %v7979
      %8109 = vst.msk [vmem:[%s542 + $0x370] sm:$0xff] %vm7998, %v7980
      %8110 = vst.msk [vmem:[%s542 + $0x378] sm:$0xff] %vm7998, %v7981
      %8111 = vst.msk [vmem:[%s542 + $0x380] sm:$0xff] %vm7998, %v7982
      %8112 = vst.msk [vmem:[%s542 + $0x388] sm:$0xff] %vm7998, %v7983
      %8113 = vst.msk [vmem:[%s542 + $0x390] sm:$0xff] %vm7998, %v7984
      %8114 = vst.msk [vmem:[%s542 + $0x398] sm:$0xff] %vm7998, %v7985
      %8115 = vst.msk [vmem:[%s542 + $0x3a0] sm:$0xff] %vm7998, %v7986
      %8116 = vst.msk [vmem:[%s542 + $0x3a8] sm:$0xff] %vm7998, %v7987
      %8117 = vst.msk [vmem:[%s542 + $0x3b0] sm:$0xff] %vm7998, %v7988
      %8118 = vst.msk [vmem:[%s542 + $0x3b8] sm:$0xff] %vm7998, %v7989
      %8119 = vst.msk [vmem:[%s542 + $0x3c0] sm:$0xff] %vm7998, %v7990
      %8120 = vst.msk [vmem:[%s542 + $0x3c8] sm:$0xff] %vm7998, %v7991
      %8121 = vst.msk [vmem:[%s542 + $0x3d0] sm:$0xff] %vm7998, %v7992
      %8122 = vst.msk [vmem:[%s542 + $0x3d8] sm:$0xff] %vm7998, %v7993
      %8123 = vst.msk [vmem:[%s542 + $0x3e0] sm:$0xff] %vm7998, %v7994
      %8124 = vst.msk [vmem:[%s542 + $0x3e8] sm:$0xff] %vm7998, %v7995
      %8125 = vst.msk [vmem:[%s542 + $0x3f0] sm:$0xff] %vm7998, %v7996
      %8126 = vst.msk [vmem:[%s542 + $0x3f8] sm:$0xff] %vm7998, %v7997
      %s8127 = smul.u32 128, %s27
      %p8128 = scmp.lt.s32.totalorder %s26, 1
      %s8129 = scalar_select %p8128, %s26, 1
      %p8130 = scmp.lt.s32.totalorder %s8127, 127
      %s8131 = scalar_select %p8130, %s8127, 127
      %s8132 = smul.addr %s8129, 128
      %s8133 = sadd.s32 %s8131, %s8132
      %s8134 = smul.addr %s8133, 8
      %s8135 = scalar_lea.vmem %s11, %s8134
      // Predicated region
      $region65: #{tpu_custom_call.1} parent=63 // pred_check
        %p8136 = pneg %p324
      $region66: #{tpu_custom_call.1} parent=63 // pred_check_branch
        %8138 = sbr.rel (%p8136) target = $region68
      $region67: #{tpu_custom_call.1} parent=63 // pred_region
        %s8139 = smul.u32 128, %s27
      $region68: #{tpu_custom_call.1} parent=63 // pred_fallthru
        _
    $region64: #{tpu_custom_call.1} parent=5 // pred_fallthru
      _
    %p8140 = scmp.le.s32.totalorder 2, %s17
    // Predicated region
    $region69: #{tpu_custom_call.1} parent=5 // pred_check
      %p8141 = pneg %p8140
    $region70: #{tpu_custom_call.1} parent=5 // pred_check_branch
      %8143 = sbr.rel (%p8141) target = $region72
    $region71: #{tpu_custom_call.1} parent=5 // pred_region
      %s8144 = ssub.s32 %s17, 2
      // Predicated region
      $region73: #{tpu_custom_call.1} parent=71 // pred_check
        %p8145 = pneg %p330
      $region74: #{tpu_custom_call.1} parent=71 // pred_check_branch
        %8147 = sbr.rel (%p8145) target = $region76
      $region75: #{tpu_custom_call.1} parent=71 // pred_region
        %s8148 = smul.u32 128, %s29
        %p8149 = scmp.lt.s32.totalorder %s28, 1
        %s8150 = scalar_select %p8149, %s28, 1
        %p8151 = scmp.lt.s32.totalorder %s8148, 127
        %s8152 = scalar_select %p8151, %s8148, 127
        %s8153 = smul.addr %s8150, 128
        %s8154 = sadd.s32 %s8152, %s8153
        %s8155 = smul.addr %s8154, 8
        %s8156 = scalar_lea.vmem %s11, %s8155
      $region76: #{tpu_custom_call.1} parent=71 // pred_fallthru
        _
    $region72: #{tpu_custom_call.1} parent=5 // pred_fallthru
      _
  $region6: #{tpu_custom_call.1} parent=0 // loop_footer
    %s21 = sadd.s32 1, %s17
  $region7: #{tpu_custom_call.1} parent=0 // loop_footer_branch
    %16 = sbr.rel target = $region3
  $region8: #{tpu_custom_call.1} parent=0 // loop_exit
    _

</llo_original>
